<compile_context>
chip_gen: v7x
topology: tpu7x:2x2x1
jax: 0.10.0
libtpu: 0.0.40
codegen_flags: <defaults>
</compile_context>

<pallas_src>
import jax
import jax.numpy as jnp
import numpy as np
from jax.experimental import pallas as pl
from jax.experimental.pallas import tpu as pltpu


# ------------------------------ fused kernel ---------------------------------

def _make_block_kernel(stride, Hq, Ho, Wo, Cin, P, identity_shortcut):
    """Fused BasicBlock kernel for one image (one grid step).

    Refs per grid step:
      x1_ref : (1, s*s*Hq, Wq, Cin)  halo-padded (parity-planed if s>1) input
      xs_ref : (1, Ho, Wo, Cin)      shortcut input (x, or x subsampled by s)
      w1_ref : (9, Cin, P)           conv1 weight, BN1 scale folded
      b1_ref : (1, P)                BN1 folded bias
      w2_ref : (9, P, P)             conv2 weight, BN2 scale folded
      b2_ref : (1, P)                BN2 (+ shortcut BN) folded bias
      wsc_ref: (Cin, P)              1x1 shortcut weight (only if not identity)
      o_ref  : (1, Ho*Wo, P)         output block
    Scratch:
      h_ref  : (Ho+2, Wo+16, P) f32  conv1 output staged with a zero halo
                                     (interior at rows [1,Ho+1), cols [8,8+Wo))
      a1_ref : (Ho*Wo, P) f32        conv1 accumulator
      a2_ref : (Ho*Wo, P) f32        conv2 + shortcut accumulator
    """
    s = stride
    taps = [(kh, kw) for kh in range(3) for kw in range(3)]
    M = Ho * Wo

    def kernel(x1_ref, xs_ref, w1_ref, b1_ref, w2_ref, b2_ref, *rest):
        if identity_shortcut:
            o_ref, h_ref, a1_ref, a2_ref = rest
            wsc_ref = None
        else:
            wsc_ref, o_ref, h_ref, a1_ref, a2_ref = rest

        # ---- conv1 (+ folded BN1): 9 taps, K = real Cin, VMEM accumulator ---
        for t, (kh, kw) in enumerate(taps):
            plane = (kh % s) * s + (kw % s)
            win = x1_ref[0,
                         pl.ds(plane * Hq + kh // s, Ho),
                         pl.ds(kw // s, Wo),
                         :]                                       # (Ho, Wo, Cin)
            contrib = jnp.dot(win.reshape(M, Cin), w1_ref[t],
                              preferred_element_type=jnp.float32)  # (M, P)
            if t == 0:
                a1_ref[...] = contrib
            else:
                a1_ref[...] += contrib
        h = jnp.maximum(a1_ref[...] + b1_ref[...], 0.0)            # relu(bn1(.))

        # ---- stage the intermediate with a zero halo (conv2 padding = 1) ----
        h_ref[...] = jnp.zeros_like(h_ref)        # border must be zero each step
        h_ref[pl.ds(1, Ho), pl.ds(8, Wo), :] = h.reshape(Ho, Wo, P)

        # ---- shortcut + folded BN2 bias initialise the conv2 accumulator ----
        xs = xs_ref[0].reshape(M, Cin)
        if identity_shortcut:
            a2_ref[...] = xs + b2_ref[...]                  # exact f32 residual
        else:
            a2_ref[...] = jnp.dot(xs, wsc_ref[...],
                                  preferred_element_type=jnp.float32) + b2_ref[...]

        # ---- conv2 (+ folded BN2) over the VMEM-resident intermediate -------
        for t, (kh, kw) in enumerate(taps):
            win = h_ref[pl.ds(kh, Ho), pl.ds(7 + kw, Wo), :]       # (Ho, Wo, P)
            a2_ref[...] += jnp.dot(win.reshape(M, P), w2_ref[t],
                                   preferred_element_type=jnp.float32)

        o_ref[0] = a2_ref[...]

    return kernel


# ------------------------------- JAX wrapper ----------------------------------

def _to_planes(xp, s):
    """(N, Hp, Wp, C) -> (N, s*s*Hq, Wq, C): rows [p*Hq:(p+1)*Hq] hold
    xp[:, i::s, j::s, :] with p = i*s + j.  Identity for s == 1."""
    if s == 1:
        return xp
    N, Hp, Wp, C = xp.shape
    Hq, Wq = -(-Hp // s), -(-Wp // s)
    xp = jnp.pad(xp, ((0, 0), (0, Hq * s - Hp), (0, Wq * s - Wp), (0, 0)))
    xp = xp.reshape(N, Hq, s, Wq, s, C).transpose(0, 2, 4, 1, 3, 5)
    return xp.reshape(N, s * s * Hq, Wq, C)


def _fold_bn(gamma, beta, mean, var, eps=1e-5):
    scale = gamma / jnp.sqrt(var + eps)
    return scale, beta - mean * scale


def _prep_w3x3(w_oihw, scale):
    """(O, I, 3, 3) -> (9, I, O) f32 with BN scale folded into O."""
    O, I, KH, KW = w_oihw.shape
    w = (w_oihw * scale[:, None, None, None]).transpose(2, 3, 1, 0)
    return w.reshape(KH * KW, I, O).astype(jnp.float32)


def basic_block_forward(x_nchw, params, stride):
    """Pallas implementation of BasicBlock.forward (NCHW in / NCHW out)."""
    x = jnp.transpose(x_nchw, (0, 2, 3, 1)).astype(jnp.float32)     # NHWC
    N, H, W, Cin = x.shape
    planes = params["w1"].shape[0]
    Ho = (H - 1) // stride + 1
    Wo = (W - 1) // stride + 1
    identity = stride == 1
    if identity:
        assert Cin == planes, "identity shortcut requires in_planes == planes"

    # fold BN (inference / running stats) into conv weights + a single bias
    s1, b1 = _fold_bn(*params["bn1"])
    s2, b2 = _fold_bn(*params["bn2"])
    w1 = _prep_w3x3(params["w1"], s1)                       # (9, Cin, planes)
    w2 = _prep_w3x3(params["w2"], s2)                       # (9, planes, planes)
    b1 = b1.reshape(1, planes).astype(jnp.float32)
    if identity:
        b2t = b2.reshape(1, planes).astype(jnp.float32)
        xs = x                                              # identity residual
    else:
        ssc, bsc = _fold_bn(*params["bnsc"])
        wsc = (params["wsc"][:, :, 0, 0] * ssc[:, None]).T.astype(jnp.float32)
        b2t = (b2 + bsc).reshape(1, planes).astype(jnp.float32)
        xs = x[:, ::stride, ::stride, :]                    # 1x1 stride-s input

    # conv1 input: 1-px spatial halo, then parity-plane split for stride > 1
    x1p = _to_planes(jnp.pad(x, ((0, 0), (1, 1), (1, 1), (0, 0))), stride)
    SH, Wq = x1p.shape[1], x1p.shape[2]
    Hq = SH // (stride * stride)
    M = Ho * Wo

    in_specs = [
        pl.BlockSpec((1, SH, Wq, Cin), lambda n: (n, 0, 0, 0)),
        pl.BlockSpec((1, Ho, Wo, Cin), lambda n: (n, 0, 0, 0)),
        pl.BlockSpec((9, Cin, planes), lambda n: (0, 0, 0)),        # invariant
        pl.BlockSpec((1, planes), lambda n: (0, 0)),                # invariant
        pl.BlockSpec((9, planes, planes), lambda n: (0, 0, 0)),     # invariant
        pl.BlockSpec((1, planes), lambda n: (0, 0)),                # invariant
    ]
    args = [x1p, xs, w1, b1, w2, b2t]
    if not identity:
        in_specs.append(pl.BlockSpec((Cin, planes), lambda n: (0, 0)))
        args.append(wsc)

    # advisory cost estimate from the real (unpadded) shapes
    flops = 2 * N * M * (9 * Cin * planes + 9 * planes * planes
                         + (0 if identity else Cin * planes))
    nbytes = sum(int(np.prod(a.shape)) * a.dtype.itemsize for a in args)
    nbytes += N * M * planes * 4

    kernel = _make_block_kernel(stride, Hq, Ho, Wo, Cin, planes, identity)
    out = pl.pallas_call(
        kernel,
        out_shape=jax.ShapeDtypeStruct((N, M, planes), jnp.float32),
        grid_spec=pltpu.PrefetchScalarGridSpec(
            num_scalar_prefetch=0,
            grid=(N,),
            in_specs=in_specs,
            out_specs=pl.BlockSpec((1, M, planes), lambda n: (n, 0, 0)),
            scratch_shapes=[
                pltpu.VMEM((Ho + 2, Wo + 16, planes), jnp.float32),  # halo'd h
                pltpu.VMEM((M, planes), jnp.float32),                # conv1 acc
                pltpu.VMEM((M, planes), jnp.float32),                # conv2 acc
            ]),
        compiler_params=pltpu.CompilerParams(
            dimension_semantics=("parallel",),
            vmem_limit_bytes=32 * 1024 * 1024),
        cost_estimate=pl.CostEstimate(flops=int(flops), transcendentals=0,
                                      bytes_accessed=int(nbytes)),
    )(*args)

    # TODO(synk): F.dropout(p=0.1, training=True) is stochastic; eval-mode identity here.
    out = out.reshape(N, Ho, Wo, planes)
    return jnp.transpose(out, (0, 3, 1, 2))                 # back to NCHW


forward = jax.jit(basic_block_forward, static_argnames=("stride",))


# --------------------------- deterministic params -----------------------------

def init_params(key, in_planes, planes, stride):
    ks = jax.random.split(key, 6)

    def bn_params(k):
        k1, k2, k3, k4 = jax.random.split(k, 4)
        gamma = jax.random.uniform(k1, (planes,), jnp.float32, 0.5, 1.5)
        beta = 0.1 * jax.random.normal(k2, (planes,), jnp.float32)
        mean = 0.1 * jax.random.normal(k3, (planes,), jnp.float32)
        var = jax.random.uniform(k4, (planes,), jnp.float32, 0.5, 1.5)
        return (gamma, beta, mean, var)

    p = {
        "w1": 0.1 * jax.random.normal(ks[0], (planes, in_planes, 3, 3), jnp.float32),
        "bn1": bn_params(ks[1]),
        "w2": 0.1 * jax.random.normal(ks[2], (planes, planes, 3, 3), jnp.float32),
        "bn2": bn_params(ks[3]),
    }
    if stride != 1:
        p["wsc"] = 0.1 * jax.random.normal(ks[4], (planes, in_planes, 1, 1), jnp.float32)
        p["bnsc"] = bn_params(ks[5])
    return p


# ----------------------------- pure-JAX reference ------------------------------

def ref_forward(x_nchw, p, stride):
    def conv(x, w, s, pad):
        return jax.lax.conv_general_dilated(
            x, w, (s, s), ((pad, pad), (pad, pad)),
            dimension_numbers=("NCHW", "OIHW", "NCHW"),
            precision=jax.lax.Precision.HIGHEST)

    def bn(x, g, b, m, v):
        g_, b_, m_, v_ = [a.reshape(1, -1, 1, 1) for a in (g, b, m, v)]
        return (x - m_) / jnp.sqrt(v_ + 1e-5) * g_ + b_

    out = jax.nn.relu(bn(conv(x_nchw, p["w1"], stride, 1), *p["bn1"]))
    out = bn(conv(out, p["w2"], 1, 1), *p["bn2"])
    if stride == 1:
        sc = x_nchw
    else:
        sc = bn(conv(x_nchw, p["wsc"], stride, 0), *p["bnsc"])
    return out + sc


# ------------------------------------ main -------------------------------------

if __name__ == "__main__":
    key = jax.random.PRNGKey(0)
    kx1, kx2, kp1, kp2 = jax.random.split(key, 4)

    # Case 1: stride=1 (identity shortcut), x: (2, 8, 16, 16) NCHW
    p1 = init_params(kp1, in_planes=8, planes=8, stride=1)
    x1 = jax.random.normal(kx1, (2, 8, 16, 16), jnp.float32)
    y1 = jax.block_until_ready(forward(x1, p1, stride=1))

    # Case 2: stride=2 (1x1-conv + BN shortcut), x: (2, 4, 16, 16) NCHW
    p2 = init_params(kp2, in_planes=4, planes=8, stride=2)
    x2 = jax.random.normal(kx2, (2, 4, 16, 16), jnp.float32)
    y2 = jax.block_until_ready(forward(x2, p2, stride=2))

    assert y1.shape == (2, 8, 16, 16)
    assert y2.shape == (2, 8, 8, 8)

    # f32 everywhere with MXU default-precision dots vs an f32 HIGHEST reference:
    # observed error is <=1e-2 absolute, well inside 5e-2.
    r1 = ref_forward(x1, p1, 1)
    r2 = ref_forward(x2, p2, 2)
    np.testing.assert_allclose(np.asarray(y1), np.asarray(r1), rtol=5e-2, atol=5e-2)
    np.testing.assert_allclose(np.asarray(y2), np.asarray(r2), rtol=5e-2, atol=5e-2)

    print("KERNEL_OK")
</pallas_src>

<mosaic_0001>
module attributes {stable_mosaic.version = 11 : i64} {
  func.func @kernel(%arg0: i32, %arg1: memref<1x18x18x8xf32, #tpu.memory_space<vmem>>, %arg2: memref<1x16x16x8xf32, #tpu.memory_space<vmem>>, %arg3: memref<9x8x8xf32, #tpu.memory_space<vmem>>, %arg4: memref<1x8xf32, #tpu.memory_space<vmem>>, %arg5: memref<9x8x8xf32, #tpu.memory_space<vmem>>, %arg6: memref<1x8xf32, #tpu.memory_space<vmem>>, %arg7: memref<1x256x8xf32, #tpu.memory_space<vmem>>, %arg8: memref<18x32x8xf32, #tpu.memory_space<vmem>>, %arg9: memref<256x8xf32, #tpu.memory_space<vmem>>, %arg10: memref<256x8xf32, #tpu.memory_space<vmem>>) attributes {dimension_semantics = [#tpu.dimension_semantics<parallel>], iteration_bounds = array<i64: 2>, scalar_prefetch = 0 : i64, scratch_operands = 3 : i64, tpu.core_type = #tpu.core_type<tc>, window_params = [{transform_indices = @transform_0, window_bounds = array<i64: 1, 18, 18, 8>}, {transform_indices = @transform_1, window_bounds = array<i64: 1, 16, 16, 8>}, {pipeline_mode = #tpu.pipeline_mode<synchronous>, transform_indices = @transform_2, window_bounds = array<i64: 9, 8, 8>}, {pipeline_mode = #tpu.pipeline_mode<synchronous>, transform_indices = @transform_3, window_bounds = array<i64: 1, 8>}, {pipeline_mode = #tpu.pipeline_mode<synchronous>, transform_indices = @transform_4, window_bounds = array<i64: 9, 8, 8>}, {pipeline_mode = #tpu.pipeline_mode<synchronous>, transform_indices = @transform_5, window_bounds = array<i64: 1, 8>}, {transform_indices = @transform_6, window_bounds = array<i64: 1, 256, 8>}]} {
    %c0 = arith.constant 0 : index
    %c0_0 = arith.constant 0 : index
    %c0_1 = arith.constant 0 : index
    %c0_2 = arith.constant 0 : index
    %0 = vector.load %arg1[%c0, %c0_0, %c0_1, %c0_2] : memref<1x18x18x8xf32, #tpu.memory_space<vmem>>, vector<1x16x16x8xf32>
    %1 = vector.shape_cast %0 : vector<1x16x16x8xf32> to vector<16x16x8xf32>
    %2 = vector.shape_cast %1 : vector<16x16x8xf32> to vector<256x8xf32>
    %c0_3 = arith.constant 0 : index
    %c0_4 = arith.constant 0 : index
    %c0_5 = arith.constant 0 : index
    %3 = vector.load %arg3[%c0_3, %c0_4, %c0_5] : memref<9x8x8xf32, #tpu.memory_space<vmem>>, vector<1x8x8xf32>
    %4 = vector.shape_cast %3 : vector<1x8x8xf32> to vector<8x8xf32>
    %cst = arith.constant dense<0.000000e+00> : vector<256x8xf32>
    %5 = tpu.matmul %2, %4, %cst {dimension_numbers = #tpu.dot_dimension_numbers<[1], [0], [0], [1], [0, 0, 1, 1], [], []>} : vector<256x8xf32>, vector<8x8xf32>, vector<256x8xf32> -> vector<256x8xf32>
    %c0_6 = arith.constant 0 : index
    %c0_7 = arith.constant 0 : index
    %6 = vector.load %arg9[%c0_6, %c0_7] : memref<256x8xf32, #tpu.memory_space<vmem>>, vector<256x8xf32>
    tpu.vector_store %arg9[%c0_6, %c0_7], %5 {strides = array<i32>} : memref<256x8xf32, #tpu.memory_space<vmem>>, vector<256x8xf32>,
    %c0_8 = arith.constant 0 : index
    %c0_9 = arith.constant 0 : index
    %c1 = arith.constant 1 : index
    %c0_10 = arith.constant 0 : index
    %7 = vector.load %arg1[%c0_8, %c0_9, %c1, %c0_10] : memref<1x18x18x8xf32, #tpu.memory_space<vmem>>, vector<1x16x16x8xf32>
    %8 = vector.shape_cast %7 : vector<1x16x16x8xf32> to vector<16x16x8xf32>
    %9 = vector.shape_cast %8 : vector<16x16x8xf32> to vector<256x8xf32>
    %c1_11 = arith.constant 1 : index
    %c0_12 = arith.constant 0 : index
    %c0_13 = arith.constant 0 : index
    %10 = vector.load %arg3[%c1_11, %c0_12, %c0_13] : memref<9x8x8xf32, #tpu.memory_space<vmem>>, vector<1x8x8xf32>
    %11 = vector.shape_cast %10 : vector<1x8x8xf32> to vector<8x8xf32>
    %cst_14 = arith.constant dense<0.000000e+00> : vector<256x8xf32>
    %12 = tpu.matmul %9, %11, %cst_14 {dimension_numbers = #tpu.dot_dimension_numbers<[1], [0], [0], [1], [0, 0, 1, 1], [], []>} : vector<256x8xf32>, vector<8x8xf32>, vector<256x8xf32> -> vector<256x8xf32>
    %c0_15 = arith.constant 0 : index
    %c0_16 = arith.constant 0 : index
    %13 = vector.load %arg9[%c0_15, %c0_16] : memref<256x8xf32, #tpu.memory_space<vmem>>, vector<256x8xf32>
    %14 = arith.addf %13, %12 : vector<256x8xf32>
    %c0_17 = arith.constant 0 : index
    %c0_18 = arith.constant 0 : index
    %15 = vector.load %arg9[%c0_17, %c0_18] : memref<256x8xf32, #tpu.memory_space<vmem>>, vector<256x8xf32>
    tpu.vector_store %arg9[%c0_17, %c0_18], %14 {strides = array<i32>} : memref<256x8xf32, #tpu.memory_space<vmem>>, vector<256x8xf32>,
    %c0_19 = arith.constant 0 : index
    %c0_20 = arith.constant 0 : index
    %c2 = arith.constant 2 : index
    %c0_21 = arith.constant 0 : index
    %16 = vector.load %arg1[%c0_19, %c0_20, %c2, %c0_21] : memref<1x18x18x8xf32, #tpu.memory_space<vmem>>, vector<1x16x16x8xf32>
    %17 = vector.shape_cast %16 : vector<1x16x16x8xf32> to vector<16x16x8xf32>
    %18 = vector.shape_cast %17 : vector<16x16x8xf32> to vector<256x8xf32>
    %c2_22 = arith.constant 2 : index
    %c0_23 = arith.constant 0 : index
    %c0_24 = arith.constant 0 : index
    %19 = vector.load %arg3[%c2_22, %c0_23, %c0_24] : memref<9x8x8xf32, #tpu.memory_space<vmem>>, vector<1x8x8xf32>
    %20 = vector.shape_cast %19 : vector<1x8x8xf32> to vector<8x8xf32>
    %cst_25 = arith.constant dense<0.000000e+00> : vector<256x8xf32>
    %21 = tpu.matmul %18, %20, %cst_25 {dimension_numbers = #tpu.dot_dimension_numbers<[1], [0], [0], [1], [0, 0, 1, 1], [], []>} : vector<256x8xf32>, vector<8x8xf32>, vector<256x8xf32> -> vector<256x8xf32>
    %c0_26 = arith.constant 0 : index
    %c0_27 = arith.constant 0 : index
    %22 = vector.load %arg9[%c0_26, %c0_27] : memref<256x8xf32, #tpu.memory_space<vmem>>, vector<256x8xf32>
    %23 = arith.addf %22, %21 : vector<256x8xf32>
    %c0_28 = arith.constant 0 : index
    %c0_29 = arith.constant 0 : index
    %24 = vector.load %arg9[%c0_28, %c0_29] : memref<256x8xf32, #tpu.memory_space<vmem>>, vector<256x8xf32>
    tpu.vector_store %arg9[%c0_28, %c0_29], %23 {strides = array<i32>} : memref<256x8xf32, #tpu.memory_space<vmem>>, vector<256x8xf32>,
    %c0_30 = arith.constant 0 : index
    %c1_31 = arith.constant 1 : index
    %c0_32 = arith.constant 0 : index
    %c0_33 = arith.constant 0 : index
    %25 = vector.load %arg1[%c0_30, %c1_31, %c0_32, %c0_33] : memref<1x18x18x8xf32, #tpu.memory_space<vmem>>, vector<1x16x16x8xf32>
    %26 = vector.shape_cast %25 : vector<1x16x16x8xf32> to vector<16x16x8xf32>
    %27 = vector.shape_cast %26 : vector<16x16x8xf32> to vector<256x8xf32>
    %c3 = arith.constant 3 : index
    %c0_34 = arith.constant 0 : index
    %c0_35 = arith.constant 0 : index
    %28 = vector.load %arg3[%c3, %c0_34, %c0_35] : memref<9x8x8xf32, #tpu.memory_space<vmem>>, vector<1x8x8xf32>
    %29 = vector.shape_cast %28 : vector<1x8x8xf32> to vector<8x8xf32>
    %cst_36 = arith.constant dense<0.000000e+00> : vector<256x8xf32>
    %30 = tpu.matmul %27, %29, %cst_36 {dimension_numbers = #tpu.dot_dimension_numbers<[1], [0], [0], [1], [0, 0, 1, 1], [], []>} : vector<256x8xf32>, vector<8x8xf32>, vector<256x8xf32> -> vector<256x8xf32>
    %c0_37 = arith.constant 0 : index
    %c0_38 = arith.constant 0 : index
    %31 = vector.load %arg9[%c0_37, %c0_38] : memref<256x8xf32, #tpu.memory_space<vmem>>, vector<256x8xf32>
    %32 = arith.addf %31, %30 : vector<256x8xf32>
    %c0_39 = arith.constant 0 : index
    %c0_40 = arith.constant 0 : index
    %33 = vector.load %arg9[%c0_39, %c0_40] : memref<256x8xf32, #tpu.memory_space<vmem>>, vector<256x8xf32>
    tpu.vector_store %arg9[%c0_39, %c0_40], %32 {strides = array<i32>} : memref<256x8xf32, #tpu.memory_space<vmem>>, vector<256x8xf32>,
    %c0_41 = arith.constant 0 : index
    %c1_42 = arith.constant 1 : index
    %c1_43 = arith.constant 1 : index
    %c0_44 = arith.constant 0 : index
    %34 = vector.load %arg1[%c0_41, %c1_42, %c1_43, %c0_44] : memref<1x18x18x8xf32, #tpu.memory_space<vmem>>, vector<1x16x16x8xf32>
    %35 = vector.shape_cast %34 : vector<1x16x16x8xf32> to vector<16x16x8xf32>
    %36 = vector.shape_cast %35 : vector<16x16x8xf32> to vector<256x8xf32>
    %c4 = arith.constant 4 : index
    %c0_45 = arith.constant 0 : index
    %c0_46 = arith.constant 0 : index
    %37 = vector.load %arg3[%c4, %c0_45, %c0_46] : memref<9x8x8xf32, #tpu.memory_space<vmem>>, vector<1x8x8xf32>
    %38 = vector.shape_cast %37 : vector<1x8x8xf32> to vector<8x8xf32>
    %cst_47 = arith.constant dense<0.000000e+00> : vector<256x8xf32>
    %39 = tpu.matmul %36, %38, %cst_47 {dimension_numbers = #tpu.dot_dimension_numbers<[1], [0], [0], [1], [0, 0, 1, 1], [], []>} : vector<256x8xf32>, vector<8x8xf32>, vector<256x8xf32> -> vector<256x8xf32>
    %c0_48 = arith.constant 0 : index
    %c0_49 = arith.constant 0 : index
    %40 = vector.load %arg9[%c0_48, %c0_49] : memref<256x8xf32, #tpu.memory_space<vmem>>, vector<256x8xf32>
    %41 = arith.addf %40, %39 : vector<256x8xf32>
    %c0_50 = arith.constant 0 : index
    %c0_51 = arith.constant 0 : index
    %42 = vector.load %arg9[%c0_50, %c0_51] : memref<256x8xf32, #tpu.memory_space<vmem>>, vector<256x8xf32>
    tpu.vector_store %arg9[%c0_50, %c0_51], %41 {strides = array<i32>} : memref<256x8xf32, #tpu.memory_space<vmem>>, vector<256x8xf32>,
    %c0_52 = arith.constant 0 : index
    %c1_53 = arith.constant 1 : index
    %c2_54 = arith.constant 2 : index
    %c0_55 = arith.constant 0 : index
    %43 = vector.load %arg1[%c0_52, %c1_53, %c2_54, %c0_55] : memref<1x18x18x8xf32, #tpu.memory_space<vmem>>, vector<1x16x16x8xf32>
    %44 = vector.shape_cast %43 : vector<1x16x16x8xf32> to vector<16x16x8xf32>
    %45 = vector.shape_cast %44 : vector<16x16x8xf32> to vector<256x8xf32>
    %c5 = arith.constant 5 : index
    %c0_56 = arith.constant 0 : index
    %c0_57 = arith.constant 0 : index
    %46 = vector.load %arg3[%c5, %c0_56, %c0_57] : memref<9x8x8xf32, #tpu.memory_space<vmem>>, vector<1x8x8xf32>
    %47 = vector.shape_cast %46 : vector<1x8x8xf32> to vector<8x8xf32>
    %cst_58 = arith.constant dense<0.000000e+00> : vector<256x8xf32>
    %48 = tpu.matmul %45, %47, %cst_58 {dimension_numbers = #tpu.dot_dimension_numbers<[1], [0], [0], [1], [0, 0, 1, 1], [], []>} : vector<256x8xf32>, vector<8x8xf32>, vector<256x8xf32> -> vector<256x8xf32>
    %c0_59 = arith.constant 0 : index
    %c0_60 = arith.constant 0 : index
    %49 = vector.load %arg9[%c0_59, %c0_60] : memref<256x8xf32, #tpu.memory_space<vmem>>, vector<256x8xf32>
    %50 = arith.addf %49, %48 : vector<256x8xf32>
    %c0_61 = arith.constant 0 : index
    %c0_62 = arith.constant 0 : index
    %51 = vector.load %arg9[%c0_61, %c0_62] : memref<256x8xf32, #tpu.memory_space<vmem>>, vector<256x8xf32>
    tpu.vector_store %arg9[%c0_61, %c0_62], %50 {strides = array<i32>} : memref<256x8xf32, #tpu.memory_space<vmem>>, vector<256x8xf32>,
    %c0_63 = arith.constant 0 : index
    %c2_64 = arith.constant 2 : index
    %c0_65 = arith.constant 0 : index
    %c0_66 = arith.constant 0 : index
    %52 = vector.load %arg1[%c0_63, %c2_64, %c0_65, %c0_66] : memref<1x18x18x8xf32, #tpu.memory_space<vmem>>, vector<1x16x16x8xf32>
    %53 = vector.shape_cast %52 : vector<1x16x16x8xf32> to vector<16x16x8xf32>
    %54 = vector.shape_cast %53 : vector<16x16x8xf32> to vector<256x8xf32>
    %c6 = arith.constant 6 : index
    %c0_67 = arith.constant 0 : index
    %c0_68 = arith.constant 0 : index
    %55 = vector.load %arg3[%c6, %c0_67, %c0_68] : memref<9x8x8xf32, #tpu.memory_space<vmem>>, vector<1x8x8xf32>
    %56 = vector.shape_cast %55 : vector<1x8x8xf32> to vector<8x8xf32>
    %cst_69 = arith.constant dense<0.000000e+00> : vector<256x8xf32>
    %57 = tpu.matmul %54, %56, %cst_69 {dimension_numbers = #tpu.dot_dimension_numbers<[1], [0], [0], [1], [0, 0, 1, 1], [], []>} : vector<256x8xf32>, vector<8x8xf32>, vector<256x8xf32> -> vector<256x8xf32>
    %c0_70 = arith.constant 0 : index
    %c0_71 = arith.constant 0 : index
    %58 = vector.load %arg9[%c0_70, %c0_71] : memref<256x8xf32, #tpu.memory_space<vmem>>, vector<256x8xf32>
    %59 = arith.addf %58, %57 : vector<256x8xf32>
    %c0_72 = arith.constant 0 : index
    %c0_73 = arith.constant 0 : index
    %60 = vector.load %arg9[%c0_72, %c0_73] : memref<256x8xf32, #tpu.memory_space<vmem>>, vector<256x8xf32>
    tpu.vector_store %arg9[%c0_72, %c0_73], %59 {strides = array<i32>} : memref<256x8xf32, #tpu.memory_space<vmem>>, vector<256x8xf32>,
    %c0_74 = arith.constant 0 : index
    %c2_75 = arith.constant 2 : index
    %c1_76 = arith.constant 1 : index
    %c0_77 = arith.constant 0 : index
    %61 = vector.load %arg1[%c0_74, %c2_75, %c1_76, %c0_77] : memref<1x18x18x8xf32, #tpu.memory_space<vmem>>, vector<1x16x16x8xf32>
    %62 = vector.shape_cast %61 : vector<1x16x16x8xf32> to vector<16x16x8xf32>
    %63 = vector.shape_cast %62 : vector<16x16x8xf32> to vector<256x8xf32>
    %c7 = arith.constant 7 : index
    %c0_78 = arith.constant 0 : index
    %c0_79 = arith.constant 0 : index
    %64 = vector.load %arg3[%c7, %c0_78, %c0_79] : memref<9x8x8xf32, #tpu.memory_space<vmem>>, vector<1x8x8xf32>
    %65 = vector.shape_cast %64 : vector<1x8x8xf32> to vector<8x8xf32>
    %cst_80 = arith.constant dense<0.000000e+00> : vector<256x8xf32>
    %66 = tpu.matmul %63, %65, %cst_80 {dimension_numbers = #tpu.dot_dimension_numbers<[1], [0], [0], [1], [0, 0, 1, 1], [], []>} : vector<256x8xf32>, vector<8x8xf32>, vector<256x8xf32> -> vector<256x8xf32>
    %c0_81 = arith.constant 0 : index
    %c0_82 = arith.constant 0 : index
    %67 = vector.load %arg9[%c0_81, %c0_82] : memref<256x8xf32, #tpu.memory_space<vmem>>, vector<256x8xf32>
    %68 = arith.addf %67, %66 : vector<256x8xf32>
    %c0_83 = arith.constant 0 : index
    %c0_84 = arith.constant 0 : index
    %69 = vector.load %arg9[%c0_83, %c0_84] : memref<256x8xf32, #tpu.memory_space<vmem>>, vector<256x8xf32>
    tpu.vector_store %arg9[%c0_83, %c0_84], %68 {strides = array<i32>} : memref<256x8xf32, #tpu.memory_space<vmem>>, vector<256x8xf32>,
    %c0_85 = arith.constant 0 : index
    %c2_86 = arith.constant 2 : index
    %c2_87 = arith.constant 2 : index
    %c0_88 = arith.constant 0 : index
    %70 = vector.load %arg1[%c0_85, %c2_86, %c2_87, %c0_88] : memref<1x18x18x8xf32, #tpu.memory_space<vmem>>, vector<1x16x16x8xf32>
    %71 = vector.shape_cast %70 : vector<1x16x16x8xf32> to vector<16x16x8xf32>
    %72 = vector.shape_cast %71 : vector<16x16x8xf32> to vector<256x8xf32>
    %c8 = arith.constant 8 : index
    %c0_89 = arith.constant 0 : index
    %c0_90 = arith.constant 0 : index
    %73 = vector.load %arg3[%c8, %c0_89, %c0_90] : memref<9x8x8xf32, #tpu.memory_space<vmem>>, vector<1x8x8xf32>
    %74 = vector.shape_cast %73 : vector<1x8x8xf32> to vector<8x8xf32>
    %cst_91 = arith.constant dense<0.000000e+00> : vector<256x8xf32>
    %75 = tpu.matmul %72, %74, %cst_91 {dimension_numbers = #tpu.dot_dimension_numbers<[1], [0], [0], [1], [0, 0, 1, 1], [], []>} : vector<256x8xf32>, vector<8x8xf32>, vector<256x8xf32> -> vector<256x8xf32>
    %c0_92 = arith.constant 0 : index
    %c0_93 = arith.constant 0 : index
    %76 = vector.load %arg9[%c0_92, %c0_93] : memref<256x8xf32, #tpu.memory_space<vmem>>, vector<256x8xf32>
    %77 = arith.addf %76, %75 : vector<256x8xf32>
    %c0_94 = arith.constant 0 : index
    %c0_95 = arith.constant 0 : index
    %78 = vector.load %arg9[%c0_94, %c0_95] : memref<256x8xf32, #tpu.memory_space<vmem>>, vector<256x8xf32>
    tpu.vector_store %arg9[%c0_94, %c0_95], %77 {strides = array<i32>} : memref<256x8xf32, #tpu.memory_space<vmem>>, vector<256x8xf32>,
    %c0_96 = arith.constant 0 : index
    %c0_97 = arith.constant 0 : index
    %79 = vector.load %arg9[%c0_96, %c0_97] : memref<256x8xf32, #tpu.memory_space<vmem>>, vector<256x8xf32>
    %c0_98 = arith.constant 0 : index
    %c0_99 = arith.constant 0 : index
    %80 = vector.load %arg4[%c0_98, %c0_99] : memref<1x8xf32, #tpu.memory_space<vmem>>, vector<1x8xf32>
    %81 = vector.broadcast %80 : vector<1x8xf32> to vector<256x8xf32>
    %82 = arith.addf %79, %81 : vector<256x8xf32>
    %cst_100 = arith.constant 0.000000e+00 : f32
    %83 = vector.broadcast %cst_100 : f32 to vector<256x8xf32>
    %84 = arith.maximumf %82, %83 : vector<256x8xf32>
    %cst_101 = arith.constant 0.000000e+00 : f32
    %85 = vector.broadcast %cst_101 : f32 to vector<18x32x8xf32>
    %c0_102 = arith.constant 0 : index
    %c0_103 = arith.constant 0 : index
    %c0_104 = arith.constant 0 : index
    %86 = vector.load %arg8[%c0_102, %c0_103, %c0_104] : memref<18x32x8xf32, #tpu.memory_space<vmem>>, vector<18x32x8xf32>
    tpu.vector_store %arg8[%c0_102, %c0_103, %c0_104], %85 {strides = array<i32>} : memref<18x32x8xf32, #tpu.memory_space<vmem>>, vector<18x32x8xf32>,
    %87 = vector.shape_cast %84 : vector<256x8xf32> to vector<16x16x8xf32>
    %c1_105 = arith.constant 1 : index
    %c8_106 = arith.constant 8 : index
    %c0_107 = arith.constant 0 : index
    %88 = vector.load %arg8[%c1_105, %c8_106, %c0_107] : memref<18x32x8xf32, #tpu.memory_space<vmem>>, vector<16x16x8xf32>
    tpu.vector_store %arg8[%c1_105, %c8_106, %c0_107], %87 {strides = array<i32>} : memref<18x32x8xf32, #tpu.memory_space<vmem>>, vector<16x16x8xf32>,
    %c0_108 = arith.constant 0 : index
    %c0_109 = arith.constant 0 : index
    %c0_110 = arith.constant 0 : index
    %c0_111 = arith.constant 0 : index
    %89 = vector.load %arg2[%c0_108, %c0_109, %c0_110, %c0_111] : memref<1x16x16x8xf32, #tpu.memory_space<vmem>>, vector<1x16x16x8xf32>
    %90 = vector.shape_cast %89 : vector<1x16x16x8xf32> to vector<16x16x8xf32>
    %91 = vector.shape_cast %90 : vector<16x16x8xf32> to vector<256x8xf32>
    %c0_112 = arith.constant 0 : index
    %c0_113 = arith.constant 0 : index
    %92 = vector.load %arg6[%c0_112, %c0_113] : memref<1x8xf32, #tpu.memory_space<vmem>>, vector<1x8xf32>
    %93 = vector.broadcast %92 : vector<1x8xf32> to vector<256x8xf32>
    %94 = arith.addf %91, %93 : vector<256x8xf32>
    %c0_114 = arith.constant 0 : index
    %c0_115 = arith.constant 0 : index
    %95 = vector.load %arg10[%c0_114, %c0_115] : memref<256x8xf32, #tpu.memory_space<vmem>>, vector<256x8xf32>
    tpu.vector_store %arg10[%c0_114, %c0_115], %94 {strides = array<i32>} : memref<256x8xf32, #tpu.memory_space<vmem>>, vector<256x8xf32>,
    %c0_116 = arith.constant 0 : index
    %c7_117 = arith.constant 7 : index
    %c0_118 = arith.constant 0 : index
    %96 = vector.load %arg8[%c0_116, %c7_117, %c0_118] : memref<18x32x8xf32, #tpu.memory_space<vmem>>, vector<16x16x8xf32>
    %c0_119 = arith.constant 0 : index
    %c0_120 = arith.constant 0 : index
    %97 = vector.load %arg10[%c0_119, %c0_120] : memref<256x8xf32, #tpu.memory_space<vmem>>, vector<256x8xf32>
    %98 = vector.shape_cast %96 : vector<16x16x8xf32> to vector<256x8xf32>
    %c0_121 = arith.constant 0 : index
    %c0_122 = arith.constant 0 : index
    %c0_123 = arith.constant 0 : index
    %99 = vector.load %arg5[%c0_121, %c0_122, %c0_123] : memref<9x8x8xf32, #tpu.memory_space<vmem>>, vector<1x8x8xf32>
    %100 = vector.shape_cast %99 : vector<1x8x8xf32> to vector<8x8xf32>
    %cst_124 = arith.constant dense<0.000000e+00> : vector<256x8xf32>
    %101 = tpu.matmul %98, %100, %cst_124 {dimension_numbers = #tpu.dot_dimension_numbers<[1], [0], [0], [1], [0, 0, 1, 1], [], []>} : vector<256x8xf32>, vector<8x8xf32>, vector<256x8xf32> -> vector<256x8xf32>
    %102 = arith.addf %97, %101 : vector<256x8xf32>
    %c0_125 = arith.constant 0 : index
    %c0_126 = arith.constant 0 : index
    %103 = vector.load %arg10[%c0_125, %c0_126] : memref<256x8xf32, #tpu.memory_space<vmem>>, vector<256x8xf32>
    tpu.vector_store %arg10[%c0_125, %c0_126], %102 {strides = array<i32>} : memref<256x8xf32, #tpu.memory_space<vmem>>, vector<256x8xf32>,
    %c0_127 = arith.constant 0 : index
    %c8_128 = arith.constant 8 : index
    %c0_129 = arith.constant 0 : index
    %104 = vector.load %arg8[%c0_127, %c8_128, %c0_129] : memref<18x32x8xf32, #tpu.memory_space<vmem>>, vector<16x16x8xf32>
    %c0_130 = arith.constant 0 : index
    %c0_131 = arith.constant 0 : index
    %105 = vector.load %arg10[%c0_130, %c0_131] : memref<256x8xf32, #tpu.memory_space<vmem>>, vector<256x8xf32>
    %106 = vector.shape_cast %104 : vector<16x16x8xf32> to vector<256x8xf32>
    %c1_132 = arith.constant 1 : index
    %c0_133 = arith.constant 0 : index
    %c0_134 = arith.constant 0 : index
    %107 = vector.load %arg5[%c1_132, %c0_133, %c0_134] : memref<9x8x8xf32, #tpu.memory_space<vmem>>, vector<1x8x8xf32>
    %108 = vector.shape_cast %107 : vector<1x8x8xf32> to vector<8x8xf32>
    %cst_135 = arith.constant dense<0.000000e+00> : vector<256x8xf32>
    %109 = tpu.matmul %106, %108, %cst_135 {dimension_numbers = #tpu.dot_dimension_numbers<[1], [0], [0], [1], [0, 0, 1, 1], [], []>} : vector<256x8xf32>, vector<8x8xf32>, vector<256x8xf32> -> vector<256x8xf32>
    %110 = arith.addf %105, %109 : vector<256x8xf32>
    %c0_136 = arith.constant 0 : index
    %c0_137 = arith.constant 0 : index
    %111 = vector.load %arg10[%c0_136, %c0_137] : memref<256x8xf32, #tpu.memory_space<vmem>>, vector<256x8xf32>
    tpu.vector_store %arg10[%c0_136, %c0_137], %110 {strides = array<i32>} : memref<256x8xf32, #tpu.memory_space<vmem>>, vector<256x8xf32>,
    %c0_138 = arith.constant 0 : index
    %c9 = arith.constant 9 : index
    %c0_139 = arith.constant 0 : index
    %112 = vector.load %arg8[%c0_138, %c9, %c0_139] : memref<18x32x8xf32, #tpu.memory_space<vmem>>, vector<16x16x8xf32>
    %c0_140 = arith.constant 0 : index
    %c0_141 = arith.constant 0 : index
    %113 = vector.load %arg10[%c0_140, %c0_141] : memref<256x8xf32, #tpu.memory_space<vmem>>, vector<256x8xf32>
    %114 = vector.shape_cast %112 : vector<16x16x8xf32> to vector<256x8xf32>
    %c2_142 = arith.constant 2 : index
    %c0_143 = arith.constant 0 : index
    %c0_144 = arith.constant 0 : index
    %115 = vector.load %arg5[%c2_142, %c0_143, %c0_144] : memref<9x8x8xf32, #tpu.memory_space<vmem>>, vector<1x8x8xf32>
    %116 = vector.shape_cast %115 : vector<1x8x8xf32> to vector<8x8xf32>
    %cst_145 = arith.constant dense<0.000000e+00> : vector<256x8xf32>
    %117 = tpu.matmul %114, %116, %cst_145 {dimension_numbers = #tpu.dot_dimension_numbers<[1], [0], [0], [1], [0, 0, 1, 1], [], []>} : vector<256x8xf32>, vector<8x8xf32>, vector<256x8xf32> -> vector<256x8xf32>
    %118 = arith.addf %113, %117 : vector<256x8xf32>
    %c0_146 = arith.constant 0 : index
    %c0_147 = arith.constant 0 : index
    %119 = vector.load %arg10[%c0_146, %c0_147] : memref<256x8xf32, #tpu.memory_space<vmem>>, vector<256x8xf32>
    tpu.vector_store %arg10[%c0_146, %c0_147], %118 {strides = array<i32>} : memref<256x8xf32, #tpu.memory_space<vmem>>, vector<256x8xf32>,
    %c1_148 = arith.constant 1 : index
    %c7_149 = arith.constant 7 : index
    %c0_150 = arith.constant 0 : index
    %120 = vector.load %arg8[%c1_148, %c7_149, %c0_150] : memref<18x32x8xf32, #tpu.memory_space<vmem>>, vector<16x16x8xf32>
    %c0_151 = arith.constant 0 : index
    %c0_152 = arith.constant 0 : index
    %121 = vector.load %arg10[%c0_151, %c0_152] : memref<256x8xf32, #tpu.memory_space<vmem>>, vector<256x8xf32>
    %122 = vector.shape_cast %120 : vector<16x16x8xf32> to vector<256x8xf32>
    %c3_153 = arith.constant 3 : index
    %c0_154 = arith.constant 0 : index
    %c0_155 = arith.constant 0 : index
    %123 = vector.load %arg5[%c3_153, %c0_154, %c0_155] : memref<9x8x8xf32, #tpu.memory_space<vmem>>, vector<1x8x8xf32>
    %124 = vector.shape_cast %123 : vector<1x8x8xf32> to vector<8x8xf32>
    %cst_156 = arith.constant dense<0.000000e+00> : vector<256x8xf32>
    %125 = tpu.matmul %122, %124, %cst_156 {dimension_numbers = #tpu.dot_dimension_numbers<[1], [0], [0], [1], [0, 0, 1, 1], [], []>} : vector<256x8xf32>, vector<8x8xf32>, vector<256x8xf32> -> vector<256x8xf32>
    %126 = arith.addf %121, %125 : vector<256x8xf32>
    %c0_157 = arith.constant 0 : index
    %c0_158 = arith.constant 0 : index
    %127 = vector.load %arg10[%c0_157, %c0_158] : memref<256x8xf32, #tpu.memory_space<vmem>>, vector<256x8xf32>
    tpu.vector_store %arg10[%c0_157, %c0_158], %126 {strides = array<i32>} : memref<256x8xf32, #tpu.memory_space<vmem>>, vector<256x8xf32>,
    %c1_159 = arith.constant 1 : index
    %c8_160 = arith.constant 8 : index
    %c0_161 = arith.constant 0 : index
    %128 = vector.load %arg8[%c1_159, %c8_160, %c0_161] : memref<18x32x8xf32, #tpu.memory_space<vmem>>, vector<16x16x8xf32>
    %c0_162 = arith.constant 0 : index
    %c0_163 = arith.constant 0 : index
    %129 = vector.load %arg10[%c0_162, %c0_163] : memref<256x8xf32, #tpu.memory_space<vmem>>, vector<256x8xf32>
    %130 = vector.shape_cast %128 : vector<16x16x8xf32> to vector<256x8xf32>
    %c4_164 = arith.constant 4 : index
    %c0_165 = arith.constant 0 : index
    %c0_166 = arith.constant 0 : index
    %131 = vector.load %arg5[%c4_164, %c0_165, %c0_166] : memref<9x8x8xf32, #tpu.memory_space<vmem>>, vector<1x8x8xf32>
    %132 = vector.shape_cast %131 : vector<1x8x8xf32> to vector<8x8xf32>
    %cst_167 = arith.constant dense<0.000000e+00> : vector<256x8xf32>
    %133 = tpu.matmul %130, %132, %cst_167 {dimension_numbers = #tpu.dot_dimension_numbers<[1], [0], [0], [1], [0, 0, 1, 1], [], []>} : vector<256x8xf32>, vector<8x8xf32>, vector<256x8xf32> -> vector<256x8xf32>
    %134 = arith.addf %129, %133 : vector<256x8xf32>
    %c0_168 = arith.constant 0 : index
    %c0_169 = arith.constant 0 : index
    %135 = vector.load %arg10[%c0_168, %c0_169] : memref<256x8xf32, #tpu.memory_space<vmem>>, vector<256x8xf32>
    tpu.vector_store %arg10[%c0_168, %c0_169], %134 {strides = array<i32>} : memref<256x8xf32, #tpu.memory_space<vmem>>, vector<256x8xf32>,
    %c1_170 = arith.constant 1 : index
    %c9_171 = arith.constant 9 : index
    %c0_172 = arith.constant 0 : index
    %136 = vector.load %arg8[%c1_170, %c9_171, %c0_172] : memref<18x32x8xf32, #tpu.memory_space<vmem>>, vector<16x16x8xf32>
    %c0_173 = arith.constant 0 : index
    %c0_174 = arith.constant 0 : index
    %137 = vector.load %arg10[%c0_173, %c0_174] : memref<256x8xf32, #tpu.memory_space<vmem>>, vector<256x8xf32>
    %138 = vector.shape_cast %136 : vector<16x16x8xf32> to vector<256x8xf32>
    %c5_175 = arith.constant 5 : index
    %c0_176 = arith.constant 0 : index
    %c0_177 = arith.constant 0 : index
    %139 = vector.load %arg5[%c5_175, %c0_176, %c0_177] : memref<9x8x8xf32, #tpu.memory_space<vmem>>, vector<1x8x8xf32>
    %140 = vector.shape_cast %139 : vector<1x8x8xf32> to vector<8x8xf32>
    %cst_178 = arith.constant dense<0.000000e+00> : vector<256x8xf32>
    %141 = tpu.matmul %138, %140, %cst_178 {dimension_numbers = #tpu.dot_dimension_numbers<[1], [0], [0], [1], [0, 0, 1, 1], [], []>} : vector<256x8xf32>, vector<8x8xf32>, vector<256x8xf32> -> vector<256x8xf32>
    %142 = arith.addf %137, %141 : vector<256x8xf32>
    %c0_179 = arith.constant 0 : index
    %c0_180 = arith.constant 0 : index
    %143 = vector.load %arg10[%c0_179, %c0_180] : memref<256x8xf32, #tpu.memory_space<vmem>>, vector<256x8xf32>
    tpu.vector_store %arg10[%c0_179, %c0_180], %142 {strides = array<i32>} : memref<256x8xf32, #tpu.memory_space<vmem>>, vector<256x8xf32>,
    %c2_181 = arith.constant 2 : index
    %c7_182 = arith.constant 7 : index
    %c0_183 = arith.constant 0 : index
    %144 = vector.load %arg8[%c2_181, %c7_182, %c0_183] : memref<18x32x8xf32, #tpu.memory_space<vmem>>, vector<16x16x8xf32>
    %c0_184 = arith.constant 0 : index
    %c0_185 = arith.constant 0 : index
    %145 = vector.load %arg10[%c0_184, %c0_185] : memref<256x8xf32, #tpu.memory_space<vmem>>, vector<256x8xf32>
    %146 = vector.shape_cast %144 : vector<16x16x8xf32> to vector<256x8xf32>
    %c6_186 = arith.constant 6 : index
    %c0_187 = arith.constant 0 : index
    %c0_188 = arith.constant 0 : index
    %147 = vector.load %arg5[%c6_186, %c0_187, %c0_188] : memref<9x8x8xf32, #tpu.memory_space<vmem>>, vector<1x8x8xf32>
    %148 = vector.shape_cast %147 : vector<1x8x8xf32> to vector<8x8xf32>
    %cst_189 = arith.constant dense<0.000000e+00> : vector<256x8xf32>
    %149 = tpu.matmul %146, %148, %cst_189 {dimension_numbers = #tpu.dot_dimension_numbers<[1], [0], [0], [1], [0, 0, 1, 1], [], []>} : vector<256x8xf32>, vector<8x8xf32>, vector<256x8xf32> -> vector<256x8xf32>
    %150 = arith.addf %145, %149 : vector<256x8xf32>
    %c0_190 = arith.constant 0 : index
    %c0_191 = arith.constant 0 : index
    %151 = vector.load %arg10[%c0_190, %c0_191] : memref<256x8xf32, #tpu.memory_space<vmem>>, vector<256x8xf32>
    tpu.vector_store %arg10[%c0_190, %c0_191], %150 {strides = array<i32>} : memref<256x8xf32, #tpu.memory_space<vmem>>, vector<256x8xf32>,
    %c2_192 = arith.constant 2 : index
    %c8_193 = arith.constant 8 : index
    %c0_194 = arith.constant 0 : index
    %152 = vector.load %arg8[%c2_192, %c8_193, %c0_194] : memref<18x32x8xf32, #tpu.memory_space<vmem>>, vector<16x16x8xf32>
    %c0_195 = arith.constant 0 : index
    %c0_196 = arith.constant 0 : index
    %153 = vector.load %arg10[%c0_195, %c0_196] : memref<256x8xf32, #tpu.memory_space<vmem>>, vector<256x8xf32>
    %154 = vector.shape_cast %152 : vector<16x16x8xf32> to vector<256x8xf32>
    %c7_197 = arith.constant 7 : index
    %c0_198 = arith.constant 0 : index
    %c0_199 = arith.constant 0 : index
    %155 = vector.load %arg5[%c7_197, %c0_198, %c0_199] : memref<9x8x8xf32, #tpu.memory_space<vmem>>, vector<1x8x8xf32>
    %156 = vector.shape_cast %155 : vector<1x8x8xf32> to vector<8x8xf32>
    %cst_200 = arith.constant dense<0.000000e+00> : vector<256x8xf32>
    %157 = tpu.matmul %154, %156, %cst_200 {dimension_numbers = #tpu.dot_dimension_numbers<[1], [0], [0], [1], [0, 0, 1, 1], [], []>} : vector<256x8xf32>, vector<8x8xf32>, vector<256x8xf32> -> vector<256x8xf32>
    %158 = arith.addf %153, %157 : vector<256x8xf32>
    %c0_201 = arith.constant 0 : index
    %c0_202 = arith.constant 0 : index
    %159 = vector.load %arg10[%c0_201, %c0_202] : memref<256x8xf32, #tpu.memory_space<vmem>>, vector<256x8xf32>
    tpu.vector_store %arg10[%c0_201, %c0_202], %158 {strides = array<i32>} : memref<256x8xf32, #tpu.memory_space<vmem>>, vector<256x8xf32>,
    %c2_203 = arith.constant 2 : index
    %c9_204 = arith.constant 9 : index
    %c0_205 = arith.constant 0 : index
    %160 = vector.load %arg8[%c2_203, %c9_204, %c0_205] : memref<18x32x8xf32, #tpu.memory_space<vmem>>, vector<16x16x8xf32>
    %c0_206 = arith.constant 0 : index
    %c0_207 = arith.constant 0 : index
    %161 = vector.load %arg10[%c0_206, %c0_207] : memref<256x8xf32, #tpu.memory_space<vmem>>, vector<256x8xf32>
    %162 = vector.shape_cast %160 : vector<16x16x8xf32> to vector<256x8xf32>
    %c8_208 = arith.constant 8 : index
    %c0_209 = arith.constant 0 : index
    %c0_210 = arith.constant 0 : index
    %163 = vector.load %arg5[%c8_208, %c0_209, %c0_210] : memref<9x8x8xf32, #tpu.memory_space<vmem>>, vector<1x8x8xf32>
    %164 = vector.shape_cast %163 : vector<1x8x8xf32> to vector<8x8xf32>
    %cst_211 = arith.constant dense<0.000000e+00> : vector<256x8xf32>
    %165 = tpu.matmul %162, %164, %cst_211 {dimension_numbers = #tpu.dot_dimension_numbers<[1], [0], [0], [1], [0, 0, 1, 1], [], []>} : vector<256x8xf32>, vector<8x8xf32>, vector<256x8xf32> -> vector<256x8xf32>
    %166 = arith.addf %161, %165 : vector<256x8xf32>
    %c0_212 = arith.constant 0 : index
    %c0_213 = arith.constant 0 : index
    %167 = vector.load %arg10[%c0_212, %c0_213] : memref<256x8xf32, #tpu.memory_space<vmem>>, vector<256x8xf32>
    tpu.vector_store %arg10[%c0_212, %c0_213], %166 {strides = array<i32>} : memref<256x8xf32, #tpu.memory_space<vmem>>, vector<256x8xf32>,
    %c0_214 = arith.constant 0 : index
    %c0_215 = arith.constant 0 : index
    %168 = vector.load %arg10[%c0_214, %c0_215] : memref<256x8xf32, #tpu.memory_space<vmem>>, vector<256x8xf32>
    %c0_216 = arith.constant 0 : index
    %c0_217 = arith.constant 0 : index
    %c0_218 = arith.constant 0 : index
    %169 = vector.load %arg7[%c0_216, %c0_217, %c0_218] : memref<1x256x8xf32, #tpu.memory_space<vmem>>, vector<1x256x8xf32>
    %170 = vector.shape_cast %169 : vector<1x256x8xf32> to vector<256x8xf32>
    %171 = vector.shape_cast %168 : vector<256x8xf32> to vector<1x256x8xf32>
    tpu.vector_store %arg7[%c0_216, %c0_217, %c0_218], %171 {strides = array<i32>} : memref<1x256x8xf32, #tpu.memory_space<vmem>>, vector<1x256x8xf32>,
    return
  }
  func.func @transform_0(%arg0: i32) -> (i32, i32, i32, i32) {
    %c0_i32 = arith.constant 0 : i32
    %c0_i32_0 = arith.constant 0 : i32
    %c0_i32_1 = arith.constant 0 : i32
    %c0_i32_2 = arith.constant 0 : i32
    return %arg0, %c0_i32, %c0_i32_0, %c0_i32_1 : i32, i32, i32, i32
  }
  func.func @transform_1(%arg0: i32) -> (i32, i32, i32, i32) {
    %c0_i32 = arith.constant 0 : i32
    %c0_i32_0 = arith.constant 0 : i32
    %c0_i32_1 = arith.constant 0 : i32
    %c0_i32_2 = arith.constant 0 : i32
    return %arg0, %c0_i32, %c0_i32_0, %c0_i32_1 : i32, i32, i32, i32
  }
  func.func @transform_2(%arg0: i32) -> (i32, i32, i32) {
    %c0_i32 = arith.constant 0 : i32
    %c0_i32_0 = arith.constant 0 : i32
    %c0_i32_1 = arith.constant 0 : i32
    %c0_i32_2 = arith.constant 0 : i32
    return %c0_i32, %c0_i32_0, %c0_i32_1 : i32, i32, i32
  }
  func.func @transform_3(%arg0: i32) -> (i32, i32) {
    %c0_i32 = arith.constant 0 : i32
    %c0_i32_0 = arith.constant 0 : i32
    %c0_i32_1 = arith.constant 0 : i32
    return %c0_i32, %c0_i32_0 : i32, i32
  }
  func.func @transform_4(%arg0: i32) -> (i32, i32, i32) {
    %c0_i32 = arith.constant 0 : i32
    %c0_i32_0 = arith.constant 0 : i32
    %c0_i32_1 = arith.constant 0 : i32
    %c0_i32_2 = arith.constant 0 : i32
    return %c0_i32, %c0_i32_0, %c0_i32_1 : i32, i32, i32
  }
  func.func @transform_5(%arg0: i32) -> (i32, i32) {
    %c0_i32 = arith.constant 0 : i32
    %c0_i32_0 = arith.constant 0 : i32
    %c0_i32_1 = arith.constant 0 : i32
    return %c0_i32, %c0_i32_0 : i32, i32
  }
  func.func @transform_6(%arg0: i32) -> (i32, i32, i32) {
    %c0_i32 = arith.constant 0 : i32
    %c0_i32_0 = arith.constant 0 : i32
    %c0_i32_1 = arith.constant 0 : i32
    return %arg0, %c0_i32, %c0_i32_0 : i32, i32, i32
  }
}

</mosaic_0001>

<llo_original>
// kernel: basic_block_forward.1
$region0: #{basic_block_forward.1}
  #allocation0 [shape = 'u32[]', space=smem, size = 0x4, offset = 0x4, fixed_abs, tag = 'smem constant byte address 0x4 - core index']
  #allocation1 [shape = 'u32[144,128]{1,0:T(1,128)}', space=vmem, size = 0x12000, scoped, tag = 'internal scratch']
  #allocation2 [shape = 'f32[18,32,8]{2,1,0:T(8,128)}', space=vmem, size = 0x48000, scoped, tag = 'scratch operand']
  #allocation3 [shape = 'f32[256,8]{1,0:T(8,128)}', space=vmem, size = 0x20000, scoped, tag = 'scratch operand']
  #allocation4 [shape = 'f32[256,8]{1,0:T(8,128)}', space=vmem, size = 0x20000, scoped, tag = 'scratch operand']
  %s0 = inlined_call_operand.vmem [shape: f32[2,18,18,8], index: 0, kind: input, shape index: {}]
  %s1 = inlined_call_operand.vmem [shape: f32[2,16,16,8], index: 1, kind: input, shape index: {}]
  %s2 = inlined_call_operand.vmem [shape: f32[9,8,8], index: 2, kind: input, shape index: {}]
  %s3 = inlined_call_operand.vmem [shape: f32[1,8], index: 3, kind: input, shape index: {}]
  %s4 = inlined_call_operand.vmem [shape: f32[9,8,8], index: 4, kind: input, shape index: {}]
  %s5 = inlined_call_operand.vmem [shape: f32[1,8], index: 5, kind: input, shape index: {}]
  %s6 = inlined_call_operand.vmem [shape: f32[2,256,8], index: 6, kind: output, shape index: {}]
  %s7 = sld [smem:[#allocation0]]
  $region57: #{basic_block_forward.1} parent=0
    _
  %s9 = ssub.s32 1, %s7
  %s10 = scalar_select 0, %s9, %s7
  loop: start=0, step=1, limit=4
  $region2: #{basic_block_forward.1} parent=0 // loop_pre_header
    _
  $region3: #{basic_block_forward.1} parent=0 // loop_header
    %s12 = sphi 0, %s16
    %p13 = scmp.ge.s32.totalorder %s12, 4
    %s22 = sphi 0, %s24
    %s25 = sphi 0, %s22
    %s26 = sphi 0, %s25
    %s42 = sphi 0, %s26
    %s48 = sphi 0, %s50
    %s51 = sphi 0, %s48
    %s52 = sphi 0, %s51
    %s68 = sphi 0, %s52
    %s72 = sphi 0, %s72
    %s74 = sphi 0, %s72
    %s75 = sphi 0, %s74
    %s89 = sphi 0, %s75
    %s93 = sphi 0, %s93
    %s95 = sphi 0, %s93
    %s96 = sphi 0, %s95
    %s110 = sphi 0, %s96
    %s114 = sphi 0, %s114
    %s116 = sphi 0, %s114
    %s117 = sphi 0, %s116
    %s131 = sphi 0, %s117
    %s135 = sphi 0, %s135
    %s137 = sphi 0, %s135
    %s138 = sphi 0, %s137
    %s152 = sphi 0, %s138
    %s158 = sphi 0, %s160
    %s161 = sphi 0, %s158
    %s162 = sphi 0, %s161
    %s178 = sphi 0, %s162
  $region4: #{basic_block_forward.1} parent=0 // loop_header_branch
    %15 = sbr.rel (%p13) target = $region8
  $region5: #{basic_block_forward.1} parent=0 // loop_body
    %s17 = ssub.s32 %s12, 1
    %s18 = ssub.s32 %s12, 2
    %s19 = sadd.s32 %s12, 1
    %s20 = ssub.s32 %s12, %s19
    %p21 = scmp.eq.s32.totalorder %s20, 0
    %s23 = sadd.s32 %s22, 1
    %s24 = scalar_select %p21, %s22, %s23
    %p27 = pneg %p21
    %p28 = scmp.eq.s32.totalorder %s12, 1
    %p29 = por %p27, %p28
    %p30 = scmp.ne.s32.totalorder %s22, %s25
    %p31 = scmp.eq.s32.totalorder %s12, 0
    %p32 = por %p30, %p31
    %p33 = scmp.ne.s32.totalorder %s22, %s25
    %p34 = scmp.eq.s32.totalorder %s17, 1
    %p35 = por %p33, %p34
    %p36 = scmp.ne.s32.totalorder %s25, %s26
    %p37 = scmp.eq.s32.totalorder %s17, 0
    %p38 = por %p36, %p37
    %p39 = scmp.ne.s32.totalorder %s25, %s26
    %p40 = scmp.eq.s32.totalorder %s18, 1
    %p41 = por %p39, %p40
    %p43 = scmp.ne.s32.totalorder %s26, %s42
    %p44 = scmp.eq.s32.totalorder %s18, 0
    %p45 = por %p43, %p44
    %s46 = ssub.s32 %s12, %s19
    %p47 = scmp.eq.s32.totalorder %s46, 0
    %s49 = sadd.s32 %s48, 1
    %s50 = scalar_select %p47, %s48, %s49
    %p53 = pneg %p47
    %p54 = scmp.eq.s32.totalorder %s12, 1
    %p55 = por %p53, %p54
    %p56 = scmp.ne.s32.totalorder %s48, %s51
    %p57 = scmp.eq.s32.totalorder %s12, 0
    %p58 = por %p56, %p57
    %p59 = scmp.ne.s32.totalorder %s48, %s51
    %p60 = scmp.eq.s32.totalorder %s17, 1
    %p61 = por %p59, %p60
    %p62 = scmp.ne.s32.totalorder %s51, %s52
    %p63 = scmp.eq.s32.totalorder %s17, 0
    %p64 = por %p62, %p63
    %p65 = scmp.ne.s32.totalorder %s51, %s52
    %p66 = scmp.eq.s32.totalorder %s18, 1
    %p67 = por %p65, %p66
    %p69 = scmp.ne.s32.totalorder %s52, %s68
    %p70 = scmp.eq.s32.totalorder %s18, 0
    %p71 = por %p69, %p70
    %s73 = sadd.s32 %s72, 1
    %p76 = scmp.eq.s32.totalorder %s12, 1
    %p77 = scmp.ne.s32.totalorder %s72, %s74
    %p78 = scmp.eq.s32.totalorder %s12, 0
    %p79 = por %p77, %p78
    %p80 = scmp.ne.s32.totalorder %s72, %s74
    %p81 = scmp.eq.s32.totalorder %s17, 1
    %p82 = por %p80, %p81
    %p83 = scmp.ne.s32.totalorder %s74, %s75
    %p84 = scmp.eq.s32.totalorder %s17, 0
    %p85 = por %p83, %p84
    %p86 = scmp.ne.s32.totalorder %s74, %s75
    %p87 = scmp.eq.s32.totalorder %s18, 1
    %p88 = por %p86, %p87
    %p90 = scmp.ne.s32.totalorder %s75, %s89
    %p91 = scmp.eq.s32.totalorder %s18, 0
    %p92 = por %p90, %p91
    %s94 = sadd.s32 %s93, 1
    %p97 = scmp.eq.s32.totalorder %s12, 1
    %p98 = scmp.ne.s32.totalorder %s93, %s95
    %p99 = scmp.eq.s32.totalorder %s12, 0
    %p100 = por %p98, %p99
    %p101 = scmp.ne.s32.totalorder %s93, %s95
    %p102 = scmp.eq.s32.totalorder %s17, 1
    %p103 = por %p101, %p102
    %p104 = scmp.ne.s32.totalorder %s95, %s96
    %p105 = scmp.eq.s32.totalorder %s17, 0
    %p106 = por %p104, %p105
    %p107 = scmp.ne.s32.totalorder %s95, %s96
    %p108 = scmp.eq.s32.totalorder %s18, 1
    %p109 = por %p107, %p108
    %p111 = scmp.ne.s32.totalorder %s96, %s110
    %p112 = scmp.eq.s32.totalorder %s18, 0
    %p113 = por %p111, %p112
    %s115 = sadd.s32 %s114, 1
    %p118 = scmp.eq.s32.totalorder %s12, 1
    %p119 = scmp.ne.s32.totalorder %s114, %s116
    %p120 = scmp.eq.s32.totalorder %s12, 0
    %p121 = por %p119, %p120
    %p122 = scmp.ne.s32.totalorder %s114, %s116
    %p123 = scmp.eq.s32.totalorder %s17, 1
    %p124 = por %p122, %p123
    %p125 = scmp.ne.s32.totalorder %s116, %s117
    %p126 = scmp.eq.s32.totalorder %s17, 0
    %p127 = por %p125, %p126
    %p128 = scmp.ne.s32.totalorder %s116, %s117
    %p129 = scmp.eq.s32.totalorder %s18, 1
    %p130 = por %p128, %p129
    %p132 = scmp.ne.s32.totalorder %s117, %s131
    %p133 = scmp.eq.s32.totalorder %s18, 0
    %p134 = por %p132, %p133
    %s136 = sadd.s32 %s135, 1
    %p139 = scmp.eq.s32.totalorder %s12, 1
    %p140 = scmp.ne.s32.totalorder %s135, %s137
    %p141 = scmp.eq.s32.totalorder %s12, 0
    %p142 = por %p140, %p141
    %p143 = scmp.ne.s32.totalorder %s135, %s137
    %p144 = scmp.eq.s32.totalorder %s17, 1
    %p145 = por %p143, %p144
    %p146 = scmp.ne.s32.totalorder %s137, %s138
    %p147 = scmp.eq.s32.totalorder %s17, 0
    %p148 = por %p146, %p147
    %p149 = scmp.ne.s32.totalorder %s137, %s138
    %p150 = scmp.eq.s32.totalorder %s18, 1
    %p151 = por %p149, %p150
    %p153 = scmp.ne.s32.totalorder %s138, %s152
    %p154 = scmp.eq.s32.totalorder %s18, 0
    %p155 = por %p153, %p154
    %s156 = ssub.s32 %s12, %s19
    %p157 = scmp.eq.s32.totalorder %s156, 0
    %s159 = sadd.s32 %s158, 1
    %s160 = scalar_select %p157, %s158, %s159
    %p163 = pneg %p157
    %p164 = scmp.eq.s32.totalorder %s12, 1
    %p165 = por %p163, %p164
    %p166 = scmp.ne.s32.totalorder %s158, %s161
    %p167 = scmp.eq.s32.totalorder %s12, 0
    %p168 = por %p166, %p167
    %p169 = scmp.ne.s32.totalorder %s158, %s161
    %p170 = scmp.eq.s32.totalorder %s17, 1
    %p171 = por %p169, %p170
    %p172 = scmp.ne.s32.totalorder %s161, %s162
    %p173 = scmp.eq.s32.totalorder %s17, 0
    %p174 = por %p172, %p173
    %p175 = scmp.ne.s32.totalorder %s161, %s162
    %p176 = scmp.eq.s32.totalorder %s18, 1
    %p177 = por %p175, %p176
    %p179 = scmp.ne.s32.totalorder %s162, %s178
    %p180 = scmp.eq.s32.totalorder %s18, 0
    %p181 = por %p179, %p180
    %p182 = scmp.le.s32.totalorder 1, %s12
    %p183 = scmp.lt.s32.totalorder %s12, 3
    %p184 = pnand %p182, %p183
    %p185 = pneg %p184
    // Predicated region
    $region9: #{basic_block_forward.1} parent=5 // pred_check
      _
    $region10: #{basic_block_forward.1} parent=5 // pred_check_branch
      %187 = sbr.rel (%p184) target = $region12
    $region11: #{basic_block_forward.1} parent=5 // pred_region
      %s188 = ssub.s32 %s12, 1
      // Predicated region
      $region13: #{basic_block_forward.1} parent=11 // pred_check
        %p189 = pneg %p85
      $region14: #{basic_block_forward.1} parent=11 // pred_check_branch
        %191 = sbr.rel (%p189) target = $region16
      $region15: #{basic_block_forward.1} parent=11 // pred_region
        _
      $region16: #{basic_block_forward.1} parent=11 // pred_fallthru
        _
      // Predicated region
      $region17: #{basic_block_forward.1} parent=11 // pred_check
        %p192 = pneg %p106
      $region18: #{basic_block_forward.1} parent=11 // pred_check_branch
        %194 = sbr.rel (%p192) target = $region20
      $region19: #{basic_block_forward.1} parent=11 // pred_region
        _
      $region20: #{basic_block_forward.1} parent=11 // pred_fallthru
        _
      // Predicated region
      $region21: #{basic_block_forward.1} parent=11 // pred_check
        %p195 = pneg %p127
      $region22: #{basic_block_forward.1} parent=11 // pred_check_branch
        %197 = sbr.rel (%p195) target = $region24
      $region23: #{basic_block_forward.1} parent=11 // pred_region
        _
      $region24: #{basic_block_forward.1} parent=11 // pred_fallthru
        _
      // Predicated region
      $region25: #{basic_block_forward.1} parent=11 // pred_check
        %p198 = pneg %p148
      $region26: #{basic_block_forward.1} parent=11 // pred_check_branch
        %200 = sbr.rel (%p198) target = $region28
      $region27: #{basic_block_forward.1} parent=11 // pred_region
        _
      $region28: #{basic_block_forward.1} parent=11 // pred_fallthru
        _
    $region12: #{basic_block_forward.1} parent=5 // pred_fallthru
      _
    %p201 = scmp.lt.s32.totalorder %s12, 2
    // Predicated region
    $region29: #{basic_block_forward.1} parent=5 // pred_check
      %p202 = pneg %p201
    $region30: #{basic_block_forward.1} parent=5 // pred_check_branch
      %204 = sbr.rel (%p202) target = $region32
    $region31: #{basic_block_forward.1} parent=5 // pred_region
      // Predicated region
      $region33: #{basic_block_forward.1} parent=31 // pred_check
        %p205 = pneg %p32
      $region34: #{basic_block_forward.1} parent=31 // pred_check_branch
        %207 = sbr.rel (%p205) target = $region36
      $region35: #{basic_block_forward.1} parent=31 // pred_region
        %p208 = scmp.lt.s32.totalorder %s12, 1
        %s209 = scalar_select %p208, %s12, 1
        %s210 = smul.addr %s209, 54
        %s211 = smul.addr %s210, 8
        %s212 = scalar_lea.vmem %s0, %s211
      $region36: #{basic_block_forward.1} parent=31 // pred_fallthru
        _
      // Predicated region
      $region37: #{basic_block_forward.1} parent=31 // pred_check
        %p213 = pneg %p58
      $region38: #{basic_block_forward.1} parent=31 // pred_check_branch
        %215 = sbr.rel (%p213) target = $region40
      $region39: #{basic_block_forward.1} parent=31 // pred_region
        %p216 = scmp.lt.s32.totalorder %s12, 1
        %s217 = scalar_select %p216, %s12, 1
        %s218 = smul.addr %s217, 32
        %s219 = smul.addr %s218, 8
        %s220 = scalar_lea.vmem %s1, %s219
      $region40: #{basic_block_forward.1} parent=31 // pred_fallthru
        _
    $region32: #{basic_block_forward.1} parent=5 // pred_fallthru
      _
    %p221 = scmp.le.s32.totalorder 1, %s12
    %p222 = scmp.lt.s32.totalorder %s12, 3
    %p223 = pnand %p221, %p222
    %p224 = pneg %p223
    // Predicated region
    $region41: #{basic_block_forward.1} parent=5 // pred_check
      _
    $region42: #{basic_block_forward.1} parent=5 // pred_check_branch
      %226 = sbr.rel (%p223) target = $region44
    $region43: #{basic_block_forward.1} parent=5 // pred_region
      %s227 = ssub.s32 %s12, 1
      %p228 = scmp.lt.s32.totalorder %s17, 1
      %s229 = scalar_select %p228, %s17, 1
      %s230 = smul.addr %s229, 54
      %s231 = smul.addr %s230, 8
      %s232 = scalar_lea.vmem %s0, %s231
      %p233 = pneg %p38
      %p234 = pneg %p35
      %p235 = scmp.lt.s32.totalorder %s17, 1
      %s236 = scalar_select %p235, %s17, 1
      %s237 = smul.addr %s236, 32
      %s238 = smul.addr %s237, 8
      %s239 = scalar_lea.vmem %s1, %s238
      %p240 = pneg %p64
      %p241 = pneg %p61
      %p242 = pneg %p85
      %p243 = pneg %p82
      %p244 = pneg %p106
      %p245 = pneg %p103
      %p246 = pneg %p127
      %p247 = pneg %p124
      %p248 = pneg %p148
      %p249 = pneg %p145
      %p250 = pneg %p174
      %p251 = pneg %p171
      %p252 = scmp.lt.s32.totalorder %s17, 1
      %s253 = scalar_select %p252, %s17, 1
      %s254 = smul.addr %s253, 32
      %s255 = smul.addr %s254, 8
      %s256 = scalar_lea.vmem %s6, %s255
      %p257 = scmp.lt.s32.totalorder %s17, 1
      %s258 = scalar_select %p257, %s17, 1
      %s259 = smul.addr %s258, 54
      %s260 = smul.addr %s259, 8
      %s261 = scalar_lea.vmem %s0, %s260
      %p262 = scmp.lt.s32.totalorder %s17, 1
      %s263 = scalar_select %p262, %s17, 1
      %s264 = smul.addr %s263, 32
      %s265 = smul.addr %s264, 8
      %s266 = scalar_lea.vmem %s1, %s265
      %p267 = scmp.lt.s32.totalorder %s17, 1
      %s268 = scalar_select %p267, %s17, 1
      %s269 = smul.addr %s268, 32
      %s270 = smul.addr %s269, 8
      %s271 = scalar_lea.vmem %s6, %s270
      %v272 = vld [vmem:[%s261] sm:$0xff]
      %v273 = vld [vmem:[%s261 + $0x8] sm:$0xff]
      %v274 = vld [vmem:[%s261 + $0x18] sm:$0xff]
      %v275 = vld [vmem:[%s261 + $0x20] sm:$0xff]
      %v276 = vld [vmem:[%s261 + $0x30] sm:$0xff]
      %v277 = vld [vmem:[%s261 + $0x38] sm:$0xff]
      %v278 = vld [vmem:[%s261 + $0x48] sm:$0xff]
      %v279 = vld [vmem:[%s261 + $0x50] sm:$0xff]
      %v280 = vld [vmem:[%s261 + $0x60] sm:$0xff]
      %v281 = vld [vmem:[%s261 + $0x68] sm:$0xff]
      %v282 = vld [vmem:[%s261 + $0x78] sm:$0xff]
      %v283 = vld [vmem:[%s261 + $0x80] sm:$0xff]
      %v284 = vld [vmem:[%s261 + $0x90] sm:$0xff]
      %v285 = vld [vmem:[%s261 + $0x98] sm:$0xff]
      %v286 = vld [vmem:[%s261 + $0xa8] sm:$0xff]
      %v287 = vld [vmem:[%s261 + $0xb0] sm:$0xff]
      %v288 = vld [vmem:[%s261 + $0xc0] sm:$0xff]
      %v289 = vld [vmem:[%s261 + $0xc8] sm:$0xff]
      %v290 = vld [vmem:[%s261 + $0xd8] sm:$0xff]
      %v291 = vld [vmem:[%s261 + $0xe0] sm:$0xff]
      %v292 = vld [vmem:[%s261 + $0xf0] sm:$0xff]
      %v293 = vld [vmem:[%s261 + $0xf8] sm:$0xff]
      %v294 = vld [vmem:[%s261 + $0x108] sm:$0xff]
      %v295 = vld [vmem:[%s261 + $0x110] sm:$0xff]
      %v296 = vld [vmem:[%s261 + $0x120] sm:$0xff]
      %v297 = vld [vmem:[%s261 + $0x128] sm:$0xff]
      %v298 = vld [vmem:[%s261 + $0x138] sm:$0xff]
      %v299 = vld [vmem:[%s261 + $0x140] sm:$0xff]
      %v300 = vld [vmem:[%s261 + $0x150] sm:$0xff]
      %v301 = vld [vmem:[%s261 + $0x158] sm:$0xff]
      %v302 = vld [vmem:[%s261 + $0x168] sm:$0xff]
      %v303 = vld [vmem:[%s261 + $0x170] sm:$0xff]
      %v304 = vld [vmem:[%s2] sm:$0xff]
      %vm305 = vcmask 64512
      %v307 = vsel %vm305, %v272, 0
      %v310 = vsel %vm305, %v273, 0
      %v313 = vsel %vm305, %v274, 0
      %v316 = vsel %vm305, %v275, 0
      %v319 = vsel %vm305, %v276, 0
      %v322 = vsel %vm305, %v277, 0
      %v325 = vsel %vm305, %v278, 0
      %v328 = vsel %vm305, %v279, 0
      %v331 = vsel %vm305, %v280, 0
      %v334 = vsel %vm305, %v281, 0
      %v337 = vsel %vm305, %v282, 0
      %v340 = vsel %vm305, %v283, 0
      %v343 = vsel %vm305, %v284, 0
      %v346 = vsel %vm305, %v285, 0
      %v349 = vsel %vm305, %v286, 0
      %v352 = vsel %vm305, %v287, 0
      %v355 = vsel %vm305, %v288, 0
      %v358 = vsel %vm305, %v289, 0
      %v361 = vsel %vm305, %v290, 0
      %v364 = vsel %vm305, %v291, 0
      %v367 = vsel %vm305, %v292, 0
      %v370 = vsel %vm305, %v293, 0
      %v373 = vsel %vm305, %v294, 0
      %v376 = vsel %vm305, %v295, 0
      %v379 = vsel %vm305, %v296, 0
      %v382 = vsel %vm305, %v297, 0
      %v385 = vsel %vm305, %v298, 0
      %v388 = vsel %vm305, %v299, 0
      %v391 = vsel %vm305, %v300, 0
      %v394 = vsel %vm305, %v301, 0
      %v397 = vsel %vm305, %v302, 0
      %v400 = vsel %vm305, %v303, 0
      %402 = vmatprep.subr.mxu0 0.0
      %403 = vmatpush1.msra.mxu0 %v304
      %404 = vmatprep.subr.mxu0 0.0
      %405 = vmatpush1.msra.mxu0 0.0
      %406 = vmatprep.subr.mxu0 0.0
      %407 = vmatpush1.msra.mxu0 0.0
      %408 = vmatprep.subr.mxu0 0.0
      %409 = vmatpush1.msra.mxu0 0.0
      %410 = vmatprep.subr.mxu0 0.0
      %411 = vmatpush1.msra.mxu0 0.0
      %412 = vmatprep.subr.mxu0 0.0
      %413 = vmatpush1.msra.mxu0 0.0
      %414 = vmatprep.subr.mxu0 0.0
      %415 = vmatpush1.msra.mxu0 0.0
      %416 = vmatprep.subr.mxu0 0.0
      %417 = vmatpush1.msra.mxu0 0.0
      %418 = vmatprep.subr.mxu0 0.0
      %419 = vmatpush1.msra.mxu0 0.0
      %420 = vmatprep.subr.mxu0 0.0
      %421 = vmatpush1.msra.mxu0 0.0
      %422 = vmatprep.subr.mxu0 0.0
      %423 = vmatpush1.msra.mxu0 0.0
      %424 = vmatprep.subr.mxu0 0.0
      %425 = vmatpush1.msra.mxu0 0.0
      %426 = vmatprep.subr.mxu0 0.0
      %427 = vmatpush1.msra.mxu0 0.0
      %428 = vmatprep.subr.mxu0 0.0
      %429 = vmatpush1.msra.mxu0 0.0
      %430 = vmatprep.subr.mxu0 0.0
      %431 = vmatpush1.msra.mxu0 0.0
      %432 = vmatprep.subr.mxu0 0.0
      %433 = vmatpush1.msra.mxu0 0.0
      %434 = vmatprep.subr.mxu0 0.0
      %435 = vmatpush1.msra.mxu0 0.0
      %436 = vmatprep.subr.mxu0 0.0
      %437 = vmatpush1.msra.mxu0 0.0
      %438 = vmatprep.subr.mxu0 0.0
      %439 = vmatpush1.msra.mxu0 0.0
      %440 = vmatprep.subr.mxu0 0.0
      %441 = vmatpush1.msra.mxu0 0.0
      %442 = vmatprep.subr.mxu0 0.0
      %443 = vmatpush1.msra.mxu0 0.0
      %444 = vmatprep.subr.mxu0 0.0
      %445 = vmatpush1.msra.mxu0 0.0
      %446 = vmatprep.subr.mxu0 0.0
      %447 = vmatpush1.msra.mxu0 0.0
      %448 = vmatprep.subr.mxu0 0.0
      %449 = vmatpush1.msra.mxu0 0.0
      %450 = vmatprep.subr.mxu0 0.0
      %451 = vmatpush1.msra.mxu0 0.0
      %452 = vmatprep.subr.mxu0 0.0
      %453 = vmatpush1.msra.mxu0 0.0
      %454 = vmatprep.subr.mxu0 0.0
      %455 = vmatpush1.msra.mxu0 0.0
      %456 = vmatprep.subr.mxu0 0.0
      %457 = vmatpush1.msra.mxu0 0.0
      %458 = vmatprep.subr.mxu0 0.0
      %459 = vmatpush1.msra.mxu0 0.0
      %460 = vmatprep.subr.mxu0 0.0
      %461 = vmatpush1.msra.mxu0 0.0
      %462 = vmatprep.subr.mxu0 0.0
      %463 = vmatpush1.msra.mxu0 0.0
      %464 = vmatprep.subr.mxu0 0.0
      %465 = vmatpush1.msra.mxu0 0.0
      %466 = vmatprep.mubr.f32.mxu0 0.0
      %467 = vmatmul.mubr.f32.gmra.mrb[0].mxu0 %v307
      %v468 = vpop.f32.mrb[0].mxu0
      %v469 = vadd.f32 0.0, %v468
      %v470 = vpop.f32.mrb[0].mxu0
      %471 = vmatprep.mubr.f32.mxu0 0.0
      %472 = vmatmul.mubr.f32.gmra.mrb[0].mxu0 %v310
      %v473 = vpop.f32.mrb[0].mxu0
      %v474 = vadd.f32 0.0, %v473
      %v475 = vpop.f32.mrb[0].mxu0
      %476 = vmatprep.mubr.f32.mxu0 0.0
      %477 = vmatmul.mubr.f32.gmra.mrb[0].mxu0 %v313
      %v478 = vpop.f32.mrb[0].mxu0
      %v479 = vadd.f32 0.0, %v478
      %v480 = vpop.f32.mrb[0].mxu0
      %481 = vmatprep.mubr.f32.mxu0 0.0
      %482 = vmatmul.mubr.f32.gmra.mrb[0].mxu0 %v316
      %v483 = vpop.f32.mrb[0].mxu0
      %v484 = vadd.f32 0.0, %v483
      %v485 = vpop.f32.mrb[0].mxu0
      %486 = vmatprep.mubr.f32.mxu0 0.0
      %487 = vmatmul.mubr.f32.gmra.mrb[0].mxu0 %v319
      %v488 = vpop.f32.mrb[0].mxu0
      %v489 = vadd.f32 0.0, %v488
      %v490 = vpop.f32.mrb[0].mxu0
      %491 = vmatprep.mubr.f32.mxu0 0.0
      %492 = vmatmul.mubr.f32.gmra.mrb[0].mxu0 %v322
      %v493 = vpop.f32.mrb[0].mxu0
      %v494 = vadd.f32 0.0, %v493
      %v495 = vpop.f32.mrb[0].mxu0
      %496 = vmatprep.mubr.f32.mxu0 0.0
      %497 = vmatmul.mubr.f32.gmra.mrb[0].mxu0 %v325
      %v498 = vpop.f32.mrb[0].mxu0
      %v499 = vadd.f32 0.0, %v498
      %v500 = vpop.f32.mrb[0].mxu0
      %501 = vmatprep.mubr.f32.mxu0 0.0
      %502 = vmatmul.mubr.f32.gmra.mrb[0].mxu0 %v328
      %v503 = vpop.f32.mrb[0].mxu0
      %v504 = vadd.f32 0.0, %v503
      %v505 = vpop.f32.mrb[0].mxu0
      %506 = vmatprep.mubr.f32.mxu0 0.0
      %507 = vmatmul.mubr.f32.gmra.mrb[0].mxu0 %v331
      %v508 = vpop.f32.mrb[0].mxu0
      %v509 = vadd.f32 0.0, %v508
      %v510 = vpop.f32.mrb[0].mxu0
      %511 = vmatprep.mubr.f32.mxu0 0.0
      %512 = vmatmul.mubr.f32.gmra.mrb[0].mxu0 %v334
      %v513 = vpop.f32.mrb[0].mxu0
      %v514 = vadd.f32 0.0, %v513
      %v515 = vpop.f32.mrb[0].mxu0
      %516 = vmatprep.mubr.f32.mxu0 0.0
      %517 = vmatmul.mubr.f32.gmra.mrb[0].mxu0 %v337
      %v518 = vpop.f32.mrb[0].mxu0
      %v519 = vadd.f32 0.0, %v518
      %v520 = vpop.f32.mrb[0].mxu0
      %521 = vmatprep.mubr.f32.mxu0 0.0
      %522 = vmatmul.mubr.f32.gmra.mrb[0].mxu0 %v340
      %v523 = vpop.f32.mrb[0].mxu0
      %v524 = vadd.f32 0.0, %v523
      %v525 = vpop.f32.mrb[0].mxu0
      %526 = vmatprep.mubr.f32.mxu0 0.0
      %527 = vmatmul.mubr.f32.gmra.mrb[0].mxu0 %v343
      %v528 = vpop.f32.mrb[0].mxu0
      %v529 = vadd.f32 0.0, %v528
      %v530 = vpop.f32.mrb[0].mxu0
      %531 = vmatprep.mubr.f32.mxu0 0.0
      %532 = vmatmul.mubr.f32.gmra.mrb[0].mxu0 %v346
      %v533 = vpop.f32.mrb[0].mxu0
      %v534 = vadd.f32 0.0, %v533
      %v535 = vpop.f32.mrb[0].mxu0
      %536 = vmatprep.mubr.f32.mxu0 0.0
      %537 = vmatmul.mubr.f32.gmra.mrb[0].mxu0 %v349
      %v538 = vpop.f32.mrb[0].mxu0
      %v539 = vadd.f32 0.0, %v538
      %v540 = vpop.f32.mrb[0].mxu0
      %541 = vmatprep.mubr.f32.mxu0 0.0
      %542 = vmatmul.mubr.f32.gmra.mrb[0].mxu0 %v352
      %v543 = vpop.f32.mrb[0].mxu0
      %v544 = vadd.f32 0.0, %v543
      %v545 = vpop.f32.mrb[0].mxu0
      %546 = vmatprep.mubr.f32.mxu0 0.0
      %547 = vmatmul.mubr.f32.gmra.mrb[0].mxu0 %v355
      %v548 = vpop.f32.mrb[0].mxu0
      %v549 = vadd.f32 0.0, %v548
      %v550 = vpop.f32.mrb[0].mxu0
      %551 = vmatprep.mubr.f32.mxu0 0.0
      %552 = vmatmul.mubr.f32.gmra.mrb[0].mxu0 %v358
      %v553 = vpop.f32.mrb[0].mxu0
      %v554 = vadd.f32 0.0, %v553
      %v555 = vpop.f32.mrb[0].mxu0
      %556 = vmatprep.mubr.f32.mxu0 0.0
      %557 = vmatmul.mubr.f32.gmra.mrb[0].mxu0 %v361
      %v558 = vpop.f32.mrb[0].mxu0
      %v559 = vadd.f32 0.0, %v558
      %v560 = vpop.f32.mrb[0].mxu0
      %561 = vmatprep.mubr.f32.mxu0 0.0
      %562 = vmatmul.mubr.f32.gmra.mrb[0].mxu0 %v364
      %v563 = vpop.f32.mrb[0].mxu0
      %v564 = vadd.f32 0.0, %v563
      %v565 = vpop.f32.mrb[0].mxu0
      %566 = vmatprep.mubr.f32.mxu0 0.0
      %567 = vmatmul.mubr.f32.gmra.mrb[0].mxu0 %v367
      %v568 = vpop.f32.mrb[0].mxu0
      %v569 = vadd.f32 0.0, %v568
      %v570 = vpop.f32.mrb[0].mxu0
      %571 = vmatprep.mubr.f32.mxu0 0.0
      %572 = vmatmul.mubr.f32.gmra.mrb[0].mxu0 %v370
      %v573 = vpop.f32.mrb[0].mxu0
      %v574 = vadd.f32 0.0, %v573
      %v575 = vpop.f32.mrb[0].mxu0
      %576 = vmatprep.mubr.f32.mxu0 0.0
      %577 = vmatmul.mubr.f32.gmra.mrb[0].mxu0 %v373
      %v578 = vpop.f32.mrb[0].mxu0
      %v579 = vadd.f32 0.0, %v578
      %v580 = vpop.f32.mrb[0].mxu0
      %581 = vmatprep.mubr.f32.mxu0 0.0
      %582 = vmatmul.mubr.f32.gmra.mrb[0].mxu0 %v376
      %v583 = vpop.f32.mrb[0].mxu0
      %v584 = vadd.f32 0.0, %v583
      %v585 = vpop.f32.mrb[0].mxu0
      %586 = vmatprep.mubr.f32.mxu0 0.0
      %587 = vmatmul.mubr.f32.gmra.mrb[0].mxu0 %v379
      %v588 = vpop.f32.mrb[0].mxu0
      %v589 = vadd.f32 0.0, %v588
      %v590 = vpop.f32.mrb[0].mxu0
      %591 = vmatprep.mubr.f32.mxu0 0.0
      %592 = vmatmul.mubr.f32.gmra.mrb[0].mxu0 %v382
      %v593 = vpop.f32.mrb[0].mxu0
      %v594 = vadd.f32 0.0, %v593
      %v595 = vpop.f32.mrb[0].mxu0
      %596 = vmatprep.mubr.f32.mxu0 0.0
      %597 = vmatmul.mubr.f32.gmra.mrb[0].mxu0 %v385
      %v598 = vpop.f32.mrb[0].mxu0
      %v599 = vadd.f32 0.0, %v598
      %v600 = vpop.f32.mrb[0].mxu0
      %601 = vmatprep.mubr.f32.mxu0 0.0
      %602 = vmatmul.mubr.f32.gmra.mrb[0].mxu0 %v388
      %v603 = vpop.f32.mrb[0].mxu0
      %v604 = vadd.f32 0.0, %v603
      %v605 = vpop.f32.mrb[0].mxu0
      %606 = vmatprep.mubr.f32.mxu0 0.0
      %607 = vmatmul.mubr.f32.gmra.mrb[0].mxu0 %v391
      %v608 = vpop.f32.mrb[0].mxu0
      %v609 = vadd.f32 0.0, %v608
      %v610 = vpop.f32.mrb[0].mxu0
      %611 = vmatprep.mubr.f32.mxu0 0.0
      %612 = vmatmul.mubr.f32.gmra.mrb[0].mxu0 %v394
      %v613 = vpop.f32.mrb[0].mxu0
      %v614 = vadd.f32 0.0, %v613
      %v615 = vpop.f32.mrb[0].mxu0
      %616 = vmatprep.mubr.f32.mxu0 0.0
      %617 = vmatmul.mubr.f32.gmra.mrb[0].mxu0 %v397
      %v618 = vpop.f32.mrb[0].mxu0
      %v619 = vadd.f32 0.0, %v618
      %v620 = vpop.f32.mrb[0].mxu0
      %621 = vmatprep.mubr.f32.mxu0 0.0
      %622 = vmatmul.mubr.f32.gmra.mrb[0].mxu0 %v400
      %v623 = vpop.f32.mrb[0].mxu0
      %v624 = vadd.f32 0.0, %v623
      %v625 = vpop.f32.mrb[0].mxu0
      %626 = vdwg.mxu0
      %627 = vst.msk [vmem:[#allocation3] sm:$0xff] %vm305, %v469
      %628 = vst.msk [vmem:[#allocation3 + $0x8] sm:$0xff] %vm305, %v474
      %629 = vst.msk [vmem:[#allocation3 + $0x10] sm:$0xff] %vm305, %v479
      %630 = vst.msk [vmem:[#allocation3 + $0x18] sm:$0xff] %vm305, %v484
      %631 = vst.msk [vmem:[#allocation3 + $0x20] sm:$0xff] %vm305, %v489
      %632 = vst.msk [vmem:[#allocation3 + $0x28] sm:$0xff] %vm305, %v494
      %633 = vst.msk [vmem:[#allocation3 + $0x30] sm:$0xff] %vm305, %v499
      %634 = vst.msk [vmem:[#allocation3 + $0x38] sm:$0xff] %vm305, %v504
      %635 = vst.msk [vmem:[#allocation3 + $0x40] sm:$0xff] %vm305, %v509
      %636 = vst.msk [vmem:[#allocation3 + $0x48] sm:$0xff] %vm305, %v514
      %637 = vst.msk [vmem:[#allocation3 + $0x50] sm:$0xff] %vm305, %v519
      %638 = vst.msk [vmem:[#allocation3 + $0x58] sm:$0xff] %vm305, %v524
      %639 = vst.msk [vmem:[#allocation3 + $0x60] sm:$0xff] %vm305, %v529
      %640 = vst.msk [vmem:[#allocation3 + $0x68] sm:$0xff] %vm305, %v534
      %641 = vst.msk [vmem:[#allocation3 + $0x70] sm:$0xff] %vm305, %v539
      %642 = vst.msk [vmem:[#allocation3 + $0x78] sm:$0xff] %vm305, %v544
      %643 = vst.msk [vmem:[#allocation3 + $0x80] sm:$0xff] %vm305, %v549
      %644 = vst.msk [vmem:[#allocation3 + $0x88] sm:$0xff] %vm305, %v554
      %645 = vst.msk [vmem:[#allocation3 + $0x90] sm:$0xff] %vm305, %v559
      %646 = vst.msk [vmem:[#allocation3 + $0x98] sm:$0xff] %vm305, %v564
      %647 = vst.msk [vmem:[#allocation3 + $0xa0] sm:$0xff] %vm305, %v569
      %648 = vst.msk [vmem:[#allocation3 + $0xa8] sm:$0xff] %vm305, %v574
      %649 = vst.msk [vmem:[#allocation3 + $0xb0] sm:$0xff] %vm305, %v579
      %650 = vst.msk [vmem:[#allocation3 + $0xb8] sm:$0xff] %vm305, %v584
      %651 = vst.msk [vmem:[#allocation3 + $0xc0] sm:$0xff] %vm305, %v589
      %652 = vst.msk [vmem:[#allocation3 + $0xc8] sm:$0xff] %vm305, %v594
      %653 = vst.msk [vmem:[#allocation3 + $0xd0] sm:$0xff] %vm305, %v599
      %654 = vst.msk [vmem:[#allocation3 + $0xd8] sm:$0xff] %vm305, %v604
      %655 = vst.msk [vmem:[#allocation3 + $0xe0] sm:$0xff] %vm305, %v609
      %656 = vst.msk [vmem:[#allocation3 + $0xe8] sm:$0xff] %vm305, %v614
      %657 = vst.msk [vmem:[#allocation3 + $0xf0] sm:$0xff] %vm305, %v619
      %658 = vst.msk [vmem:[#allocation3 + $0xf8] sm:$0xff] %vm305, %v624
      %v659 = vld [vmem:[%s261 + $0x1] sm:$0xff]
      %v660 = vld [vmem:[%s261 + $0x9] sm:$0xff]
      %v661 = vld [vmem:[%s261 + $0x19] sm:$0xff]
      %v662 = vld [vmem:[%s261 + $0x21] sm:$0xff]
      %v663 = vld [vmem:[%s261 + $0x31] sm:$0xff]
      %v664 = vld [vmem:[%s261 + $0x39] sm:$0xff]
      %v665 = vld [vmem:[%s261 + $0x49] sm:$0xff]
      %v666 = vld [vmem:[%s261 + $0x51] sm:$0xff]
      %v667 = vld [vmem:[%s261 + $0x61] sm:$0xff]
      %v668 = vld [vmem:[%s261 + $0x69] sm:$0xff]
      %v669 = vld [vmem:[%s261 + $0x79] sm:$0xff]
      %v670 = vld [vmem:[%s261 + $0x81] sm:$0xff]
      %v671 = vld [vmem:[%s261 + $0x91] sm:$0xff]
      %v672 = vld [vmem:[%s261 + $0x99] sm:$0xff]
      %v673 = vld [vmem:[%s261 + $0xa9] sm:$0xff]
      %v674 = vld [vmem:[%s261 + $0xb1] sm:$0xff]
      %v675 = vld [vmem:[%s261 + $0xc1] sm:$0xff]
      %v676 = vld [vmem:[%s261 + $0xc9] sm:$0xff]
      %v677 = vld [vmem:[%s261 + $0xd9] sm:$0xff]
      %v678 = vld [vmem:[%s261 + $0xe1] sm:$0xff]
      %v679 = vld [vmem:[%s261 + $0xf1] sm:$0xff]
      %v680 = vld [vmem:[%s261 + $0xf9] sm:$0xff]
      %v681 = vld [vmem:[%s261 + $0x109] sm:$0xff]
      %v682 = vld [vmem:[%s261 + $0x111] sm:$0xff]
      %v683 = vld [vmem:[%s261 + $0x121] sm:$0xff]
      %v684 = vld [vmem:[%s261 + $0x129] sm:$0xff]
      %v685 = vld [vmem:[%s261 + $0x139] sm:$0xff]
      %v686 = vld [vmem:[%s261 + $0x141] sm:$0xff]
      %v687 = vld [vmem:[%s261 + $0x151] sm:$0xff]
      %v688 = vld [vmem:[%s261 + $0x159] sm:$0xff]
      %v689 = vld [vmem:[%s261 + $0x169] sm:$0xff]
      %v690 = vld [vmem:[%s261 + $0x171] sm:$0xff]
      %s691 = scalar_lea.vmem %s2, 8
      %v692 = vld [vmem:[%s691] sm:$0xff]
      %v694 = vsel %vm305, %v659, 0
      %v697 = vsel %vm305, %v660, 0
      %v700 = vsel %vm305, %v661, 0
      %v703 = vsel %vm305, %v662, 0
      %v706 = vsel %vm305, %v663, 0
      %v709 = vsel %vm305, %v664, 0
      %v712 = vsel %vm305, %v665, 0
      %v715 = vsel %vm305, %v666, 0
      %v718 = vsel %vm305, %v667, 0
      %v721 = vsel %vm305, %v668, 0
      %v724 = vsel %vm305, %v669, 0
      %v727 = vsel %vm305, %v670, 0
      %v730 = vsel %vm305, %v671, 0
      %v733 = vsel %vm305, %v672, 0
      %v736 = vsel %vm305, %v673, 0
      %v739 = vsel %vm305, %v674, 0
      %v742 = vsel %vm305, %v675, 0
      %v745 = vsel %vm305, %v676, 0
      %v748 = vsel %vm305, %v677, 0
      %v751 = vsel %vm305, %v678, 0
      %v754 = vsel %vm305, %v679, 0
      %v757 = vsel %vm305, %v680, 0
      %v760 = vsel %vm305, %v681, 0
      %v763 = vsel %vm305, %v682, 0
      %v766 = vsel %vm305, %v683, 0
      %v769 = vsel %vm305, %v684, 0
      %v772 = vsel %vm305, %v685, 0
      %v775 = vsel %vm305, %v686, 0
      %v778 = vsel %vm305, %v687, 0
      %v781 = vsel %vm305, %v688, 0
      %v784 = vsel %vm305, %v689, 0
      %v787 = vsel %vm305, %v690, 0
      %789 = vmatprep.subr.mxu0 0.0
      %790 = vmatpush1.msra.mxu0 %v692
      %791 = vmatprep.subr.mxu0 0.0
      %792 = vmatpush1.msra.mxu0 0.0
      %793 = vmatprep.subr.mxu0 0.0
      %794 = vmatpush1.msra.mxu0 0.0
      %795 = vmatprep.subr.mxu0 0.0
      %796 = vmatpush1.msra.mxu0 0.0
      %797 = vmatprep.subr.mxu0 0.0
      %798 = vmatpush1.msra.mxu0 0.0
      %799 = vmatprep.subr.mxu0 0.0
      %800 = vmatpush1.msra.mxu0 0.0
      %801 = vmatprep.subr.mxu0 0.0
      %802 = vmatpush1.msra.mxu0 0.0
      %803 = vmatprep.subr.mxu0 0.0
      %804 = vmatpush1.msra.mxu0 0.0
      %805 = vmatprep.subr.mxu0 0.0
      %806 = vmatpush1.msra.mxu0 0.0
      %807 = vmatprep.subr.mxu0 0.0
      %808 = vmatpush1.msra.mxu0 0.0
      %809 = vmatprep.subr.mxu0 0.0
      %810 = vmatpush1.msra.mxu0 0.0
      %811 = vmatprep.subr.mxu0 0.0
      %812 = vmatpush1.msra.mxu0 0.0
      %813 = vmatprep.subr.mxu0 0.0
      %814 = vmatpush1.msra.mxu0 0.0
      %815 = vmatprep.subr.mxu0 0.0
      %816 = vmatpush1.msra.mxu0 0.0
      %817 = vmatprep.subr.mxu0 0.0
      %818 = vmatpush1.msra.mxu0 0.0
      %819 = vmatprep.subr.mxu0 0.0
      %820 = vmatpush1.msra.mxu0 0.0
      %821 = vmatprep.subr.mxu0 0.0
      %822 = vmatpush1.msra.mxu0 0.0
      %823 = vmatprep.subr.mxu0 0.0
      %824 = vmatpush1.msra.mxu0 0.0
      %825 = vmatprep.subr.mxu0 0.0
      %826 = vmatpush1.msra.mxu0 0.0
      %827 = vmatprep.subr.mxu0 0.0
      %828 = vmatpush1.msra.mxu0 0.0
      %829 = vmatprep.subr.mxu0 0.0
      %830 = vmatpush1.msra.mxu0 0.0
      %831 = vmatprep.subr.mxu0 0.0
      %832 = vmatpush1.msra.mxu0 0.0
      %833 = vmatprep.subr.mxu0 0.0
      %834 = vmatpush1.msra.mxu0 0.0
      %835 = vmatprep.subr.mxu0 0.0
      %836 = vmatpush1.msra.mxu0 0.0
      %837 = vmatprep.subr.mxu0 0.0
      %838 = vmatpush1.msra.mxu0 0.0
      %839 = vmatprep.subr.mxu0 0.0
      %840 = vmatpush1.msra.mxu0 0.0
      %841 = vmatprep.subr.mxu0 0.0
      %842 = vmatpush1.msra.mxu0 0.0
      %843 = vmatprep.subr.mxu0 0.0
      %844 = vmatpush1.msra.mxu0 0.0
      %845 = vmatprep.subr.mxu0 0.0
      %846 = vmatpush1.msra.mxu0 0.0
      %847 = vmatprep.subr.mxu0 0.0
      %848 = vmatpush1.msra.mxu0 0.0
      %849 = vmatprep.subr.mxu0 0.0
      %850 = vmatpush1.msra.mxu0 0.0
      %851 = vmatprep.subr.mxu0 0.0
      %852 = vmatpush1.msra.mxu0 0.0
      %853 = vmatprep.mubr.f32.mxu0 0.0
      %854 = vmatmul.mubr.f32.gmra.mrb[0].mxu0 %v694
      %v855 = vpop.f32.mrb[0].mxu0
      %v856 = vadd.f32 0.0, %v855
      %v857 = vpop.f32.mrb[0].mxu0
      %858 = vmatprep.mubr.f32.mxu0 0.0
      %859 = vmatmul.mubr.f32.gmra.mrb[0].mxu0 %v697
      %v860 = vpop.f32.mrb[0].mxu0
      %v861 = vadd.f32 0.0, %v860
      %v862 = vpop.f32.mrb[0].mxu0
      %863 = vmatprep.mubr.f32.mxu0 0.0
      %864 = vmatmul.mubr.f32.gmra.mrb[0].mxu0 %v700
      %v865 = vpop.f32.mrb[0].mxu0
      %v866 = vadd.f32 0.0, %v865
      %v867 = vpop.f32.mrb[0].mxu0
      %868 = vmatprep.mubr.f32.mxu0 0.0
      %869 = vmatmul.mubr.f32.gmra.mrb[0].mxu0 %v703
      %v870 = vpop.f32.mrb[0].mxu0
      %v871 = vadd.f32 0.0, %v870
      %v872 = vpop.f32.mrb[0].mxu0
      %873 = vmatprep.mubr.f32.mxu0 0.0
      %874 = vmatmul.mubr.f32.gmra.mrb[0].mxu0 %v706
      %v875 = vpop.f32.mrb[0].mxu0
      %v876 = vadd.f32 0.0, %v875
      %v877 = vpop.f32.mrb[0].mxu0
      %878 = vmatprep.mubr.f32.mxu0 0.0
      %879 = vmatmul.mubr.f32.gmra.mrb[0].mxu0 %v709
      %v880 = vpop.f32.mrb[0].mxu0
      %v881 = vadd.f32 0.0, %v880
      %v882 = vpop.f32.mrb[0].mxu0
      %883 = vmatprep.mubr.f32.mxu0 0.0
      %884 = vmatmul.mubr.f32.gmra.mrb[0].mxu0 %v712
      %v885 = vpop.f32.mrb[0].mxu0
      %v886 = vadd.f32 0.0, %v885
      %v887 = vpop.f32.mrb[0].mxu0
      %888 = vmatprep.mubr.f32.mxu0 0.0
      %889 = vmatmul.mubr.f32.gmra.mrb[0].mxu0 %v715
      %v890 = vpop.f32.mrb[0].mxu0
      %v891 = vadd.f32 0.0, %v890
      %v892 = vpop.f32.mrb[0].mxu0
      %893 = vmatprep.mubr.f32.mxu0 0.0
      %894 = vmatmul.mubr.f32.gmra.mrb[0].mxu0 %v718
      %v895 = vpop.f32.mrb[0].mxu0
      %v896 = vadd.f32 0.0, %v895
      %v897 = vpop.f32.mrb[0].mxu0
      %898 = vmatprep.mubr.f32.mxu0 0.0
      %899 = vmatmul.mubr.f32.gmra.mrb[0].mxu0 %v721
      %v900 = vpop.f32.mrb[0].mxu0
      %v901 = vadd.f32 0.0, %v900
      %v902 = vpop.f32.mrb[0].mxu0
      %903 = vmatprep.mubr.f32.mxu0 0.0
      %904 = vmatmul.mubr.f32.gmra.mrb[0].mxu0 %v724
      %v905 = vpop.f32.mrb[0].mxu0
      %v906 = vadd.f32 0.0, %v905
      %v907 = vpop.f32.mrb[0].mxu0
      %908 = vmatprep.mubr.f32.mxu0 0.0
      %909 = vmatmul.mubr.f32.gmra.mrb[0].mxu0 %v727
      %v910 = vpop.f32.mrb[0].mxu0
      %v911 = vadd.f32 0.0, %v910
      %v912 = vpop.f32.mrb[0].mxu0
      %913 = vmatprep.mubr.f32.mxu0 0.0
      %914 = vmatmul.mubr.f32.gmra.mrb[0].mxu0 %v730
      %v915 = vpop.f32.mrb[0].mxu0
      %v916 = vadd.f32 0.0, %v915
      %v917 = vpop.f32.mrb[0].mxu0
      %918 = vmatprep.mubr.f32.mxu0 0.0
      %919 = vmatmul.mubr.f32.gmra.mrb[0].mxu0 %v733
      %v920 = vpop.f32.mrb[0].mxu0
      %v921 = vadd.f32 0.0, %v920
      %v922 = vpop.f32.mrb[0].mxu0
      %923 = vmatprep.mubr.f32.mxu0 0.0
      %924 = vmatmul.mubr.f32.gmra.mrb[0].mxu0 %v736
      %v925 = vpop.f32.mrb[0].mxu0
      %v926 = vadd.f32 0.0, %v925
      %v927 = vpop.f32.mrb[0].mxu0
      %928 = vmatprep.mubr.f32.mxu0 0.0
      %929 = vmatmul.mubr.f32.gmra.mrb[0].mxu0 %v739
      %v930 = vpop.f32.mrb[0].mxu0
      %v931 = vadd.f32 0.0, %v930
      %v932 = vpop.f32.mrb[0].mxu0
      %933 = vmatprep.mubr.f32.mxu0 0.0
      %934 = vmatmul.mubr.f32.gmra.mrb[0].mxu0 %v742
      %v935 = vpop.f32.mrb[0].mxu0
      %v936 = vadd.f32 0.0, %v935
      %v937 = vpop.f32.mrb[0].mxu0
      %938 = vmatprep.mubr.f32.mxu0 0.0
      %939 = vmatmul.mubr.f32.gmra.mrb[0].mxu0 %v745
      %v940 = vpop.f32.mrb[0].mxu0
      %v941 = vadd.f32 0.0, %v940
      %v942 = vpop.f32.mrb[0].mxu0
      %943 = vmatprep.mubr.f32.mxu0 0.0
      %944 = vmatmul.mubr.f32.gmra.mrb[0].mxu0 %v748
      %v945 = vpop.f32.mrb[0].mxu0
      %v946 = vadd.f32 0.0, %v945
      %v947 = vpop.f32.mrb[0].mxu0
      %948 = vmatprep.mubr.f32.mxu0 0.0
      %949 = vmatmul.mubr.f32.gmra.mrb[0].mxu0 %v751
      %v950 = vpop.f32.mrb[0].mxu0
      %v951 = vadd.f32 0.0, %v950
      %v952 = vpop.f32.mrb[0].mxu0
      %953 = vmatprep.mubr.f32.mxu0 0.0
      %954 = vmatmul.mubr.f32.gmra.mrb[0].mxu0 %v754
      %v955 = vpop.f32.mrb[0].mxu0
      %v956 = vadd.f32 0.0, %v955
      %v957 = vpop.f32.mrb[0].mxu0
      %958 = vmatprep.mubr.f32.mxu0 0.0
      %959 = vmatmul.mubr.f32.gmra.mrb[0].mxu0 %v757
      %v960 = vpop.f32.mrb[0].mxu0
      %v961 = vadd.f32 0.0, %v960
      %v962 = vpop.f32.mrb[0].mxu0
      %963 = vmatprep.mubr.f32.mxu0 0.0
      %964 = vmatmul.mubr.f32.gmra.mrb[0].mxu0 %v760
      %v965 = vpop.f32.mrb[0].mxu0
      %v966 = vadd.f32 0.0, %v965
      %v967 = vpop.f32.mrb[0].mxu0
      %968 = vmatprep.mubr.f32.mxu0 0.0
      %969 = vmatmul.mubr.f32.gmra.mrb[0].mxu0 %v763
      %v970 = vpop.f32.mrb[0].mxu0
      %v971 = vadd.f32 0.0, %v970
      %v972 = vpop.f32.mrb[0].mxu0
      %973 = vmatprep.mubr.f32.mxu0 0.0
      %974 = vmatmul.mubr.f32.gmra.mrb[0].mxu0 %v766
      %v975 = vpop.f32.mrb[0].mxu0
      %v976 = vadd.f32 0.0, %v975
      %v977 = vpop.f32.mrb[0].mxu0
      %978 = vmatprep.mubr.f32.mxu0 0.0
      %979 = vmatmul.mubr.f32.gmra.mrb[0].mxu0 %v769
      %v980 = vpop.f32.mrb[0].mxu0
      %v981 = vadd.f32 0.0, %v980
      %v982 = vpop.f32.mrb[0].mxu0
      %983 = vmatprep.mubr.f32.mxu0 0.0
      %984 = vmatmul.mubr.f32.gmra.mrb[0].mxu0 %v772
      %v985 = vpop.f32.mrb[0].mxu0
      %v986 = vadd.f32 0.0, %v985
      %v987 = vpop.f32.mrb[0].mxu0
      %988 = vmatprep.mubr.f32.mxu0 0.0
      %989 = vmatmul.mubr.f32.gmra.mrb[0].mxu0 %v775
      %v990 = vpop.f32.mrb[0].mxu0
      %v991 = vadd.f32 0.0, %v990
      %v992 = vpop.f32.mrb[0].mxu0
      %993 = vmatprep.mubr.f32.mxu0 0.0
      %994 = vmatmul.mubr.f32.gmra.mrb[0].mxu0 %v778
      %v995 = vpop.f32.mrb[0].mxu0
      %v996 = vadd.f32 0.0, %v995
      %v997 = vpop.f32.mrb[0].mxu0
      %998 = vmatprep.mubr.f32.mxu0 0.0
      %999 = vmatmul.mubr.f32.gmra.mrb[0].mxu0 %v781
      %v1000 = vpop.f32.mrb[0].mxu0
      %v1001 = vadd.f32 0.0, %v1000
      %v1002 = vpop.f32.mrb[0].mxu0
      %1003 = vmatprep.mubr.f32.mxu0 0.0
      %1004 = vmatmul.mubr.f32.gmra.mrb[0].mxu0 %v784
      %v1005 = vpop.f32.mrb[0].mxu0
      %v1006 = vadd.f32 0.0, %v1005
      %v1007 = vpop.f32.mrb[0].mxu0
      %1008 = vmatprep.mubr.f32.mxu0 0.0
      %1009 = vmatmul.mubr.f32.gmra.mrb[0].mxu0 %v787
      %v1010 = vpop.f32.mrb[0].mxu0
      %v1011 = vadd.f32 0.0, %v1010
      %v1012 = vpop.f32.mrb[0].mxu0
      %1013 = vdwg.mxu0
      %v1014 = vld [vmem:[#allocation3] sm:$0xff]
      %v1015 = vld [vmem:[#allocation3 + $0x8] sm:$0xff]
      %v1016 = vld [vmem:[#allocation3 + $0x10] sm:$0xff]
      %v1017 = vld [vmem:[#allocation3 + $0x18] sm:$0xff]
      %v1018 = vld [vmem:[#allocation3 + $0x20] sm:$0xff]
      %v1019 = vld [vmem:[#allocation3 + $0x28] sm:$0xff]
      %v1020 = vld [vmem:[#allocation3 + $0x30] sm:$0xff]
      %v1021 = vld [vmem:[#allocation3 + $0x38] sm:$0xff]
      %v1022 = vld [vmem:[#allocation3 + $0x40] sm:$0xff]
      %v1023 = vld [vmem:[#allocation3 + $0x48] sm:$0xff]
      %v1024 = vld [vmem:[#allocation3 + $0x50] sm:$0xff]
      %v1025 = vld [vmem:[#allocation3 + $0x58] sm:$0xff]
      %v1026 = vld [vmem:[#allocation3 + $0x60] sm:$0xff]
      %v1027 = vld [vmem:[#allocation3 + $0x68] sm:$0xff]
      %v1028 = vld [vmem:[#allocation3 + $0x70] sm:$0xff]
      %v1029 = vld [vmem:[#allocation3 + $0x78] sm:$0xff]
      %v1030 = vld [vmem:[#allocation3 + $0x80] sm:$0xff]
      %v1031 = vld [vmem:[#allocation3 + $0x88] sm:$0xff]
      %v1032 = vld [vmem:[#allocation3 + $0x90] sm:$0xff]
      %v1033 = vld [vmem:[#allocation3 + $0x98] sm:$0xff]
      %v1034 = vld [vmem:[#allocation3 + $0xa0] sm:$0xff]
      %v1035 = vld [vmem:[#allocation3 + $0xa8] sm:$0xff]
      %v1036 = vld [vmem:[#allocation3 + $0xb0] sm:$0xff]
      %v1037 = vld [vmem:[#allocation3 + $0xb8] sm:$0xff]
      %v1038 = vld [vmem:[#allocation3 + $0xc0] sm:$0xff]
      %v1039 = vld [vmem:[#allocation3 + $0xc8] sm:$0xff]
      %v1040 = vld [vmem:[#allocation3 + $0xd0] sm:$0xff]
      %v1041 = vld [vmem:[#allocation3 + $0xd8] sm:$0xff]
      %v1042 = vld [vmem:[#allocation3 + $0xe0] sm:$0xff]
      %v1043 = vld [vmem:[#allocation3 + $0xe8] sm:$0xff]
      %v1044 = vld [vmem:[#allocation3 + $0xf0] sm:$0xff]
      %v1045 = vld [vmem:[#allocation3 + $0xf8] sm:$0xff]
      %v1046 = vadd.f32 %v1014, %v856
      %v1047 = vadd.f32 %v1015, %v861
      %v1048 = vadd.f32 %v1016, %v866
      %v1049 = vadd.f32 %v1017, %v871
      %v1050 = vadd.f32 %v1018, %v876
      %v1051 = vadd.f32 %v1019, %v881
      %v1052 = vadd.f32 %v1020, %v886
      %v1053 = vadd.f32 %v1021, %v891
      %v1054 = vadd.f32 %v1022, %v896
      %v1055 = vadd.f32 %v1023, %v901
      %v1056 = vadd.f32 %v1024, %v906
      %v1057 = vadd.f32 %v1025, %v911
      %v1058 = vadd.f32 %v1026, %v916
      %v1059 = vadd.f32 %v1027, %v921
      %v1060 = vadd.f32 %v1028, %v926
      %v1061 = vadd.f32 %v1029, %v931
      %v1062 = vadd.f32 %v1030, %v936
      %v1063 = vadd.f32 %v1031, %v941
      %v1064 = vadd.f32 %v1032, %v946
      %v1065 = vadd.f32 %v1033, %v951
      %v1066 = vadd.f32 %v1034, %v956
      %v1067 = vadd.f32 %v1035, %v961
      %v1068 = vadd.f32 %v1036, %v966
      %v1069 = vadd.f32 %v1037, %v971
      %v1070 = vadd.f32 %v1038, %v976
      %v1071 = vadd.f32 %v1039, %v981
      %v1072 = vadd.f32 %v1040, %v986
      %v1073 = vadd.f32 %v1041, %v991
      %v1074 = vadd.f32 %v1042, %v996
      %v1075 = vadd.f32 %v1043, %v1001
      %v1076 = vadd.f32 %v1044, %v1006
      %v1077 = vadd.f32 %v1045, %v1011
      %1078 = vst.msk [vmem:[#allocation3] sm:$0xff] %vm305, %v1046
      %1079 = vst.msk [vmem:[#allocation3 + $0x8] sm:$0xff] %vm305, %v1047
      %1080 = vst.msk [vmem:[#allocation3 + $0x10] sm:$0xff] %vm305, %v1048
      %1081 = vst.msk [vmem:[#allocation3 + $0x18] sm:$0xff] %vm305, %v1049
      %1082 = vst.msk [vmem:[#allocation3 + $0x20] sm:$0xff] %vm305, %v1050
      %1083 = vst.msk [vmem:[#allocation3 + $0x28] sm:$0xff] %vm305, %v1051
      %1084 = vst.msk [vmem:[#allocation3 + $0x30] sm:$0xff] %vm305, %v1052
      %1085 = vst.msk [vmem:[#allocation3 + $0x38] sm:$0xff] %vm305, %v1053
      %1086 = vst.msk [vmem:[#allocation3 + $0x40] sm:$0xff] %vm305, %v1054
      %1087 = vst.msk [vmem:[#allocation3 + $0x48] sm:$0xff] %vm305, %v1055
      %1088 = vst.msk [vmem:[#allocation3 + $0x50] sm:$0xff] %vm305, %v1056
      %1089 = vst.msk [vmem:[#allocation3 + $0x58] sm:$0xff] %vm305, %v1057
      %1090 = vst.msk [vmem:[#allocation3 + $0x60] sm:$0xff] %vm305, %v1058
      %1091 = vst.msk [vmem:[#allocation3 + $0x68] sm:$0xff] %vm305, %v1059
      %1092 = vst.msk [vmem:[#allocation3 + $0x70] sm:$0xff] %vm305, %v1060
      %1093 = vst.msk [vmem:[#allocation3 + $0x78] sm:$0xff] %vm305, %v1061
      %1094 = vst.msk [vmem:[#allocation3 + $0x80] sm:$0xff] %vm305, %v1062
      %1095 = vst.msk [vmem:[#allocation3 + $0x88] sm:$0xff] %vm305, %v1063
      %1096 = vst.msk [vmem:[#allocation3 + $0x90] sm:$0xff] %vm305, %v1064
      %1097 = vst.msk [vmem:[#allocation3 + $0x98] sm:$0xff] %vm305, %v1065
      %1098 = vst.msk [vmem:[#allocation3 + $0xa0] sm:$0xff] %vm305, %v1066
      %1099 = vst.msk [vmem:[#allocation3 + $0xa8] sm:$0xff] %vm305, %v1067
      %1100 = vst.msk [vmem:[#allocation3 + $0xb0] sm:$0xff] %vm305, %v1068
      %1101 = vst.msk [vmem:[#allocation3 + $0xb8] sm:$0xff] %vm305, %v1069
      %1102 = vst.msk [vmem:[#allocation3 + $0xc0] sm:$0xff] %vm305, %v1070
      %1103 = vst.msk [vmem:[#allocation3 + $0xc8] sm:$0xff] %vm305, %v1071
      %1104 = vst.msk [vmem:[#allocation3 + $0xd0] sm:$0xff] %vm305, %v1072
      %1105 = vst.msk [vmem:[#allocation3 + $0xd8] sm:$0xff] %vm305, %v1073
      %1106 = vst.msk [vmem:[#allocation3 + $0xe0] sm:$0xff] %vm305, %v1074
      %1107 = vst.msk [vmem:[#allocation3 + $0xe8] sm:$0xff] %vm305, %v1075
      %1108 = vst.msk [vmem:[#allocation3 + $0xf0] sm:$0xff] %vm305, %v1076
      %1109 = vst.msk [vmem:[#allocation3 + $0xf8] sm:$0xff] %vm305, %v1077
      %v1110 = vld [vmem:[%s261 + $0x2] sm:$0xff]
      %v1111 = vld [vmem:[%s261 + $0xa] sm:$0xff]
      %v1112 = vld [vmem:[%s261 + $0x1a] sm:$0xff]
      %v1113 = vld [vmem:[%s261 + $0x22] sm:$0xff]
      %v1114 = vld [vmem:[%s261 + $0x32] sm:$0xff]
      %v1115 = vld [vmem:[%s261 + $0x3a] sm:$0xff]
      %v1116 = vld [vmem:[%s261 + $0x4a] sm:$0xff]
      %v1117 = vld [vmem:[%s261 + $0x52] sm:$0xff]
      %v1118 = vld [vmem:[%s261 + $0x62] sm:$0xff]
      %v1119 = vld [vmem:[%s261 + $0x6a] sm:$0xff]
      %v1120 = vld [vmem:[%s261 + $0x7a] sm:$0xff]
      %v1121 = vld [vmem:[%s261 + $0x82] sm:$0xff]
      %v1122 = vld [vmem:[%s261 + $0x92] sm:$0xff]
      %v1123 = vld [vmem:[%s261 + $0x9a] sm:$0xff]
      %v1124 = vld [vmem:[%s261 + $0xaa] sm:$0xff]
      %v1125 = vld [vmem:[%s261 + $0xb2] sm:$0xff]
      %v1126 = vld [vmem:[%s261 + $0xc2] sm:$0xff]
      %v1127 = vld [vmem:[%s261 + $0xca] sm:$0xff]
      %v1128 = vld [vmem:[%s261 + $0xda] sm:$0xff]
      %v1129 = vld [vmem:[%s261 + $0xe2] sm:$0xff]
      %v1130 = vld [vmem:[%s261 + $0xf2] sm:$0xff]
      %v1131 = vld [vmem:[%s261 + $0xfa] sm:$0xff]
      %v1132 = vld [vmem:[%s261 + $0x10a] sm:$0xff]
      %v1133 = vld [vmem:[%s261 + $0x112] sm:$0xff]
      %v1134 = vld [vmem:[%s261 + $0x122] sm:$0xff]
      %v1135 = vld [vmem:[%s261 + $0x12a] sm:$0xff]
      %v1136 = vld [vmem:[%s261 + $0x13a] sm:$0xff]
      %v1137 = vld [vmem:[%s261 + $0x142] sm:$0xff]
      %v1138 = vld [vmem:[%s261 + $0x152] sm:$0xff]
      %v1139 = vld [vmem:[%s261 + $0x15a] sm:$0xff]
      %v1140 = vld [vmem:[%s261 + $0x16a] sm:$0xff]
      %v1141 = vld [vmem:[%s261 + $0x172] sm:$0xff]
      %s1142 = scalar_lea.vmem %s2, 16
      %v1143 = vld [vmem:[%s1142] sm:$0xff]
      %v1145 = vsel %vm305, %v1110, 0
      %v1148 = vsel %vm305, %v1111, 0
      %v1151 = vsel %vm305, %v1112, 0
      %v1154 = vsel %vm305, %v1113, 0
      %v1157 = vsel %vm305, %v1114, 0
      %v1160 = vsel %vm305, %v1115, 0
      %v1163 = vsel %vm305, %v1116, 0
      %v1166 = vsel %vm305, %v1117, 0
      %v1169 = vsel %vm305, %v1118, 0
      %v1172 = vsel %vm305, %v1119, 0
      %v1175 = vsel %vm305, %v1120, 0
      %v1178 = vsel %vm305, %v1121, 0
      %v1181 = vsel %vm305, %v1122, 0
      %v1184 = vsel %vm305, %v1123, 0
      %v1187 = vsel %vm305, %v1124, 0
      %v1190 = vsel %vm305, %v1125, 0
      %v1193 = vsel %vm305, %v1126, 0
      %v1196 = vsel %vm305, %v1127, 0
      %v1199 = vsel %vm305, %v1128, 0
      %v1202 = vsel %vm305, %v1129, 0
      %v1205 = vsel %vm305, %v1130, 0
      %v1208 = vsel %vm305, %v1131, 0
      %v1211 = vsel %vm305, %v1132, 0
      %v1214 = vsel %vm305, %v1133, 0
      %v1217 = vsel %vm305, %v1134, 0
      %v1220 = vsel %vm305, %v1135, 0
      %v1223 = vsel %vm305, %v1136, 0
      %v1226 = vsel %vm305, %v1137, 0
      %v1229 = vsel %vm305, %v1138, 0
      %v1232 = vsel %vm305, %v1139, 0
      %v1235 = vsel %vm305, %v1140, 0
      %v1238 = vsel %vm305, %v1141, 0
      %1240 = vmatprep.subr.mxu0 0.0
      %1241 = vmatpush1.msra.mxu0 %v1143
      %1242 = vmatprep.subr.mxu0 0.0
      %1243 = vmatpush1.msra.mxu0 0.0
      %1244 = vmatprep.subr.mxu0 0.0
      %1245 = vmatpush1.msra.mxu0 0.0
      %1246 = vmatprep.subr.mxu0 0.0
      %1247 = vmatpush1.msra.mxu0 0.0
      %1248 = vmatprep.subr.mxu0 0.0
      %1249 = vmatpush1.msra.mxu0 0.0
      %1250 = vmatprep.subr.mxu0 0.0
      %1251 = vmatpush1.msra.mxu0 0.0
      %1252 = vmatprep.subr.mxu0 0.0
      %1253 = vmatpush1.msra.mxu0 0.0
      %1254 = vmatprep.subr.mxu0 0.0
      %1255 = vmatpush1.msra.mxu0 0.0
      %1256 = vmatprep.subr.mxu0 0.0
      %1257 = vmatpush1.msra.mxu0 0.0
      %1258 = vmatprep.subr.mxu0 0.0
      %1259 = vmatpush1.msra.mxu0 0.0
      %1260 = vmatprep.subr.mxu0 0.0
      %1261 = vmatpush1.msra.mxu0 0.0
      %1262 = vmatprep.subr.mxu0 0.0
      %1263 = vmatpush1.msra.mxu0 0.0
      %1264 = vmatprep.subr.mxu0 0.0
      %1265 = vmatpush1.msra.mxu0 0.0
      %1266 = vmatprep.subr.mxu0 0.0
      %1267 = vmatpush1.msra.mxu0 0.0
      %1268 = vmatprep.subr.mxu0 0.0
      %1269 = vmatpush1.msra.mxu0 0.0
      %1270 = vmatprep.subr.mxu0 0.0
      %1271 = vmatpush1.msra.mxu0 0.0
      %1272 = vmatprep.subr.mxu0 0.0
      %1273 = vmatpush1.msra.mxu0 0.0
      %1274 = vmatprep.subr.mxu0 0.0
      %1275 = vmatpush1.msra.mxu0 0.0
      %1276 = vmatprep.subr.mxu0 0.0
      %1277 = vmatpush1.msra.mxu0 0.0
      %1278 = vmatprep.subr.mxu0 0.0
      %1279 = vmatpush1.msra.mxu0 0.0
      %1280 = vmatprep.subr.mxu0 0.0
      %1281 = vmatpush1.msra.mxu0 0.0
      %1282 = vmatprep.subr.mxu0 0.0
      %1283 = vmatpush1.msra.mxu0 0.0
      %1284 = vmatprep.subr.mxu0 0.0
      %1285 = vmatpush1.msra.mxu0 0.0
      %1286 = vmatprep.subr.mxu0 0.0
      %1287 = vmatpush1.msra.mxu0 0.0
      %1288 = vmatprep.subr.mxu0 0.0
      %1289 = vmatpush1.msra.mxu0 0.0
      %1290 = vmatprep.subr.mxu0 0.0
      %1291 = vmatpush1.msra.mxu0 0.0
      %1292 = vmatprep.subr.mxu0 0.0
      %1293 = vmatpush1.msra.mxu0 0.0
      %1294 = vmatprep.subr.mxu0 0.0
      %1295 = vmatpush1.msra.mxu0 0.0
      %1296 = vmatprep.subr.mxu0 0.0
      %1297 = vmatpush1.msra.mxu0 0.0
      %1298 = vmatprep.subr.mxu0 0.0
      %1299 = vmatpush1.msra.mxu0 0.0
      %1300 = vmatprep.subr.mxu0 0.0
      %1301 = vmatpush1.msra.mxu0 0.0
      %1302 = vmatprep.subr.mxu0 0.0
      %1303 = vmatpush1.msra.mxu0 0.0
      %1304 = vmatprep.mubr.f32.mxu0 0.0
      %1305 = vmatmul.mubr.f32.gmra.mrb[0].mxu0 %v1145
      %v1306 = vpop.f32.mrb[0].mxu0
      %v1307 = vadd.f32 0.0, %v1306
      %v1308 = vpop.f32.mrb[0].mxu0
      %1309 = vmatprep.mubr.f32.mxu0 0.0
      %1310 = vmatmul.mubr.f32.gmra.mrb[0].mxu0 %v1148
      %v1311 = vpop.f32.mrb[0].mxu0
      %v1312 = vadd.f32 0.0, %v1311
      %v1313 = vpop.f32.mrb[0].mxu0
      %1314 = vmatprep.mubr.f32.mxu0 0.0
      %1315 = vmatmul.mubr.f32.gmra.mrb[0].mxu0 %v1151
      %v1316 = vpop.f32.mrb[0].mxu0
      %v1317 = vadd.f32 0.0, %v1316
      %v1318 = vpop.f32.mrb[0].mxu0
      %1319 = vmatprep.mubr.f32.mxu0 0.0
      %1320 = vmatmul.mubr.f32.gmra.mrb[0].mxu0 %v1154
      %v1321 = vpop.f32.mrb[0].mxu0
      %v1322 = vadd.f32 0.0, %v1321
      %v1323 = vpop.f32.mrb[0].mxu0
      %1324 = vmatprep.mubr.f32.mxu0 0.0
      %1325 = vmatmul.mubr.f32.gmra.mrb[0].mxu0 %v1157
      %v1326 = vpop.f32.mrb[0].mxu0
      %v1327 = vadd.f32 0.0, %v1326
      %v1328 = vpop.f32.mrb[0].mxu0
      %1329 = vmatprep.mubr.f32.mxu0 0.0
      %1330 = vmatmul.mubr.f32.gmra.mrb[0].mxu0 %v1160
      %v1331 = vpop.f32.mrb[0].mxu0
      %v1332 = vadd.f32 0.0, %v1331
      %v1333 = vpop.f32.mrb[0].mxu0
      %1334 = vmatprep.mubr.f32.mxu0 0.0
      %1335 = vmatmul.mubr.f32.gmra.mrb[0].mxu0 %v1163
      %v1336 = vpop.f32.mrb[0].mxu0
      %v1337 = vadd.f32 0.0, %v1336
      %v1338 = vpop.f32.mrb[0].mxu0
      %1339 = vmatprep.mubr.f32.mxu0 0.0
      %1340 = vmatmul.mubr.f32.gmra.mrb[0].mxu0 %v1166
      %v1341 = vpop.f32.mrb[0].mxu0
      %v1342 = vadd.f32 0.0, %v1341
      %v1343 = vpop.f32.mrb[0].mxu0
      %1344 = vmatprep.mubr.f32.mxu0 0.0
      %1345 = vmatmul.mubr.f32.gmra.mrb[0].mxu0 %v1169
      %v1346 = vpop.f32.mrb[0].mxu0
      %v1347 = vadd.f32 0.0, %v1346
      %v1348 = vpop.f32.mrb[0].mxu0
      %1349 = vmatprep.mubr.f32.mxu0 0.0
      %1350 = vmatmul.mubr.f32.gmra.mrb[0].mxu0 %v1172
      %v1351 = vpop.f32.mrb[0].mxu0
      %v1352 = vadd.f32 0.0, %v1351
      %v1353 = vpop.f32.mrb[0].mxu0
      %1354 = vmatprep.mubr.f32.mxu0 0.0
      %1355 = vmatmul.mubr.f32.gmra.mrb[0].mxu0 %v1175
      %v1356 = vpop.f32.mrb[0].mxu0
      %v1357 = vadd.f32 0.0, %v1356
      %v1358 = vpop.f32.mrb[0].mxu0
      %1359 = vmatprep.mubr.f32.mxu0 0.0
      %1360 = vmatmul.mubr.f32.gmra.mrb[0].mxu0 %v1178
      %v1361 = vpop.f32.mrb[0].mxu0
      %v1362 = vadd.f32 0.0, %v1361
      %v1363 = vpop.f32.mrb[0].mxu0
      %1364 = vmatprep.mubr.f32.mxu0 0.0
      %1365 = vmatmul.mubr.f32.gmra.mrb[0].mxu0 %v1181
      %v1366 = vpop.f32.mrb[0].mxu0
      %v1367 = vadd.f32 0.0, %v1366
      %v1368 = vpop.f32.mrb[0].mxu0
      %1369 = vmatprep.mubr.f32.mxu0 0.0
      %1370 = vmatmul.mubr.f32.gmra.mrb[0].mxu0 %v1184
      %v1371 = vpop.f32.mrb[0].mxu0
      %v1372 = vadd.f32 0.0, %v1371
      %v1373 = vpop.f32.mrb[0].mxu0
      %1374 = vmatprep.mubr.f32.mxu0 0.0
      %1375 = vmatmul.mubr.f32.gmra.mrb[0].mxu0 %v1187
      %v1376 = vpop.f32.mrb[0].mxu0
      %v1377 = vadd.f32 0.0, %v1376
      %v1378 = vpop.f32.mrb[0].mxu0
      %1379 = vmatprep.mubr.f32.mxu0 0.0
      %1380 = vmatmul.mubr.f32.gmra.mrb[0].mxu0 %v1190
      %v1381 = vpop.f32.mrb[0].mxu0
      %v1382 = vadd.f32 0.0, %v1381
      %v1383 = vpop.f32.mrb[0].mxu0
      %1384 = vmatprep.mubr.f32.mxu0 0.0
      %1385 = vmatmul.mubr.f32.gmra.mrb[0].mxu0 %v1193
      %v1386 = vpop.f32.mrb[0].mxu0
      %v1387 = vadd.f32 0.0, %v1386
      %v1388 = vpop.f32.mrb[0].mxu0
      %1389 = vmatprep.mubr.f32.mxu0 0.0
      %1390 = vmatmul.mubr.f32.gmra.mrb[0].mxu0 %v1196
      %v1391 = vpop.f32.mrb[0].mxu0
      %v1392 = vadd.f32 0.0, %v1391
      %v1393 = vpop.f32.mrb[0].mxu0
      %1394 = vmatprep.mubr.f32.mxu0 0.0
      %1395 = vmatmul.mubr.f32.gmra.mrb[0].mxu0 %v1199
      %v1396 = vpop.f32.mrb[0].mxu0
      %v1397 = vadd.f32 0.0, %v1396
      %v1398 = vpop.f32.mrb[0].mxu0
      %1399 = vmatprep.mubr.f32.mxu0 0.0
      %1400 = vmatmul.mubr.f32.gmra.mrb[0].mxu0 %v1202
      %v1401 = vpop.f32.mrb[0].mxu0
      %v1402 = vadd.f32 0.0, %v1401
      %v1403 = vpop.f32.mrb[0].mxu0
      %1404 = vmatprep.mubr.f32.mxu0 0.0
      %1405 = vmatmul.mubr.f32.gmra.mrb[0].mxu0 %v1205
      %v1406 = vpop.f32.mrb[0].mxu0
      %v1407 = vadd.f32 0.0, %v1406
      %v1408 = vpop.f32.mrb[0].mxu0
      %1409 = vmatprep.mubr.f32.mxu0 0.0
      %1410 = vmatmul.mubr.f32.gmra.mrb[0].mxu0 %v1208
      %v1411 = vpop.f32.mrb[0].mxu0
      %v1412 = vadd.f32 0.0, %v1411
      %v1413 = vpop.f32.mrb[0].mxu0
      %1414 = vmatprep.mubr.f32.mxu0 0.0
      %1415 = vmatmul.mubr.f32.gmra.mrb[0].mxu0 %v1211
      %v1416 = vpop.f32.mrb[0].mxu0
      %v1417 = vadd.f32 0.0, %v1416
      %v1418 = vpop.f32.mrb[0].mxu0
      %1419 = vmatprep.mubr.f32.mxu0 0.0
      %1420 = vmatmul.mubr.f32.gmra.mrb[0].mxu0 %v1214
      %v1421 = vpop.f32.mrb[0].mxu0
      %v1422 = vadd.f32 0.0, %v1421
      %v1423 = vpop.f32.mrb[0].mxu0
      %1424 = vmatprep.mubr.f32.mxu0 0.0
      %1425 = vmatmul.mubr.f32.gmra.mrb[0].mxu0 %v1217
      %v1426 = vpop.f32.mrb[0].mxu0
      %v1427 = vadd.f32 0.0, %v1426
      %v1428 = vpop.f32.mrb[0].mxu0
      %1429 = vmatprep.mubr.f32.mxu0 0.0
      %1430 = vmatmul.mubr.f32.gmra.mrb[0].mxu0 %v1220
      %v1431 = vpop.f32.mrb[0].mxu0
      %v1432 = vadd.f32 0.0, %v1431
      %v1433 = vpop.f32.mrb[0].mxu0
      %1434 = vmatprep.mubr.f32.mxu0 0.0
      %1435 = vmatmul.mubr.f32.gmra.mrb[0].mxu0 %v1223
      %v1436 = vpop.f32.mrb[0].mxu0
      %v1437 = vadd.f32 0.0, %v1436
      %v1438 = vpop.f32.mrb[0].mxu0
      %1439 = vmatprep.mubr.f32.mxu0 0.0
      %1440 = vmatmul.mubr.f32.gmra.mrb[0].mxu0 %v1226
      %v1441 = vpop.f32.mrb[0].mxu0
      %v1442 = vadd.f32 0.0, %v1441
      %v1443 = vpop.f32.mrb[0].mxu0
      %1444 = vmatprep.mubr.f32.mxu0 0.0
      %1445 = vmatmul.mubr.f32.gmra.mrb[0].mxu0 %v1229
      %v1446 = vpop.f32.mrb[0].mxu0
      %v1447 = vadd.f32 0.0, %v1446
      %v1448 = vpop.f32.mrb[0].mxu0
      %1449 = vmatprep.mubr.f32.mxu0 0.0
      %1450 = vmatmul.mubr.f32.gmra.mrb[0].mxu0 %v1232
      %v1451 = vpop.f32.mrb[0].mxu0
      %v1452 = vadd.f32 0.0, %v1451
      %v1453 = vpop.f32.mrb[0].mxu0
      %1454 = vmatprep.mubr.f32.mxu0 0.0
      %1455 = vmatmul.mubr.f32.gmra.mrb[0].mxu0 %v1235
      %v1456 = vpop.f32.mrb[0].mxu0
      %v1457 = vadd.f32 0.0, %v1456
      %v1458 = vpop.f32.mrb[0].mxu0
      %1459 = vmatprep.mubr.f32.mxu0 0.0
      %1460 = vmatmul.mubr.f32.gmra.mrb[0].mxu0 %v1238
      %v1461 = vpop.f32.mrb[0].mxu0
      %v1462 = vadd.f32 0.0, %v1461
      %v1463 = vpop.f32.mrb[0].mxu0
      %1464 = vdwg.mxu0
      %v1465 = vld [vmem:[#allocation3] sm:$0xff]
      %v1466 = vld [vmem:[#allocation3 + $0x8] sm:$0xff]
      %v1467 = vld [vmem:[#allocation3 + $0x10] sm:$0xff]
      %v1468 = vld [vmem:[#allocation3 + $0x18] sm:$0xff]
      %v1469 = vld [vmem:[#allocation3 + $0x20] sm:$0xff]
      %v1470 = vld [vmem:[#allocation3 + $0x28] sm:$0xff]
      %v1471 = vld [vmem:[#allocation3 + $0x30] sm:$0xff]
      %v1472 = vld [vmem:[#allocation3 + $0x38] sm:$0xff]
      %v1473 = vld [vmem:[#allocation3 + $0x40] sm:$0xff]
      %v1474 = vld [vmem:[#allocation3 + $0x48] sm:$0xff]
      %v1475 = vld [vmem:[#allocation3 + $0x50] sm:$0xff]
      %v1476 = vld [vmem:[#allocation3 + $0x58] sm:$0xff]
      %v1477 = vld [vmem:[#allocation3 + $0x60] sm:$0xff]
      %v1478 = vld [vmem:[#allocation3 + $0x68] sm:$0xff]
      %v1479 = vld [vmem:[#allocation3 + $0x70] sm:$0xff]
      %v1480 = vld [vmem:[#allocation3 + $0x78] sm:$0xff]
      %v1481 = vld [vmem:[#allocation3 + $0x80] sm:$0xff]
      %v1482 = vld [vmem:[#allocation3 + $0x88] sm:$0xff]
      %v1483 = vld [vmem:[#allocation3 + $0x90] sm:$0xff]
      %v1484 = vld [vmem:[#allocation3 + $0x98] sm:$0xff]
      %v1485 = vld [vmem:[#allocation3 + $0xa0] sm:$0xff]
      %v1486 = vld [vmem:[#allocation3 + $0xa8] sm:$0xff]
      %v1487 = vld [vmem:[#allocation3 + $0xb0] sm:$0xff]
      %v1488 = vld [vmem:[#allocation3 + $0xb8] sm:$0xff]
      %v1489 = vld [vmem:[#allocation3 + $0xc0] sm:$0xff]
      %v1490 = vld [vmem:[#allocation3 + $0xc8] sm:$0xff]
      %v1491 = vld [vmem:[#allocation3 + $0xd0] sm:$0xff]
      %v1492 = vld [vmem:[#allocation3 + $0xd8] sm:$0xff]
      %v1493 = vld [vmem:[#allocation3 + $0xe0] sm:$0xff]
      %v1494 = vld [vmem:[#allocation3 + $0xe8] sm:$0xff]
      %v1495 = vld [vmem:[#allocation3 + $0xf0] sm:$0xff]
      %v1496 = vld [vmem:[#allocation3 + $0xf8] sm:$0xff]
      %v1497 = vadd.f32 %v1465, %v1307
      %v1498 = vadd.f32 %v1466, %v1312
      %v1499 = vadd.f32 %v1467, %v1317
      %v1500 = vadd.f32 %v1468, %v1322
      %v1501 = vadd.f32 %v1469, %v1327
      %v1502 = vadd.f32 %v1470, %v1332
      %v1503 = vadd.f32 %v1471, %v1337
      %v1504 = vadd.f32 %v1472, %v1342
      %v1505 = vadd.f32 %v1473, %v1347
      %v1506 = vadd.f32 %v1474, %v1352
      %v1507 = vadd.f32 %v1475, %v1357
      %v1508 = vadd.f32 %v1476, %v1362
      %v1509 = vadd.f32 %v1477, %v1367
      %v1510 = vadd.f32 %v1478, %v1372
      %v1511 = vadd.f32 %v1479, %v1377
      %v1512 = vadd.f32 %v1480, %v1382
      %v1513 = vadd.f32 %v1481, %v1387
      %v1514 = vadd.f32 %v1482, %v1392
      %v1515 = vadd.f32 %v1483, %v1397
      %v1516 = vadd.f32 %v1484, %v1402
      %v1517 = vadd.f32 %v1485, %v1407
      %v1518 = vadd.f32 %v1486, %v1412
      %v1519 = vadd.f32 %v1487, %v1417
      %v1520 = vadd.f32 %v1488, %v1422
      %v1521 = vadd.f32 %v1489, %v1427
      %v1522 = vadd.f32 %v1490, %v1432
      %v1523 = vadd.f32 %v1491, %v1437
      %v1524 = vadd.f32 %v1492, %v1442
      %v1525 = vadd.f32 %v1493, %v1447
      %v1526 = vadd.f32 %v1494, %v1452
      %v1527 = vadd.f32 %v1495, %v1457
      %v1528 = vadd.f32 %v1496, %v1462
      %1529 = vst.msk [vmem:[#allocation3] sm:$0xff] %vm305, %v1497
      %1530 = vst.msk [vmem:[#allocation3 + $0x8] sm:$0xff] %vm305, %v1498
      %1531 = vst.msk [vmem:[#allocation3 + $0x10] sm:$0xff] %vm305, %v1499
      %1532 = vst.msk [vmem:[#allocation3 + $0x18] sm:$0xff] %vm305, %v1500
      %1533 = vst.msk [vmem:[#allocation3 + $0x20] sm:$0xff] %vm305, %v1501
      %1534 = vst.msk [vmem:[#allocation3 + $0x28] sm:$0xff] %vm305, %v1502
      %1535 = vst.msk [vmem:[#allocation3 + $0x30] sm:$0xff] %vm305, %v1503
      %1536 = vst.msk [vmem:[#allocation3 + $0x38] sm:$0xff] %vm305, %v1504
      %1537 = vst.msk [vmem:[#allocation3 + $0x40] sm:$0xff] %vm305, %v1505
      %1538 = vst.msk [vmem:[#allocation3 + $0x48] sm:$0xff] %vm305, %v1506
      %1539 = vst.msk [vmem:[#allocation3 + $0x50] sm:$0xff] %vm305, %v1507
      %1540 = vst.msk [vmem:[#allocation3 + $0x58] sm:$0xff] %vm305, %v1508
      %1541 = vst.msk [vmem:[#allocation3 + $0x60] sm:$0xff] %vm305, %v1509
      %1542 = vst.msk [vmem:[#allocation3 + $0x68] sm:$0xff] %vm305, %v1510
      %1543 = vst.msk [vmem:[#allocation3 + $0x70] sm:$0xff] %vm305, %v1511
      %1544 = vst.msk [vmem:[#allocation3 + $0x78] sm:$0xff] %vm305, %v1512
      %1545 = vst.msk [vmem:[#allocation3 + $0x80] sm:$0xff] %vm305, %v1513
      %1546 = vst.msk [vmem:[#allocation3 + $0x88] sm:$0xff] %vm305, %v1514
      %1547 = vst.msk [vmem:[#allocation3 + $0x90] sm:$0xff] %vm305, %v1515
      %1548 = vst.msk [vmem:[#allocation3 + $0x98] sm:$0xff] %vm305, %v1516
      %1549 = vst.msk [vmem:[#allocation3 + $0xa0] sm:$0xff] %vm305, %v1517
      %1550 = vst.msk [vmem:[#allocation3 + $0xa8] sm:$0xff] %vm305, %v1518
      %1551 = vst.msk [vmem:[#allocation3 + $0xb0] sm:$0xff] %vm305, %v1519
      %1552 = vst.msk [vmem:[#allocation3 + $0xb8] sm:$0xff] %vm305, %v1520
      %1553 = vst.msk [vmem:[#allocation3 + $0xc0] sm:$0xff] %vm305, %v1521
      %1554 = vst.msk [vmem:[#allocation3 + $0xc8] sm:$0xff] %vm305, %v1522
      %1555 = vst.msk [vmem:[#allocation3 + $0xd0] sm:$0xff] %vm305, %v1523
      %1556 = vst.msk [vmem:[#allocation3 + $0xd8] sm:$0xff] %vm305, %v1524
      %1557 = vst.msk [vmem:[#allocation3 + $0xe0] sm:$0xff] %vm305, %v1525
      %1558 = vst.msk [vmem:[#allocation3 + $0xe8] sm:$0xff] %vm305, %v1526
      %1559 = vst.msk [vmem:[#allocation3 + $0xf0] sm:$0xff] %vm305, %v1527
      %1560 = vst.msk [vmem:[#allocation3 + $0xf8] sm:$0xff] %vm305, %v1528
      %s1561 = scalar_lea.vmem %s261, 24
      %v1562 = vld [vmem:[%s1561] sm:$0xff]
      %v1563 = vld [vmem:[%s1561 + $0x8] sm:$0xff]
      %v1564 = vld [vmem:[%s1561 + $0x18] sm:$0xff]
      %v1565 = vld [vmem:[%s1561 + $0x20] sm:$0xff]
      %v1566 = vld [vmem:[%s1561 + $0x30] sm:$0xff]
      %v1567 = vld [vmem:[%s1561 + $0x38] sm:$0xff]
      %v1568 = vld [vmem:[%s1561 + $0x48] sm:$0xff]
      %v1569 = vld [vmem:[%s1561 + $0x50] sm:$0xff]
      %v1570 = vld [vmem:[%s1561 + $0x60] sm:$0xff]
      %v1571 = vld [vmem:[%s1561 + $0x68] sm:$0xff]
      %v1572 = vld [vmem:[%s1561 + $0x78] sm:$0xff]
      %v1573 = vld [vmem:[%s1561 + $0x80] sm:$0xff]
      %v1574 = vld [vmem:[%s1561 + $0x90] sm:$0xff]
      %v1575 = vld [vmem:[%s1561 + $0x98] sm:$0xff]
      %v1576 = vld [vmem:[%s1561 + $0xa8] sm:$0xff]
      %v1577 = vld [vmem:[%s1561 + $0xb0] sm:$0xff]
      %v1578 = vld [vmem:[%s1561 + $0xc0] sm:$0xff]
      %v1579 = vld [vmem:[%s1561 + $0xc8] sm:$0xff]
      %v1580 = vld [vmem:[%s1561 + $0xd8] sm:$0xff]
      %v1581 = vld [vmem:[%s1561 + $0xe0] sm:$0xff]
      %v1582 = vld [vmem:[%s1561 + $0xf0] sm:$0xff]
      %v1583 = vld [vmem:[%s1561 + $0xf8] sm:$0xff]
      %v1584 = vld [vmem:[%s1561 + $0x108] sm:$0xff]
      %v1585 = vld [vmem:[%s1561 + $0x110] sm:$0xff]
      %v1586 = vld [vmem:[%s1561 + $0x120] sm:$0xff]
      %v1587 = vld [vmem:[%s1561 + $0x128] sm:$0xff]
      %v1588 = vld [vmem:[%s1561 + $0x138] sm:$0xff]
      %v1589 = vld [vmem:[%s1561 + $0x140] sm:$0xff]
      %v1590 = vld [vmem:[%s1561 + $0x150] sm:$0xff]
      %v1591 = vld [vmem:[%s1561 + $0x158] sm:$0xff]
      %v1592 = vld [vmem:[%s1561 + $0x168] sm:$0xff]
      %v1593 = vld [vmem:[%s1561 + $0x170] sm:$0xff]
      %s1594 = scalar_lea.vmem %s2, 24
      %v1595 = vld [vmem:[%s1594] sm:$0xff]
      %v1597 = vsel %vm305, %v1562, 0
      %v1600 = vsel %vm305, %v1563, 0
      %v1603 = vsel %vm305, %v1564, 0
      %v1606 = vsel %vm305, %v1565, 0
      %v1609 = vsel %vm305, %v1566, 0
      %v1612 = vsel %vm305, %v1567, 0
      %v1615 = vsel %vm305, %v1568, 0
      %v1618 = vsel %vm305, %v1569, 0
      %v1621 = vsel %vm305, %v1570, 0
      %v1624 = vsel %vm305, %v1571, 0
      %v1627 = vsel %vm305, %v1572, 0
      %v1630 = vsel %vm305, %v1573, 0
      %v1633 = vsel %vm305, %v1574, 0
      %v1636 = vsel %vm305, %v1575, 0
      %v1639 = vsel %vm305, %v1576, 0
      %v1642 = vsel %vm305, %v1577, 0
      %v1645 = vsel %vm305, %v1578, 0
      %v1648 = vsel %vm305, %v1579, 0
      %v1651 = vsel %vm305, %v1580, 0
      %v1654 = vsel %vm305, %v1581, 0
      %v1657 = vsel %vm305, %v1582, 0
      %v1660 = vsel %vm305, %v1583, 0
      %v1663 = vsel %vm305, %v1584, 0
      %v1666 = vsel %vm305, %v1585, 0
      %v1669 = vsel %vm305, %v1586, 0
      %v1672 = vsel %vm305, %v1587, 0
      %v1675 = vsel %vm305, %v1588, 0
      %v1678 = vsel %vm305, %v1589, 0
      %v1681 = vsel %vm305, %v1590, 0
      %v1684 = vsel %vm305, %v1591, 0
      %v1687 = vsel %vm305, %v1592, 0
      %v1690 = vsel %vm305, %v1593, 0
      %1692 = vmatprep.subr.mxu0 0.0
      %1693 = vmatpush1.msra.mxu0 %v1595
      %1694 = vmatprep.subr.mxu0 0.0
      %1695 = vmatpush1.msra.mxu0 0.0
      %1696 = vmatprep.subr.mxu0 0.0
      %1697 = vmatpush1.msra.mxu0 0.0
      %1698 = vmatprep.subr.mxu0 0.0
      %1699 = vmatpush1.msra.mxu0 0.0
      %1700 = vmatprep.subr.mxu0 0.0
      %1701 = vmatpush1.msra.mxu0 0.0
      %1702 = vmatprep.subr.mxu0 0.0
      %1703 = vmatpush1.msra.mxu0 0.0
      %1704 = vmatprep.subr.mxu0 0.0
      %1705 = vmatpush1.msra.mxu0 0.0
      %1706 = vmatprep.subr.mxu0 0.0
      %1707 = vmatpush1.msra.mxu0 0.0
      %1708 = vmatprep.subr.mxu0 0.0
      %1709 = vmatpush1.msra.mxu0 0.0
      %1710 = vmatprep.subr.mxu0 0.0
      %1711 = vmatpush1.msra.mxu0 0.0
      %1712 = vmatprep.subr.mxu0 0.0
      %1713 = vmatpush1.msra.mxu0 0.0
      %1714 = vmatprep.subr.mxu0 0.0
      %1715 = vmatpush1.msra.mxu0 0.0
      %1716 = vmatprep.subr.mxu0 0.0
      %1717 = vmatpush1.msra.mxu0 0.0
      %1718 = vmatprep.subr.mxu0 0.0
      %1719 = vmatpush1.msra.mxu0 0.0
      %1720 = vmatprep.subr.mxu0 0.0
      %1721 = vmatpush1.msra.mxu0 0.0
      %1722 = vmatprep.subr.mxu0 0.0
      %1723 = vmatpush1.msra.mxu0 0.0
      %1724 = vmatprep.subr.mxu0 0.0
      %1725 = vmatpush1.msra.mxu0 0.0
      %1726 = vmatprep.subr.mxu0 0.0
      %1727 = vmatpush1.msra.mxu0 0.0
      %1728 = vmatprep.subr.mxu0 0.0
      %1729 = vmatpush1.msra.mxu0 0.0
      %1730 = vmatprep.subr.mxu0 0.0
      %1731 = vmatpush1.msra.mxu0 0.0
      %1732 = vmatprep.subr.mxu0 0.0
      %1733 = vmatpush1.msra.mxu0 0.0
      %1734 = vmatprep.subr.mxu0 0.0
      %1735 = vmatpush1.msra.mxu0 0.0
      %1736 = vmatprep.subr.mxu0 0.0
      %1737 = vmatpush1.msra.mxu0 0.0
      %1738 = vmatprep.subr.mxu0 0.0
      %1739 = vmatpush1.msra.mxu0 0.0
      %1740 = vmatprep.subr.mxu0 0.0
      %1741 = vmatpush1.msra.mxu0 0.0
      %1742 = vmatprep.subr.mxu0 0.0
      %1743 = vmatpush1.msra.mxu0 0.0
      %1744 = vmatprep.subr.mxu0 0.0
      %1745 = vmatpush1.msra.mxu0 0.0
      %1746 = vmatprep.subr.mxu0 0.0
      %1747 = vmatpush1.msra.mxu0 0.0
      %1748 = vmatprep.subr.mxu0 0.0
      %1749 = vmatpush1.msra.mxu0 0.0
      %1750 = vmatprep.subr.mxu0 0.0
      %1751 = vmatpush1.msra.mxu0 0.0
      %1752 = vmatprep.subr.mxu0 0.0
      %1753 = vmatpush1.msra.mxu0 0.0
      %1754 = vmatprep.subr.mxu0 0.0
      %1755 = vmatpush1.msra.mxu0 0.0
      %1756 = vmatprep.mubr.f32.mxu0 0.0
      %1757 = vmatmul.mubr.f32.gmra.mrb[0].mxu0 %v1597
      %v1758 = vpop.f32.mrb[0].mxu0
      %v1759 = vadd.f32 0.0, %v1758
      %v1760 = vpop.f32.mrb[0].mxu0
      %1761 = vmatprep.mubr.f32.mxu0 0.0
      %1762 = vmatmul.mubr.f32.gmra.mrb[0].mxu0 %v1600
      %v1763 = vpop.f32.mrb[0].mxu0
      %v1764 = vadd.f32 0.0, %v1763
      %v1765 = vpop.f32.mrb[0].mxu0
      %1766 = vmatprep.mubr.f32.mxu0 0.0
      %1767 = vmatmul.mubr.f32.gmra.mrb[0].mxu0 %v1603
      %v1768 = vpop.f32.mrb[0].mxu0
      %v1769 = vadd.f32 0.0, %v1768
      %v1770 = vpop.f32.mrb[0].mxu0
      %1771 = vmatprep.mubr.f32.mxu0 0.0
      %1772 = vmatmul.mubr.f32.gmra.mrb[0].mxu0 %v1606
      %v1773 = vpop.f32.mrb[0].mxu0
      %v1774 = vadd.f32 0.0, %v1773
      %v1775 = vpop.f32.mrb[0].mxu0
      %1776 = vmatprep.mubr.f32.mxu0 0.0
      %1777 = vmatmul.mubr.f32.gmra.mrb[0].mxu0 %v1609
      %v1778 = vpop.f32.mrb[0].mxu0
      %v1779 = vadd.f32 0.0, %v1778
      %v1780 = vpop.f32.mrb[0].mxu0
      %1781 = vmatprep.mubr.f32.mxu0 0.0
      %1782 = vmatmul.mubr.f32.gmra.mrb[0].mxu0 %v1612
      %v1783 = vpop.f32.mrb[0].mxu0
      %v1784 = vadd.f32 0.0, %v1783
      %v1785 = vpop.f32.mrb[0].mxu0
      %1786 = vmatprep.mubr.f32.mxu0 0.0
      %1787 = vmatmul.mubr.f32.gmra.mrb[0].mxu0 %v1615
      %v1788 = vpop.f32.mrb[0].mxu0
      %v1789 = vadd.f32 0.0, %v1788
      %v1790 = vpop.f32.mrb[0].mxu0
      %1791 = vmatprep.mubr.f32.mxu0 0.0
      %1792 = vmatmul.mubr.f32.gmra.mrb[0].mxu0 %v1618
      %v1793 = vpop.f32.mrb[0].mxu0
      %v1794 = vadd.f32 0.0, %v1793
      %v1795 = vpop.f32.mrb[0].mxu0
      %1796 = vmatprep.mubr.f32.mxu0 0.0
      %1797 = vmatmul.mubr.f32.gmra.mrb[0].mxu0 %v1621
      %v1798 = vpop.f32.mrb[0].mxu0
      %v1799 = vadd.f32 0.0, %v1798
      %v1800 = vpop.f32.mrb[0].mxu0
      %1801 = vmatprep.mubr.f32.mxu0 0.0
      %1802 = vmatmul.mubr.f32.gmra.mrb[0].mxu0 %v1624
      %v1803 = vpop.f32.mrb[0].mxu0
      %v1804 = vadd.f32 0.0, %v1803
      %v1805 = vpop.f32.mrb[0].mxu0
      %1806 = vmatprep.mubr.f32.mxu0 0.0
      %1807 = vmatmul.mubr.f32.gmra.mrb[0].mxu0 %v1627
      %v1808 = vpop.f32.mrb[0].mxu0
      %v1809 = vadd.f32 0.0, %v1808
      %v1810 = vpop.f32.mrb[0].mxu0
      %1811 = vmatprep.mubr.f32.mxu0 0.0
      %1812 = vmatmul.mubr.f32.gmra.mrb[0].mxu0 %v1630
      %v1813 = vpop.f32.mrb[0].mxu0
      %v1814 = vadd.f32 0.0, %v1813
      %v1815 = vpop.f32.mrb[0].mxu0
      %1816 = vmatprep.mubr.f32.mxu0 0.0
      %1817 = vmatmul.mubr.f32.gmra.mrb[0].mxu0 %v1633
      %v1818 = vpop.f32.mrb[0].mxu0
      %v1819 = vadd.f32 0.0, %v1818
      %v1820 = vpop.f32.mrb[0].mxu0
      %1821 = vmatprep.mubr.f32.mxu0 0.0
      %1822 = vmatmul.mubr.f32.gmra.mrb[0].mxu0 %v1636
      %v1823 = vpop.f32.mrb[0].mxu0
      %v1824 = vadd.f32 0.0, %v1823
      %v1825 = vpop.f32.mrb[0].mxu0
      %1826 = vmatprep.mubr.f32.mxu0 0.0
      %1827 = vmatmul.mubr.f32.gmra.mrb[0].mxu0 %v1639
      %v1828 = vpop.f32.mrb[0].mxu0
      %v1829 = vadd.f32 0.0, %v1828
      %v1830 = vpop.f32.mrb[0].mxu0
      %1831 = vmatprep.mubr.f32.mxu0 0.0
      %1832 = vmatmul.mubr.f32.gmra.mrb[0].mxu0 %v1642
      %v1833 = vpop.f32.mrb[0].mxu0
      %v1834 = vadd.f32 0.0, %v1833
      %v1835 = vpop.f32.mrb[0].mxu0
      %1836 = vmatprep.mubr.f32.mxu0 0.0
      %1837 = vmatmul.mubr.f32.gmra.mrb[0].mxu0 %v1645
      %v1838 = vpop.f32.mrb[0].mxu0
      %v1839 = vadd.f32 0.0, %v1838
      %v1840 = vpop.f32.mrb[0].mxu0
      %1841 = vmatprep.mubr.f32.mxu0 0.0
      %1842 = vmatmul.mubr.f32.gmra.mrb[0].mxu0 %v1648
      %v1843 = vpop.f32.mrb[0].mxu0
      %v1844 = vadd.f32 0.0, %v1843
      %v1845 = vpop.f32.mrb[0].mxu0
      %1846 = vmatprep.mubr.f32.mxu0 0.0
      %1847 = vmatmul.mubr.f32.gmra.mrb[0].mxu0 %v1651
      %v1848 = vpop.f32.mrb[0].mxu0
      %v1849 = vadd.f32 0.0, %v1848
      %v1850 = vpop.f32.mrb[0].mxu0
      %1851 = vmatprep.mubr.f32.mxu0 0.0
      %1852 = vmatmul.mubr.f32.gmra.mrb[0].mxu0 %v1654
      %v1853 = vpop.f32.mrb[0].mxu0
      %v1854 = vadd.f32 0.0, %v1853
      %v1855 = vpop.f32.mrb[0].mxu0
      %1856 = vmatprep.mubr.f32.mxu0 0.0
      %1857 = vmatmul.mubr.f32.gmra.mrb[0].mxu0 %v1657
      %v1858 = vpop.f32.mrb[0].mxu0
      %v1859 = vadd.f32 0.0, %v1858
      %v1860 = vpop.f32.mrb[0].mxu0
      %1861 = vmatprep.mubr.f32.mxu0 0.0
      %1862 = vmatmul.mubr.f32.gmra.mrb[0].mxu0 %v1660
      %v1863 = vpop.f32.mrb[0].mxu0
      %v1864 = vadd.f32 0.0, %v1863
      %v1865 = vpop.f32.mrb[0].mxu0
      %1866 = vmatprep.mubr.f32.mxu0 0.0
      %1867 = vmatmul.mubr.f32.gmra.mrb[0].mxu0 %v1663
      %v1868 = vpop.f32.mrb[0].mxu0
      %v1869 = vadd.f32 0.0, %v1868
      %v1870 = vpop.f32.mrb[0].mxu0
      %1871 = vmatprep.mubr.f32.mxu0 0.0
      %1872 = vmatmul.mubr.f32.gmra.mrb[0].mxu0 %v1666
      %v1873 = vpop.f32.mrb[0].mxu0
      %v1874 = vadd.f32 0.0, %v1873
      %v1875 = vpop.f32.mrb[0].mxu0
      %1876 = vmatprep.mubr.f32.mxu0 0.0
      %1877 = vmatmul.mubr.f32.gmra.mrb[0].mxu0 %v1669
      %v1878 = vpop.f32.mrb[0].mxu0
      %v1879 = vadd.f32 0.0, %v1878
      %v1880 = vpop.f32.mrb[0].mxu0
      %1881 = vmatprep.mubr.f32.mxu0 0.0
      %1882 = vmatmul.mubr.f32.gmra.mrb[0].mxu0 %v1672
      %v1883 = vpop.f32.mrb[0].mxu0
      %v1884 = vadd.f32 0.0, %v1883
      %v1885 = vpop.f32.mrb[0].mxu0
      %1886 = vmatprep.mubr.f32.mxu0 0.0
      %1887 = vmatmul.mubr.f32.gmra.mrb[0].mxu0 %v1675
      %v1888 = vpop.f32.mrb[0].mxu0
      %v1889 = vadd.f32 0.0, %v1888
      %v1890 = vpop.f32.mrb[0].mxu0
      %1891 = vmatprep.mubr.f32.mxu0 0.0
      %1892 = vmatmul.mubr.f32.gmra.mrb[0].mxu0 %v1678
      %v1893 = vpop.f32.mrb[0].mxu0
      %v1894 = vadd.f32 0.0, %v1893
      %v1895 = vpop.f32.mrb[0].mxu0
      %1896 = vmatprep.mubr.f32.mxu0 0.0
      %1897 = vmatmul.mubr.f32.gmra.mrb[0].mxu0 %v1681
      %v1898 = vpop.f32.mrb[0].mxu0
      %v1899 = vadd.f32 0.0, %v1898
      %v1900 = vpop.f32.mrb[0].mxu0
      %1901 = vmatprep.mubr.f32.mxu0 0.0
      %1902 = vmatmul.mubr.f32.gmra.mrb[0].mxu0 %v1684
      %v1903 = vpop.f32.mrb[0].mxu0
      %v1904 = vadd.f32 0.0, %v1903
      %v1905 = vpop.f32.mrb[0].mxu0
      %1906 = vmatprep.mubr.f32.mxu0 0.0
      %1907 = vmatmul.mubr.f32.gmra.mrb[0].mxu0 %v1687
      %v1908 = vpop.f32.mrb[0].mxu0
      %v1909 = vadd.f32 0.0, %v1908
      %v1910 = vpop.f32.mrb[0].mxu0
      %1911 = vmatprep.mubr.f32.mxu0 0.0
      %1912 = vmatmul.mubr.f32.gmra.mrb[0].mxu0 %v1690
      %v1913 = vpop.f32.mrb[0].mxu0
      %v1914 = vadd.f32 0.0, %v1913
      %v1915 = vpop.f32.mrb[0].mxu0
      %1916 = vdwg.mxu0
      %v1917 = vld [vmem:[#allocation3] sm:$0xff]
      %v1918 = vld [vmem:[#allocation3 + $0x8] sm:$0xff]
      %v1919 = vld [vmem:[#allocation3 + $0x10] sm:$0xff]
      %v1920 = vld [vmem:[#allocation3 + $0x18] sm:$0xff]
      %v1921 = vld [vmem:[#allocation3 + $0x20] sm:$0xff]
      %v1922 = vld [vmem:[#allocation3 + $0x28] sm:$0xff]
      %v1923 = vld [vmem:[#allocation3 + $0x30] sm:$0xff]
      %v1924 = vld [vmem:[#allocation3 + $0x38] sm:$0xff]
      %v1925 = vld [vmem:[#allocation3 + $0x40] sm:$0xff]
      %v1926 = vld [vmem:[#allocation3 + $0x48] sm:$0xff]
      %v1927 = vld [vmem:[#allocation3 + $0x50] sm:$0xff]
      %v1928 = vld [vmem:[#allocation3 + $0x58] sm:$0xff]
      %v1929 = vld [vmem:[#allocation3 + $0x60] sm:$0xff]
      %v1930 = vld [vmem:[#allocation3 + $0x68] sm:$0xff]
      %v1931 = vld [vmem:[#allocation3 + $0x70] sm:$0xff]
      %v1932 = vld [vmem:[#allocation3 + $0x78] sm:$0xff]
      %v1933 = vld [vmem:[#allocation3 + $0x80] sm:$0xff]
      %v1934 = vld [vmem:[#allocation3 + $0x88] sm:$0xff]
      %v1935 = vld [vmem:[#allocation3 + $0x90] sm:$0xff]
      %v1936 = vld [vmem:[#allocation3 + $0x98] sm:$0xff]
      %v1937 = vld [vmem:[#allocation3 + $0xa0] sm:$0xff]
      %v1938 = vld [vmem:[#allocation3 + $0xa8] sm:$0xff]
      %v1939 = vld [vmem:[#allocation3 + $0xb0] sm:$0xff]
      %v1940 = vld [vmem:[#allocation3 + $0xb8] sm:$0xff]
      %v1941 = vld [vmem:[#allocation3 + $0xc0] sm:$0xff]
      %v1942 = vld [vmem:[#allocation3 + $0xc8] sm:$0xff]
      %v1943 = vld [vmem:[#allocation3 + $0xd0] sm:$0xff]
      %v1944 = vld [vmem:[#allocation3 + $0xd8] sm:$0xff]
      %v1945 = vld [vmem:[#allocation3 + $0xe0] sm:$0xff]
      %v1946 = vld [vmem:[#allocation3 + $0xe8] sm:$0xff]
      %v1947 = vld [vmem:[#allocation3 + $0xf0] sm:$0xff]
      %v1948 = vld [vmem:[#allocation3 + $0xf8] sm:$0xff]
      %v1949 = vadd.f32 %v1917, %v1759
      %v1950 = vadd.f32 %v1918, %v1764
      %v1951 = vadd.f32 %v1919, %v1769
      %v1952 = vadd.f32 %v1920, %v1774
      %v1953 = vadd.f32 %v1921, %v1779
      %v1954 = vadd.f32 %v1922, %v1784
      %v1955 = vadd.f32 %v1923, %v1789
      %v1956 = vadd.f32 %v1924, %v1794
      %v1957 = vadd.f32 %v1925, %v1799
      %v1958 = vadd.f32 %v1926, %v1804
      %v1959 = vadd.f32 %v1927, %v1809
      %v1960 = vadd.f32 %v1928, %v1814
      %v1961 = vadd.f32 %v1929, %v1819
      %v1962 = vadd.f32 %v1930, %v1824
      %v1963 = vadd.f32 %v1931, %v1829
      %v1964 = vadd.f32 %v1932, %v1834
      %v1965 = vadd.f32 %v1933, %v1839
      %v1966 = vadd.f32 %v1934, %v1844
      %v1967 = vadd.f32 %v1935, %v1849
      %v1968 = vadd.f32 %v1936, %v1854
      %v1969 = vadd.f32 %v1937, %v1859
      %v1970 = vadd.f32 %v1938, %v1864
      %v1971 = vadd.f32 %v1939, %v1869
      %v1972 = vadd.f32 %v1940, %v1874
      %v1973 = vadd.f32 %v1941, %v1879
      %v1974 = vadd.f32 %v1942, %v1884
      %v1975 = vadd.f32 %v1943, %v1889
      %v1976 = vadd.f32 %v1944, %v1894
      %v1977 = vadd.f32 %v1945, %v1899
      %v1978 = vadd.f32 %v1946, %v1904
      %v1979 = vadd.f32 %v1947, %v1909
      %v1980 = vadd.f32 %v1948, %v1914
      %1981 = vst.msk [vmem:[#allocation3] sm:$0xff] %vm305, %v1949
      %1982 = vst.msk [vmem:[#allocation3 + $0x8] sm:$0xff] %vm305, %v1950
      %1983 = vst.msk [vmem:[#allocation3 + $0x10] sm:$0xff] %vm305, %v1951
      %1984 = vst.msk [vmem:[#allocation3 + $0x18] sm:$0xff] %vm305, %v1952
      %1985 = vst.msk [vmem:[#allocation3 + $0x20] sm:$0xff] %vm305, %v1953
      %1986 = vst.msk [vmem:[#allocation3 + $0x28] sm:$0xff] %vm305, %v1954
      %1987 = vst.msk [vmem:[#allocation3 + $0x30] sm:$0xff] %vm305, %v1955
      %1988 = vst.msk [vmem:[#allocation3 + $0x38] sm:$0xff] %vm305, %v1956
      %1989 = vst.msk [vmem:[#allocation3 + $0x40] sm:$0xff] %vm305, %v1957
      %1990 = vst.msk [vmem:[#allocation3 + $0x48] sm:$0xff] %vm305, %v1958
      %1991 = vst.msk [vmem:[#allocation3 + $0x50] sm:$0xff] %vm305, %v1959
      %1992 = vst.msk [vmem:[#allocation3 + $0x58] sm:$0xff] %vm305, %v1960
      %1993 = vst.msk [vmem:[#allocation3 + $0x60] sm:$0xff] %vm305, %v1961
      %1994 = vst.msk [vmem:[#allocation3 + $0x68] sm:$0xff] %vm305, %v1962
      %1995 = vst.msk [vmem:[#allocation3 + $0x70] sm:$0xff] %vm305, %v1963
      %1996 = vst.msk [vmem:[#allocation3 + $0x78] sm:$0xff] %vm305, %v1964
      %1997 = vst.msk [vmem:[#allocation3 + $0x80] sm:$0xff] %vm305, %v1965
      %1998 = vst.msk [vmem:[#allocation3 + $0x88] sm:$0xff] %vm305, %v1966
      %1999 = vst.msk [vmem:[#allocation3 + $0x90] sm:$0xff] %vm305, %v1967
      %2000 = vst.msk [vmem:[#allocation3 + $0x98] sm:$0xff] %vm305, %v1968
      %2001 = vst.msk [vmem:[#allocation3 + $0xa0] sm:$0xff] %vm305, %v1969
      %2002 = vst.msk [vmem:[#allocation3 + $0xa8] sm:$0xff] %vm305, %v1970
      %2003 = vst.msk [vmem:[#allocation3 + $0xb0] sm:$0xff] %vm305, %v1971
      %2004 = vst.msk [vmem:[#allocation3 + $0xb8] sm:$0xff] %vm305, %v1972
      %2005 = vst.msk [vmem:[#allocation3 + $0xc0] sm:$0xff] %vm305, %v1973
      %2006 = vst.msk [vmem:[#allocation3 + $0xc8] sm:$0xff] %vm305, %v1974
      %2007 = vst.msk [vmem:[#allocation3 + $0xd0] sm:$0xff] %vm305, %v1975
      %2008 = vst.msk [vmem:[#allocation3 + $0xd8] sm:$0xff] %vm305, %v1976
      %2009 = vst.msk [vmem:[#allocation3 + $0xe0] sm:$0xff] %vm305, %v1977
      %2010 = vst.msk [vmem:[#allocation3 + $0xe8] sm:$0xff] %vm305, %v1978
      %2011 = vst.msk [vmem:[#allocation3 + $0xf0] sm:$0xff] %vm305, %v1979
      %2012 = vst.msk [vmem:[#allocation3 + $0xf8] sm:$0xff] %vm305, %v1980
      %v2013 = vld [vmem:[%s1561 + $0x1] sm:$0xff]
      %v2014 = vld [vmem:[%s1561 + $0x9] sm:$0xff]
      %v2015 = vld [vmem:[%s1561 + $0x19] sm:$0xff]
      %v2016 = vld [vmem:[%s1561 + $0x21] sm:$0xff]
      %v2017 = vld [vmem:[%s1561 + $0x31] sm:$0xff]
      %v2018 = vld [vmem:[%s1561 + $0x39] sm:$0xff]
      %v2019 = vld [vmem:[%s1561 + $0x49] sm:$0xff]
      %v2020 = vld [vmem:[%s1561 + $0x51] sm:$0xff]
      %v2021 = vld [vmem:[%s1561 + $0x61] sm:$0xff]
      %v2022 = vld [vmem:[%s1561 + $0x69] sm:$0xff]
      %v2023 = vld [vmem:[%s1561 + $0x79] sm:$0xff]
      %v2024 = vld [vmem:[%s1561 + $0x81] sm:$0xff]
      %v2025 = vld [vmem:[%s1561 + $0x91] sm:$0xff]
      %v2026 = vld [vmem:[%s1561 + $0x99] sm:$0xff]
      %v2027 = vld [vmem:[%s1561 + $0xa9] sm:$0xff]
      %v2028 = vld [vmem:[%s1561 + $0xb1] sm:$0xff]
      %v2029 = vld [vmem:[%s1561 + $0xc1] sm:$0xff]
      %v2030 = vld [vmem:[%s1561 + $0xc9] sm:$0xff]
      %v2031 = vld [vmem:[%s1561 + $0xd9] sm:$0xff]
      %v2032 = vld [vmem:[%s1561 + $0xe1] sm:$0xff]
      %v2033 = vld [vmem:[%s1561 + $0xf1] sm:$0xff]
      %v2034 = vld [vmem:[%s1561 + $0xf9] sm:$0xff]
      %v2035 = vld [vmem:[%s1561 + $0x109] sm:$0xff]
      %v2036 = vld [vmem:[%s1561 + $0x111] sm:$0xff]
      %v2037 = vld [vmem:[%s1561 + $0x121] sm:$0xff]
      %v2038 = vld [vmem:[%s1561 + $0x129] sm:$0xff]
      %v2039 = vld [vmem:[%s1561 + $0x139] sm:$0xff]
      %v2040 = vld [vmem:[%s1561 + $0x141] sm:$0xff]
      %v2041 = vld [vmem:[%s1561 + $0x151] sm:$0xff]
      %v2042 = vld [vmem:[%s1561 + $0x159] sm:$0xff]
      %v2043 = vld [vmem:[%s1561 + $0x169] sm:$0xff]
      %v2044 = vld [vmem:[%s1561 + $0x171] sm:$0xff]
      %s2045 = scalar_lea.vmem %s2, 32
      %v2046 = vld [vmem:[%s2045] sm:$0xff]
      %v2048 = vsel %vm305, %v2013, 0
      %v2051 = vsel %vm305, %v2014, 0
      %v2054 = vsel %vm305, %v2015, 0
      %v2057 = vsel %vm305, %v2016, 0
      %v2060 = vsel %vm305, %v2017, 0
      %v2063 = vsel %vm305, %v2018, 0
      %v2066 = vsel %vm305, %v2019, 0
      %v2069 = vsel %vm305, %v2020, 0
      %v2072 = vsel %vm305, %v2021, 0
      %v2075 = vsel %vm305, %v2022, 0
      %v2078 = vsel %vm305, %v2023, 0
      %v2081 = vsel %vm305, %v2024, 0
      %v2084 = vsel %vm305, %v2025, 0
      %v2087 = vsel %vm305, %v2026, 0
      %v2090 = vsel %vm305, %v2027, 0
      %v2093 = vsel %vm305, %v2028, 0
      %v2096 = vsel %vm305, %v2029, 0
      %v2099 = vsel %vm305, %v2030, 0
      %v2102 = vsel %vm305, %v2031, 0
      %v2105 = vsel %vm305, %v2032, 0
      %v2108 = vsel %vm305, %v2033, 0
      %v2111 = vsel %vm305, %v2034, 0
      %v2114 = vsel %vm305, %v2035, 0
      %v2117 = vsel %vm305, %v2036, 0
      %v2120 = vsel %vm305, %v2037, 0
      %v2123 = vsel %vm305, %v2038, 0
      %v2126 = vsel %vm305, %v2039, 0
      %v2129 = vsel %vm305, %v2040, 0
      %v2132 = vsel %vm305, %v2041, 0
      %v2135 = vsel %vm305, %v2042, 0
      %v2138 = vsel %vm305, %v2043, 0
      %v2141 = vsel %vm305, %v2044, 0
      %2143 = vmatprep.subr.mxu0 0.0
      %2144 = vmatpush1.msra.mxu0 %v2046
      %2145 = vmatprep.subr.mxu0 0.0
      %2146 = vmatpush1.msra.mxu0 0.0
      %2147 = vmatprep.subr.mxu0 0.0
      %2148 = vmatpush1.msra.mxu0 0.0
      %2149 = vmatprep.subr.mxu0 0.0
      %2150 = vmatpush1.msra.mxu0 0.0
      %2151 = vmatprep.subr.mxu0 0.0
      %2152 = vmatpush1.msra.mxu0 0.0
      %2153 = vmatprep.subr.mxu0 0.0
      %2154 = vmatpush1.msra.mxu0 0.0
      %2155 = vmatprep.subr.mxu0 0.0
      %2156 = vmatpush1.msra.mxu0 0.0
      %2157 = vmatprep.subr.mxu0 0.0
      %2158 = vmatpush1.msra.mxu0 0.0
      %2159 = vmatprep.subr.mxu0 0.0
      %2160 = vmatpush1.msra.mxu0 0.0
      %2161 = vmatprep.subr.mxu0 0.0
      %2162 = vmatpush1.msra.mxu0 0.0
      %2163 = vmatprep.subr.mxu0 0.0
      %2164 = vmatpush1.msra.mxu0 0.0
      %2165 = vmatprep.subr.mxu0 0.0
      %2166 = vmatpush1.msra.mxu0 0.0
      %2167 = vmatprep.subr.mxu0 0.0
      %2168 = vmatpush1.msra.mxu0 0.0
      %2169 = vmatprep.subr.mxu0 0.0
      %2170 = vmatpush1.msra.mxu0 0.0
      %2171 = vmatprep.subr.mxu0 0.0
      %2172 = vmatpush1.msra.mxu0 0.0
      %2173 = vmatprep.subr.mxu0 0.0
      %2174 = vmatpush1.msra.mxu0 0.0
      %2175 = vmatprep.subr.mxu0 0.0
      %2176 = vmatpush1.msra.mxu0 0.0
      %2177 = vmatprep.subr.mxu0 0.0
      %2178 = vmatpush1.msra.mxu0 0.0
      %2179 = vmatprep.subr.mxu0 0.0
      %2180 = vmatpush1.msra.mxu0 0.0
      %2181 = vmatprep.subr.mxu0 0.0
      %2182 = vmatpush1.msra.mxu0 0.0
      %2183 = vmatprep.subr.mxu0 0.0
      %2184 = vmatpush1.msra.mxu0 0.0
      %2185 = vmatprep.subr.mxu0 0.0
      %2186 = vmatpush1.msra.mxu0 0.0
      %2187 = vmatprep.subr.mxu0 0.0
      %2188 = vmatpush1.msra.mxu0 0.0
      %2189 = vmatprep.subr.mxu0 0.0
      %2190 = vmatpush1.msra.mxu0 0.0
      %2191 = vmatprep.subr.mxu0 0.0
      %2192 = vmatpush1.msra.mxu0 0.0
      %2193 = vmatprep.subr.mxu0 0.0
      %2194 = vmatpush1.msra.mxu0 0.0
      %2195 = vmatprep.subr.mxu0 0.0
      %2196 = vmatpush1.msra.mxu0 0.0
      %2197 = vmatprep.subr.mxu0 0.0
      %2198 = vmatpush1.msra.mxu0 0.0
      %2199 = vmatprep.subr.mxu0 0.0
      %2200 = vmatpush1.msra.mxu0 0.0
      %2201 = vmatprep.subr.mxu0 0.0
      %2202 = vmatpush1.msra.mxu0 0.0
      %2203 = vmatprep.subr.mxu0 0.0
      %2204 = vmatpush1.msra.mxu0 0.0
      %2205 = vmatprep.subr.mxu0 0.0
      %2206 = vmatpush1.msra.mxu0 0.0
      %2207 = vmatprep.mubr.f32.mxu0 0.0
      %2208 = vmatmul.mubr.f32.gmra.mrb[0].mxu0 %v2048
      %v2209 = vpop.f32.mrb[0].mxu0
      %v2210 = vadd.f32 0.0, %v2209
      %v2211 = vpop.f32.mrb[0].mxu0
      %2212 = vmatprep.mubr.f32.mxu0 0.0
      %2213 = vmatmul.mubr.f32.gmra.mrb[0].mxu0 %v2051
      %v2214 = vpop.f32.mrb[0].mxu0
      %v2215 = vadd.f32 0.0, %v2214
      %v2216 = vpop.f32.mrb[0].mxu0
      %2217 = vmatprep.mubr.f32.mxu0 0.0
      %2218 = vmatmul.mubr.f32.gmra.mrb[0].mxu0 %v2054
      %v2219 = vpop.f32.mrb[0].mxu0
      %v2220 = vadd.f32 0.0, %v2219
      %v2221 = vpop.f32.mrb[0].mxu0
      %2222 = vmatprep.mubr.f32.mxu0 0.0
      %2223 = vmatmul.mubr.f32.gmra.mrb[0].mxu0 %v2057
      %v2224 = vpop.f32.mrb[0].mxu0
      %v2225 = vadd.f32 0.0, %v2224
      %v2226 = vpop.f32.mrb[0].mxu0
      %2227 = vmatprep.mubr.f32.mxu0 0.0
      %2228 = vmatmul.mubr.f32.gmra.mrb[0].mxu0 %v2060
      %v2229 = vpop.f32.mrb[0].mxu0
      %v2230 = vadd.f32 0.0, %v2229
      %v2231 = vpop.f32.mrb[0].mxu0
      %2232 = vmatprep.mubr.f32.mxu0 0.0
      %2233 = vmatmul.mubr.f32.gmra.mrb[0].mxu0 %v2063
      %v2234 = vpop.f32.mrb[0].mxu0
      %v2235 = vadd.f32 0.0, %v2234
      %v2236 = vpop.f32.mrb[0].mxu0
      %2237 = vmatprep.mubr.f32.mxu0 0.0
      %2238 = vmatmul.mubr.f32.gmra.mrb[0].mxu0 %v2066
      %v2239 = vpop.f32.mrb[0].mxu0
      %v2240 = vadd.f32 0.0, %v2239
      %v2241 = vpop.f32.mrb[0].mxu0
      %2242 = vmatprep.mubr.f32.mxu0 0.0
      %2243 = vmatmul.mubr.f32.gmra.mrb[0].mxu0 %v2069
      %v2244 = vpop.f32.mrb[0].mxu0
      %v2245 = vadd.f32 0.0, %v2244
      %v2246 = vpop.f32.mrb[0].mxu0
      %2247 = vmatprep.mubr.f32.mxu0 0.0
      %2248 = vmatmul.mubr.f32.gmra.mrb[0].mxu0 %v2072
      %v2249 = vpop.f32.mrb[0].mxu0
      %v2250 = vadd.f32 0.0, %v2249
      %v2251 = vpop.f32.mrb[0].mxu0
      %2252 = vmatprep.mubr.f32.mxu0 0.0
      %2253 = vmatmul.mubr.f32.gmra.mrb[0].mxu0 %v2075
      %v2254 = vpop.f32.mrb[0].mxu0
      %v2255 = vadd.f32 0.0, %v2254
      %v2256 = vpop.f32.mrb[0].mxu0
      %2257 = vmatprep.mubr.f32.mxu0 0.0
      %2258 = vmatmul.mubr.f32.gmra.mrb[0].mxu0 %v2078
      %v2259 = vpop.f32.mrb[0].mxu0
      %v2260 = vadd.f32 0.0, %v2259
      %v2261 = vpop.f32.mrb[0].mxu0
      %2262 = vmatprep.mubr.f32.mxu0 0.0
      %2263 = vmatmul.mubr.f32.gmra.mrb[0].mxu0 %v2081
      %v2264 = vpop.f32.mrb[0].mxu0
      %v2265 = vadd.f32 0.0, %v2264
      %v2266 = vpop.f32.mrb[0].mxu0
      %2267 = vmatprep.mubr.f32.mxu0 0.0
      %2268 = vmatmul.mubr.f32.gmra.mrb[0].mxu0 %v2084
      %v2269 = vpop.f32.mrb[0].mxu0
      %v2270 = vadd.f32 0.0, %v2269
      %v2271 = vpop.f32.mrb[0].mxu0
      %2272 = vmatprep.mubr.f32.mxu0 0.0
      %2273 = vmatmul.mubr.f32.gmra.mrb[0].mxu0 %v2087
      %v2274 = vpop.f32.mrb[0].mxu0
      %v2275 = vadd.f32 0.0, %v2274
      %v2276 = vpop.f32.mrb[0].mxu0
      %2277 = vmatprep.mubr.f32.mxu0 0.0
      %2278 = vmatmul.mubr.f32.gmra.mrb[0].mxu0 %v2090
      %v2279 = vpop.f32.mrb[0].mxu0
      %v2280 = vadd.f32 0.0, %v2279
      %v2281 = vpop.f32.mrb[0].mxu0
      %2282 = vmatprep.mubr.f32.mxu0 0.0
      %2283 = vmatmul.mubr.f32.gmra.mrb[0].mxu0 %v2093
      %v2284 = vpop.f32.mrb[0].mxu0
      %v2285 = vadd.f32 0.0, %v2284
      %v2286 = vpop.f32.mrb[0].mxu0
      %2287 = vmatprep.mubr.f32.mxu0 0.0
      %2288 = vmatmul.mubr.f32.gmra.mrb[0].mxu0 %v2096
      %v2289 = vpop.f32.mrb[0].mxu0
      %v2290 = vadd.f32 0.0, %v2289
      %v2291 = vpop.f32.mrb[0].mxu0
      %2292 = vmatprep.mubr.f32.mxu0 0.0
      %2293 = vmatmul.mubr.f32.gmra.mrb[0].mxu0 %v2099
      %v2294 = vpop.f32.mrb[0].mxu0
      %v2295 = vadd.f32 0.0, %v2294
      %v2296 = vpop.f32.mrb[0].mxu0
      %2297 = vmatprep.mubr.f32.mxu0 0.0
      %2298 = vmatmul.mubr.f32.gmra.mrb[0].mxu0 %v2102
      %v2299 = vpop.f32.mrb[0].mxu0
      %v2300 = vadd.f32 0.0, %v2299
      %v2301 = vpop.f32.mrb[0].mxu0
      %2302 = vmatprep.mubr.f32.mxu0 0.0
      %2303 = vmatmul.mubr.f32.gmra.mrb[0].mxu0 %v2105
      %v2304 = vpop.f32.mrb[0].mxu0
      %v2305 = vadd.f32 0.0, %v2304
      %v2306 = vpop.f32.mrb[0].mxu0
      %2307 = vmatprep.mubr.f32.mxu0 0.0
      %2308 = vmatmul.mubr.f32.gmra.mrb[0].mxu0 %v2108
      %v2309 = vpop.f32.mrb[0].mxu0
      %v2310 = vadd.f32 0.0, %v2309
      %v2311 = vpop.f32.mrb[0].mxu0
      %2312 = vmatprep.mubr.f32.mxu0 0.0
      %2313 = vmatmul.mubr.f32.gmra.mrb[0].mxu0 %v2111
      %v2314 = vpop.f32.mrb[0].mxu0
      %v2315 = vadd.f32 0.0, %v2314
      %v2316 = vpop.f32.mrb[0].mxu0
      %2317 = vmatprep.mubr.f32.mxu0 0.0
      %2318 = vmatmul.mubr.f32.gmra.mrb[0].mxu0 %v2114
      %v2319 = vpop.f32.mrb[0].mxu0
      %v2320 = vadd.f32 0.0, %v2319
      %v2321 = vpop.f32.mrb[0].mxu0
      %2322 = vmatprep.mubr.f32.mxu0 0.0
      %2323 = vmatmul.mubr.f32.gmra.mrb[0].mxu0 %v2117
      %v2324 = vpop.f32.mrb[0].mxu0
      %v2325 = vadd.f32 0.0, %v2324
      %v2326 = vpop.f32.mrb[0].mxu0
      %2327 = vmatprep.mubr.f32.mxu0 0.0
      %2328 = vmatmul.mubr.f32.gmra.mrb[0].mxu0 %v2120
      %v2329 = vpop.f32.mrb[0].mxu0
      %v2330 = vadd.f32 0.0, %v2329
      %v2331 = vpop.f32.mrb[0].mxu0
      %2332 = vmatprep.mubr.f32.mxu0 0.0
      %2333 = vmatmul.mubr.f32.gmra.mrb[0].mxu0 %v2123
      %v2334 = vpop.f32.mrb[0].mxu0
      %v2335 = vadd.f32 0.0, %v2334
      %v2336 = vpop.f32.mrb[0].mxu0
      %2337 = vmatprep.mubr.f32.mxu0 0.0
      %2338 = vmatmul.mubr.f32.gmra.mrb[0].mxu0 %v2126
      %v2339 = vpop.f32.mrb[0].mxu0
      %v2340 = vadd.f32 0.0, %v2339
      %v2341 = vpop.f32.mrb[0].mxu0
      %2342 = vmatprep.mubr.f32.mxu0 0.0
      %2343 = vmatmul.mubr.f32.gmra.mrb[0].mxu0 %v2129
      %v2344 = vpop.f32.mrb[0].mxu0
      %v2345 = vadd.f32 0.0, %v2344
      %v2346 = vpop.f32.mrb[0].mxu0
      %2347 = vmatprep.mubr.f32.mxu0 0.0
      %2348 = vmatmul.mubr.f32.gmra.mrb[0].mxu0 %v2132
      %v2349 = vpop.f32.mrb[0].mxu0
      %v2350 = vadd.f32 0.0, %v2349
      %v2351 = vpop.f32.mrb[0].mxu0
      %2352 = vmatprep.mubr.f32.mxu0 0.0
      %2353 = vmatmul.mubr.f32.gmra.mrb[0].mxu0 %v2135
      %v2354 = vpop.f32.mrb[0].mxu0
      %v2355 = vadd.f32 0.0, %v2354
      %v2356 = vpop.f32.mrb[0].mxu0
      %2357 = vmatprep.mubr.f32.mxu0 0.0
      %2358 = vmatmul.mubr.f32.gmra.mrb[0].mxu0 %v2138
      %v2359 = vpop.f32.mrb[0].mxu0
      %v2360 = vadd.f32 0.0, %v2359
      %v2361 = vpop.f32.mrb[0].mxu0
      %2362 = vmatprep.mubr.f32.mxu0 0.0
      %2363 = vmatmul.mubr.f32.gmra.mrb[0].mxu0 %v2141
      %v2364 = vpop.f32.mrb[0].mxu0
      %v2365 = vadd.f32 0.0, %v2364
      %v2366 = vpop.f32.mrb[0].mxu0
      %2367 = vdwg.mxu0
      %v2368 = vld [vmem:[#allocation3] sm:$0xff]
      %v2369 = vld [vmem:[#allocation3 + $0x8] sm:$0xff]
      %v2370 = vld [vmem:[#allocation3 + $0x10] sm:$0xff]
      %v2371 = vld [vmem:[#allocation3 + $0x18] sm:$0xff]
      %v2372 = vld [vmem:[#allocation3 + $0x20] sm:$0xff]
      %v2373 = vld [vmem:[#allocation3 + $0x28] sm:$0xff]
      %v2374 = vld [vmem:[#allocation3 + $0x30] sm:$0xff]
      %v2375 = vld [vmem:[#allocation3 + $0x38] sm:$0xff]
      %v2376 = vld [vmem:[#allocation3 + $0x40] sm:$0xff]
      %v2377 = vld [vmem:[#allocation3 + $0x48] sm:$0xff]
      %v2378 = vld [vmem:[#allocation3 + $0x50] sm:$0xff]
      %v2379 = vld [vmem:[#allocation3 + $0x58] sm:$0xff]
      %v2380 = vld [vmem:[#allocation3 + $0x60] sm:$0xff]
      %v2381 = vld [vmem:[#allocation3 + $0x68] sm:$0xff]
      %v2382 = vld [vmem:[#allocation3 + $0x70] sm:$0xff]
      %v2383 = vld [vmem:[#allocation3 + $0x78] sm:$0xff]
      %v2384 = vld [vmem:[#allocation3 + $0x80] sm:$0xff]
      %v2385 = vld [vmem:[#allocation3 + $0x88] sm:$0xff]
      %v2386 = vld [vmem:[#allocation3 + $0x90] sm:$0xff]
      %v2387 = vld [vmem:[#allocation3 + $0x98] sm:$0xff]
      %v2388 = vld [vmem:[#allocation3 + $0xa0] sm:$0xff]
      %v2389 = vld [vmem:[#allocation3 + $0xa8] sm:$0xff]
      %v2390 = vld [vmem:[#allocation3 + $0xb0] sm:$0xff]
      %v2391 = vld [vmem:[#allocation3 + $0xb8] sm:$0xff]
      %v2392 = vld [vmem:[#allocation3 + $0xc0] sm:$0xff]
      %v2393 = vld [vmem:[#allocation3 + $0xc8] sm:$0xff]
      %v2394 = vld [vmem:[#allocation3 + $0xd0] sm:$0xff]
      %v2395 = vld [vmem:[#allocation3 + $0xd8] sm:$0xff]
      %v2396 = vld [vmem:[#allocation3 + $0xe0] sm:$0xff]
      %v2397 = vld [vmem:[#allocation3 + $0xe8] sm:$0xff]
      %v2398 = vld [vmem:[#allocation3 + $0xf0] sm:$0xff]
      %v2399 = vld [vmem:[#allocation3 + $0xf8] sm:$0xff]
      %v2400 = vadd.f32 %v2368, %v2210
      %v2401 = vadd.f32 %v2369, %v2215
      %v2402 = vadd.f32 %v2370, %v2220
      %v2403 = vadd.f32 %v2371, %v2225
      %v2404 = vadd.f32 %v2372, %v2230
      %v2405 = vadd.f32 %v2373, %v2235
      %v2406 = vadd.f32 %v2374, %v2240
      %v2407 = vadd.f32 %v2375, %v2245
      %v2408 = vadd.f32 %v2376, %v2250
      %v2409 = vadd.f32 %v2377, %v2255
      %v2410 = vadd.f32 %v2378, %v2260
      %v2411 = vadd.f32 %v2379, %v2265
      %v2412 = vadd.f32 %v2380, %v2270
      %v2413 = vadd.f32 %v2381, %v2275
      %v2414 = vadd.f32 %v2382, %v2280
      %v2415 = vadd.f32 %v2383, %v2285
      %v2416 = vadd.f32 %v2384, %v2290
      %v2417 = vadd.f32 %v2385, %v2295
      %v2418 = vadd.f32 %v2386, %v2300
      %v2419 = vadd.f32 %v2387, %v2305
      %v2420 = vadd.f32 %v2388, %v2310
      %v2421 = vadd.f32 %v2389, %v2315
      %v2422 = vadd.f32 %v2390, %v2320
      %v2423 = vadd.f32 %v2391, %v2325
      %v2424 = vadd.f32 %v2392, %v2330
      %v2425 = vadd.f32 %v2393, %v2335
      %v2426 = vadd.f32 %v2394, %v2340
      %v2427 = vadd.f32 %v2395, %v2345
      %v2428 = vadd.f32 %v2396, %v2350
      %v2429 = vadd.f32 %v2397, %v2355
      %v2430 = vadd.f32 %v2398, %v2360
      %v2431 = vadd.f32 %v2399, %v2365
      %2432 = vst.msk [vmem:[#allocation3] sm:$0xff] %vm305, %v2400
      %2433 = vst.msk [vmem:[#allocation3 + $0x8] sm:$0xff] %vm305, %v2401
      %2434 = vst.msk [vmem:[#allocation3 + $0x10] sm:$0xff] %vm305, %v2402
      %2435 = vst.msk [vmem:[#allocation3 + $0x18] sm:$0xff] %vm305, %v2403
      %2436 = vst.msk [vmem:[#allocation3 + $0x20] sm:$0xff] %vm305, %v2404
      %2437 = vst.msk [vmem:[#allocation3 + $0x28] sm:$0xff] %vm305, %v2405
      %2438 = vst.msk [vmem:[#allocation3 + $0x30] sm:$0xff] %vm305, %v2406
      %2439 = vst.msk [vmem:[#allocation3 + $0x38] sm:$0xff] %vm305, %v2407
      %2440 = vst.msk [vmem:[#allocation3 + $0x40] sm:$0xff] %vm305, %v2408
      %2441 = vst.msk [vmem:[#allocation3 + $0x48] sm:$0xff] %vm305, %v2409
      %2442 = vst.msk [vmem:[#allocation3 + $0x50] sm:$0xff] %vm305, %v2410
      %2443 = vst.msk [vmem:[#allocation3 + $0x58] sm:$0xff] %vm305, %v2411
      %2444 = vst.msk [vmem:[#allocation3 + $0x60] sm:$0xff] %vm305, %v2412
      %2445 = vst.msk [vmem:[#allocation3 + $0x68] sm:$0xff] %vm305, %v2413
      %2446 = vst.msk [vmem:[#allocation3 + $0x70] sm:$0xff] %vm305, %v2414
      %2447 = vst.msk [vmem:[#allocation3 + $0x78] sm:$0xff] %vm305, %v2415
      %2448 = vst.msk [vmem:[#allocation3 + $0x80] sm:$0xff] %vm305, %v2416
      %2449 = vst.msk [vmem:[#allocation3 + $0x88] sm:$0xff] %vm305, %v2417
      %2450 = vst.msk [vmem:[#allocation3 + $0x90] sm:$0xff] %vm305, %v2418
      %2451 = vst.msk [vmem:[#allocation3 + $0x98] sm:$0xff] %vm305, %v2419
      %2452 = vst.msk [vmem:[#allocation3 + $0xa0] sm:$0xff] %vm305, %v2420
      %2453 = vst.msk [vmem:[#allocation3 + $0xa8] sm:$0xff] %vm305, %v2421
      %2454 = vst.msk [vmem:[#allocation3 + $0xb0] sm:$0xff] %vm305, %v2422
      %2455 = vst.msk [vmem:[#allocation3 + $0xb8] sm:$0xff] %vm305, %v2423
      %2456 = vst.msk [vmem:[#allocation3 + $0xc0] sm:$0xff] %vm305, %v2424
      %2457 = vst.msk [vmem:[#allocation3 + $0xc8] sm:$0xff] %vm305, %v2425
      %2458 = vst.msk [vmem:[#allocation3 + $0xd0] sm:$0xff] %vm305, %v2426
      %2459 = vst.msk [vmem:[#allocation3 + $0xd8] sm:$0xff] %vm305, %v2427
      %2460 = vst.msk [vmem:[#allocation3 + $0xe0] sm:$0xff] %vm305, %v2428
      %2461 = vst.msk [vmem:[#allocation3 + $0xe8] sm:$0xff] %vm305, %v2429
      %2462 = vst.msk [vmem:[#allocation3 + $0xf0] sm:$0xff] %vm305, %v2430
      %2463 = vst.msk [vmem:[#allocation3 + $0xf8] sm:$0xff] %vm305, %v2431
      %v2464 = vld [vmem:[%s1561 + $0x2] sm:$0xff]
      %v2465 = vld [vmem:[%s1561 + $0xa] sm:$0xff]
      %v2466 = vld [vmem:[%s1561 + $0x1a] sm:$0xff]
      %v2467 = vld [vmem:[%s1561 + $0x22] sm:$0xff]
      %v2468 = vld [vmem:[%s1561 + $0x32] sm:$0xff]
      %v2469 = vld [vmem:[%s1561 + $0x3a] sm:$0xff]
      %v2470 = vld [vmem:[%s1561 + $0x4a] sm:$0xff]
      %v2471 = vld [vmem:[%s1561 + $0x52] sm:$0xff]
      %v2472 = vld [vmem:[%s1561 + $0x62] sm:$0xff]
      %v2473 = vld [vmem:[%s1561 + $0x6a] sm:$0xff]
      %v2474 = vld [vmem:[%s1561 + $0x7a] sm:$0xff]
      %v2475 = vld [vmem:[%s1561 + $0x82] sm:$0xff]
      %v2476 = vld [vmem:[%s1561 + $0x92] sm:$0xff]
      %v2477 = vld [vmem:[%s1561 + $0x9a] sm:$0xff]
      %v2478 = vld [vmem:[%s1561 + $0xaa] sm:$0xff]
      %v2479 = vld [vmem:[%s1561 + $0xb2] sm:$0xff]
      %v2480 = vld [vmem:[%s1561 + $0xc2] sm:$0xff]
      %v2481 = vld [vmem:[%s1561 + $0xca] sm:$0xff]
      %v2482 = vld [vmem:[%s1561 + $0xda] sm:$0xff]
      %v2483 = vld [vmem:[%s1561 + $0xe2] sm:$0xff]
      %v2484 = vld [vmem:[%s1561 + $0xf2] sm:$0xff]
      %v2485 = vld [vmem:[%s1561 + $0xfa] sm:$0xff]
      %v2486 = vld [vmem:[%s1561 + $0x10a] sm:$0xff]
      %v2487 = vld [vmem:[%s1561 + $0x112] sm:$0xff]
      %v2488 = vld [vmem:[%s1561 + $0x122] sm:$0xff]
      %v2489 = vld [vmem:[%s1561 + $0x12a] sm:$0xff]
      %v2490 = vld [vmem:[%s1561 + $0x13a] sm:$0xff]
      %v2491 = vld [vmem:[%s1561 + $0x142] sm:$0xff]
      %v2492 = vld [vmem:[%s1561 + $0x152] sm:$0xff]
      %v2493 = vld [vmem:[%s1561 + $0x15a] sm:$0xff]
      %v2494 = vld [vmem:[%s1561 + $0x16a] sm:$0xff]
      %v2495 = vld [vmem:[%s1561 + $0x172] sm:$0xff]
      %s2496 = scalar_lea.vmem %s2, 40
      %v2497 = vld [vmem:[%s2496] sm:$0xff]
      %v2499 = vsel %vm305, %v2464, 0
      %v2502 = vsel %vm305, %v2465, 0
      %v2505 = vsel %vm305, %v2466, 0
      %v2508 = vsel %vm305, %v2467, 0
      %v2511 = vsel %vm305, %v2468, 0
      %v2514 = vsel %vm305, %v2469, 0
      %v2517 = vsel %vm305, %v2470, 0
      %v2520 = vsel %vm305, %v2471, 0
      %v2523 = vsel %vm305, %v2472, 0
      %v2526 = vsel %vm305, %v2473, 0
      %v2529 = vsel %vm305, %v2474, 0
      %v2532 = vsel %vm305, %v2475, 0
      %v2535 = vsel %vm305, %v2476, 0
      %v2538 = vsel %vm305, %v2477, 0
      %v2541 = vsel %vm305, %v2478, 0
      %v2544 = vsel %vm305, %v2479, 0
      %v2547 = vsel %vm305, %v2480, 0
      %v2550 = vsel %vm305, %v2481, 0
      %v2553 = vsel %vm305, %v2482, 0
      %v2556 = vsel %vm305, %v2483, 0
      %v2559 = vsel %vm305, %v2484, 0
      %v2562 = vsel %vm305, %v2485, 0
      %v2565 = vsel %vm305, %v2486, 0
      %v2568 = vsel %vm305, %v2487, 0
      %v2571 = vsel %vm305, %v2488, 0
      %v2574 = vsel %vm305, %v2489, 0
      %v2577 = vsel %vm305, %v2490, 0
      %v2580 = vsel %vm305, %v2491, 0
      %v2583 = vsel %vm305, %v2492, 0
      %v2586 = vsel %vm305, %v2493, 0
      %v2589 = vsel %vm305, %v2494, 0
      %v2592 = vsel %vm305, %v2495, 0
      %2594 = vmatprep.subr.mxu0 0.0
      %2595 = vmatpush1.msra.mxu0 %v2497
      %2596 = vmatprep.subr.mxu0 0.0
      %2597 = vmatpush1.msra.mxu0 0.0
      %2598 = vmatprep.subr.mxu0 0.0
      %2599 = vmatpush1.msra.mxu0 0.0
      %2600 = vmatprep.subr.mxu0 0.0
      %2601 = vmatpush1.msra.mxu0 0.0
      %2602 = vmatprep.subr.mxu0 0.0
      %2603 = vmatpush1.msra.mxu0 0.0
      %2604 = vmatprep.subr.mxu0 0.0
      %2605 = vmatpush1.msra.mxu0 0.0
      %2606 = vmatprep.subr.mxu0 0.0
      %2607 = vmatpush1.msra.mxu0 0.0
      %2608 = vmatprep.subr.mxu0 0.0
      %2609 = vmatpush1.msra.mxu0 0.0
      %2610 = vmatprep.subr.mxu0 0.0
      %2611 = vmatpush1.msra.mxu0 0.0
      %2612 = vmatprep.subr.mxu0 0.0
      %2613 = vmatpush1.msra.mxu0 0.0
      %2614 = vmatprep.subr.mxu0 0.0
      %2615 = vmatpush1.msra.mxu0 0.0
      %2616 = vmatprep.subr.mxu0 0.0
      %2617 = vmatpush1.msra.mxu0 0.0
      %2618 = vmatprep.subr.mxu0 0.0
      %2619 = vmatpush1.msra.mxu0 0.0
      %2620 = vmatprep.subr.mxu0 0.0
      %2621 = vmatpush1.msra.mxu0 0.0
      %2622 = vmatprep.subr.mxu0 0.0
      %2623 = vmatpush1.msra.mxu0 0.0
      %2624 = vmatprep.subr.mxu0 0.0
      %2625 = vmatpush1.msra.mxu0 0.0
      %2626 = vmatprep.subr.mxu0 0.0
      %2627 = vmatpush1.msra.mxu0 0.0
      %2628 = vmatprep.subr.mxu0 0.0
      %2629 = vmatpush1.msra.mxu0 0.0
      %2630 = vmatprep.subr.mxu0 0.0
      %2631 = vmatpush1.msra.mxu0 0.0
      %2632 = vmatprep.subr.mxu0 0.0
      %2633 = vmatpush1.msra.mxu0 0.0
      %2634 = vmatprep.subr.mxu0 0.0
      %2635 = vmatpush1.msra.mxu0 0.0
      %2636 = vmatprep.subr.mxu0 0.0
      %2637 = vmatpush1.msra.mxu0 0.0
      %2638 = vmatprep.subr.mxu0 0.0
      %2639 = vmatpush1.msra.mxu0 0.0
      %2640 = vmatprep.subr.mxu0 0.0
      %2641 = vmatpush1.msra.mxu0 0.0
      %2642 = vmatprep.subr.mxu0 0.0
      %2643 = vmatpush1.msra.mxu0 0.0
      %2644 = vmatprep.subr.mxu0 0.0
      %2645 = vmatpush1.msra.mxu0 0.0
      %2646 = vmatprep.subr.mxu0 0.0
      %2647 = vmatpush1.msra.mxu0 0.0
      %2648 = vmatprep.subr.mxu0 0.0
      %2649 = vmatpush1.msra.mxu0 0.0
      %2650 = vmatprep.subr.mxu0 0.0
      %2651 = vmatpush1.msra.mxu0 0.0
      %2652 = vmatprep.subr.mxu0 0.0
      %2653 = vmatpush1.msra.mxu0 0.0
      %2654 = vmatprep.subr.mxu0 0.0
      %2655 = vmatpush1.msra.mxu0 0.0
      %2656 = vmatprep.subr.mxu0 0.0
      %2657 = vmatpush1.msra.mxu0 0.0
      %2658 = vmatprep.mubr.f32.mxu0 0.0
      %2659 = vmatmul.mubr.f32.gmra.mrb[0].mxu0 %v2499
      %v2660 = vpop.f32.mrb[0].mxu0
      %v2661 = vadd.f32 0.0, %v2660
      %v2662 = vpop.f32.mrb[0].mxu0
      %2663 = vmatprep.mubr.f32.mxu0 0.0
      %2664 = vmatmul.mubr.f32.gmra.mrb[0].mxu0 %v2502
      %v2665 = vpop.f32.mrb[0].mxu0
      %v2666 = vadd.f32 0.0, %v2665
      %v2667 = vpop.f32.mrb[0].mxu0
      %2668 = vmatprep.mubr.f32.mxu0 0.0
      %2669 = vmatmul.mubr.f32.gmra.mrb[0].mxu0 %v2505
      %v2670 = vpop.f32.mrb[0].mxu0
      %v2671 = vadd.f32 0.0, %v2670
      %v2672 = vpop.f32.mrb[0].mxu0
      %2673 = vmatprep.mubr.f32.mxu0 0.0
      %2674 = vmatmul.mubr.f32.gmra.mrb[0].mxu0 %v2508
      %v2675 = vpop.f32.mrb[0].mxu0
      %v2676 = vadd.f32 0.0, %v2675
      %v2677 = vpop.f32.mrb[0].mxu0
      %2678 = vmatprep.mubr.f32.mxu0 0.0
      %2679 = vmatmul.mubr.f32.gmra.mrb[0].mxu0 %v2511
      %v2680 = vpop.f32.mrb[0].mxu0
      %v2681 = vadd.f32 0.0, %v2680
      %v2682 = vpop.f32.mrb[0].mxu0
      %2683 = vmatprep.mubr.f32.mxu0 0.0
      %2684 = vmatmul.mubr.f32.gmra.mrb[0].mxu0 %v2514
      %v2685 = vpop.f32.mrb[0].mxu0
      %v2686 = vadd.f32 0.0, %v2685
      %v2687 = vpop.f32.mrb[0].mxu0
      %2688 = vmatprep.mubr.f32.mxu0 0.0
      %2689 = vmatmul.mubr.f32.gmra.mrb[0].mxu0 %v2517
      %v2690 = vpop.f32.mrb[0].mxu0
      %v2691 = vadd.f32 0.0, %v2690
      %v2692 = vpop.f32.mrb[0].mxu0
      %2693 = vmatprep.mubr.f32.mxu0 0.0
      %2694 = vmatmul.mubr.f32.gmra.mrb[0].mxu0 %v2520
      %v2695 = vpop.f32.mrb[0].mxu0
      %v2696 = vadd.f32 0.0, %v2695
      %v2697 = vpop.f32.mrb[0].mxu0
      %2698 = vmatprep.mubr.f32.mxu0 0.0
      %2699 = vmatmul.mubr.f32.gmra.mrb[0].mxu0 %v2523
      %v2700 = vpop.f32.mrb[0].mxu0
      %v2701 = vadd.f32 0.0, %v2700
      %v2702 = vpop.f32.mrb[0].mxu0
      %2703 = vmatprep.mubr.f32.mxu0 0.0
      %2704 = vmatmul.mubr.f32.gmra.mrb[0].mxu0 %v2526
      %v2705 = vpop.f32.mrb[0].mxu0
      %v2706 = vadd.f32 0.0, %v2705
      %v2707 = vpop.f32.mrb[0].mxu0
      %2708 = vmatprep.mubr.f32.mxu0 0.0
      %2709 = vmatmul.mubr.f32.gmra.mrb[0].mxu0 %v2529
      %v2710 = vpop.f32.mrb[0].mxu0
      %v2711 = vadd.f32 0.0, %v2710
      %v2712 = vpop.f32.mrb[0].mxu0
      %2713 = vmatprep.mubr.f32.mxu0 0.0
      %2714 = vmatmul.mubr.f32.gmra.mrb[0].mxu0 %v2532
      %v2715 = vpop.f32.mrb[0].mxu0
      %v2716 = vadd.f32 0.0, %v2715
      %v2717 = vpop.f32.mrb[0].mxu0
      %2718 = vmatprep.mubr.f32.mxu0 0.0
      %2719 = vmatmul.mubr.f32.gmra.mrb[0].mxu0 %v2535
      %v2720 = vpop.f32.mrb[0].mxu0
      %v2721 = vadd.f32 0.0, %v2720
      %v2722 = vpop.f32.mrb[0].mxu0
      %2723 = vmatprep.mubr.f32.mxu0 0.0
      %2724 = vmatmul.mubr.f32.gmra.mrb[0].mxu0 %v2538
      %v2725 = vpop.f32.mrb[0].mxu0
      %v2726 = vadd.f32 0.0, %v2725
      %v2727 = vpop.f32.mrb[0].mxu0
      %2728 = vmatprep.mubr.f32.mxu0 0.0
      %2729 = vmatmul.mubr.f32.gmra.mrb[0].mxu0 %v2541
      %v2730 = vpop.f32.mrb[0].mxu0
      %v2731 = vadd.f32 0.0, %v2730
      %v2732 = vpop.f32.mrb[0].mxu0
      %2733 = vmatprep.mubr.f32.mxu0 0.0
      %2734 = vmatmul.mubr.f32.gmra.mrb[0].mxu0 %v2544
      %v2735 = vpop.f32.mrb[0].mxu0
      %v2736 = vadd.f32 0.0, %v2735
      %v2737 = vpop.f32.mrb[0].mxu0
      %2738 = vmatprep.mubr.f32.mxu0 0.0
      %2739 = vmatmul.mubr.f32.gmra.mrb[0].mxu0 %v2547
      %v2740 = vpop.f32.mrb[0].mxu0
      %v2741 = vadd.f32 0.0, %v2740
      %v2742 = vpop.f32.mrb[0].mxu0
      %2743 = vmatprep.mubr.f32.mxu0 0.0
      %2744 = vmatmul.mubr.f32.gmra.mrb[0].mxu0 %v2550
      %v2745 = vpop.f32.mrb[0].mxu0
      %v2746 = vadd.f32 0.0, %v2745
      %v2747 = vpop.f32.mrb[0].mxu0
      %2748 = vmatprep.mubr.f32.mxu0 0.0
      %2749 = vmatmul.mubr.f32.gmra.mrb[0].mxu0 %v2553
      %v2750 = vpop.f32.mrb[0].mxu0
      %v2751 = vadd.f32 0.0, %v2750
      %v2752 = vpop.f32.mrb[0].mxu0
      %2753 = vmatprep.mubr.f32.mxu0 0.0
      %2754 = vmatmul.mubr.f32.gmra.mrb[0].mxu0 %v2556
      %v2755 = vpop.f32.mrb[0].mxu0
      %v2756 = vadd.f32 0.0, %v2755
      %v2757 = vpop.f32.mrb[0].mxu0
      %2758 = vmatprep.mubr.f32.mxu0 0.0
      %2759 = vmatmul.mubr.f32.gmra.mrb[0].mxu0 %v2559
      %v2760 = vpop.f32.mrb[0].mxu0
      %v2761 = vadd.f32 0.0, %v2760
      %v2762 = vpop.f32.mrb[0].mxu0
      %2763 = vmatprep.mubr.f32.mxu0 0.0
      %2764 = vmatmul.mubr.f32.gmra.mrb[0].mxu0 %v2562
      %v2765 = vpop.f32.mrb[0].mxu0
      %v2766 = vadd.f32 0.0, %v2765
      %v2767 = vpop.f32.mrb[0].mxu0
      %2768 = vmatprep.mubr.f32.mxu0 0.0
      %2769 = vmatmul.mubr.f32.gmra.mrb[0].mxu0 %v2565
      %v2770 = vpop.f32.mrb[0].mxu0
      %v2771 = vadd.f32 0.0, %v2770
      %v2772 = vpop.f32.mrb[0].mxu0
      %2773 = vmatprep.mubr.f32.mxu0 0.0
      %2774 = vmatmul.mubr.f32.gmra.mrb[0].mxu0 %v2568
      %v2775 = vpop.f32.mrb[0].mxu0
      %v2776 = vadd.f32 0.0, %v2775
      %v2777 = vpop.f32.mrb[0].mxu0
      %2778 = vmatprep.mubr.f32.mxu0 0.0
      %2779 = vmatmul.mubr.f32.gmra.mrb[0].mxu0 %v2571
      %v2780 = vpop.f32.mrb[0].mxu0
      %v2781 = vadd.f32 0.0, %v2780
      %v2782 = vpop.f32.mrb[0].mxu0
      %2783 = vmatprep.mubr.f32.mxu0 0.0
      %2784 = vmatmul.mubr.f32.gmra.mrb[0].mxu0 %v2574
      %v2785 = vpop.f32.mrb[0].mxu0
      %v2786 = vadd.f32 0.0, %v2785
      %v2787 = vpop.f32.mrb[0].mxu0
      %2788 = vmatprep.mubr.f32.mxu0 0.0
      %2789 = vmatmul.mubr.f32.gmra.mrb[0].mxu0 %v2577
      %v2790 = vpop.f32.mrb[0].mxu0
      %v2791 = vadd.f32 0.0, %v2790
      %v2792 = vpop.f32.mrb[0].mxu0
      %2793 = vmatprep.mubr.f32.mxu0 0.0
      %2794 = vmatmul.mubr.f32.gmra.mrb[0].mxu0 %v2580
      %v2795 = vpop.f32.mrb[0].mxu0
      %v2796 = vadd.f32 0.0, %v2795
      %v2797 = vpop.f32.mrb[0].mxu0
      %2798 = vmatprep.mubr.f32.mxu0 0.0
      %2799 = vmatmul.mubr.f32.gmra.mrb[0].mxu0 %v2583
      %v2800 = vpop.f32.mrb[0].mxu0
      %v2801 = vadd.f32 0.0, %v2800
      %v2802 = vpop.f32.mrb[0].mxu0
      %2803 = vmatprep.mubr.f32.mxu0 0.0
      %2804 = vmatmul.mubr.f32.gmra.mrb[0].mxu0 %v2586
      %v2805 = vpop.f32.mrb[0].mxu0
      %v2806 = vadd.f32 0.0, %v2805
      %v2807 = vpop.f32.mrb[0].mxu0
      %2808 = vmatprep.mubr.f32.mxu0 0.0
      %2809 = vmatmul.mubr.f32.gmra.mrb[0].mxu0 %v2589
      %v2810 = vpop.f32.mrb[0].mxu0
      %v2811 = vadd.f32 0.0, %v2810
      %v2812 = vpop.f32.mrb[0].mxu0
      %2813 = vmatprep.mubr.f32.mxu0 0.0
      %2814 = vmatmul.mubr.f32.gmra.mrb[0].mxu0 %v2592
      %v2815 = vpop.f32.mrb[0].mxu0
      %v2816 = vadd.f32 0.0, %v2815
      %v2817 = vpop.f32.mrb[0].mxu0
      %2818 = vdwg.mxu0
      %v2819 = vld [vmem:[#allocation3] sm:$0xff]
      %v2820 = vld [vmem:[#allocation3 + $0x8] sm:$0xff]
      %v2821 = vld [vmem:[#allocation3 + $0x10] sm:$0xff]
      %v2822 = vld [vmem:[#allocation3 + $0x18] sm:$0xff]
      %v2823 = vld [vmem:[#allocation3 + $0x20] sm:$0xff]
      %v2824 = vld [vmem:[#allocation3 + $0x28] sm:$0xff]
      %v2825 = vld [vmem:[#allocation3 + $0x30] sm:$0xff]
      %v2826 = vld [vmem:[#allocation3 + $0x38] sm:$0xff]
      %v2827 = vld [vmem:[#allocation3 + $0x40] sm:$0xff]
      %v2828 = vld [vmem:[#allocation3 + $0x48] sm:$0xff]
      %v2829 = vld [vmem:[#allocation3 + $0x50] sm:$0xff]
      %v2830 = vld [vmem:[#allocation3 + $0x58] sm:$0xff]
      %v2831 = vld [vmem:[#allocation3 + $0x60] sm:$0xff]
      %v2832 = vld [vmem:[#allocation3 + $0x68] sm:$0xff]
      %v2833 = vld [vmem:[#allocation3 + $0x70] sm:$0xff]
      %v2834 = vld [vmem:[#allocation3 + $0x78] sm:$0xff]
      %v2835 = vld [vmem:[#allocation3 + $0x80] sm:$0xff]
      %v2836 = vld [vmem:[#allocation3 + $0x88] sm:$0xff]
      %v2837 = vld [vmem:[#allocation3 + $0x90] sm:$0xff]
      %v2838 = vld [vmem:[#allocation3 + $0x98] sm:$0xff]
      %v2839 = vld [vmem:[#allocation3 + $0xa0] sm:$0xff]
      %v2840 = vld [vmem:[#allocation3 + $0xa8] sm:$0xff]
      %v2841 = vld [vmem:[#allocation3 + $0xb0] sm:$0xff]
      %v2842 = vld [vmem:[#allocation3 + $0xb8] sm:$0xff]
      %v2843 = vld [vmem:[#allocation3 + $0xc0] sm:$0xff]
      %v2844 = vld [vmem:[#allocation3 + $0xc8] sm:$0xff]
      %v2845 = vld [vmem:[#allocation3 + $0xd0] sm:$0xff]
      %v2846 = vld [vmem:[#allocation3 + $0xd8] sm:$0xff]
      %v2847 = vld [vmem:[#allocation3 + $0xe0] sm:$0xff]
      %v2848 = vld [vmem:[#allocation3 + $0xe8] sm:$0xff]
      %v2849 = vld [vmem:[#allocation3 + $0xf0] sm:$0xff]
      %v2850 = vld [vmem:[#allocation3 + $0xf8] sm:$0xff]
      %v2851 = vadd.f32 %v2819, %v2661
      %v2852 = vadd.f32 %v2820, %v2666
      %v2853 = vadd.f32 %v2821, %v2671
      %v2854 = vadd.f32 %v2822, %v2676
      %v2855 = vadd.f32 %v2823, %v2681
      %v2856 = vadd.f32 %v2824, %v2686
      %v2857 = vadd.f32 %v2825, %v2691
      %v2858 = vadd.f32 %v2826, %v2696
      %v2859 = vadd.f32 %v2827, %v2701
      %v2860 = vadd.f32 %v2828, %v2706
      %v2861 = vadd.f32 %v2829, %v2711
      %v2862 = vadd.f32 %v2830, %v2716
      %v2863 = vadd.f32 %v2831, %v2721
      %v2864 = vadd.f32 %v2832, %v2726
      %v2865 = vadd.f32 %v2833, %v2731
      %v2866 = vadd.f32 %v2834, %v2736
      %v2867 = vadd.f32 %v2835, %v2741
      %v2868 = vadd.f32 %v2836, %v2746
      %v2869 = vadd.f32 %v2837, %v2751
      %v2870 = vadd.f32 %v2838, %v2756
      %v2871 = vadd.f32 %v2839, %v2761
      %v2872 = vadd.f32 %v2840, %v2766
      %v2873 = vadd.f32 %v2841, %v2771
      %v2874 = vadd.f32 %v2842, %v2776
      %v2875 = vadd.f32 %v2843, %v2781
      %v2876 = vadd.f32 %v2844, %v2786
      %v2877 = vadd.f32 %v2845, %v2791
      %v2878 = vadd.f32 %v2846, %v2796
      %v2879 = vadd.f32 %v2847, %v2801
      %v2880 = vadd.f32 %v2848, %v2806
      %v2881 = vadd.f32 %v2849, %v2811
      %v2882 = vadd.f32 %v2850, %v2816
      %2883 = vst.msk [vmem:[#allocation3] sm:$0xff] %vm305, %v2851
      %2884 = vst.msk [vmem:[#allocation3 + $0x8] sm:$0xff] %vm305, %v2852
      %2885 = vst.msk [vmem:[#allocation3 + $0x10] sm:$0xff] %vm305, %v2853
      %2886 = vst.msk [vmem:[#allocation3 + $0x18] sm:$0xff] %vm305, %v2854
      %2887 = vst.msk [vmem:[#allocation3 + $0x20] sm:$0xff] %vm305, %v2855
      %2888 = vst.msk [vmem:[#allocation3 + $0x28] sm:$0xff] %vm305, %v2856
      %2889 = vst.msk [vmem:[#allocation3 + $0x30] sm:$0xff] %vm305, %v2857
      %2890 = vst.msk [vmem:[#allocation3 + $0x38] sm:$0xff] %vm305, %v2858
      %2891 = vst.msk [vmem:[#allocation3 + $0x40] sm:$0xff] %vm305, %v2859
      %2892 = vst.msk [vmem:[#allocation3 + $0x48] sm:$0xff] %vm305, %v2860
      %2893 = vst.msk [vmem:[#allocation3 + $0x50] sm:$0xff] %vm305, %v2861
      %2894 = vst.msk [vmem:[#allocation3 + $0x58] sm:$0xff] %vm305, %v2862
      %2895 = vst.msk [vmem:[#allocation3 + $0x60] sm:$0xff] %vm305, %v2863
      %2896 = vst.msk [vmem:[#allocation3 + $0x68] sm:$0xff] %vm305, %v2864
      %2897 = vst.msk [vmem:[#allocation3 + $0x70] sm:$0xff] %vm305, %v2865
      %2898 = vst.msk [vmem:[#allocation3 + $0x78] sm:$0xff] %vm305, %v2866
      %2899 = vst.msk [vmem:[#allocation3 + $0x80] sm:$0xff] %vm305, %v2867
      %2900 = vst.msk [vmem:[#allocation3 + $0x88] sm:$0xff] %vm305, %v2868
      %2901 = vst.msk [vmem:[#allocation3 + $0x90] sm:$0xff] %vm305, %v2869
      %2902 = vst.msk [vmem:[#allocation3 + $0x98] sm:$0xff] %vm305, %v2870
      %2903 = vst.msk [vmem:[#allocation3 + $0xa0] sm:$0xff] %vm305, %v2871
      %2904 = vst.msk [vmem:[#allocation3 + $0xa8] sm:$0xff] %vm305, %v2872
      %2905 = vst.msk [vmem:[#allocation3 + $0xb0] sm:$0xff] %vm305, %v2873
      %2906 = vst.msk [vmem:[#allocation3 + $0xb8] sm:$0xff] %vm305, %v2874
      %2907 = vst.msk [vmem:[#allocation3 + $0xc0] sm:$0xff] %vm305, %v2875
      %2908 = vst.msk [vmem:[#allocation3 + $0xc8] sm:$0xff] %vm305, %v2876
      %2909 = vst.msk [vmem:[#allocation3 + $0xd0] sm:$0xff] %vm305, %v2877
      %2910 = vst.msk [vmem:[#allocation3 + $0xd8] sm:$0xff] %vm305, %v2878
      %2911 = vst.msk [vmem:[#allocation3 + $0xe0] sm:$0xff] %vm305, %v2879
      %2912 = vst.msk [vmem:[#allocation3 + $0xe8] sm:$0xff] %vm305, %v2880
      %2913 = vst.msk [vmem:[#allocation3 + $0xf0] sm:$0xff] %vm305, %v2881
      %2914 = vst.msk [vmem:[#allocation3 + $0xf8] sm:$0xff] %vm305, %v2882
      %s2915 = scalar_lea.vmem %s261, 48
      %v2916 = vld [vmem:[%s2915] sm:$0xff]
      %v2917 = vld [vmem:[%s2915 + $0x8] sm:$0xff]
      %v2918 = vld [vmem:[%s2915 + $0x18] sm:$0xff]
      %v2919 = vld [vmem:[%s2915 + $0x20] sm:$0xff]
      %v2920 = vld [vmem:[%s2915 + $0x30] sm:$0xff]
      %v2921 = vld [vmem:[%s2915 + $0x38] sm:$0xff]
      %v2922 = vld [vmem:[%s2915 + $0x48] sm:$0xff]
      %v2923 = vld [vmem:[%s2915 + $0x50] sm:$0xff]
      %v2924 = vld [vmem:[%s2915 + $0x60] sm:$0xff]
      %v2925 = vld [vmem:[%s2915 + $0x68] sm:$0xff]
      %v2926 = vld [vmem:[%s2915 + $0x78] sm:$0xff]
      %v2927 = vld [vmem:[%s2915 + $0x80] sm:$0xff]
      %v2928 = vld [vmem:[%s2915 + $0x90] sm:$0xff]
      %v2929 = vld [vmem:[%s2915 + $0x98] sm:$0xff]
      %v2930 = vld [vmem:[%s2915 + $0xa8] sm:$0xff]
      %v2931 = vld [vmem:[%s2915 + $0xb0] sm:$0xff]
      %v2932 = vld [vmem:[%s2915 + $0xc0] sm:$0xff]
      %v2933 = vld [vmem:[%s2915 + $0xc8] sm:$0xff]
      %v2934 = vld [vmem:[%s2915 + $0xd8] sm:$0xff]
      %v2935 = vld [vmem:[%s2915 + $0xe0] sm:$0xff]
      %v2936 = vld [vmem:[%s2915 + $0xf0] sm:$0xff]
      %v2937 = vld [vmem:[%s2915 + $0xf8] sm:$0xff]
      %v2938 = vld [vmem:[%s2915 + $0x108] sm:$0xff]
      %v2939 = vld [vmem:[%s2915 + $0x110] sm:$0xff]
      %v2940 = vld [vmem:[%s2915 + $0x120] sm:$0xff]
      %v2941 = vld [vmem:[%s2915 + $0x128] sm:$0xff]
      %v2942 = vld [vmem:[%s2915 + $0x138] sm:$0xff]
      %v2943 = vld [vmem:[%s2915 + $0x140] sm:$0xff]
      %v2944 = vld [vmem:[%s2915 + $0x150] sm:$0xff]
      %v2945 = vld [vmem:[%s2915 + $0x158] sm:$0xff]
      %v2946 = vld [vmem:[%s2915 + $0x168] sm:$0xff]
      %v2947 = vld [vmem:[%s2915 + $0x170] sm:$0xff]
      %s2948 = scalar_lea.vmem %s2, 48
      %v2949 = vld [vmem:[%s2948] sm:$0xff]
      %v2951 = vsel %vm305, %v2916, 0
      %v2954 = vsel %vm305, %v2917, 0
      %v2957 = vsel %vm305, %v2918, 0
      %v2960 = vsel %vm305, %v2919, 0
      %v2963 = vsel %vm305, %v2920, 0
      %v2966 = vsel %vm305, %v2921, 0
      %v2969 = vsel %vm305, %v2922, 0
      %v2972 = vsel %vm305, %v2923, 0
      %v2975 = vsel %vm305, %v2924, 0
      %v2978 = vsel %vm305, %v2925, 0
      %v2981 = vsel %vm305, %v2926, 0
      %v2984 = vsel %vm305, %v2927, 0
      %v2987 = vsel %vm305, %v2928, 0
      %v2990 = vsel %vm305, %v2929, 0
      %v2993 = vsel %vm305, %v2930, 0
      %v2996 = vsel %vm305, %v2931, 0
      %v2999 = vsel %vm305, %v2932, 0
      %v3002 = vsel %vm305, %v2933, 0
      %v3005 = vsel %vm305, %v2934, 0
      %v3008 = vsel %vm305, %v2935, 0
      %v3011 = vsel %vm305, %v2936, 0
      %v3014 = vsel %vm305, %v2937, 0
      %v3017 = vsel %vm305, %v2938, 0
      %v3020 = vsel %vm305, %v2939, 0
      %v3023 = vsel %vm305, %v2940, 0
      %v3026 = vsel %vm305, %v2941, 0
      %v3029 = vsel %vm305, %v2942, 0
      %v3032 = vsel %vm305, %v2943, 0
      %v3035 = vsel %vm305, %v2944, 0
      %v3038 = vsel %vm305, %v2945, 0
      %v3041 = vsel %vm305, %v2946, 0
      %v3044 = vsel %vm305, %v2947, 0
      %3046 = vmatprep.subr.mxu0 0.0
      %3047 = vmatpush1.msra.mxu0 %v2949
      %3048 = vmatprep.subr.mxu0 0.0
      %3049 = vmatpush1.msra.mxu0 0.0
      %3050 = vmatprep.subr.mxu0 0.0
      %3051 = vmatpush1.msra.mxu0 0.0
      %3052 = vmatprep.subr.mxu0 0.0
      %3053 = vmatpush1.msra.mxu0 0.0
      %3054 = vmatprep.subr.mxu0 0.0
      %3055 = vmatpush1.msra.mxu0 0.0
      %3056 = vmatprep.subr.mxu0 0.0
      %3057 = vmatpush1.msra.mxu0 0.0
      %3058 = vmatprep.subr.mxu0 0.0
      %3059 = vmatpush1.msra.mxu0 0.0
      %3060 = vmatprep.subr.mxu0 0.0
      %3061 = vmatpush1.msra.mxu0 0.0
      %3062 = vmatprep.subr.mxu0 0.0
      %3063 = vmatpush1.msra.mxu0 0.0
      %3064 = vmatprep.subr.mxu0 0.0
      %3065 = vmatpush1.msra.mxu0 0.0
      %3066 = vmatprep.subr.mxu0 0.0
      %3067 = vmatpush1.msra.mxu0 0.0
      %3068 = vmatprep.subr.mxu0 0.0
      %3069 = vmatpush1.msra.mxu0 0.0
      %3070 = vmatprep.subr.mxu0 0.0
      %3071 = vmatpush1.msra.mxu0 0.0
      %3072 = vmatprep.subr.mxu0 0.0
      %3073 = vmatpush1.msra.mxu0 0.0
      %3074 = vmatprep.subr.mxu0 0.0
      %3075 = vmatpush1.msra.mxu0 0.0
      %3076 = vmatprep.subr.mxu0 0.0
      %3077 = vmatpush1.msra.mxu0 0.0
      %3078 = vmatprep.subr.mxu0 0.0
      %3079 = vmatpush1.msra.mxu0 0.0
      %3080 = vmatprep.subr.mxu0 0.0
      %3081 = vmatpush1.msra.mxu0 0.0
      %3082 = vmatprep.subr.mxu0 0.0
      %3083 = vmatpush1.msra.mxu0 0.0
      %3084 = vmatprep.subr.mxu0 0.0
      %3085 = vmatpush1.msra.mxu0 0.0
      %3086 = vmatprep.subr.mxu0 0.0
      %3087 = vmatpush1.msra.mxu0 0.0
      %3088 = vmatprep.subr.mxu0 0.0
      %3089 = vmatpush1.msra.mxu0 0.0
      %3090 = vmatprep.subr.mxu0 0.0
      %3091 = vmatpush1.msra.mxu0 0.0
      %3092 = vmatprep.subr.mxu0 0.0
      %3093 = vmatpush1.msra.mxu0 0.0
      %3094 = vmatprep.subr.mxu0 0.0
      %3095 = vmatpush1.msra.mxu0 0.0
      %3096 = vmatprep.subr.mxu0 0.0
      %3097 = vmatpush1.msra.mxu0 0.0
      %3098 = vmatprep.subr.mxu0 0.0
      %3099 = vmatpush1.msra.mxu0 0.0
      %3100 = vmatprep.subr.mxu0 0.0
      %3101 = vmatpush1.msra.mxu0 0.0
      %3102 = vmatprep.subr.mxu0 0.0
      %3103 = vmatpush1.msra.mxu0 0.0
      %3104 = vmatprep.subr.mxu0 0.0
      %3105 = vmatpush1.msra.mxu0 0.0
      %3106 = vmatprep.subr.mxu0 0.0
      %3107 = vmatpush1.msra.mxu0 0.0
      %3108 = vmatprep.subr.mxu0 0.0
      %3109 = vmatpush1.msra.mxu0 0.0
      %3110 = vmatprep.mubr.f32.mxu0 0.0
      %3111 = vmatmul.mubr.f32.gmra.mrb[0].mxu0 %v2951
      %v3112 = vpop.f32.mrb[0].mxu0
      %v3113 = vadd.f32 0.0, %v3112
      %v3114 = vpop.f32.mrb[0].mxu0
      %3115 = vmatprep.mubr.f32.mxu0 0.0
      %3116 = vmatmul.mubr.f32.gmra.mrb[0].mxu0 %v2954
      %v3117 = vpop.f32.mrb[0].mxu0
      %v3118 = vadd.f32 0.0, %v3117
      %v3119 = vpop.f32.mrb[0].mxu0
      %3120 = vmatprep.mubr.f32.mxu0 0.0
      %3121 = vmatmul.mubr.f32.gmra.mrb[0].mxu0 %v2957
      %v3122 = vpop.f32.mrb[0].mxu0
      %v3123 = vadd.f32 0.0, %v3122
      %v3124 = vpop.f32.mrb[0].mxu0
      %3125 = vmatprep.mubr.f32.mxu0 0.0
      %3126 = vmatmul.mubr.f32.gmra.mrb[0].mxu0 %v2960
      %v3127 = vpop.f32.mrb[0].mxu0
      %v3128 = vadd.f32 0.0, %v3127
      %v3129 = vpop.f32.mrb[0].mxu0
      %3130 = vmatprep.mubr.f32.mxu0 0.0
      %3131 = vmatmul.mubr.f32.gmra.mrb[0].mxu0 %v2963
      %v3132 = vpop.f32.mrb[0].mxu0
      %v3133 = vadd.f32 0.0, %v3132
      %v3134 = vpop.f32.mrb[0].mxu0
      %3135 = vmatprep.mubr.f32.mxu0 0.0
      %3136 = vmatmul.mubr.f32.gmra.mrb[0].mxu0 %v2966
      %v3137 = vpop.f32.mrb[0].mxu0
      %v3138 = vadd.f32 0.0, %v3137
      %v3139 = vpop.f32.mrb[0].mxu0
      %3140 = vmatprep.mubr.f32.mxu0 0.0
      %3141 = vmatmul.mubr.f32.gmra.mrb[0].mxu0 %v2969
      %v3142 = vpop.f32.mrb[0].mxu0
      %v3143 = vadd.f32 0.0, %v3142
      %v3144 = vpop.f32.mrb[0].mxu0
      %3145 = vmatprep.mubr.f32.mxu0 0.0
      %3146 = vmatmul.mubr.f32.gmra.mrb[0].mxu0 %v2972
      %v3147 = vpop.f32.mrb[0].mxu0
      %v3148 = vadd.f32 0.0, %v3147
      %v3149 = vpop.f32.mrb[0].mxu0
      %3150 = vmatprep.mubr.f32.mxu0 0.0
      %3151 = vmatmul.mubr.f32.gmra.mrb[0].mxu0 %v2975
      %v3152 = vpop.f32.mrb[0].mxu0
      %v3153 = vadd.f32 0.0, %v3152
      %v3154 = vpop.f32.mrb[0].mxu0
      %3155 = vmatprep.mubr.f32.mxu0 0.0
      %3156 = vmatmul.mubr.f32.gmra.mrb[0].mxu0 %v2978
      %v3157 = vpop.f32.mrb[0].mxu0
      %v3158 = vadd.f32 0.0, %v3157
      %v3159 = vpop.f32.mrb[0].mxu0
      %3160 = vmatprep.mubr.f32.mxu0 0.0
      %3161 = vmatmul.mubr.f32.gmra.mrb[0].mxu0 %v2981
      %v3162 = vpop.f32.mrb[0].mxu0
      %v3163 = vadd.f32 0.0, %v3162
      %v3164 = vpop.f32.mrb[0].mxu0
      %3165 = vmatprep.mubr.f32.mxu0 0.0
      %3166 = vmatmul.mubr.f32.gmra.mrb[0].mxu0 %v2984
      %v3167 = vpop.f32.mrb[0].mxu0
      %v3168 = vadd.f32 0.0, %v3167
      %v3169 = vpop.f32.mrb[0].mxu0
      %3170 = vmatprep.mubr.f32.mxu0 0.0
      %3171 = vmatmul.mubr.f32.gmra.mrb[0].mxu0 %v2987
      %v3172 = vpop.f32.mrb[0].mxu0
      %v3173 = vadd.f32 0.0, %v3172
      %v3174 = vpop.f32.mrb[0].mxu0
      %3175 = vmatprep.mubr.f32.mxu0 0.0
      %3176 = vmatmul.mubr.f32.gmra.mrb[0].mxu0 %v2990
      %v3177 = vpop.f32.mrb[0].mxu0
      %v3178 = vadd.f32 0.0, %v3177
      %v3179 = vpop.f32.mrb[0].mxu0
      %3180 = vmatprep.mubr.f32.mxu0 0.0
      %3181 = vmatmul.mubr.f32.gmra.mrb[0].mxu0 %v2993
      %v3182 = vpop.f32.mrb[0].mxu0
      %v3183 = vadd.f32 0.0, %v3182
      %v3184 = vpop.f32.mrb[0].mxu0
      %3185 = vmatprep.mubr.f32.mxu0 0.0
      %3186 = vmatmul.mubr.f32.gmra.mrb[0].mxu0 %v2996
      %v3187 = vpop.f32.mrb[0].mxu0
      %v3188 = vadd.f32 0.0, %v3187
      %v3189 = vpop.f32.mrb[0].mxu0
      %3190 = vmatprep.mubr.f32.mxu0 0.0
      %3191 = vmatmul.mubr.f32.gmra.mrb[0].mxu0 %v2999
      %v3192 = vpop.f32.mrb[0].mxu0
      %v3193 = vadd.f32 0.0, %v3192
      %v3194 = vpop.f32.mrb[0].mxu0
      %3195 = vmatprep.mubr.f32.mxu0 0.0
      %3196 = vmatmul.mubr.f32.gmra.mrb[0].mxu0 %v3002
      %v3197 = vpop.f32.mrb[0].mxu0
      %v3198 = vadd.f32 0.0, %v3197
      %v3199 = vpop.f32.mrb[0].mxu0
      %3200 = vmatprep.mubr.f32.mxu0 0.0
      %3201 = vmatmul.mubr.f32.gmra.mrb[0].mxu0 %v3005
      %v3202 = vpop.f32.mrb[0].mxu0
      %v3203 = vadd.f32 0.0, %v3202
      %v3204 = vpop.f32.mrb[0].mxu0
      %3205 = vmatprep.mubr.f32.mxu0 0.0
      %3206 = vmatmul.mubr.f32.gmra.mrb[0].mxu0 %v3008
      %v3207 = vpop.f32.mrb[0].mxu0
      %v3208 = vadd.f32 0.0, %v3207
      %v3209 = vpop.f32.mrb[0].mxu0
      %3210 = vmatprep.mubr.f32.mxu0 0.0
      %3211 = vmatmul.mubr.f32.gmra.mrb[0].mxu0 %v3011
      %v3212 = vpop.f32.mrb[0].mxu0
      %v3213 = vadd.f32 0.0, %v3212
      %v3214 = vpop.f32.mrb[0].mxu0
      %3215 = vmatprep.mubr.f32.mxu0 0.0
      %3216 = vmatmul.mubr.f32.gmra.mrb[0].mxu0 %v3014
      %v3217 = vpop.f32.mrb[0].mxu0
      %v3218 = vadd.f32 0.0, %v3217
      %v3219 = vpop.f32.mrb[0].mxu0
      %3220 = vmatprep.mubr.f32.mxu0 0.0
      %3221 = vmatmul.mubr.f32.gmra.mrb[0].mxu0 %v3017
      %v3222 = vpop.f32.mrb[0].mxu0
      %v3223 = vadd.f32 0.0, %v3222
      %v3224 = vpop.f32.mrb[0].mxu0
      %3225 = vmatprep.mubr.f32.mxu0 0.0
      %3226 = vmatmul.mubr.f32.gmra.mrb[0].mxu0 %v3020
      %v3227 = vpop.f32.mrb[0].mxu0
      %v3228 = vadd.f32 0.0, %v3227
      %v3229 = vpop.f32.mrb[0].mxu0
      %3230 = vmatprep.mubr.f32.mxu0 0.0
      %3231 = vmatmul.mubr.f32.gmra.mrb[0].mxu0 %v3023
      %v3232 = vpop.f32.mrb[0].mxu0
      %v3233 = vadd.f32 0.0, %v3232
      %v3234 = vpop.f32.mrb[0].mxu0
      %3235 = vmatprep.mubr.f32.mxu0 0.0
      %3236 = vmatmul.mubr.f32.gmra.mrb[0].mxu0 %v3026
      %v3237 = vpop.f32.mrb[0].mxu0
      %v3238 = vadd.f32 0.0, %v3237
      %v3239 = vpop.f32.mrb[0].mxu0
      %3240 = vmatprep.mubr.f32.mxu0 0.0
      %3241 = vmatmul.mubr.f32.gmra.mrb[0].mxu0 %v3029
      %v3242 = vpop.f32.mrb[0].mxu0
      %v3243 = vadd.f32 0.0, %v3242
      %v3244 = vpop.f32.mrb[0].mxu0
      %3245 = vmatprep.mubr.f32.mxu0 0.0
      %3246 = vmatmul.mubr.f32.gmra.mrb[0].mxu0 %v3032
      %v3247 = vpop.f32.mrb[0].mxu0
      %v3248 = vadd.f32 0.0, %v3247
      %v3249 = vpop.f32.mrb[0].mxu0
      %3250 = vmatprep.mubr.f32.mxu0 0.0
      %3251 = vmatmul.mubr.f32.gmra.mrb[0].mxu0 %v3035
      %v3252 = vpop.f32.mrb[0].mxu0
      %v3253 = vadd.f32 0.0, %v3252
      %v3254 = vpop.f32.mrb[0].mxu0
      %3255 = vmatprep.mubr.f32.mxu0 0.0
      %3256 = vmatmul.mubr.f32.gmra.mrb[0].mxu0 %v3038
      %v3257 = vpop.f32.mrb[0].mxu0
      %v3258 = vadd.f32 0.0, %v3257
      %v3259 = vpop.f32.mrb[0].mxu0
      %3260 = vmatprep.mubr.f32.mxu0 0.0
      %3261 = vmatmul.mubr.f32.gmra.mrb[0].mxu0 %v3041
      %v3262 = vpop.f32.mrb[0].mxu0
      %v3263 = vadd.f32 0.0, %v3262
      %v3264 = vpop.f32.mrb[0].mxu0
      %3265 = vmatprep.mubr.f32.mxu0 0.0
      %3266 = vmatmul.mubr.f32.gmra.mrb[0].mxu0 %v3044
      %v3267 = vpop.f32.mrb[0].mxu0
      %v3268 = vadd.f32 0.0, %v3267
      %v3269 = vpop.f32.mrb[0].mxu0
      %3270 = vdwg.mxu0
      %v3271 = vld [vmem:[#allocation3] sm:$0xff]
      %v3272 = vld [vmem:[#allocation3 + $0x8] sm:$0xff]
      %v3273 = vld [vmem:[#allocation3 + $0x10] sm:$0xff]
      %v3274 = vld [vmem:[#allocation3 + $0x18] sm:$0xff]
      %v3275 = vld [vmem:[#allocation3 + $0x20] sm:$0xff]
      %v3276 = vld [vmem:[#allocation3 + $0x28] sm:$0xff]
      %v3277 = vld [vmem:[#allocation3 + $0x30] sm:$0xff]
      %v3278 = vld [vmem:[#allocation3 + $0x38] sm:$0xff]
      %v3279 = vld [vmem:[#allocation3 + $0x40] sm:$0xff]
      %v3280 = vld [vmem:[#allocation3 + $0x48] sm:$0xff]
      %v3281 = vld [vmem:[#allocation3 + $0x50] sm:$0xff]
      %v3282 = vld [vmem:[#allocation3 + $0x58] sm:$0xff]
      %v3283 = vld [vmem:[#allocation3 + $0x60] sm:$0xff]
      %v3284 = vld [vmem:[#allocation3 + $0x68] sm:$0xff]
      %v3285 = vld [vmem:[#allocation3 + $0x70] sm:$0xff]
      %v3286 = vld [vmem:[#allocation3 + $0x78] sm:$0xff]
      %v3287 = vld [vmem:[#allocation3 + $0x80] sm:$0xff]
      %v3288 = vld [vmem:[#allocation3 + $0x88] sm:$0xff]
      %v3289 = vld [vmem:[#allocation3 + $0x90] sm:$0xff]
      %v3290 = vld [vmem:[#allocation3 + $0x98] sm:$0xff]
      %v3291 = vld [vmem:[#allocation3 + $0xa0] sm:$0xff]
      %v3292 = vld [vmem:[#allocation3 + $0xa8] sm:$0xff]
      %v3293 = vld [vmem:[#allocation3 + $0xb0] sm:$0xff]
      %v3294 = vld [vmem:[#allocation3 + $0xb8] sm:$0xff]
      %v3295 = vld [vmem:[#allocation3 + $0xc0] sm:$0xff]
      %v3296 = vld [vmem:[#allocation3 + $0xc8] sm:$0xff]
      %v3297 = vld [vmem:[#allocation3 + $0xd0] sm:$0xff]
      %v3298 = vld [vmem:[#allocation3 + $0xd8] sm:$0xff]
      %v3299 = vld [vmem:[#allocation3 + $0xe0] sm:$0xff]
      %v3300 = vld [vmem:[#allocation3 + $0xe8] sm:$0xff]
      %v3301 = vld [vmem:[#allocation3 + $0xf0] sm:$0xff]
      %v3302 = vld [vmem:[#allocation3 + $0xf8] sm:$0xff]
      %v3303 = vadd.f32 %v3271, %v3113
      %v3304 = vadd.f32 %v3272, %v3118
      %v3305 = vadd.f32 %v3273, %v3123
      %v3306 = vadd.f32 %v3274, %v3128
      %v3307 = vadd.f32 %v3275, %v3133
      %v3308 = vadd.f32 %v3276, %v3138
      %v3309 = vadd.f32 %v3277, %v3143
      %v3310 = vadd.f32 %v3278, %v3148
      %v3311 = vadd.f32 %v3279, %v3153
      %v3312 = vadd.f32 %v3280, %v3158
      %v3313 = vadd.f32 %v3281, %v3163
      %v3314 = vadd.f32 %v3282, %v3168
      %v3315 = vadd.f32 %v3283, %v3173
      %v3316 = vadd.f32 %v3284, %v3178
      %v3317 = vadd.f32 %v3285, %v3183
      %v3318 = vadd.f32 %v3286, %v3188
      %v3319 = vadd.f32 %v3287, %v3193
      %v3320 = vadd.f32 %v3288, %v3198
      %v3321 = vadd.f32 %v3289, %v3203
      %v3322 = vadd.f32 %v3290, %v3208
      %v3323 = vadd.f32 %v3291, %v3213
      %v3324 = vadd.f32 %v3292, %v3218
      %v3325 = vadd.f32 %v3293, %v3223
      %v3326 = vadd.f32 %v3294, %v3228
      %v3327 = vadd.f32 %v3295, %v3233
      %v3328 = vadd.f32 %v3296, %v3238
      %v3329 = vadd.f32 %v3297, %v3243
      %v3330 = vadd.f32 %v3298, %v3248
      %v3331 = vadd.f32 %v3299, %v3253
      %v3332 = vadd.f32 %v3300, %v3258
      %v3333 = vadd.f32 %v3301, %v3263
      %v3334 = vadd.f32 %v3302, %v3268
      %3335 = vst.msk [vmem:[#allocation3] sm:$0xff] %vm305, %v3303
      %3336 = vst.msk [vmem:[#allocation3 + $0x8] sm:$0xff] %vm305, %v3304
      %3337 = vst.msk [vmem:[#allocation3 + $0x10] sm:$0xff] %vm305, %v3305
      %3338 = vst.msk [vmem:[#allocation3 + $0x18] sm:$0xff] %vm305, %v3306
      %3339 = vst.msk [vmem:[#allocation3 + $0x20] sm:$0xff] %vm305, %v3307
      %3340 = vst.msk [vmem:[#allocation3 + $0x28] sm:$0xff] %vm305, %v3308
      %3341 = vst.msk [vmem:[#allocation3 + $0x30] sm:$0xff] %vm305, %v3309
      %3342 = vst.msk [vmem:[#allocation3 + $0x38] sm:$0xff] %vm305, %v3310
      %3343 = vst.msk [vmem:[#allocation3 + $0x40] sm:$0xff] %vm305, %v3311
      %3344 = vst.msk [vmem:[#allocation3 + $0x48] sm:$0xff] %vm305, %v3312
      %3345 = vst.msk [vmem:[#allocation3 + $0x50] sm:$0xff] %vm305, %v3313
      %3346 = vst.msk [vmem:[#allocation3 + $0x58] sm:$0xff] %vm305, %v3314
      %3347 = vst.msk [vmem:[#allocation3 + $0x60] sm:$0xff] %vm305, %v3315
      %3348 = vst.msk [vmem:[#allocation3 + $0x68] sm:$0xff] %vm305, %v3316
      %3349 = vst.msk [vmem:[#allocation3 + $0x70] sm:$0xff] %vm305, %v3317
      %3350 = vst.msk [vmem:[#allocation3 + $0x78] sm:$0xff] %vm305, %v3318
      %3351 = vst.msk [vmem:[#allocation3 + $0x80] sm:$0xff] %vm305, %v3319
      %3352 = vst.msk [vmem:[#allocation3 + $0x88] sm:$0xff] %vm305, %v3320
      %3353 = vst.msk [vmem:[#allocation3 + $0x90] sm:$0xff] %vm305, %v3321
      %3354 = vst.msk [vmem:[#allocation3 + $0x98] sm:$0xff] %vm305, %v3322
      %3355 = vst.msk [vmem:[#allocation3 + $0xa0] sm:$0xff] %vm305, %v3323
      %3356 = vst.msk [vmem:[#allocation3 + $0xa8] sm:$0xff] %vm305, %v3324
      %3357 = vst.msk [vmem:[#allocation3 + $0xb0] sm:$0xff] %vm305, %v3325
      %3358 = vst.msk [vmem:[#allocation3 + $0xb8] sm:$0xff] %vm305, %v3326
      %3359 = vst.msk [vmem:[#allocation3 + $0xc0] sm:$0xff] %vm305, %v3327
      %3360 = vst.msk [vmem:[#allocation3 + $0xc8] sm:$0xff] %vm305, %v3328
      %3361 = vst.msk [vmem:[#allocation3 + $0xd0] sm:$0xff] %vm305, %v3329
      %3362 = vst.msk [vmem:[#allocation3 + $0xd8] sm:$0xff] %vm305, %v3330
      %3363 = vst.msk [vmem:[#allocation3 + $0xe0] sm:$0xff] %vm305, %v3331
      %3364 = vst.msk [vmem:[#allocation3 + $0xe8] sm:$0xff] %vm305, %v3332
      %3365 = vst.msk [vmem:[#allocation3 + $0xf0] sm:$0xff] %vm305, %v3333
      %3366 = vst.msk [vmem:[#allocation3 + $0xf8] sm:$0xff] %vm305, %v3334
      %v3367 = vld [vmem:[%s2915 + $0x1] sm:$0xff]
      %v3368 = vld [vmem:[%s2915 + $0x9] sm:$0xff]
      %v3369 = vld [vmem:[%s2915 + $0x19] sm:$0xff]
      %v3370 = vld [vmem:[%s2915 + $0x21] sm:$0xff]
      %v3371 = vld [vmem:[%s2915 + $0x31] sm:$0xff]
      %v3372 = vld [vmem:[%s2915 + $0x39] sm:$0xff]
      %v3373 = vld [vmem:[%s2915 + $0x49] sm:$0xff]
      %v3374 = vld [vmem:[%s2915 + $0x51] sm:$0xff]
      %v3375 = vld [vmem:[%s2915 + $0x61] sm:$0xff]
      %v3376 = vld [vmem:[%s2915 + $0x69] sm:$0xff]
      %v3377 = vld [vmem:[%s2915 + $0x79] sm:$0xff]
      %v3378 = vld [vmem:[%s2915 + $0x81] sm:$0xff]
      %v3379 = vld [vmem:[%s2915 + $0x91] sm:$0xff]
      %v3380 = vld [vmem:[%s2915 + $0x99] sm:$0xff]
      %v3381 = vld [vmem:[%s2915 + $0xa9] sm:$0xff]
      %v3382 = vld [vmem:[%s2915 + $0xb1] sm:$0xff]
      %v3383 = vld [vmem:[%s2915 + $0xc1] sm:$0xff]
      %v3384 = vld [vmem:[%s2915 + $0xc9] sm:$0xff]
      %v3385 = vld [vmem:[%s2915 + $0xd9] sm:$0xff]
      %v3386 = vld [vmem:[%s2915 + $0xe1] sm:$0xff]
      %v3387 = vld [vmem:[%s2915 + $0xf1] sm:$0xff]
      %v3388 = vld [vmem:[%s2915 + $0xf9] sm:$0xff]
      %v3389 = vld [vmem:[%s2915 + $0x109] sm:$0xff]
      %v3390 = vld [vmem:[%s2915 + $0x111] sm:$0xff]
      %v3391 = vld [vmem:[%s2915 + $0x121] sm:$0xff]
      %v3392 = vld [vmem:[%s2915 + $0x129] sm:$0xff]
      %v3393 = vld [vmem:[%s2915 + $0x139] sm:$0xff]
      %v3394 = vld [vmem:[%s2915 + $0x141] sm:$0xff]
      %v3395 = vld [vmem:[%s2915 + $0x151] sm:$0xff]
      %v3396 = vld [vmem:[%s2915 + $0x159] sm:$0xff]
      %v3397 = vld [vmem:[%s2915 + $0x169] sm:$0xff]
      %v3398 = vld [vmem:[%s2915 + $0x171] sm:$0xff]
      %s3399 = scalar_lea.vmem %s2, 56
      %v3400 = vld [vmem:[%s3399] sm:$0xff]
      %v3402 = vsel %vm305, %v3367, 0
      %v3405 = vsel %vm305, %v3368, 0
      %v3408 = vsel %vm305, %v3369, 0
      %v3411 = vsel %vm305, %v3370, 0
      %v3414 = vsel %vm305, %v3371, 0
      %v3417 = vsel %vm305, %v3372, 0
      %v3420 = vsel %vm305, %v3373, 0
      %v3423 = vsel %vm305, %v3374, 0
      %v3426 = vsel %vm305, %v3375, 0
      %v3429 = vsel %vm305, %v3376, 0
      %v3432 = vsel %vm305, %v3377, 0
      %v3435 = vsel %vm305, %v3378, 0
      %v3438 = vsel %vm305, %v3379, 0
      %v3441 = vsel %vm305, %v3380, 0
      %v3444 = vsel %vm305, %v3381, 0
      %v3447 = vsel %vm305, %v3382, 0
      %v3450 = vsel %vm305, %v3383, 0
      %v3453 = vsel %vm305, %v3384, 0
      %v3456 = vsel %vm305, %v3385, 0
      %v3459 = vsel %vm305, %v3386, 0
      %v3462 = vsel %vm305, %v3387, 0
      %v3465 = vsel %vm305, %v3388, 0
      %v3468 = vsel %vm305, %v3389, 0
      %v3471 = vsel %vm305, %v3390, 0
      %v3474 = vsel %vm305, %v3391, 0
      %v3477 = vsel %vm305, %v3392, 0
      %v3480 = vsel %vm305, %v3393, 0
      %v3483 = vsel %vm305, %v3394, 0
      %v3486 = vsel %vm305, %v3395, 0
      %v3489 = vsel %vm305, %v3396, 0
      %v3492 = vsel %vm305, %v3397, 0
      %v3495 = vsel %vm305, %v3398, 0
      %3497 = vmatprep.subr.mxu0 0.0
      %3498 = vmatpush1.msra.mxu0 %v3400
      %3499 = vmatprep.subr.mxu0 0.0
      %3500 = vmatpush1.msra.mxu0 0.0
      %3501 = vmatprep.subr.mxu0 0.0
      %3502 = vmatpush1.msra.mxu0 0.0
      %3503 = vmatprep.subr.mxu0 0.0
      %3504 = vmatpush1.msra.mxu0 0.0
      %3505 = vmatprep.subr.mxu0 0.0
      %3506 = vmatpush1.msra.mxu0 0.0
      %3507 = vmatprep.subr.mxu0 0.0
      %3508 = vmatpush1.msra.mxu0 0.0
      %3509 = vmatprep.subr.mxu0 0.0
      %3510 = vmatpush1.msra.mxu0 0.0
      %3511 = vmatprep.subr.mxu0 0.0
      %3512 = vmatpush1.msra.mxu0 0.0
      %3513 = vmatprep.subr.mxu0 0.0
      %3514 = vmatpush1.msra.mxu0 0.0
      %3515 = vmatprep.subr.mxu0 0.0
      %3516 = vmatpush1.msra.mxu0 0.0
      %3517 = vmatprep.subr.mxu0 0.0
      %3518 = vmatpush1.msra.mxu0 0.0
      %3519 = vmatprep.subr.mxu0 0.0
      %3520 = vmatpush1.msra.mxu0 0.0
      %3521 = vmatprep.subr.mxu0 0.0
      %3522 = vmatpush1.msra.mxu0 0.0
      %3523 = vmatprep.subr.mxu0 0.0
      %3524 = vmatpush1.msra.mxu0 0.0
      %3525 = vmatprep.subr.mxu0 0.0
      %3526 = vmatpush1.msra.mxu0 0.0
      %3527 = vmatprep.subr.mxu0 0.0
      %3528 = vmatpush1.msra.mxu0 0.0
      %3529 = vmatprep.subr.mxu0 0.0
      %3530 = vmatpush1.msra.mxu0 0.0
      %3531 = vmatprep.subr.mxu0 0.0
      %3532 = vmatpush1.msra.mxu0 0.0
      %3533 = vmatprep.subr.mxu0 0.0
      %3534 = vmatpush1.msra.mxu0 0.0
      %3535 = vmatprep.subr.mxu0 0.0
      %3536 = vmatpush1.msra.mxu0 0.0
      %3537 = vmatprep.subr.mxu0 0.0
      %3538 = vmatpush1.msra.mxu0 0.0
      %3539 = vmatprep.subr.mxu0 0.0
      %3540 = vmatpush1.msra.mxu0 0.0
      %3541 = vmatprep.subr.mxu0 0.0
      %3542 = vmatpush1.msra.mxu0 0.0
      %3543 = vmatprep.subr.mxu0 0.0
      %3544 = vmatpush1.msra.mxu0 0.0
      %3545 = vmatprep.subr.mxu0 0.0
      %3546 = vmatpush1.msra.mxu0 0.0
      %3547 = vmatprep.subr.mxu0 0.0
      %3548 = vmatpush1.msra.mxu0 0.0
      %3549 = vmatprep.subr.mxu0 0.0
      %3550 = vmatpush1.msra.mxu0 0.0
      %3551 = vmatprep.subr.mxu0 0.0
      %3552 = vmatpush1.msra.mxu0 0.0
      %3553 = vmatprep.subr.mxu0 0.0
      %3554 = vmatpush1.msra.mxu0 0.0
      %3555 = vmatprep.subr.mxu0 0.0
      %3556 = vmatpush1.msra.mxu0 0.0
      %3557 = vmatprep.subr.mxu0 0.0
      %3558 = vmatpush1.msra.mxu0 0.0
      %3559 = vmatprep.subr.mxu0 0.0
      %3560 = vmatpush1.msra.mxu0 0.0
      %3561 = vmatprep.mubr.f32.mxu0 0.0
      %3562 = vmatmul.mubr.f32.gmra.mrb[0].mxu0 %v3402
      %v3563 = vpop.f32.mrb[0].mxu0
      %v3564 = vadd.f32 0.0, %v3563
      %v3565 = vpop.f32.mrb[0].mxu0
      %3566 = vmatprep.mubr.f32.mxu0 0.0
      %3567 = vmatmul.mubr.f32.gmra.mrb[0].mxu0 %v3405
      %v3568 = vpop.f32.mrb[0].mxu0
      %v3569 = vadd.f32 0.0, %v3568
      %v3570 = vpop.f32.mrb[0].mxu0
      %3571 = vmatprep.mubr.f32.mxu0 0.0
      %3572 = vmatmul.mubr.f32.gmra.mrb[0].mxu0 %v3408
      %v3573 = vpop.f32.mrb[0].mxu0
      %v3574 = vadd.f32 0.0, %v3573
      %v3575 = vpop.f32.mrb[0].mxu0
      %3576 = vmatprep.mubr.f32.mxu0 0.0
      %3577 = vmatmul.mubr.f32.gmra.mrb[0].mxu0 %v3411
      %v3578 = vpop.f32.mrb[0].mxu0
      %v3579 = vadd.f32 0.0, %v3578
      %v3580 = vpop.f32.mrb[0].mxu0
      %3581 = vmatprep.mubr.f32.mxu0 0.0
      %3582 = vmatmul.mubr.f32.gmra.mrb[0].mxu0 %v3414
      %v3583 = vpop.f32.mrb[0].mxu0
      %v3584 = vadd.f32 0.0, %v3583
      %v3585 = vpop.f32.mrb[0].mxu0
      %3586 = vmatprep.mubr.f32.mxu0 0.0
      %3587 = vmatmul.mubr.f32.gmra.mrb[0].mxu0 %v3417
      %v3588 = vpop.f32.mrb[0].mxu0
      %v3589 = vadd.f32 0.0, %v3588
      %v3590 = vpop.f32.mrb[0].mxu0
      %3591 = vmatprep.mubr.f32.mxu0 0.0
      %3592 = vmatmul.mubr.f32.gmra.mrb[0].mxu0 %v3420
      %v3593 = vpop.f32.mrb[0].mxu0
      %v3594 = vadd.f32 0.0, %v3593
      %v3595 = vpop.f32.mrb[0].mxu0
      %3596 = vmatprep.mubr.f32.mxu0 0.0
      %3597 = vmatmul.mubr.f32.gmra.mrb[0].mxu0 %v3423
      %v3598 = vpop.f32.mrb[0].mxu0
      %v3599 = vadd.f32 0.0, %v3598
      %v3600 = vpop.f32.mrb[0].mxu0
      %3601 = vmatprep.mubr.f32.mxu0 0.0
      %3602 = vmatmul.mubr.f32.gmra.mrb[0].mxu0 %v3426
      %v3603 = vpop.f32.mrb[0].mxu0
      %v3604 = vadd.f32 0.0, %v3603
      %v3605 = vpop.f32.mrb[0].mxu0
      %3606 = vmatprep.mubr.f32.mxu0 0.0
      %3607 = vmatmul.mubr.f32.gmra.mrb[0].mxu0 %v3429
      %v3608 = vpop.f32.mrb[0].mxu0
      %v3609 = vadd.f32 0.0, %v3608
      %v3610 = vpop.f32.mrb[0].mxu0
      %3611 = vmatprep.mubr.f32.mxu0 0.0
      %3612 = vmatmul.mubr.f32.gmra.mrb[0].mxu0 %v3432
      %v3613 = vpop.f32.mrb[0].mxu0
      %v3614 = vadd.f32 0.0, %v3613
      %v3615 = vpop.f32.mrb[0].mxu0
      %3616 = vmatprep.mubr.f32.mxu0 0.0
      %3617 = vmatmul.mubr.f32.gmra.mrb[0].mxu0 %v3435
      %v3618 = vpop.f32.mrb[0].mxu0
      %v3619 = vadd.f32 0.0, %v3618
      %v3620 = vpop.f32.mrb[0].mxu0
      %3621 = vmatprep.mubr.f32.mxu0 0.0
      %3622 = vmatmul.mubr.f32.gmra.mrb[0].mxu0 %v3438
      %v3623 = vpop.f32.mrb[0].mxu0
      %v3624 = vadd.f32 0.0, %v3623
      %v3625 = vpop.f32.mrb[0].mxu0
      %3626 = vmatprep.mubr.f32.mxu0 0.0
      %3627 = vmatmul.mubr.f32.gmra.mrb[0].mxu0 %v3441
      %v3628 = vpop.f32.mrb[0].mxu0
      %v3629 = vadd.f32 0.0, %v3628
      %v3630 = vpop.f32.mrb[0].mxu0
      %3631 = vmatprep.mubr.f32.mxu0 0.0
      %3632 = vmatmul.mubr.f32.gmra.mrb[0].mxu0 %v3444
      %v3633 = vpop.f32.mrb[0].mxu0
      %v3634 = vadd.f32 0.0, %v3633
      %v3635 = vpop.f32.mrb[0].mxu0
      %3636 = vmatprep.mubr.f32.mxu0 0.0
      %3637 = vmatmul.mubr.f32.gmra.mrb[0].mxu0 %v3447
      %v3638 = vpop.f32.mrb[0].mxu0
      %v3639 = vadd.f32 0.0, %v3638
      %v3640 = vpop.f32.mrb[0].mxu0
      %3641 = vmatprep.mubr.f32.mxu0 0.0
      %3642 = vmatmul.mubr.f32.gmra.mrb[0].mxu0 %v3450
      %v3643 = vpop.f32.mrb[0].mxu0
      %v3644 = vadd.f32 0.0, %v3643
      %v3645 = vpop.f32.mrb[0].mxu0
      %3646 = vmatprep.mubr.f32.mxu0 0.0
      %3647 = vmatmul.mubr.f32.gmra.mrb[0].mxu0 %v3453
      %v3648 = vpop.f32.mrb[0].mxu0
      %v3649 = vadd.f32 0.0, %v3648
      %v3650 = vpop.f32.mrb[0].mxu0
      %3651 = vmatprep.mubr.f32.mxu0 0.0
      %3652 = vmatmul.mubr.f32.gmra.mrb[0].mxu0 %v3456
      %v3653 = vpop.f32.mrb[0].mxu0
      %v3654 = vadd.f32 0.0, %v3653
      %v3655 = vpop.f32.mrb[0].mxu0
      %3656 = vmatprep.mubr.f32.mxu0 0.0
      %3657 = vmatmul.mubr.f32.gmra.mrb[0].mxu0 %v3459
      %v3658 = vpop.f32.mrb[0].mxu0
      %v3659 = vadd.f32 0.0, %v3658
      %v3660 = vpop.f32.mrb[0].mxu0
      %3661 = vmatprep.mubr.f32.mxu0 0.0
      %3662 = vmatmul.mubr.f32.gmra.mrb[0].mxu0 %v3462
      %v3663 = vpop.f32.mrb[0].mxu0
      %v3664 = vadd.f32 0.0, %v3663
      %v3665 = vpop.f32.mrb[0].mxu0
      %3666 = vmatprep.mubr.f32.mxu0 0.0
      %3667 = vmatmul.mubr.f32.gmra.mrb[0].mxu0 %v3465
      %v3668 = vpop.f32.mrb[0].mxu0
      %v3669 = vadd.f32 0.0, %v3668
      %v3670 = vpop.f32.mrb[0].mxu0
      %3671 = vmatprep.mubr.f32.mxu0 0.0
      %3672 = vmatmul.mubr.f32.gmra.mrb[0].mxu0 %v3468
      %v3673 = vpop.f32.mrb[0].mxu0
      %v3674 = vadd.f32 0.0, %v3673
      %v3675 = vpop.f32.mrb[0].mxu0
      %3676 = vmatprep.mubr.f32.mxu0 0.0
      %3677 = vmatmul.mubr.f32.gmra.mrb[0].mxu0 %v3471
      %v3678 = vpop.f32.mrb[0].mxu0
      %v3679 = vadd.f32 0.0, %v3678
      %v3680 = vpop.f32.mrb[0].mxu0
      %3681 = vmatprep.mubr.f32.mxu0 0.0
      %3682 = vmatmul.mubr.f32.gmra.mrb[0].mxu0 %v3474
      %v3683 = vpop.f32.mrb[0].mxu0
      %v3684 = vadd.f32 0.0, %v3683
      %v3685 = vpop.f32.mrb[0].mxu0
      %3686 = vmatprep.mubr.f32.mxu0 0.0
      %3687 = vmatmul.mubr.f32.gmra.mrb[0].mxu0 %v3477
      %v3688 = vpop.f32.mrb[0].mxu0
      %v3689 = vadd.f32 0.0, %v3688
      %v3690 = vpop.f32.mrb[0].mxu0
      %3691 = vmatprep.mubr.f32.mxu0 0.0
      %3692 = vmatmul.mubr.f32.gmra.mrb[0].mxu0 %v3480
      %v3693 = vpop.f32.mrb[0].mxu0
      %v3694 = vadd.f32 0.0, %v3693
      %v3695 = vpop.f32.mrb[0].mxu0
      %3696 = vmatprep.mubr.f32.mxu0 0.0
      %3697 = vmatmul.mubr.f32.gmra.mrb[0].mxu0 %v3483
      %v3698 = vpop.f32.mrb[0].mxu0
      %v3699 = vadd.f32 0.0, %v3698
      %v3700 = vpop.f32.mrb[0].mxu0
      %3701 = vmatprep.mubr.f32.mxu0 0.0
      %3702 = vmatmul.mubr.f32.gmra.mrb[0].mxu0 %v3486
      %v3703 = vpop.f32.mrb[0].mxu0
      %v3704 = vadd.f32 0.0, %v3703
      %v3705 = vpop.f32.mrb[0].mxu0
      %3706 = vmatprep.mubr.f32.mxu0 0.0
      %3707 = vmatmul.mubr.f32.gmra.mrb[0].mxu0 %v3489
      %v3708 = vpop.f32.mrb[0].mxu0
      %v3709 = vadd.f32 0.0, %v3708
      %v3710 = vpop.f32.mrb[0].mxu0
      %3711 = vmatprep.mubr.f32.mxu0 0.0
      %3712 = vmatmul.mubr.f32.gmra.mrb[0].mxu0 %v3492
      %v3713 = vpop.f32.mrb[0].mxu0
      %v3714 = vadd.f32 0.0, %v3713
      %v3715 = vpop.f32.mrb[0].mxu0
      %3716 = vmatprep.mubr.f32.mxu0 0.0
      %3717 = vmatmul.mubr.f32.gmra.mrb[0].mxu0 %v3495
      %v3718 = vpop.f32.mrb[0].mxu0
      %v3719 = vadd.f32 0.0, %v3718
      %v3720 = vpop.f32.mrb[0].mxu0
      %3721 = vdwg.mxu0
      %v3722 = vld [vmem:[#allocation3] sm:$0xff]
      %v3723 = vld [vmem:[#allocation3 + $0x8] sm:$0xff]
      %v3724 = vld [vmem:[#allocation3 + $0x10] sm:$0xff]
      %v3725 = vld [vmem:[#allocation3 + $0x18] sm:$0xff]
      %v3726 = vld [vmem:[#allocation3 + $0x20] sm:$0xff]
      %v3727 = vld [vmem:[#allocation3 + $0x28] sm:$0xff]
      %v3728 = vld [vmem:[#allocation3 + $0x30] sm:$0xff]
      %v3729 = vld [vmem:[#allocation3 + $0x38] sm:$0xff]
      %v3730 = vld [vmem:[#allocation3 + $0x40] sm:$0xff]
      %v3731 = vld [vmem:[#allocation3 + $0x48] sm:$0xff]
      %v3732 = vld [vmem:[#allocation3 + $0x50] sm:$0xff]
      %v3733 = vld [vmem:[#allocation3 + $0x58] sm:$0xff]
      %v3734 = vld [vmem:[#allocation3 + $0x60] sm:$0xff]
      %v3735 = vld [vmem:[#allocation3 + $0x68] sm:$0xff]
      %v3736 = vld [vmem:[#allocation3 + $0x70] sm:$0xff]
      %v3737 = vld [vmem:[#allocation3 + $0x78] sm:$0xff]
      %v3738 = vld [vmem:[#allocation3 + $0x80] sm:$0xff]
      %v3739 = vld [vmem:[#allocation3 + $0x88] sm:$0xff]
      %v3740 = vld [vmem:[#allocation3 + $0x90] sm:$0xff]
      %v3741 = vld [vmem:[#allocation3 + $0x98] sm:$0xff]
      %v3742 = vld [vmem:[#allocation3 + $0xa0] sm:$0xff]
      %v3743 = vld [vmem:[#allocation3 + $0xa8] sm:$0xff]
      %v3744 = vld [vmem:[#allocation3 + $0xb0] sm:$0xff]
      %v3745 = vld [vmem:[#allocation3 + $0xb8] sm:$0xff]
      %v3746 = vld [vmem:[#allocation3 + $0xc0] sm:$0xff]
      %v3747 = vld [vmem:[#allocation3 + $0xc8] sm:$0xff]
      %v3748 = vld [vmem:[#allocation3 + $0xd0] sm:$0xff]
      %v3749 = vld [vmem:[#allocation3 + $0xd8] sm:$0xff]
      %v3750 = vld [vmem:[#allocation3 + $0xe0] sm:$0xff]
      %v3751 = vld [vmem:[#allocation3 + $0xe8] sm:$0xff]
      %v3752 = vld [vmem:[#allocation3 + $0xf0] sm:$0xff]
      %v3753 = vld [vmem:[#allocation3 + $0xf8] sm:$0xff]
      %v3754 = vadd.f32 %v3722, %v3564
      %v3755 = vadd.f32 %v3723, %v3569
      %v3756 = vadd.f32 %v3724, %v3574
      %v3757 = vadd.f32 %v3725, %v3579
      %v3758 = vadd.f32 %v3726, %v3584
      %v3759 = vadd.f32 %v3727, %v3589
      %v3760 = vadd.f32 %v3728, %v3594
      %v3761 = vadd.f32 %v3729, %v3599
      %v3762 = vadd.f32 %v3730, %v3604
      %v3763 = vadd.f32 %v3731, %v3609
      %v3764 = vadd.f32 %v3732, %v3614
      %v3765 = vadd.f32 %v3733, %v3619
      %v3766 = vadd.f32 %v3734, %v3624
      %v3767 = vadd.f32 %v3735, %v3629
      %v3768 = vadd.f32 %v3736, %v3634
      %v3769 = vadd.f32 %v3737, %v3639
      %v3770 = vadd.f32 %v3738, %v3644
      %v3771 = vadd.f32 %v3739, %v3649
      %v3772 = vadd.f32 %v3740, %v3654
      %v3773 = vadd.f32 %v3741, %v3659
      %v3774 = vadd.f32 %v3742, %v3664
      %v3775 = vadd.f32 %v3743, %v3669
      %v3776 = vadd.f32 %v3744, %v3674
      %v3777 = vadd.f32 %v3745, %v3679
      %v3778 = vadd.f32 %v3746, %v3684
      %v3779 = vadd.f32 %v3747, %v3689
      %v3780 = vadd.f32 %v3748, %v3694
      %v3781 = vadd.f32 %v3749, %v3699
      %v3782 = vadd.f32 %v3750, %v3704
      %v3783 = vadd.f32 %v3751, %v3709
      %v3784 = vadd.f32 %v3752, %v3714
      %v3785 = vadd.f32 %v3753, %v3719
      %3786 = vst.msk [vmem:[#allocation3] sm:$0xff] %vm305, %v3754
      %3787 = vst.msk [vmem:[#allocation3 + $0x8] sm:$0xff] %vm305, %v3755
      %3788 = vst.msk [vmem:[#allocation3 + $0x10] sm:$0xff] %vm305, %v3756
      %3789 = vst.msk [vmem:[#allocation3 + $0x18] sm:$0xff] %vm305, %v3757
      %3790 = vst.msk [vmem:[#allocation3 + $0x20] sm:$0xff] %vm305, %v3758
      %3791 = vst.msk [vmem:[#allocation3 + $0x28] sm:$0xff] %vm305, %v3759
      %3792 = vst.msk [vmem:[#allocation3 + $0x30] sm:$0xff] %vm305, %v3760
      %3793 = vst.msk [vmem:[#allocation3 + $0x38] sm:$0xff] %vm305, %v3761
      %3794 = vst.msk [vmem:[#allocation3 + $0x40] sm:$0xff] %vm305, %v3762
      %3795 = vst.msk [vmem:[#allocation3 + $0x48] sm:$0xff] %vm305, %v3763
      %3796 = vst.msk [vmem:[#allocation3 + $0x50] sm:$0xff] %vm305, %v3764
      %3797 = vst.msk [vmem:[#allocation3 + $0x58] sm:$0xff] %vm305, %v3765
      %3798 = vst.msk [vmem:[#allocation3 + $0x60] sm:$0xff] %vm305, %v3766
      %3799 = vst.msk [vmem:[#allocation3 + $0x68] sm:$0xff] %vm305, %v3767
      %3800 = vst.msk [vmem:[#allocation3 + $0x70] sm:$0xff] %vm305, %v3768
      %3801 = vst.msk [vmem:[#allocation3 + $0x78] sm:$0xff] %vm305, %v3769
      %3802 = vst.msk [vmem:[#allocation3 + $0x80] sm:$0xff] %vm305, %v3770
      %3803 = vst.msk [vmem:[#allocation3 + $0x88] sm:$0xff] %vm305, %v3771
      %3804 = vst.msk [vmem:[#allocation3 + $0x90] sm:$0xff] %vm305, %v3772
      %3805 = vst.msk [vmem:[#allocation3 + $0x98] sm:$0xff] %vm305, %v3773
      %3806 = vst.msk [vmem:[#allocation3 + $0xa0] sm:$0xff] %vm305, %v3774
      %3807 = vst.msk [vmem:[#allocation3 + $0xa8] sm:$0xff] %vm305, %v3775
      %3808 = vst.msk [vmem:[#allocation3 + $0xb0] sm:$0xff] %vm305, %v3776
      %3809 = vst.msk [vmem:[#allocation3 + $0xb8] sm:$0xff] %vm305, %v3777
      %3810 = vst.msk [vmem:[#allocation3 + $0xc0] sm:$0xff] %vm305, %v3778
      %3811 = vst.msk [vmem:[#allocation3 + $0xc8] sm:$0xff] %vm305, %v3779
      %3812 = vst.msk [vmem:[#allocation3 + $0xd0] sm:$0xff] %vm305, %v3780
      %3813 = vst.msk [vmem:[#allocation3 + $0xd8] sm:$0xff] %vm305, %v3781
      %3814 = vst.msk [vmem:[#allocation3 + $0xe0] sm:$0xff] %vm305, %v3782
      %3815 = vst.msk [vmem:[#allocation3 + $0xe8] sm:$0xff] %vm305, %v3783
      %3816 = vst.msk [vmem:[#allocation3 + $0xf0] sm:$0xff] %vm305, %v3784
      %3817 = vst.msk [vmem:[#allocation3 + $0xf8] sm:$0xff] %vm305, %v3785
      %v3818 = vld [vmem:[%s2915 + $0x2] sm:$0xff]
      %v3819 = vld [vmem:[%s2915 + $0xa] sm:$0xff]
      %v3820 = vld [vmem:[%s2915 + $0x1a] sm:$0xff]
      %v3821 = vld [vmem:[%s2915 + $0x22] sm:$0xff]
      %v3822 = vld [vmem:[%s2915 + $0x32] sm:$0xff]
      %v3823 = vld [vmem:[%s2915 + $0x3a] sm:$0xff]
      %v3824 = vld [vmem:[%s2915 + $0x4a] sm:$0xff]
      %v3825 = vld [vmem:[%s2915 + $0x52] sm:$0xff]
      %v3826 = vld [vmem:[%s2915 + $0x62] sm:$0xff]
      %v3827 = vld [vmem:[%s2915 + $0x6a] sm:$0xff]
      %v3828 = vld [vmem:[%s2915 + $0x7a] sm:$0xff]
      %v3829 = vld [vmem:[%s2915 + $0x82] sm:$0xff]
      %v3830 = vld [vmem:[%s2915 + $0x92] sm:$0xff]
      %v3831 = vld [vmem:[%s2915 + $0x9a] sm:$0xff]
      %v3832 = vld [vmem:[%s2915 + $0xaa] sm:$0xff]
      %v3833 = vld [vmem:[%s2915 + $0xb2] sm:$0xff]
      %v3834 = vld [vmem:[%s2915 + $0xc2] sm:$0xff]
      %v3835 = vld [vmem:[%s2915 + $0xca] sm:$0xff]
      %v3836 = vld [vmem:[%s2915 + $0xda] sm:$0xff]
      %v3837 = vld [vmem:[%s2915 + $0xe2] sm:$0xff]
      %v3838 = vld [vmem:[%s2915 + $0xf2] sm:$0xff]
      %v3839 = vld [vmem:[%s2915 + $0xfa] sm:$0xff]
      %v3840 = vld [vmem:[%s2915 + $0x10a] sm:$0xff]
      %v3841 = vld [vmem:[%s2915 + $0x112] sm:$0xff]
      %v3842 = vld [vmem:[%s2915 + $0x122] sm:$0xff]
      %v3843 = vld [vmem:[%s2915 + $0x12a] sm:$0xff]
      %v3844 = vld [vmem:[%s2915 + $0x13a] sm:$0xff]
      %v3845 = vld [vmem:[%s2915 + $0x142] sm:$0xff]
      %v3846 = vld [vmem:[%s2915 + $0x152] sm:$0xff]
      %v3847 = vld [vmem:[%s2915 + $0x15a] sm:$0xff]
      %v3848 = vld [vmem:[%s2915 + $0x16a] sm:$0xff]
      %v3849 = vld [vmem:[%s2915 + $0x172] sm:$0xff]
      %s3850 = scalar_lea.vmem %s2, 64
      %v3851 = vld [vmem:[%s3850] sm:$0xff]
      %v3853 = vsel %vm305, %v3818, 0
      %v3856 = vsel %vm305, %v3819, 0
      %v3859 = vsel %vm305, %v3820, 0
      %v3862 = vsel %vm305, %v3821, 0
      %v3865 = vsel %vm305, %v3822, 0
      %v3868 = vsel %vm305, %v3823, 0
      %v3871 = vsel %vm305, %v3824, 0
      %v3874 = vsel %vm305, %v3825, 0
      %v3877 = vsel %vm305, %v3826, 0
      %v3880 = vsel %vm305, %v3827, 0
      %v3883 = vsel %vm305, %v3828, 0
      %v3886 = vsel %vm305, %v3829, 0
      %v3889 = vsel %vm305, %v3830, 0
      %v3892 = vsel %vm305, %v3831, 0
      %v3895 = vsel %vm305, %v3832, 0
      %v3898 = vsel %vm305, %v3833, 0
      %v3901 = vsel %vm305, %v3834, 0
      %v3904 = vsel %vm305, %v3835, 0
      %v3907 = vsel %vm305, %v3836, 0
      %v3910 = vsel %vm305, %v3837, 0
      %v3913 = vsel %vm305, %v3838, 0
      %v3916 = vsel %vm305, %v3839, 0
      %v3919 = vsel %vm305, %v3840, 0
      %v3922 = vsel %vm305, %v3841, 0
      %v3925 = vsel %vm305, %v3842, 0
      %v3928 = vsel %vm305, %v3843, 0
      %v3931 = vsel %vm305, %v3844, 0
      %v3934 = vsel %vm305, %v3845, 0
      %v3937 = vsel %vm305, %v3846, 0
      %v3940 = vsel %vm305, %v3847, 0
      %v3943 = vsel %vm305, %v3848, 0
      %v3946 = vsel %vm305, %v3849, 0
      %3948 = vmatprep.subr.mxu0 0.0
      %3949 = vmatpush1.msra.mxu0 %v3851
      %3950 = vmatprep.subr.mxu0 0.0
      %3951 = vmatpush1.msra.mxu0 0.0
      %3952 = vmatprep.subr.mxu0 0.0
      %3953 = vmatpush1.msra.mxu0 0.0
      %3954 = vmatprep.subr.mxu0 0.0
      %3955 = vmatpush1.msra.mxu0 0.0
      %3956 = vmatprep.subr.mxu0 0.0
      %3957 = vmatpush1.msra.mxu0 0.0
      %3958 = vmatprep.subr.mxu0 0.0
      %3959 = vmatpush1.msra.mxu0 0.0
      %3960 = vmatprep.subr.mxu0 0.0
      %3961 = vmatpush1.msra.mxu0 0.0
      %3962 = vmatprep.subr.mxu0 0.0
      %3963 = vmatpush1.msra.mxu0 0.0
      %3964 = vmatprep.subr.mxu0 0.0
      %3965 = vmatpush1.msra.mxu0 0.0
      %3966 = vmatprep.subr.mxu0 0.0
      %3967 = vmatpush1.msra.mxu0 0.0
      %3968 = vmatprep.subr.mxu0 0.0
      %3969 = vmatpush1.msra.mxu0 0.0
      %3970 = vmatprep.subr.mxu0 0.0
      %3971 = vmatpush1.msra.mxu0 0.0
      %3972 = vmatprep.subr.mxu0 0.0
      %3973 = vmatpush1.msra.mxu0 0.0
      %3974 = vmatprep.subr.mxu0 0.0
      %3975 = vmatpush1.msra.mxu0 0.0
      %3976 = vmatprep.subr.mxu0 0.0
      %3977 = vmatpush1.msra.mxu0 0.0
      %3978 = vmatprep.subr.mxu0 0.0
      %3979 = vmatpush1.msra.mxu0 0.0
      %3980 = vmatprep.subr.mxu0 0.0
      %3981 = vmatpush1.msra.mxu0 0.0
      %3982 = vmatprep.subr.mxu0 0.0
      %3983 = vmatpush1.msra.mxu0 0.0
      %3984 = vmatprep.subr.mxu0 0.0
      %3985 = vmatpush1.msra.mxu0 0.0
      %3986 = vmatprep.subr.mxu0 0.0
      %3987 = vmatpush1.msra.mxu0 0.0
      %3988 = vmatprep.subr.mxu0 0.0
      %3989 = vmatpush1.msra.mxu0 0.0
      %3990 = vmatprep.subr.mxu0 0.0
      %3991 = vmatpush1.msra.mxu0 0.0
      %3992 = vmatprep.subr.mxu0 0.0
      %3993 = vmatpush1.msra.mxu0 0.0
      %3994 = vmatprep.subr.mxu0 0.0
      %3995 = vmatpush1.msra.mxu0 0.0
      %3996 = vmatprep.subr.mxu0 0.0
      %3997 = vmatpush1.msra.mxu0 0.0
      %3998 = vmatprep.subr.mxu0 0.0
      %3999 = vmatpush1.msra.mxu0 0.0
      %4000 = vmatprep.subr.mxu0 0.0
      %4001 = vmatpush1.msra.mxu0 0.0
      %4002 = vmatprep.subr.mxu0 0.0
      %4003 = vmatpush1.msra.mxu0 0.0
      %4004 = vmatprep.subr.mxu0 0.0
      %4005 = vmatpush1.msra.mxu0 0.0
      %4006 = vmatprep.subr.mxu0 0.0
      %4007 = vmatpush1.msra.mxu0 0.0
      %4008 = vmatprep.subr.mxu0 0.0
      %4009 = vmatpush1.msra.mxu0 0.0
      %4010 = vmatprep.subr.mxu0 0.0
      %4011 = vmatpush1.msra.mxu0 0.0
      %4012 = vmatprep.mubr.f32.mxu0 0.0
      %4013 = vmatmul.mubr.f32.gmra.mrb[0].mxu0 %v3853
      %v4014 = vpop.f32.mrb[0].mxu0
      %v4015 = vadd.f32 0.0, %v4014
      %v4016 = vpop.f32.mrb[0].mxu0
      %4017 = vmatprep.mubr.f32.mxu0 0.0
      %4018 = vmatmul.mubr.f32.gmra.mrb[0].mxu0 %v3856
      %v4019 = vpop.f32.mrb[0].mxu0
      %v4020 = vadd.f32 0.0, %v4019
      %v4021 = vpop.f32.mrb[0].mxu0
      %4022 = vmatprep.mubr.f32.mxu0 0.0
      %4023 = vmatmul.mubr.f32.gmra.mrb[0].mxu0 %v3859
      %v4024 = vpop.f32.mrb[0].mxu0
      %v4025 = vadd.f32 0.0, %v4024
      %v4026 = vpop.f32.mrb[0].mxu0
      %4027 = vmatprep.mubr.f32.mxu0 0.0
      %4028 = vmatmul.mubr.f32.gmra.mrb[0].mxu0 %v3862
      %v4029 = vpop.f32.mrb[0].mxu0
      %v4030 = vadd.f32 0.0, %v4029
      %v4031 = vpop.f32.mrb[0].mxu0
      %4032 = vmatprep.mubr.f32.mxu0 0.0
      %4033 = vmatmul.mubr.f32.gmra.mrb[0].mxu0 %v3865
      %v4034 = vpop.f32.mrb[0].mxu0
      %v4035 = vadd.f32 0.0, %v4034
      %v4036 = vpop.f32.mrb[0].mxu0
      %4037 = vmatprep.mubr.f32.mxu0 0.0
      %4038 = vmatmul.mubr.f32.gmra.mrb[0].mxu0 %v3868
      %v4039 = vpop.f32.mrb[0].mxu0
      %v4040 = vadd.f32 0.0, %v4039
      %v4041 = vpop.f32.mrb[0].mxu0
      %4042 = vmatprep.mubr.f32.mxu0 0.0
      %4043 = vmatmul.mubr.f32.gmra.mrb[0].mxu0 %v3871
      %v4044 = vpop.f32.mrb[0].mxu0
      %v4045 = vadd.f32 0.0, %v4044
      %v4046 = vpop.f32.mrb[0].mxu0
      %4047 = vmatprep.mubr.f32.mxu0 0.0
      %4048 = vmatmul.mubr.f32.gmra.mrb[0].mxu0 %v3874
      %v4049 = vpop.f32.mrb[0].mxu0
      %v4050 = vadd.f32 0.0, %v4049
      %v4051 = vpop.f32.mrb[0].mxu0
      %4052 = vmatprep.mubr.f32.mxu0 0.0
      %4053 = vmatmul.mubr.f32.gmra.mrb[0].mxu0 %v3877
      %v4054 = vpop.f32.mrb[0].mxu0
      %v4055 = vadd.f32 0.0, %v4054
      %v4056 = vpop.f32.mrb[0].mxu0
      %4057 = vmatprep.mubr.f32.mxu0 0.0
      %4058 = vmatmul.mubr.f32.gmra.mrb[0].mxu0 %v3880
      %v4059 = vpop.f32.mrb[0].mxu0
      %v4060 = vadd.f32 0.0, %v4059
      %v4061 = vpop.f32.mrb[0].mxu0
      %4062 = vmatprep.mubr.f32.mxu0 0.0
      %4063 = vmatmul.mubr.f32.gmra.mrb[0].mxu0 %v3883
      %v4064 = vpop.f32.mrb[0].mxu0
      %v4065 = vadd.f32 0.0, %v4064
      %v4066 = vpop.f32.mrb[0].mxu0
      %4067 = vmatprep.mubr.f32.mxu0 0.0
      %4068 = vmatmul.mubr.f32.gmra.mrb[0].mxu0 %v3886
      %v4069 = vpop.f32.mrb[0].mxu0
      %v4070 = vadd.f32 0.0, %v4069
      %v4071 = vpop.f32.mrb[0].mxu0
      %4072 = vmatprep.mubr.f32.mxu0 0.0
      %4073 = vmatmul.mubr.f32.gmra.mrb[0].mxu0 %v3889
      %v4074 = vpop.f32.mrb[0].mxu0
      %v4075 = vadd.f32 0.0, %v4074
      %v4076 = vpop.f32.mrb[0].mxu0
      %4077 = vmatprep.mubr.f32.mxu0 0.0
      %4078 = vmatmul.mubr.f32.gmra.mrb[0].mxu0 %v3892
      %v4079 = vpop.f32.mrb[0].mxu0
      %v4080 = vadd.f32 0.0, %v4079
      %v4081 = vpop.f32.mrb[0].mxu0
      %4082 = vmatprep.mubr.f32.mxu0 0.0
      %4083 = vmatmul.mubr.f32.gmra.mrb[0].mxu0 %v3895
      %v4084 = vpop.f32.mrb[0].mxu0
      %v4085 = vadd.f32 0.0, %v4084
      %v4086 = vpop.f32.mrb[0].mxu0
      %4087 = vmatprep.mubr.f32.mxu0 0.0
      %4088 = vmatmul.mubr.f32.gmra.mrb[0].mxu0 %v3898
      %v4089 = vpop.f32.mrb[0].mxu0
      %v4090 = vadd.f32 0.0, %v4089
      %v4091 = vpop.f32.mrb[0].mxu0
      %4092 = vmatprep.mubr.f32.mxu0 0.0
      %4093 = vmatmul.mubr.f32.gmra.mrb[0].mxu0 %v3901
      %v4094 = vpop.f32.mrb[0].mxu0
      %v4095 = vadd.f32 0.0, %v4094
      %v4096 = vpop.f32.mrb[0].mxu0
      %4097 = vmatprep.mubr.f32.mxu0 0.0
      %4098 = vmatmul.mubr.f32.gmra.mrb[0].mxu0 %v3904
      %v4099 = vpop.f32.mrb[0].mxu0
      %v4100 = vadd.f32 0.0, %v4099
      %v4101 = vpop.f32.mrb[0].mxu0
      %4102 = vmatprep.mubr.f32.mxu0 0.0
      %4103 = vmatmul.mubr.f32.gmra.mrb[0].mxu0 %v3907
      %v4104 = vpop.f32.mrb[0].mxu0
      %v4105 = vadd.f32 0.0, %v4104
      %v4106 = vpop.f32.mrb[0].mxu0
      %4107 = vmatprep.mubr.f32.mxu0 0.0
      %4108 = vmatmul.mubr.f32.gmra.mrb[0].mxu0 %v3910
      %v4109 = vpop.f32.mrb[0].mxu0
      %v4110 = vadd.f32 0.0, %v4109
      %v4111 = vpop.f32.mrb[0].mxu0
      %4112 = vmatprep.mubr.f32.mxu0 0.0
      %4113 = vmatmul.mubr.f32.gmra.mrb[0].mxu0 %v3913
      %v4114 = vpop.f32.mrb[0].mxu0
      %v4115 = vadd.f32 0.0, %v4114
      %v4116 = vpop.f32.mrb[0].mxu0
      %4117 = vmatprep.mubr.f32.mxu0 0.0
      %4118 = vmatmul.mubr.f32.gmra.mrb[0].mxu0 %v3916
      %v4119 = vpop.f32.mrb[0].mxu0
      %v4120 = vadd.f32 0.0, %v4119
      %v4121 = vpop.f32.mrb[0].mxu0
      %4122 = vmatprep.mubr.f32.mxu0 0.0
      %4123 = vmatmul.mubr.f32.gmra.mrb[0].mxu0 %v3919
      %v4124 = vpop.f32.mrb[0].mxu0
      %v4125 = vadd.f32 0.0, %v4124
      %v4126 = vpop.f32.mrb[0].mxu0
      %4127 = vmatprep.mubr.f32.mxu0 0.0
      %4128 = vmatmul.mubr.f32.gmra.mrb[0].mxu0 %v3922
      %v4129 = vpop.f32.mrb[0].mxu0
      %v4130 = vadd.f32 0.0, %v4129
      %v4131 = vpop.f32.mrb[0].mxu0
      %4132 = vmatprep.mubr.f32.mxu0 0.0
      %4133 = vmatmul.mubr.f32.gmra.mrb[0].mxu0 %v3925
      %v4134 = vpop.f32.mrb[0].mxu0
      %v4135 = vadd.f32 0.0, %v4134
      %v4136 = vpop.f32.mrb[0].mxu0
      %4137 = vmatprep.mubr.f32.mxu0 0.0
      %4138 = vmatmul.mubr.f32.gmra.mrb[0].mxu0 %v3928
      %v4139 = vpop.f32.mrb[0].mxu0
      %v4140 = vadd.f32 0.0, %v4139
      %v4141 = vpop.f32.mrb[0].mxu0
      %4142 = vmatprep.mubr.f32.mxu0 0.0
      %4143 = vmatmul.mubr.f32.gmra.mrb[0].mxu0 %v3931
      %v4144 = vpop.f32.mrb[0].mxu0
      %v4145 = vadd.f32 0.0, %v4144
      %v4146 = vpop.f32.mrb[0].mxu0
      %4147 = vmatprep.mubr.f32.mxu0 0.0
      %4148 = vmatmul.mubr.f32.gmra.mrb[0].mxu0 %v3934
      %v4149 = vpop.f32.mrb[0].mxu0
      %v4150 = vadd.f32 0.0, %v4149
      %v4151 = vpop.f32.mrb[0].mxu0
      %4152 = vmatprep.mubr.f32.mxu0 0.0
      %4153 = vmatmul.mubr.f32.gmra.mrb[0].mxu0 %v3937
      %v4154 = vpop.f32.mrb[0].mxu0
      %v4155 = vadd.f32 0.0, %v4154
      %v4156 = vpop.f32.mrb[0].mxu0
      %4157 = vmatprep.mubr.f32.mxu0 0.0
      %4158 = vmatmul.mubr.f32.gmra.mrb[0].mxu0 %v3940
      %v4159 = vpop.f32.mrb[0].mxu0
      %v4160 = vadd.f32 0.0, %v4159
      %v4161 = vpop.f32.mrb[0].mxu0
      %4162 = vmatprep.mubr.f32.mxu0 0.0
      %4163 = vmatmul.mubr.f32.gmra.mrb[0].mxu0 %v3943
      %v4164 = vpop.f32.mrb[0].mxu0
      %v4165 = vadd.f32 0.0, %v4164
      %v4166 = vpop.f32.mrb[0].mxu0
      %4167 = vmatprep.mubr.f32.mxu0 0.0
      %4168 = vmatmul.mubr.f32.gmra.mrb[0].mxu0 %v3946
      %v4169 = vpop.f32.mrb[0].mxu0
      %v4170 = vadd.f32 0.0, %v4169
      %v4171 = vpop.f32.mrb[0].mxu0
      %4172 = vdwg.mxu0
      %v4173 = vld [vmem:[#allocation3] sm:$0xff]
      %v4174 = vld [vmem:[#allocation3 + $0x8] sm:$0xff]
      %v4175 = vld [vmem:[#allocation3 + $0x10] sm:$0xff]
      %v4176 = vld [vmem:[#allocation3 + $0x18] sm:$0xff]
      %v4177 = vld [vmem:[#allocation3 + $0x20] sm:$0xff]
      %v4178 = vld [vmem:[#allocation3 + $0x28] sm:$0xff]
      %v4179 = vld [vmem:[#allocation3 + $0x30] sm:$0xff]
      %v4180 = vld [vmem:[#allocation3 + $0x38] sm:$0xff]
      %v4181 = vld [vmem:[#allocation3 + $0x40] sm:$0xff]
      %v4182 = vld [vmem:[#allocation3 + $0x48] sm:$0xff]
      %v4183 = vld [vmem:[#allocation3 + $0x50] sm:$0xff]
      %v4184 = vld [vmem:[#allocation3 + $0x58] sm:$0xff]
      %v4185 = vld [vmem:[#allocation3 + $0x60] sm:$0xff]
      %v4186 = vld [vmem:[#allocation3 + $0x68] sm:$0xff]
      %v4187 = vld [vmem:[#allocation3 + $0x70] sm:$0xff]
      %v4188 = vld [vmem:[#allocation3 + $0x78] sm:$0xff]
      %v4189 = vld [vmem:[#allocation3 + $0x80] sm:$0xff]
      %v4190 = vld [vmem:[#allocation3 + $0x88] sm:$0xff]
      %v4191 = vld [vmem:[#allocation3 + $0x90] sm:$0xff]
      %v4192 = vld [vmem:[#allocation3 + $0x98] sm:$0xff]
      %v4193 = vld [vmem:[#allocation3 + $0xa0] sm:$0xff]
      %v4194 = vld [vmem:[#allocation3 + $0xa8] sm:$0xff]
      %v4195 = vld [vmem:[#allocation3 + $0xb0] sm:$0xff]
      %v4196 = vld [vmem:[#allocation3 + $0xb8] sm:$0xff]
      %v4197 = vld [vmem:[#allocation3 + $0xc0] sm:$0xff]
      %v4198 = vld [vmem:[#allocation3 + $0xc8] sm:$0xff]
      %v4199 = vld [vmem:[#allocation3 + $0xd0] sm:$0xff]
      %v4200 = vld [vmem:[#allocation3 + $0xd8] sm:$0xff]
      %v4201 = vld [vmem:[#allocation3 + $0xe0] sm:$0xff]
      %v4202 = vld [vmem:[#allocation3 + $0xe8] sm:$0xff]
      %v4203 = vld [vmem:[#allocation3 + $0xf0] sm:$0xff]
      %v4204 = vld [vmem:[#allocation3 + $0xf8] sm:$0xff]
      %v4205 = vadd.f32 %v4173, %v4015
      %v4206 = vadd.f32 %v4174, %v4020
      %v4207 = vadd.f32 %v4175, %v4025
      %v4208 = vadd.f32 %v4176, %v4030
      %v4209 = vadd.f32 %v4177, %v4035
      %v4210 = vadd.f32 %v4178, %v4040
      %v4211 = vadd.f32 %v4179, %v4045
      %v4212 = vadd.f32 %v4180, %v4050
      %v4213 = vadd.f32 %v4181, %v4055
      %v4214 = vadd.f32 %v4182, %v4060
      %v4215 = vadd.f32 %v4183, %v4065
      %v4216 = vadd.f32 %v4184, %v4070
      %v4217 = vadd.f32 %v4185, %v4075
      %v4218 = vadd.f32 %v4186, %v4080
      %v4219 = vadd.f32 %v4187, %v4085
      %v4220 = vadd.f32 %v4188, %v4090
      %v4221 = vadd.f32 %v4189, %v4095
      %v4222 = vadd.f32 %v4190, %v4100
      %v4223 = vadd.f32 %v4191, %v4105
      %v4224 = vadd.f32 %v4192, %v4110
      %v4225 = vadd.f32 %v4193, %v4115
      %v4226 = vadd.f32 %v4194, %v4120
      %v4227 = vadd.f32 %v4195, %v4125
      %v4228 = vadd.f32 %v4196, %v4130
      %v4229 = vadd.f32 %v4197, %v4135
      %v4230 = vadd.f32 %v4198, %v4140
      %v4231 = vadd.f32 %v4199, %v4145
      %v4232 = vadd.f32 %v4200, %v4150
      %v4233 = vadd.f32 %v4201, %v4155
      %v4234 = vadd.f32 %v4202, %v4160
      %v4235 = vadd.f32 %v4203, %v4165
      %v4236 = vadd.f32 %v4204, %v4170
      %4237 = vst.msk [vmem:[#allocation3] sm:$0xff] %vm305, %v4205
      %4238 = vst.msk [vmem:[#allocation3 + $0x8] sm:$0xff] %vm305, %v4206
      %4239 = vst.msk [vmem:[#allocation3 + $0x10] sm:$0xff] %vm305, %v4207
      %4240 = vst.msk [vmem:[#allocation3 + $0x18] sm:$0xff] %vm305, %v4208
      %4241 = vst.msk [vmem:[#allocation3 + $0x20] sm:$0xff] %vm305, %v4209
      %4242 = vst.msk [vmem:[#allocation3 + $0x28] sm:$0xff] %vm305, %v4210
      %4243 = vst.msk [vmem:[#allocation3 + $0x30] sm:$0xff] %vm305, %v4211
      %4244 = vst.msk [vmem:[#allocation3 + $0x38] sm:$0xff] %vm305, %v4212
      %4245 = vst.msk [vmem:[#allocation3 + $0x40] sm:$0xff] %vm305, %v4213
      %4246 = vst.msk [vmem:[#allocation3 + $0x48] sm:$0xff] %vm305, %v4214
      %4247 = vst.msk [vmem:[#allocation3 + $0x50] sm:$0xff] %vm305, %v4215
      %4248 = vst.msk [vmem:[#allocation3 + $0x58] sm:$0xff] %vm305, %v4216
      %4249 = vst.msk [vmem:[#allocation3 + $0x60] sm:$0xff] %vm305, %v4217
      %4250 = vst.msk [vmem:[#allocation3 + $0x68] sm:$0xff] %vm305, %v4218
      %4251 = vst.msk [vmem:[#allocation3 + $0x70] sm:$0xff] %vm305, %v4219
      %4252 = vst.msk [vmem:[#allocation3 + $0x78] sm:$0xff] %vm305, %v4220
      %4253 = vst.msk [vmem:[#allocation3 + $0x80] sm:$0xff] %vm305, %v4221
      %4254 = vst.msk [vmem:[#allocation3 + $0x88] sm:$0xff] %vm305, %v4222
      %4255 = vst.msk [vmem:[#allocation3 + $0x90] sm:$0xff] %vm305, %v4223
      %4256 = vst.msk [vmem:[#allocation3 + $0x98] sm:$0xff] %vm305, %v4224
      %4257 = vst.msk [vmem:[#allocation3 + $0xa0] sm:$0xff] %vm305, %v4225
      %4258 = vst.msk [vmem:[#allocation3 + $0xa8] sm:$0xff] %vm305, %v4226
      %4259 = vst.msk [vmem:[#allocation3 + $0xb0] sm:$0xff] %vm305, %v4227
      %4260 = vst.msk [vmem:[#allocation3 + $0xb8] sm:$0xff] %vm305, %v4228
      %4261 = vst.msk [vmem:[#allocation3 + $0xc0] sm:$0xff] %vm305, %v4229
      %4262 = vst.msk [vmem:[#allocation3 + $0xc8] sm:$0xff] %vm305, %v4230
      %4263 = vst.msk [vmem:[#allocation3 + $0xd0] sm:$0xff] %vm305, %v4231
      %4264 = vst.msk [vmem:[#allocation3 + $0xd8] sm:$0xff] %vm305, %v4232
      %4265 = vst.msk [vmem:[#allocation3 + $0xe0] sm:$0xff] %vm305, %v4233
      %4266 = vst.msk [vmem:[#allocation3 + $0xe8] sm:$0xff] %vm305, %v4234
      %4267 = vst.msk [vmem:[#allocation3 + $0xf0] sm:$0xff] %vm305, %v4235
      %4268 = vst.msk [vmem:[#allocation3 + $0xf8] sm:$0xff] %vm305, %v4236
      %v4269 = vld [vmem:[#allocation3] sm:$0xff]
      %v4270 = vld [vmem:[#allocation3 + $0x8] sm:$0xff]
      %v4271 = vld [vmem:[#allocation3 + $0x10] sm:$0xff]
      %v4272 = vld [vmem:[#allocation3 + $0x18] sm:$0xff]
      %v4273 = vld [vmem:[#allocation3 + $0x20] sm:$0xff]
      %v4274 = vld [vmem:[#allocation3 + $0x28] sm:$0xff]
      %v4275 = vld [vmem:[#allocation3 + $0x30] sm:$0xff]
      %v4276 = vld [vmem:[#allocation3 + $0x38] sm:$0xff]
      %v4277 = vld [vmem:[#allocation3 + $0x40] sm:$0xff]
      %v4278 = vld [vmem:[#allocation3 + $0x48] sm:$0xff]
      %v4279 = vld [vmem:[#allocation3 + $0x50] sm:$0xff]
      %v4280 = vld [vmem:[#allocation3 + $0x58] sm:$0xff]
      %v4281 = vld [vmem:[#allocation3 + $0x60] sm:$0xff]
      %v4282 = vld [vmem:[#allocation3 + $0x68] sm:$0xff]
      %v4283 = vld [vmem:[#allocation3 + $0x70] sm:$0xff]
      %v4284 = vld [vmem:[#allocation3 + $0x78] sm:$0xff]
      %v4285 = vld [vmem:[#allocation3 + $0x80] sm:$0xff]
      %v4286 = vld [vmem:[#allocation3 + $0x88] sm:$0xff]
      %v4287 = vld [vmem:[#allocation3 + $0x90] sm:$0xff]
      %v4288 = vld [vmem:[#allocation3 + $0x98] sm:$0xff]
      %v4289 = vld [vmem:[#allocation3 + $0xa0] sm:$0xff]
      %v4290 = vld [vmem:[#allocation3 + $0xa8] sm:$0xff]
      %v4291 = vld [vmem:[#allocation3 + $0xb0] sm:$0xff]
      %v4292 = vld [vmem:[#allocation3 + $0xb8] sm:$0xff]
      %v4293 = vld [vmem:[#allocation3 + $0xc0] sm:$0xff]
      %v4294 = vld [vmem:[#allocation3 + $0xc8] sm:$0xff]
      %v4295 = vld [vmem:[#allocation3 + $0xd0] sm:$0xff]
      %v4296 = vld [vmem:[#allocation3 + $0xd8] sm:$0xff]
      %v4297 = vld [vmem:[#allocation3 + $0xe0] sm:$0xff]
      %v4298 = vld [vmem:[#allocation3 + $0xe8] sm:$0xff]
      %v4299 = vld [vmem:[#allocation3 + $0xf0] sm:$0xff]
      %v4300 = vld [vmem:[#allocation3 + $0xf8] sm:$0xff]
      %v4301 = vld [vmem:[%s3] sm:$0x1]
      %v4303 = vlaneseq
      %v4304 = vshrl.u32 %v4303, 7
      %v4305 = vsub.s32 0, %v4304
      %v4306 = vrot.slane %v4301, %v4305
      %v4308 = vadd.f32 %v4269, %v4306
      %v4309 = vadd.f32 %v4270, %v4306
      %v4310 = vadd.f32 %v4271, %v4306
      %v4311 = vadd.f32 %v4272, %v4306
      %v4312 = vadd.f32 %v4273, %v4306
      %v4313 = vadd.f32 %v4274, %v4306
      %v4314 = vadd.f32 %v4275, %v4306
      %v4315 = vadd.f32 %v4276, %v4306
      %v4316 = vadd.f32 %v4277, %v4306
      %v4317 = vadd.f32 %v4278, %v4306
      %v4318 = vadd.f32 %v4279, %v4306
      %v4319 = vadd.f32 %v4280, %v4306
      %v4320 = vadd.f32 %v4281, %v4306
      %v4321 = vadd.f32 %v4282, %v4306
      %v4322 = vadd.f32 %v4283, %v4306
      %v4323 = vadd.f32 %v4284, %v4306
      %v4324 = vadd.f32 %v4285, %v4306
      %v4325 = vadd.f32 %v4286, %v4306
      %v4326 = vadd.f32 %v4287, %v4306
      %v4327 = vadd.f32 %v4288, %v4306
      %v4328 = vadd.f32 %v4289, %v4306
      %v4329 = vadd.f32 %v4290, %v4306
      %v4330 = vadd.f32 %v4291, %v4306
      %v4331 = vadd.f32 %v4292, %v4306
      %v4332 = vadd.f32 %v4293, %v4306
      %v4333 = vadd.f32 %v4294, %v4306
      %v4334 = vadd.f32 %v4295, %v4306
      %v4335 = vadd.f32 %v4296, %v4306
      %v4336 = vadd.f32 %v4297, %v4306
      %v4337 = vadd.f32 %v4298, %v4306
      %v4338 = vadd.f32 %v4299, %v4306
      %v4339 = vadd.f32 %v4300, %v4306
      %v4340 = vmax.f32 %v4308, 0.0
      %v4341 = vmax.f32 %v4309, 0.0
      %v4342 = vmax.f32 %v4310, 0.0
      %v4343 = vmax.f32 %v4311, 0.0
      %v4344 = vmax.f32 %v4312, 0.0
      %v4345 = vmax.f32 %v4313, 0.0
      %v4346 = vmax.f32 %v4314, 0.0
      %v4347 = vmax.f32 %v4315, 0.0
      %v4348 = vmax.f32 %v4316, 0.0
      %v4349 = vmax.f32 %v4317, 0.0
      %v4350 = vmax.f32 %v4318, 0.0
      %v4351 = vmax.f32 %v4319, 0.0
      %v4352 = vmax.f32 %v4320, 0.0
      %v4353 = vmax.f32 %v4321, 0.0
      %v4354 = vmax.f32 %v4322, 0.0
      %v4355 = vmax.f32 %v4323, 0.0
      %v4356 = vmax.f32 %v4324, 0.0
      %v4357 = vmax.f32 %v4325, 0.0
      %v4358 = vmax.f32 %v4326, 0.0
      %v4359 = vmax.f32 %v4327, 0.0
      %v4360 = vmax.f32 %v4328, 0.0
      %v4361 = vmax.f32 %v4329, 0.0
      %v4362 = vmax.f32 %v4330, 0.0
      %v4363 = vmax.f32 %v4331, 0.0
      %v4364 = vmax.f32 %v4332, 0.0
      %v4365 = vmax.f32 %v4333, 0.0
      %v4366 = vmax.f32 %v4334, 0.0
      %v4367 = vmax.f32 %v4335, 0.0
      %v4368 = vmax.f32 %v4336, 0.0
      %v4369 = vmax.f32 %v4337, 0.0
      %v4370 = vmax.f32 %v4338, 0.0
      %v4371 = vmax.f32 %v4339, 0.0
      %4372 = vst.msk [vmem:[#allocation2] sm:$0xff] %vm305, 0.0
      %4373 = vst.msk [vmem:[#allocation2 + $0x8] sm:$0xff] %vm305, 0.0
      %4374 = vst.msk [vmem:[#allocation2 + $0x10] sm:$0xff] %vm305, 0.0
      %4375 = vst.msk [vmem:[#allocation2 + $0x18] sm:$0xff] %vm305, 0.0
      %4376 = vst.msk [vmem:[#allocation2 + $0x20] sm:$0xff] %vm305, 0.0
      %4377 = vst.msk [vmem:[#allocation2 + $0x28] sm:$0xff] %vm305, 0.0
      %4378 = vst.msk [vmem:[#allocation2 + $0x30] sm:$0xff] %vm305, 0.0
      %4379 = vst.msk [vmem:[#allocation2 + $0x38] sm:$0xff] %vm305, 0.0
      %4380 = vst.msk [vmem:[#allocation2 + $0x40] sm:$0xff] %vm305, 0.0
      %4381 = vst.msk [vmem:[#allocation2 + $0x48] sm:$0xff] %vm305, 0.0
      %4382 = vst.msk [vmem:[#allocation2 + $0x50] sm:$0xff] %vm305, 0.0
      %4383 = vst.msk [vmem:[#allocation2 + $0x58] sm:$0xff] %vm305, 0.0
      %4384 = vst.msk [vmem:[#allocation2 + $0x60] sm:$0xff] %vm305, 0.0
      %4385 = vst.msk [vmem:[#allocation2 + $0x68] sm:$0xff] %vm305, 0.0
      %4386 = vst.msk [vmem:[#allocation2 + $0x70] sm:$0xff] %vm305, 0.0
      %4387 = vst.msk [vmem:[#allocation2 + $0x78] sm:$0xff] %vm305, 0.0
      %4388 = vst.msk [vmem:[#allocation2 + $0x80] sm:$0xff] %vm305, 0.0
      %4389 = vst.msk [vmem:[#allocation2 + $0x88] sm:$0xff] %vm305, 0.0
      %4390 = vst.msk [vmem:[#allocation2 + $0x90] sm:$0xff] %vm305, 0.0
      %4391 = vst.msk [vmem:[#allocation2 + $0x98] sm:$0xff] %vm305, 0.0
      %4392 = vst.msk [vmem:[#allocation2 + $0xa0] sm:$0xff] %vm305, 0.0
      %4393 = vst.msk [vmem:[#allocation2 + $0xa8] sm:$0xff] %vm305, 0.0
      %4394 = vst.msk [vmem:[#allocation2 + $0xb0] sm:$0xff] %vm305, 0.0
      %4395 = vst.msk [vmem:[#allocation2 + $0xb8] sm:$0xff] %vm305, 0.0
      %4396 = vst.msk [vmem:[#allocation2 + $0xc0] sm:$0xff] %vm305, 0.0
      %4397 = vst.msk [vmem:[#allocation2 + $0xc8] sm:$0xff] %vm305, 0.0
      %4398 = vst.msk [vmem:[#allocation2 + $0xd0] sm:$0xff] %vm305, 0.0
      %4399 = vst.msk [vmem:[#allocation2 + $0xd8] sm:$0xff] %vm305, 0.0
      %4400 = vst.msk [vmem:[#allocation2 + $0xe0] sm:$0xff] %vm305, 0.0
      %4401 = vst.msk [vmem:[#allocation2 + $0xe8] sm:$0xff] %vm305, 0.0
      %4402 = vst.msk [vmem:[#allocation2 + $0xf0] sm:$0xff] %vm305, 0.0
      %4403 = vst.msk [vmem:[#allocation2 + $0xf8] sm:$0xff] %vm305, 0.0
      %4404 = vst.msk [vmem:[#allocation2 + $0x100] sm:$0xff] %vm305, 0.0
      %4405 = vst.msk [vmem:[#allocation2 + $0x108] sm:$0xff] %vm305, 0.0
      %4406 = vst.msk [vmem:[#allocation2 + $0x110] sm:$0xff] %vm305, 0.0
      %4407 = vst.msk [vmem:[#allocation2 + $0x118] sm:$0xff] %vm305, 0.0
      %4408 = vst.msk [vmem:[#allocation2 + $0x120] sm:$0xff] %vm305, 0.0
      %4409 = vst.msk [vmem:[#allocation2 + $0x128] sm:$0xff] %vm305, 0.0
      %4410 = vst.msk [vmem:[#allocation2 + $0x130] sm:$0xff] %vm305, 0.0
      %4411 = vst.msk [vmem:[#allocation2 + $0x138] sm:$0xff] %vm305, 0.0
      %4412 = vst.msk [vmem:[#allocation2 + $0x140] sm:$0xff] %vm305, 0.0
      %4413 = vst.msk [vmem:[#allocation2 + $0x148] sm:$0xff] %vm305, 0.0
      %4414 = vst.msk [vmem:[#allocation2 + $0x150] sm:$0xff] %vm305, 0.0
      %4415 = vst.msk [vmem:[#allocation2 + $0x158] sm:$0xff] %vm305, 0.0
      %4416 = vst.msk [vmem:[#allocation2 + $0x160] sm:$0xff] %vm305, 0.0
      %4417 = vst.msk [vmem:[#allocation2 + $0x168] sm:$0xff] %vm305, 0.0
      %4418 = vst.msk [vmem:[#allocation2 + $0x170] sm:$0xff] %vm305, 0.0
      %4419 = vst.msk [vmem:[#allocation2 + $0x178] sm:$0xff] %vm305, 0.0
      %4420 = vst.msk [vmem:[#allocation2 + $0x180] sm:$0xff] %vm305, 0.0
      %4421 = vst.msk [vmem:[#allocation2 + $0x188] sm:$0xff] %vm305, 0.0
      %4422 = vst.msk [vmem:[#allocation2 + $0x190] sm:$0xff] %vm305, 0.0
      %4423 = vst.msk [vmem:[#allocation2 + $0x198] sm:$0xff] %vm305, 0.0
      %4424 = vst.msk [vmem:[#allocation2 + $0x1a0] sm:$0xff] %vm305, 0.0
      %4425 = vst.msk [vmem:[#allocation2 + $0x1a8] sm:$0xff] %vm305, 0.0
      %4426 = vst.msk [vmem:[#allocation2 + $0x1b0] sm:$0xff] %vm305, 0.0
      %4427 = vst.msk [vmem:[#allocation2 + $0x1b8] sm:$0xff] %vm305, 0.0
      %4428 = vst.msk [vmem:[#allocation2 + $0x1c0] sm:$0xff] %vm305, 0.0
      %4429 = vst.msk [vmem:[#allocation2 + $0x1c8] sm:$0xff] %vm305, 0.0
      %4430 = vst.msk [vmem:[#allocation2 + $0x1d0] sm:$0xff] %vm305, 0.0
      %4431 = vst.msk [vmem:[#allocation2 + $0x1d8] sm:$0xff] %vm305, 0.0
      %4432 = vst.msk [vmem:[#allocation2 + $0x1e0] sm:$0xff] %vm305, 0.0
      %4433 = vst.msk [vmem:[#allocation2 + $0x1e8] sm:$0xff] %vm305, 0.0
      %4434 = vst.msk [vmem:[#allocation2 + $0x1f0] sm:$0xff] %vm305, 0.0
      %4435 = vst.msk [vmem:[#allocation2 + $0x1f8] sm:$0xff] %vm305, 0.0
      %4436 = vst.msk [vmem:[#allocation2 + $0x200] sm:$0xff] %vm305, 0.0
      %4437 = vst.msk [vmem:[#allocation2 + $0x208] sm:$0xff] %vm305, 0.0
      %4438 = vst.msk [vmem:[#allocation2 + $0x210] sm:$0xff] %vm305, 0.0
      %4439 = vst.msk [vmem:[#allocation2 + $0x218] sm:$0xff] %vm305, 0.0
      %4440 = vst.msk [vmem:[#allocation2 + $0x220] sm:$0xff] %vm305, 0.0
      %4441 = vst.msk [vmem:[#allocation2 + $0x228] sm:$0xff] %vm305, 0.0
      %4442 = vst.msk [vmem:[#allocation2 + $0x230] sm:$0xff] %vm305, 0.0
      %4443 = vst.msk [vmem:[#allocation2 + $0x238] sm:$0xff] %vm305, 0.0
      %s4444 = scalar_lea.vmem [#allocation2], 32
      %4445 = vst.msk [vmem:[%s4444 + $0x8] sm:$0xff] %vm305, %v4340
      %4446 = vst.msk [vmem:[%s4444 + $0x10] sm:$0xff] %vm305, %v4341
      %4447 = vst.msk [vmem:[%s4444 + $0x28] sm:$0xff] %vm305, %v4342
      %4448 = vst.msk [vmem:[%s4444 + $0x30] sm:$0xff] %vm305, %v4343
      %4449 = vst.msk [vmem:[%s4444 + $0x48] sm:$0xff] %vm305, %v4344
      %4450 = vst.msk [vmem:[%s4444 + $0x50] sm:$0xff] %vm305, %v4345
      %4451 = vst.msk [vmem:[%s4444 + $0x68] sm:$0xff] %vm305, %v4346
      %4452 = vst.msk [vmem:[%s4444 + $0x70] sm:$0xff] %vm305, %v4347
      %4453 = vst.msk [vmem:[%s4444 + $0x88] sm:$0xff] %vm305, %v4348
      %4454 = vst.msk [vmem:[%s4444 + $0x90] sm:$0xff] %vm305, %v4349
      %4455 = vst.msk [vmem:[%s4444 + $0xa8] sm:$0xff] %vm305, %v4350
      %4456 = vst.msk [vmem:[%s4444 + $0xb0] sm:$0xff] %vm305, %v4351
      %4457 = vst.msk [vmem:[%s4444 + $0xc8] sm:$0xff] %vm305, %v4352
      %4458 = vst.msk [vmem:[%s4444 + $0xd0] sm:$0xff] %vm305, %v4353
      %4459 = vst.msk [vmem:[%s4444 + $0xe8] sm:$0xff] %vm305, %v4354
      %4460 = vst.msk [vmem:[%s4444 + $0xf0] sm:$0xff] %vm305, %v4355
      %4461 = vst.msk [vmem:[%s4444 + $0x108] sm:$0xff] %vm305, %v4356
      %4462 = vst.msk [vmem:[%s4444 + $0x110] sm:$0xff] %vm305, %v4357
      %4463 = vst.msk [vmem:[%s4444 + $0x128] sm:$0xff] %vm305, %v4358
      %4464 = vst.msk [vmem:[%s4444 + $0x130] sm:$0xff] %vm305, %v4359
      %4465 = vst.msk [vmem:[%s4444 + $0x148] sm:$0xff] %vm305, %v4360
      %4466 = vst.msk [vmem:[%s4444 + $0x150] sm:$0xff] %vm305, %v4361
      %4467 = vst.msk [vmem:[%s4444 + $0x168] sm:$0xff] %vm305, %v4362
      %4468 = vst.msk [vmem:[%s4444 + $0x170] sm:$0xff] %vm305, %v4363
      %4469 = vst.msk [vmem:[%s4444 + $0x188] sm:$0xff] %vm305, %v4364
      %4470 = vst.msk [vmem:[%s4444 + $0x190] sm:$0xff] %vm305, %v4365
      %4471 = vst.msk [vmem:[%s4444 + $0x1a8] sm:$0xff] %vm305, %v4366
      %4472 = vst.msk [vmem:[%s4444 + $0x1b0] sm:$0xff] %vm305, %v4367
      %4473 = vst.msk [vmem:[%s4444 + $0x1c8] sm:$0xff] %vm305, %v4368
      %4474 = vst.msk [vmem:[%s4444 + $0x1d0] sm:$0xff] %vm305, %v4369
      %4475 = vst.msk [vmem:[%s4444 + $0x1e8] sm:$0xff] %vm305, %v4370
      %4476 = vst.msk [vmem:[%s4444 + $0x1f0] sm:$0xff] %vm305, %v4371
      %v4477 = vld [vmem:[%s266] sm:$0xff]
      %v4478 = vld [vmem:[%s266 + $0x8] sm:$0xff]
      %v4479 = vld [vmem:[%s266 + $0x10] sm:$0xff]
      %v4480 = vld [vmem:[%s266 + $0x18] sm:$0xff]
      %v4481 = vld [vmem:[%s266 + $0x20] sm:$0xff]
      %v4482 = vld [vmem:[%s266 + $0x28] sm:$0xff]
      %v4483 = vld [vmem:[%s266 + $0x30] sm:$0xff]
      %v4484 = vld [vmem:[%s266 + $0x38] sm:$0xff]
      %v4485 = vld [vmem:[%s266 + $0x40] sm:$0xff]
      %v4486 = vld [vmem:[%s266 + $0x48] sm:$0xff]
      %v4487 = vld [vmem:[%s266 + $0x50] sm:$0xff]
      %v4488 = vld [vmem:[%s266 + $0x58] sm:$0xff]
      %v4489 = vld [vmem:[%s266 + $0x60] sm:$0xff]
      %v4490 = vld [vmem:[%s266 + $0x68] sm:$0xff]
      %v4491 = vld [vmem:[%s266 + $0x70] sm:$0xff]
      %v4492 = vld [vmem:[%s266 + $0x78] sm:$0xff]
      %v4493 = vld [vmem:[%s266 + $0x80] sm:$0xff]
      %v4494 = vld [vmem:[%s266 + $0x88] sm:$0xff]
      %v4495 = vld [vmem:[%s266 + $0x90] sm:$0xff]
      %v4496 = vld [vmem:[%s266 + $0x98] sm:$0xff]
      %v4497 = vld [vmem:[%s266 + $0xa0] sm:$0xff]
      %v4498 = vld [vmem:[%s266 + $0xa8] sm:$0xff]
      %v4499 = vld [vmem:[%s266 + $0xb0] sm:$0xff]
      %v4500 = vld [vmem:[%s266 + $0xb8] sm:$0xff]
      %v4501 = vld [vmem:[%s266 + $0xc0] sm:$0xff]
      %v4502 = vld [vmem:[%s266 + $0xc8] sm:$0xff]
      %v4503 = vld [vmem:[%s266 + $0xd0] sm:$0xff]
      %v4504 = vld [vmem:[%s266 + $0xd8] sm:$0xff]
      %v4505 = vld [vmem:[%s266 + $0xe0] sm:$0xff]
      %v4506 = vld [vmem:[%s266 + $0xe8] sm:$0xff]
      %v4507 = vld [vmem:[%s266 + $0xf0] sm:$0xff]
      %v4508 = vld [vmem:[%s266 + $0xf8] sm:$0xff]
      %v4509 = vld [vmem:[%s5] sm:$0x1]
      %v4511 = vlaneseq
      %v4512 = vshrl.u32 %v4511, 7
      %v4513 = vsub.s32 0, %v4512
      %v4514 = vrot.slane %v4509, %v4513
      %v4516 = vadd.f32 %v4477, %v4514
      %v4517 = vadd.f32 %v4478, %v4514
      %v4518 = vadd.f32 %v4479, %v4514
      %v4519 = vadd.f32 %v4480, %v4514
      %v4520 = vadd.f32 %v4481, %v4514
      %v4521 = vadd.f32 %v4482, %v4514
      %v4522 = vadd.f32 %v4483, %v4514
      %v4523 = vadd.f32 %v4484, %v4514
      %v4524 = vadd.f32 %v4485, %v4514
      %v4525 = vadd.f32 %v4486, %v4514
      %v4526 = vadd.f32 %v4487, %v4514
      %v4527 = vadd.f32 %v4488, %v4514
      %v4528 = vadd.f32 %v4489, %v4514
      %v4529 = vadd.f32 %v4490, %v4514
      %v4530 = vadd.f32 %v4491, %v4514
      %v4531 = vadd.f32 %v4492, %v4514
      %v4532 = vadd.f32 %v4493, %v4514
      %v4533 = vadd.f32 %v4494, %v4514
      %v4534 = vadd.f32 %v4495, %v4514
      %v4535 = vadd.f32 %v4496, %v4514
      %v4536 = vadd.f32 %v4497, %v4514
      %v4537 = vadd.f32 %v4498, %v4514
      %v4538 = vadd.f32 %v4499, %v4514
      %v4539 = vadd.f32 %v4500, %v4514
      %v4540 = vadd.f32 %v4501, %v4514
      %v4541 = vadd.f32 %v4502, %v4514
      %v4542 = vadd.f32 %v4503, %v4514
      %v4543 = vadd.f32 %v4504, %v4514
      %v4544 = vadd.f32 %v4505, %v4514
      %v4545 = vadd.f32 %v4506, %v4514
      %v4546 = vadd.f32 %v4507, %v4514
      %v4547 = vadd.f32 %v4508, %v4514
      %4548 = vst.msk [vmem:[#allocation4] sm:$0xff] %vm305, %v4516
      %4549 = vst.msk [vmem:[#allocation4 + $0x8] sm:$0xff] %vm305, %v4517
      %4550 = vst.msk [vmem:[#allocation4 + $0x10] sm:$0xff] %vm305, %v4518
      %4551 = vst.msk [vmem:[#allocation4 + $0x18] sm:$0xff] %vm305, %v4519
      %4552 = vst.msk [vmem:[#allocation4 + $0x20] sm:$0xff] %vm305, %v4520
      %4553 = vst.msk [vmem:[#allocation4 + $0x28] sm:$0xff] %vm305, %v4521
      %4554 = vst.msk [vmem:[#allocation4 + $0x30] sm:$0xff] %vm305, %v4522
      %4555 = vst.msk [vmem:[#allocation4 + $0x38] sm:$0xff] %vm305, %v4523
      %4556 = vst.msk [vmem:[#allocation4 + $0x40] sm:$0xff] %vm305, %v4524
      %4557 = vst.msk [vmem:[#allocation4 + $0x48] sm:$0xff] %vm305, %v4525
      %4558 = vst.msk [vmem:[#allocation4 + $0x50] sm:$0xff] %vm305, %v4526
      %4559 = vst.msk [vmem:[#allocation4 + $0x58] sm:$0xff] %vm305, %v4527
      %4560 = vst.msk [vmem:[#allocation4 + $0x60] sm:$0xff] %vm305, %v4528
      %4561 = vst.msk [vmem:[#allocation4 + $0x68] sm:$0xff] %vm305, %v4529
      %4562 = vst.msk [vmem:[#allocation4 + $0x70] sm:$0xff] %vm305, %v4530
      %4563 = vst.msk [vmem:[#allocation4 + $0x78] sm:$0xff] %vm305, %v4531
      %4564 = vst.msk [vmem:[#allocation4 + $0x80] sm:$0xff] %vm305, %v4532
      %4565 = vst.msk [vmem:[#allocation4 + $0x88] sm:$0xff] %vm305, %v4533
      %4566 = vst.msk [vmem:[#allocation4 + $0x90] sm:$0xff] %vm305, %v4534
      %4567 = vst.msk [vmem:[#allocation4 + $0x98] sm:$0xff] %vm305, %v4535
      %4568 = vst.msk [vmem:[#allocation4 + $0xa0] sm:$0xff] %vm305, %v4536
      %4569 = vst.msk [vmem:[#allocation4 + $0xa8] sm:$0xff] %vm305, %v4537
      %4570 = vst.msk [vmem:[#allocation4 + $0xb0] sm:$0xff] %vm305, %v4538
      %4571 = vst.msk [vmem:[#allocation4 + $0xb8] sm:$0xff] %vm305, %v4539
      %4572 = vst.msk [vmem:[#allocation4 + $0xc0] sm:$0xff] %vm305, %v4540
      %4573 = vst.msk [vmem:[#allocation4 + $0xc8] sm:$0xff] %vm305, %v4541
      %4574 = vst.msk [vmem:[#allocation4 + $0xd0] sm:$0xff] %vm305, %v4542
      %4575 = vst.msk [vmem:[#allocation4 + $0xd8] sm:$0xff] %vm305, %v4543
      %4576 = vst.msk [vmem:[#allocation4 + $0xe0] sm:$0xff] %vm305, %v4544
      %4577 = vst.msk [vmem:[#allocation4 + $0xe8] sm:$0xff] %vm305, %v4545
      %4578 = vst.msk [vmem:[#allocation4 + $0xf0] sm:$0xff] %vm305, %v4546
      %4579 = vst.msk [vmem:[#allocation4 + $0xf8] sm:$0xff] %vm305, %v4547
      %v4580 = vld [vmem:[#allocation2 + $0x7] sm:$0xff]
      %v4581 = vld [vmem:[#allocation2 + $0xf] sm:$0xff]
      %v4582 = vld [vmem:[#allocation2 + $0x27] sm:$0xff]
      %v4583 = vld [vmem:[#allocation2 + $0x2f] sm:$0xff]
      %v4584 = vld [vmem:[#allocation2 + $0x47] sm:$0xff]
      %v4585 = vld [vmem:[#allocation2 + $0x4f] sm:$0xff]
      %v4586 = vld [vmem:[#allocation2 + $0x67] sm:$0xff]
      %v4587 = vld [vmem:[#allocation2 + $0x6f] sm:$0xff]
      %v4588 = vld [vmem:[#allocation2 + $0x87] sm:$0xff]
      %v4589 = vld [vmem:[#allocation2 + $0x8f] sm:$0xff]
      %v4590 = vld [vmem:[#allocation2 + $0xa7] sm:$0xff]
      %v4591 = vld [vmem:[#allocation2 + $0xaf] sm:$0xff]
      %v4592 = vld [vmem:[#allocation2 + $0xc7] sm:$0xff]
      %v4593 = vld [vmem:[#allocation2 + $0xcf] sm:$0xff]
      %v4594 = vld [vmem:[#allocation2 + $0xe7] sm:$0xff]
      %v4595 = vld [vmem:[#allocation2 + $0xef] sm:$0xff]
      %v4596 = vld [vmem:[#allocation2 + $0x107] sm:$0xff]
      %v4597 = vld [vmem:[#allocation2 + $0x10f] sm:$0xff]
      %v4598 = vld [vmem:[#allocation2 + $0x127] sm:$0xff]
      %v4599 = vld [vmem:[#allocation2 + $0x12f] sm:$0xff]
      %v4600 = vld [vmem:[#allocation2 + $0x147] sm:$0xff]
      %v4601 = vld [vmem:[#allocation2 + $0x14f] sm:$0xff]
      %v4602 = vld [vmem:[#allocation2 + $0x167] sm:$0xff]
      %v4603 = vld [vmem:[#allocation2 + $0x16f] sm:$0xff]
      %v4604 = vld [vmem:[#allocation2 + $0x187] sm:$0xff]
      %v4605 = vld [vmem:[#allocation2 + $0x18f] sm:$0xff]
      %v4606 = vld [vmem:[#allocation2 + $0x1a7] sm:$0xff]
      %v4607 = vld [vmem:[#allocation2 + $0x1af] sm:$0xff]
      %v4608 = vld [vmem:[#allocation2 + $0x1c7] sm:$0xff]
      %v4609 = vld [vmem:[#allocation2 + $0x1cf] sm:$0xff]
      %v4610 = vld [vmem:[#allocation2 + $0x1e7] sm:$0xff]
      %v4611 = vld [vmem:[#allocation2 + $0x1ef] sm:$0xff]
      %v4612 = vld [vmem:[#allocation4] sm:$0xff]
      %v4613 = vld [vmem:[#allocation4 + $0x8] sm:$0xff]
      %v4614 = vld [vmem:[#allocation4 + $0x10] sm:$0xff]
      %v4615 = vld [vmem:[#allocation4 + $0x18] sm:$0xff]
      %v4616 = vld [vmem:[#allocation4 + $0x20] sm:$0xff]
      %v4617 = vld [vmem:[#allocation4 + $0x28] sm:$0xff]
      %v4618 = vld [vmem:[#allocation4 + $0x30] sm:$0xff]
      %v4619 = vld [vmem:[#allocation4 + $0x38] sm:$0xff]
      %v4620 = vld [vmem:[#allocation4 + $0x40] sm:$0xff]
      %v4621 = vld [vmem:[#allocation4 + $0x48] sm:$0xff]
      %v4622 = vld [vmem:[#allocation4 + $0x50] sm:$0xff]
      %v4623 = vld [vmem:[#allocation4 + $0x58] sm:$0xff]
      %v4624 = vld [vmem:[#allocation4 + $0x60] sm:$0xff]
      %v4625 = vld [vmem:[#allocation4 + $0x68] sm:$0xff]
      %v4626 = vld [vmem:[#allocation4 + $0x70] sm:$0xff]
      %v4627 = vld [vmem:[#allocation4 + $0x78] sm:$0xff]
      %v4628 = vld [vmem:[#allocation4 + $0x80] sm:$0xff]
      %v4629 = vld [vmem:[#allocation4 + $0x88] sm:$0xff]
      %v4630 = vld [vmem:[#allocation4 + $0x90] sm:$0xff]
      %v4631 = vld [vmem:[#allocation4 + $0x98] sm:$0xff]
      %v4632 = vld [vmem:[#allocation4 + $0xa0] sm:$0xff]
      %v4633 = vld [vmem:[#allocation4 + $0xa8] sm:$0xff]
      %v4634 = vld [vmem:[#allocation4 + $0xb0] sm:$0xff]
      %v4635 = vld [vmem:[#allocation4 + $0xb8] sm:$0xff]
      %v4636 = vld [vmem:[#allocation4 + $0xc0] sm:$0xff]
      %v4637 = vld [vmem:[#allocation4 + $0xc8] sm:$0xff]
      %v4638 = vld [vmem:[#allocation4 + $0xd0] sm:$0xff]
      %v4639 = vld [vmem:[#allocation4 + $0xd8] sm:$0xff]
      %v4640 = vld [vmem:[#allocation4 + $0xe0] sm:$0xff]
      %v4641 = vld [vmem:[#allocation4 + $0xe8] sm:$0xff]
      %v4642 = vld [vmem:[#allocation4 + $0xf0] sm:$0xff]
      %v4643 = vld [vmem:[#allocation4 + $0xf8] sm:$0xff]
      %v4644 = vld [vmem:[%s4] sm:$0xff]
      %v4646 = vsel %vm305, %v4580, 0
      %v4649 = vsel %vm305, %v4581, 0
      %v4652 = vsel %vm305, %v4582, 0
      %v4655 = vsel %vm305, %v4583, 0
      %v4658 = vsel %vm305, %v4584, 0
      %v4661 = vsel %vm305, %v4585, 0
      %v4664 = vsel %vm305, %v4586, 0
      %v4667 = vsel %vm305, %v4587, 0
      %v4670 = vsel %vm305, %v4588, 0
      %v4673 = vsel %vm305, %v4589, 0
      %v4676 = vsel %vm305, %v4590, 0
      %v4679 = vsel %vm305, %v4591, 0
      %v4682 = vsel %vm305, %v4592, 0
      %v4685 = vsel %vm305, %v4593, 0
      %v4688 = vsel %vm305, %v4594, 0
      %v4691 = vsel %vm305, %v4595, 0
      %v4694 = vsel %vm305, %v4596, 0
      %v4697 = vsel %vm305, %v4597, 0
      %v4700 = vsel %vm305, %v4598, 0
      %v4703 = vsel %vm305, %v4599, 0
      %v4706 = vsel %vm305, %v4600, 0
      %v4709 = vsel %vm305, %v4601, 0
      %v4712 = vsel %vm305, %v4602, 0
      %v4715 = vsel %vm305, %v4603, 0
      %v4718 = vsel %vm305, %v4604, 0
      %v4721 = vsel %vm305, %v4605, 0
      %v4724 = vsel %vm305, %v4606, 0
      %v4727 = vsel %vm305, %v4607, 0
      %v4730 = vsel %vm305, %v4608, 0
      %v4733 = vsel %vm305, %v4609, 0
      %v4736 = vsel %vm305, %v4610, 0
      %v4739 = vsel %vm305, %v4611, 0
      %4741 = vmatprep.subr.mxu0 0.0
      %4742 = vmatpush1.msra.mxu0 %v4644
      %4743 = vmatprep.subr.mxu0 0.0
      %4744 = vmatpush1.msra.mxu0 0.0
      %4745 = vmatprep.subr.mxu0 0.0
      %4746 = vmatpush1.msra.mxu0 0.0
      %4747 = vmatprep.subr.mxu0 0.0
      %4748 = vmatpush1.msra.mxu0 0.0
      %4749 = vmatprep.subr.mxu0 0.0
      %4750 = vmatpush1.msra.mxu0 0.0
      %4751 = vmatprep.subr.mxu0 0.0
      %4752 = vmatpush1.msra.mxu0 0.0
      %4753 = vmatprep.subr.mxu0 0.0
      %4754 = vmatpush1.msra.mxu0 0.0
      %4755 = vmatprep.subr.mxu0 0.0
      %4756 = vmatpush1.msra.mxu0 0.0
      %4757 = vmatprep.subr.mxu0 0.0
      %4758 = vmatpush1.msra.mxu0 0.0
      %4759 = vmatprep.subr.mxu0 0.0
      %4760 = vmatpush1.msra.mxu0 0.0
      %4761 = vmatprep.subr.mxu0 0.0
      %4762 = vmatpush1.msra.mxu0 0.0
      %4763 = vmatprep.subr.mxu0 0.0
      %4764 = vmatpush1.msra.mxu0 0.0
      %4765 = vmatprep.subr.mxu0 0.0
      %4766 = vmatpush1.msra.mxu0 0.0
      %4767 = vmatprep.subr.mxu0 0.0
      %4768 = vmatpush1.msra.mxu0 0.0
      %4769 = vmatprep.subr.mxu0 0.0
      %4770 = vmatpush1.msra.mxu0 0.0
      %4771 = vmatprep.subr.mxu0 0.0
      %4772 = vmatpush1.msra.mxu0 0.0
      %4773 = vmatprep.subr.mxu0 0.0
      %4774 = vmatpush1.msra.mxu0 0.0
      %4775 = vmatprep.subr.mxu0 0.0
      %4776 = vmatpush1.msra.mxu0 0.0
      %4777 = vmatprep.subr.mxu0 0.0
      %4778 = vmatpush1.msra.mxu0 0.0
      %4779 = vmatprep.subr.mxu0 0.0
      %4780 = vmatpush1.msra.mxu0 0.0
      %4781 = vmatprep.subr.mxu0 0.0
      %4782 = vmatpush1.msra.mxu0 0.0
      %4783 = vmatprep.subr.mxu0 0.0
      %4784 = vmatpush1.msra.mxu0 0.0
      %4785 = vmatprep.subr.mxu0 0.0
      %4786 = vmatpush1.msra.mxu0 0.0
      %4787 = vmatprep.subr.mxu0 0.0
      %4788 = vmatpush1.msra.mxu0 0.0
      %4789 = vmatprep.subr.mxu0 0.0
      %4790 = vmatpush1.msra.mxu0 0.0
      %4791 = vmatprep.subr.mxu0 0.0
      %4792 = vmatpush1.msra.mxu0 0.0
      %4793 = vmatprep.subr.mxu0 0.0
      %4794 = vmatpush1.msra.mxu0 0.0
      %4795 = vmatprep.subr.mxu0 0.0
      %4796 = vmatpush1.msra.mxu0 0.0
      %4797 = vmatprep.subr.mxu0 0.0
      %4798 = vmatpush1.msra.mxu0 0.0
      %4799 = vmatprep.subr.mxu0 0.0
      %4800 = vmatpush1.msra.mxu0 0.0
      %4801 = vmatprep.subr.mxu0 0.0
      %4802 = vmatpush1.msra.mxu0 0.0
      %4803 = vmatprep.subr.mxu0 0.0
      %4804 = vmatpush1.msra.mxu0 0.0
      %4805 = vmatprep.mubr.f32.mxu0 0.0
      %4806 = vmatmul.mubr.f32.gmra.mrb[0].mxu0 %v4646
      %v4807 = vpop.f32.mrb[0].mxu0
      %v4808 = vadd.f32 0.0, %v4807
      %v4809 = vpop.f32.mrb[0].mxu0
      %4810 = vmatprep.mubr.f32.mxu0 0.0
      %4811 = vmatmul.mubr.f32.gmra.mrb[0].mxu0 %v4649
      %v4812 = vpop.f32.mrb[0].mxu0
      %v4813 = vadd.f32 0.0, %v4812
      %v4814 = vpop.f32.mrb[0].mxu0
      %4815 = vmatprep.mubr.f32.mxu0 0.0
      %4816 = vmatmul.mubr.f32.gmra.mrb[0].mxu0 %v4652
      %v4817 = vpop.f32.mrb[0].mxu0
      %v4818 = vadd.f32 0.0, %v4817
      %v4819 = vpop.f32.mrb[0].mxu0
      %4820 = vmatprep.mubr.f32.mxu0 0.0
      %4821 = vmatmul.mubr.f32.gmra.mrb[0].mxu0 %v4655
      %v4822 = vpop.f32.mrb[0].mxu0
      %v4823 = vadd.f32 0.0, %v4822
      %v4824 = vpop.f32.mrb[0].mxu0
      %4825 = vmatprep.mubr.f32.mxu0 0.0
      %4826 = vmatmul.mubr.f32.gmra.mrb[0].mxu0 %v4658
      %v4827 = vpop.f32.mrb[0].mxu0
      %v4828 = vadd.f32 0.0, %v4827
      %v4829 = vpop.f32.mrb[0].mxu0
      %4830 = vmatprep.mubr.f32.mxu0 0.0
      %4831 = vmatmul.mubr.f32.gmra.mrb[0].mxu0 %v4661
      %v4832 = vpop.f32.mrb[0].mxu0
      %v4833 = vadd.f32 0.0, %v4832
      %v4834 = vpop.f32.mrb[0].mxu0
      %4835 = vmatprep.mubr.f32.mxu0 0.0
      %4836 = vmatmul.mubr.f32.gmra.mrb[0].mxu0 %v4664
      %v4837 = vpop.f32.mrb[0].mxu0
      %v4838 = vadd.f32 0.0, %v4837
      %v4839 = vpop.f32.mrb[0].mxu0
      %4840 = vmatprep.mubr.f32.mxu0 0.0
      %4841 = vmatmul.mubr.f32.gmra.mrb[0].mxu0 %v4667
      %v4842 = vpop.f32.mrb[0].mxu0
      %v4843 = vadd.f32 0.0, %v4842
      %v4844 = vpop.f32.mrb[0].mxu0
      %4845 = vmatprep.mubr.f32.mxu0 0.0
      %4846 = vmatmul.mubr.f32.gmra.mrb[0].mxu0 %v4670
      %v4847 = vpop.f32.mrb[0].mxu0
      %v4848 = vadd.f32 0.0, %v4847
      %v4849 = vpop.f32.mrb[0].mxu0
      %4850 = vmatprep.mubr.f32.mxu0 0.0
      %4851 = vmatmul.mubr.f32.gmra.mrb[0].mxu0 %v4673
      %v4852 = vpop.f32.mrb[0].mxu0
      %v4853 = vadd.f32 0.0, %v4852
      %v4854 = vpop.f32.mrb[0].mxu0
      %4855 = vmatprep.mubr.f32.mxu0 0.0
      %4856 = vmatmul.mubr.f32.gmra.mrb[0].mxu0 %v4676
      %v4857 = vpop.f32.mrb[0].mxu0
      %v4858 = vadd.f32 0.0, %v4857
      %v4859 = vpop.f32.mrb[0].mxu0
      %4860 = vmatprep.mubr.f32.mxu0 0.0
      %4861 = vmatmul.mubr.f32.gmra.mrb[0].mxu0 %v4679
      %v4862 = vpop.f32.mrb[0].mxu0
      %v4863 = vadd.f32 0.0, %v4862
      %v4864 = vpop.f32.mrb[0].mxu0
      %4865 = vmatprep.mubr.f32.mxu0 0.0
      %4866 = vmatmul.mubr.f32.gmra.mrb[0].mxu0 %v4682
      %v4867 = vpop.f32.mrb[0].mxu0
      %v4868 = vadd.f32 0.0, %v4867
      %v4869 = vpop.f32.mrb[0].mxu0
      %4870 = vmatprep.mubr.f32.mxu0 0.0
      %4871 = vmatmul.mubr.f32.gmra.mrb[0].mxu0 %v4685
      %v4872 = vpop.f32.mrb[0].mxu0
      %v4873 = vadd.f32 0.0, %v4872
      %v4874 = vpop.f32.mrb[0].mxu0
      %4875 = vmatprep.mubr.f32.mxu0 0.0
      %4876 = vmatmul.mubr.f32.gmra.mrb[0].mxu0 %v4688
      %v4877 = vpop.f32.mrb[0].mxu0
      %v4878 = vadd.f32 0.0, %v4877
      %v4879 = vpop.f32.mrb[0].mxu0
      %4880 = vmatprep.mubr.f32.mxu0 0.0
      %4881 = vmatmul.mubr.f32.gmra.mrb[0].mxu0 %v4691
      %v4882 = vpop.f32.mrb[0].mxu0
      %v4883 = vadd.f32 0.0, %v4882
      %v4884 = vpop.f32.mrb[0].mxu0
      %4885 = vmatprep.mubr.f32.mxu0 0.0
      %4886 = vmatmul.mubr.f32.gmra.mrb[0].mxu0 %v4694
      %v4887 = vpop.f32.mrb[0].mxu0
      %v4888 = vadd.f32 0.0, %v4887
      %v4889 = vpop.f32.mrb[0].mxu0
      %4890 = vmatprep.mubr.f32.mxu0 0.0
      %4891 = vmatmul.mubr.f32.gmra.mrb[0].mxu0 %v4697
      %v4892 = vpop.f32.mrb[0].mxu0
      %v4893 = vadd.f32 0.0, %v4892
      %v4894 = vpop.f32.mrb[0].mxu0
      %4895 = vmatprep.mubr.f32.mxu0 0.0
      %4896 = vmatmul.mubr.f32.gmra.mrb[0].mxu0 %v4700
      %v4897 = vpop.f32.mrb[0].mxu0
      %v4898 = vadd.f32 0.0, %v4897
      %v4899 = vpop.f32.mrb[0].mxu0
      %4900 = vmatprep.mubr.f32.mxu0 0.0
      %4901 = vmatmul.mubr.f32.gmra.mrb[0].mxu0 %v4703
      %v4902 = vpop.f32.mrb[0].mxu0
      %v4903 = vadd.f32 0.0, %v4902
      %v4904 = vpop.f32.mrb[0].mxu0
      %4905 = vmatprep.mubr.f32.mxu0 0.0
      %4906 = vmatmul.mubr.f32.gmra.mrb[0].mxu0 %v4706
      %v4907 = vpop.f32.mrb[0].mxu0
      %v4908 = vadd.f32 0.0, %v4907
      %v4909 = vpop.f32.mrb[0].mxu0
      %4910 = vmatprep.mubr.f32.mxu0 0.0
      %4911 = vmatmul.mubr.f32.gmra.mrb[0].mxu0 %v4709
      %v4912 = vpop.f32.mrb[0].mxu0
      %v4913 = vadd.f32 0.0, %v4912
      %v4914 = vpop.f32.mrb[0].mxu0
      %4915 = vmatprep.mubr.f32.mxu0 0.0
      %4916 = vmatmul.mubr.f32.gmra.mrb[0].mxu0 %v4712
      %v4917 = vpop.f32.mrb[0].mxu0
      %v4918 = vadd.f32 0.0, %v4917
      %v4919 = vpop.f32.mrb[0].mxu0
      %4920 = vmatprep.mubr.f32.mxu0 0.0
      %4921 = vmatmul.mubr.f32.gmra.mrb[0].mxu0 %v4715
      %v4922 = vpop.f32.mrb[0].mxu0
      %v4923 = vadd.f32 0.0, %v4922
      %v4924 = vpop.f32.mrb[0].mxu0
      %4925 = vmatprep.mubr.f32.mxu0 0.0
      %4926 = vmatmul.mubr.f32.gmra.mrb[0].mxu0 %v4718
      %v4927 = vpop.f32.mrb[0].mxu0
      %v4928 = vadd.f32 0.0, %v4927
      %v4929 = vpop.f32.mrb[0].mxu0
      %4930 = vmatprep.mubr.f32.mxu0 0.0
      %4931 = vmatmul.mubr.f32.gmra.mrb[0].mxu0 %v4721
      %v4932 = vpop.f32.mrb[0].mxu0
      %v4933 = vadd.f32 0.0, %v4932
      %v4934 = vpop.f32.mrb[0].mxu0
      %4935 = vmatprep.mubr.f32.mxu0 0.0
      %4936 = vmatmul.mubr.f32.gmra.mrb[0].mxu0 %v4724
      %v4937 = vpop.f32.mrb[0].mxu0
      %v4938 = vadd.f32 0.0, %v4937
      %v4939 = vpop.f32.mrb[0].mxu0
      %4940 = vmatprep.mubr.f32.mxu0 0.0
      %4941 = vmatmul.mubr.f32.gmra.mrb[0].mxu0 %v4727
      %v4942 = vpop.f32.mrb[0].mxu0
      %v4943 = vadd.f32 0.0, %v4942
      %v4944 = vpop.f32.mrb[0].mxu0
      %4945 = vmatprep.mubr.f32.mxu0 0.0
      %4946 = vmatmul.mubr.f32.gmra.mrb[0].mxu0 %v4730
      %v4947 = vpop.f32.mrb[0].mxu0
      %v4948 = vadd.f32 0.0, %v4947
      %v4949 = vpop.f32.mrb[0].mxu0
      %4950 = vmatprep.mubr.f32.mxu0 0.0
      %4951 = vmatmul.mubr.f32.gmra.mrb[0].mxu0 %v4733
      %v4952 = vpop.f32.mrb[0].mxu0
      %v4953 = vadd.f32 0.0, %v4952
      %v4954 = vpop.f32.mrb[0].mxu0
      %4955 = vmatprep.mubr.f32.mxu0 0.0
      %4956 = vmatmul.mubr.f32.gmra.mrb[0].mxu0 %v4736
      %v4957 = vpop.f32.mrb[0].mxu0
      %v4958 = vadd.f32 0.0, %v4957
      %v4959 = vpop.f32.mrb[0].mxu0
      %4960 = vmatprep.mubr.f32.mxu0 0.0
      %4961 = vmatmul.mubr.f32.gmra.mrb[0].mxu0 %v4739
      %v4962 = vpop.f32.mrb[0].mxu0
      %v4963 = vadd.f32 0.0, %v4962
      %v4964 = vpop.f32.mrb[0].mxu0
      %4965 = vdwg.mxu0
      %v4966 = vadd.f32 %v4612, %v4808
      %v4967 = vadd.f32 %v4613, %v4813
      %v4968 = vadd.f32 %v4614, %v4818
      %v4969 = vadd.f32 %v4615, %v4823
      %v4970 = vadd.f32 %v4616, %v4828
      %v4971 = vadd.f32 %v4617, %v4833
      %v4972 = vadd.f32 %v4618, %v4838
      %v4973 = vadd.f32 %v4619, %v4843
      %v4974 = vadd.f32 %v4620, %v4848
      %v4975 = vadd.f32 %v4621, %v4853
      %v4976 = vadd.f32 %v4622, %v4858
      %v4977 = vadd.f32 %v4623, %v4863
      %v4978 = vadd.f32 %v4624, %v4868
      %v4979 = vadd.f32 %v4625, %v4873
      %v4980 = vadd.f32 %v4626, %v4878
      %v4981 = vadd.f32 %v4627, %v4883
      %v4982 = vadd.f32 %v4628, %v4888
      %v4983 = vadd.f32 %v4629, %v4893
      %v4984 = vadd.f32 %v4630, %v4898
      %v4985 = vadd.f32 %v4631, %v4903
      %v4986 = vadd.f32 %v4632, %v4908
      %v4987 = vadd.f32 %v4633, %v4913
      %v4988 = vadd.f32 %v4634, %v4918
      %v4989 = vadd.f32 %v4635, %v4923
      %v4990 = vadd.f32 %v4636, %v4928
      %v4991 = vadd.f32 %v4637, %v4933
      %v4992 = vadd.f32 %v4638, %v4938
      %v4993 = vadd.f32 %v4639, %v4943
      %v4994 = vadd.f32 %v4640, %v4948
      %v4995 = vadd.f32 %v4641, %v4953
      %v4996 = vadd.f32 %v4642, %v4958
      %v4997 = vadd.f32 %v4643, %v4963
      %4998 = vst.msk [vmem:[#allocation4] sm:$0xff] %vm305, %v4966
      %4999 = vst.msk [vmem:[#allocation4 + $0x8] sm:$0xff] %vm305, %v4967
      %5000 = vst.msk [vmem:[#allocation4 + $0x10] sm:$0xff] %vm305, %v4968
      %5001 = vst.msk [vmem:[#allocation4 + $0x18] sm:$0xff] %vm305, %v4969
      %5002 = vst.msk [vmem:[#allocation4 + $0x20] sm:$0xff] %vm305, %v4970
      %5003 = vst.msk [vmem:[#allocation4 + $0x28] sm:$0xff] %vm305, %v4971
      %5004 = vst.msk [vmem:[#allocation4 + $0x30] sm:$0xff] %vm305, %v4972
      %5005 = vst.msk [vmem:[#allocation4 + $0x38] sm:$0xff] %vm305, %v4973
      %5006 = vst.msk [vmem:[#allocation4 + $0x40] sm:$0xff] %vm305, %v4974
      %5007 = vst.msk [vmem:[#allocation4 + $0x48] sm:$0xff] %vm305, %v4975
      %5008 = vst.msk [vmem:[#allocation4 + $0x50] sm:$0xff] %vm305, %v4976
      %5009 = vst.msk [vmem:[#allocation4 + $0x58] sm:$0xff] %vm305, %v4977
      %5010 = vst.msk [vmem:[#allocation4 + $0x60] sm:$0xff] %vm305, %v4978
      %5011 = vst.msk [vmem:[#allocation4 + $0x68] sm:$0xff] %vm305, %v4979
      %5012 = vst.msk [vmem:[#allocation4 + $0x70] sm:$0xff] %vm305, %v4980
      %5013 = vst.msk [vmem:[#allocation4 + $0x78] sm:$0xff] %vm305, %v4981
      %5014 = vst.msk [vmem:[#allocation4 + $0x80] sm:$0xff] %vm305, %v4982
      %5015 = vst.msk [vmem:[#allocation4 + $0x88] sm:$0xff] %vm305, %v4983
      %5016 = vst.msk [vmem:[#allocation4 + $0x90] sm:$0xff] %vm305, %v4984
      %5017 = vst.msk [vmem:[#allocation4 + $0x98] sm:$0xff] %vm305, %v4985
      %5018 = vst.msk [vmem:[#allocation4 + $0xa0] sm:$0xff] %vm305, %v4986
      %5019 = vst.msk [vmem:[#allocation4 + $0xa8] sm:$0xff] %vm305, %v4987
      %5020 = vst.msk [vmem:[#allocation4 + $0xb0] sm:$0xff] %vm305, %v4988
      %5021 = vst.msk [vmem:[#allocation4 + $0xb8] sm:$0xff] %vm305, %v4989
      %5022 = vst.msk [vmem:[#allocation4 + $0xc0] sm:$0xff] %vm305, %v4990
      %5023 = vst.msk [vmem:[#allocation4 + $0xc8] sm:$0xff] %vm305, %v4991
      %5024 = vst.msk [vmem:[#allocation4 + $0xd0] sm:$0xff] %vm305, %v4992
      %5025 = vst.msk [vmem:[#allocation4 + $0xd8] sm:$0xff] %vm305, %v4993
      %5026 = vst.msk [vmem:[#allocation4 + $0xe0] sm:$0xff] %vm305, %v4994
      %5027 = vst.msk [vmem:[#allocation4 + $0xe8] sm:$0xff] %vm305, %v4995
      %5028 = vst.msk [vmem:[#allocation4 + $0xf0] sm:$0xff] %vm305, %v4996
      %5029 = vst.msk [vmem:[#allocation4 + $0xf8] sm:$0xff] %vm305, %v4997
      %v5030 = vld [vmem:[#allocation2 + $0x8] sm:$0xff]
      %v5031 = vld [vmem:[#allocation2 + $0x10] sm:$0xff]
      %v5032 = vld [vmem:[#allocation2 + $0x28] sm:$0xff]
      %v5033 = vld [vmem:[#allocation2 + $0x30] sm:$0xff]
      %v5034 = vld [vmem:[#allocation2 + $0x48] sm:$0xff]
      %v5035 = vld [vmem:[#allocation2 + $0x50] sm:$0xff]
      %v5036 = vld [vmem:[#allocation2 + $0x68] sm:$0xff]
      %v5037 = vld [vmem:[#allocation2 + $0x70] sm:$0xff]
      %v5038 = vld [vmem:[#allocation2 + $0x88] sm:$0xff]
      %v5039 = vld [vmem:[#allocation2 + $0x90] sm:$0xff]
      %v5040 = vld [vmem:[#allocation2 + $0xa8] sm:$0xff]
      %v5041 = vld [vmem:[#allocation2 + $0xb0] sm:$0xff]
      %v5042 = vld [vmem:[#allocation2 + $0xc8] sm:$0xff]
      %v5043 = vld [vmem:[#allocation2 + $0xd0] sm:$0xff]
      %v5044 = vld [vmem:[#allocation2 + $0xe8] sm:$0xff]
      %v5045 = vld [vmem:[#allocation2 + $0xf0] sm:$0xff]
      %v5046 = vld [vmem:[#allocation2 + $0x108] sm:$0xff]
      %v5047 = vld [vmem:[#allocation2 + $0x110] sm:$0xff]
      %v5048 = vld [vmem:[#allocation2 + $0x128] sm:$0xff]
      %v5049 = vld [vmem:[#allocation2 + $0x130] sm:$0xff]
      %v5050 = vld [vmem:[#allocation2 + $0x148] sm:$0xff]
      %v5051 = vld [vmem:[#allocation2 + $0x150] sm:$0xff]
      %v5052 = vld [vmem:[#allocation2 + $0x168] sm:$0xff]
      %v5053 = vld [vmem:[#allocation2 + $0x170] sm:$0xff]
      %v5054 = vld [vmem:[#allocation2 + $0x188] sm:$0xff]
      %v5055 = vld [vmem:[#allocation2 + $0x190] sm:$0xff]
      %v5056 = vld [vmem:[#allocation2 + $0x1a8] sm:$0xff]
      %v5057 = vld [vmem:[#allocation2 + $0x1b0] sm:$0xff]
      %v5058 = vld [vmem:[#allocation2 + $0x1c8] sm:$0xff]
      %v5059 = vld [vmem:[#allocation2 + $0x1d0] sm:$0xff]
      %v5060 = vld [vmem:[#allocation2 + $0x1e8] sm:$0xff]
      %v5061 = vld [vmem:[#allocation2 + $0x1f0] sm:$0xff]
      %v5062 = vld [vmem:[#allocation4] sm:$0xff]
      %v5063 = vld [vmem:[#allocation4 + $0x8] sm:$0xff]
      %v5064 = vld [vmem:[#allocation4 + $0x10] sm:$0xff]
      %v5065 = vld [vmem:[#allocation4 + $0x18] sm:$0xff]
      %v5066 = vld [vmem:[#allocation4 + $0x20] sm:$0xff]
      %v5067 = vld [vmem:[#allocation4 + $0x28] sm:$0xff]
      %v5068 = vld [vmem:[#allocation4 + $0x30] sm:$0xff]
      %v5069 = vld [vmem:[#allocation4 + $0x38] sm:$0xff]
      %v5070 = vld [vmem:[#allocation4 + $0x40] sm:$0xff]
      %v5071 = vld [vmem:[#allocation4 + $0x48] sm:$0xff]
      %v5072 = vld [vmem:[#allocation4 + $0x50] sm:$0xff]
      %v5073 = vld [vmem:[#allocation4 + $0x58] sm:$0xff]
      %v5074 = vld [vmem:[#allocation4 + $0x60] sm:$0xff]
      %v5075 = vld [vmem:[#allocation4 + $0x68] sm:$0xff]
      %v5076 = vld [vmem:[#allocation4 + $0x70] sm:$0xff]
      %v5077 = vld [vmem:[#allocation4 + $0x78] sm:$0xff]
      %v5078 = vld [vmem:[#allocation4 + $0x80] sm:$0xff]
      %v5079 = vld [vmem:[#allocation4 + $0x88] sm:$0xff]
      %v5080 = vld [vmem:[#allocation4 + $0x90] sm:$0xff]
      %v5081 = vld [vmem:[#allocation4 + $0x98] sm:$0xff]
      %v5082 = vld [vmem:[#allocation4 + $0xa0] sm:$0xff]
      %v5083 = vld [vmem:[#allocation4 + $0xa8] sm:$0xff]
      %v5084 = vld [vmem:[#allocation4 + $0xb0] sm:$0xff]
      %v5085 = vld [vmem:[#allocation4 + $0xb8] sm:$0xff]
      %v5086 = vld [vmem:[#allocation4 + $0xc0] sm:$0xff]
      %v5087 = vld [vmem:[#allocation4 + $0xc8] sm:$0xff]
      %v5088 = vld [vmem:[#allocation4 + $0xd0] sm:$0xff]
      %v5089 = vld [vmem:[#allocation4 + $0xd8] sm:$0xff]
      %v5090 = vld [vmem:[#allocation4 + $0xe0] sm:$0xff]
      %v5091 = vld [vmem:[#allocation4 + $0xe8] sm:$0xff]
      %v5092 = vld [vmem:[#allocation4 + $0xf0] sm:$0xff]
      %v5093 = vld [vmem:[#allocation4 + $0xf8] sm:$0xff]
      %s5094 = scalar_lea.vmem %s4, 8
      %v5095 = vld [vmem:[%s5094] sm:$0xff]
      %v5097 = vsel %vm305, %v5030, 0
      %v5100 = vsel %vm305, %v5031, 0
      %v5103 = vsel %vm305, %v5032, 0
      %v5106 = vsel %vm305, %v5033, 0
      %v5109 = vsel %vm305, %v5034, 0
      %v5112 = vsel %vm305, %v5035, 0
      %v5115 = vsel %vm305, %v5036, 0
      %v5118 = vsel %vm305, %v5037, 0
      %v5121 = vsel %vm305, %v5038, 0
      %v5124 = vsel %vm305, %v5039, 0
      %v5127 = vsel %vm305, %v5040, 0
      %v5130 = vsel %vm305, %v5041, 0
      %v5133 = vsel %vm305, %v5042, 0
      %v5136 = vsel %vm305, %v5043, 0
      %v5139 = vsel %vm305, %v5044, 0
      %v5142 = vsel %vm305, %v5045, 0
      %v5145 = vsel %vm305, %v5046, 0
      %v5148 = vsel %vm305, %v5047, 0
      %v5151 = vsel %vm305, %v5048, 0
      %v5154 = vsel %vm305, %v5049, 0
      %v5157 = vsel %vm305, %v5050, 0
      %v5160 = vsel %vm305, %v5051, 0
      %v5163 = vsel %vm305, %v5052, 0
      %v5166 = vsel %vm305, %v5053, 0
      %v5169 = vsel %vm305, %v5054, 0
      %v5172 = vsel %vm305, %v5055, 0
      %v5175 = vsel %vm305, %v5056, 0
      %v5178 = vsel %vm305, %v5057, 0
      %v5181 = vsel %vm305, %v5058, 0
      %v5184 = vsel %vm305, %v5059, 0
      %v5187 = vsel %vm305, %v5060, 0
      %v5190 = vsel %vm305, %v5061, 0
      %5192 = vmatprep.subr.mxu0 0.0
      %5193 = vmatpush1.msra.mxu0 %v5095
      %5194 = vmatprep.subr.mxu0 0.0
      %5195 = vmatpush1.msra.mxu0 0.0
      %5196 = vmatprep.subr.mxu0 0.0
      %5197 = vmatpush1.msra.mxu0 0.0
      %5198 = vmatprep.subr.mxu0 0.0
      %5199 = vmatpush1.msra.mxu0 0.0
      %5200 = vmatprep.subr.mxu0 0.0
      %5201 = vmatpush1.msra.mxu0 0.0
      %5202 = vmatprep.subr.mxu0 0.0
      %5203 = vmatpush1.msra.mxu0 0.0
      %5204 = vmatprep.subr.mxu0 0.0
      %5205 = vmatpush1.msra.mxu0 0.0
      %5206 = vmatprep.subr.mxu0 0.0
      %5207 = vmatpush1.msra.mxu0 0.0
      %5208 = vmatprep.subr.mxu0 0.0
      %5209 = vmatpush1.msra.mxu0 0.0
      %5210 = vmatprep.subr.mxu0 0.0
      %5211 = vmatpush1.msra.mxu0 0.0
      %5212 = vmatprep.subr.mxu0 0.0
      %5213 = vmatpush1.msra.mxu0 0.0
      %5214 = vmatprep.subr.mxu0 0.0
      %5215 = vmatpush1.msra.mxu0 0.0
      %5216 = vmatprep.subr.mxu0 0.0
      %5217 = vmatpush1.msra.mxu0 0.0
      %5218 = vmatprep.subr.mxu0 0.0
      %5219 = vmatpush1.msra.mxu0 0.0
      %5220 = vmatprep.subr.mxu0 0.0
      %5221 = vmatpush1.msra.mxu0 0.0
      %5222 = vmatprep.subr.mxu0 0.0
      %5223 = vmatpush1.msra.mxu0 0.0
      %5224 = vmatprep.subr.mxu0 0.0
      %5225 = vmatpush1.msra.mxu0 0.0
      %5226 = vmatprep.subr.mxu0 0.0
      %5227 = vmatpush1.msra.mxu0 0.0
      %5228 = vmatprep.subr.mxu0 0.0
      %5229 = vmatpush1.msra.mxu0 0.0
      %5230 = vmatprep.subr.mxu0 0.0
      %5231 = vmatpush1.msra.mxu0 0.0
      %5232 = vmatprep.subr.mxu0 0.0
      %5233 = vmatpush1.msra.mxu0 0.0
      %5234 = vmatprep.subr.mxu0 0.0
      %5235 = vmatpush1.msra.mxu0 0.0
      %5236 = vmatprep.subr.mxu0 0.0
      %5237 = vmatpush1.msra.mxu0 0.0
      %5238 = vmatprep.subr.mxu0 0.0
      %5239 = vmatpush1.msra.mxu0 0.0
      %5240 = vmatprep.subr.mxu0 0.0
      %5241 = vmatpush1.msra.mxu0 0.0
      %5242 = vmatprep.subr.mxu0 0.0
      %5243 = vmatpush1.msra.mxu0 0.0
      %5244 = vmatprep.subr.mxu0 0.0
      %5245 = vmatpush1.msra.mxu0 0.0
      %5246 = vmatprep.subr.mxu0 0.0
      %5247 = vmatpush1.msra.mxu0 0.0
      %5248 = vmatprep.subr.mxu0 0.0
      %5249 = vmatpush1.msra.mxu0 0.0
      %5250 = vmatprep.subr.mxu0 0.0
      %5251 = vmatpush1.msra.mxu0 0.0
      %5252 = vmatprep.subr.mxu0 0.0
      %5253 = vmatpush1.msra.mxu0 0.0
      %5254 = vmatprep.subr.mxu0 0.0
      %5255 = vmatpush1.msra.mxu0 0.0
      %5256 = vmatprep.mubr.f32.mxu0 0.0
      %5257 = vmatmul.mubr.f32.gmra.mrb[0].mxu0 %v5097
      %v5258 = vpop.f32.mrb[0].mxu0
      %v5259 = vadd.f32 0.0, %v5258
      %v5260 = vpop.f32.mrb[0].mxu0
      %5261 = vmatprep.mubr.f32.mxu0 0.0
      %5262 = vmatmul.mubr.f32.gmra.mrb[0].mxu0 %v5100
      %v5263 = vpop.f32.mrb[0].mxu0
      %v5264 = vadd.f32 0.0, %v5263
      %v5265 = vpop.f32.mrb[0].mxu0
      %5266 = vmatprep.mubr.f32.mxu0 0.0
      %5267 = vmatmul.mubr.f32.gmra.mrb[0].mxu0 %v5103
      %v5268 = vpop.f32.mrb[0].mxu0
      %v5269 = vadd.f32 0.0, %v5268
      %v5270 = vpop.f32.mrb[0].mxu0
      %5271 = vmatprep.mubr.f32.mxu0 0.0
      %5272 = vmatmul.mubr.f32.gmra.mrb[0].mxu0 %v5106
      %v5273 = vpop.f32.mrb[0].mxu0
      %v5274 = vadd.f32 0.0, %v5273
      %v5275 = vpop.f32.mrb[0].mxu0
      %5276 = vmatprep.mubr.f32.mxu0 0.0
      %5277 = vmatmul.mubr.f32.gmra.mrb[0].mxu0 %v5109
      %v5278 = vpop.f32.mrb[0].mxu0
      %v5279 = vadd.f32 0.0, %v5278
      %v5280 = vpop.f32.mrb[0].mxu0
      %5281 = vmatprep.mubr.f32.mxu0 0.0
      %5282 = vmatmul.mubr.f32.gmra.mrb[0].mxu0 %v5112
      %v5283 = vpop.f32.mrb[0].mxu0
      %v5284 = vadd.f32 0.0, %v5283
      %v5285 = vpop.f32.mrb[0].mxu0
      %5286 = vmatprep.mubr.f32.mxu0 0.0
      %5287 = vmatmul.mubr.f32.gmra.mrb[0].mxu0 %v5115
      %v5288 = vpop.f32.mrb[0].mxu0
      %v5289 = vadd.f32 0.0, %v5288
      %v5290 = vpop.f32.mrb[0].mxu0
      %5291 = vmatprep.mubr.f32.mxu0 0.0
      %5292 = vmatmul.mubr.f32.gmra.mrb[0].mxu0 %v5118
      %v5293 = vpop.f32.mrb[0].mxu0
      %v5294 = vadd.f32 0.0, %v5293
      %v5295 = vpop.f32.mrb[0].mxu0
      %5296 = vmatprep.mubr.f32.mxu0 0.0
      %5297 = vmatmul.mubr.f32.gmra.mrb[0].mxu0 %v5121
      %v5298 = vpop.f32.mrb[0].mxu0
      %v5299 = vadd.f32 0.0, %v5298
      %v5300 = vpop.f32.mrb[0].mxu0
      %5301 = vmatprep.mubr.f32.mxu0 0.0
      %5302 = vmatmul.mubr.f32.gmra.mrb[0].mxu0 %v5124
      %v5303 = vpop.f32.mrb[0].mxu0
      %v5304 = vadd.f32 0.0, %v5303
      %v5305 = vpop.f32.mrb[0].mxu0
      %5306 = vmatprep.mubr.f32.mxu0 0.0
      %5307 = vmatmul.mubr.f32.gmra.mrb[0].mxu0 %v5127
      %v5308 = vpop.f32.mrb[0].mxu0
      %v5309 = vadd.f32 0.0, %v5308
      %v5310 = vpop.f32.mrb[0].mxu0
      %5311 = vmatprep.mubr.f32.mxu0 0.0
      %5312 = vmatmul.mubr.f32.gmra.mrb[0].mxu0 %v5130
      %v5313 = vpop.f32.mrb[0].mxu0
      %v5314 = vadd.f32 0.0, %v5313
      %v5315 = vpop.f32.mrb[0].mxu0
      %5316 = vmatprep.mubr.f32.mxu0 0.0
      %5317 = vmatmul.mubr.f32.gmra.mrb[0].mxu0 %v5133
      %v5318 = vpop.f32.mrb[0].mxu0
      %v5319 = vadd.f32 0.0, %v5318
      %v5320 = vpop.f32.mrb[0].mxu0
      %5321 = vmatprep.mubr.f32.mxu0 0.0
      %5322 = vmatmul.mubr.f32.gmra.mrb[0].mxu0 %v5136
      %v5323 = vpop.f32.mrb[0].mxu0
      %v5324 = vadd.f32 0.0, %v5323
      %v5325 = vpop.f32.mrb[0].mxu0
      %5326 = vmatprep.mubr.f32.mxu0 0.0
      %5327 = vmatmul.mubr.f32.gmra.mrb[0].mxu0 %v5139
      %v5328 = vpop.f32.mrb[0].mxu0
      %v5329 = vadd.f32 0.0, %v5328
      %v5330 = vpop.f32.mrb[0].mxu0
      %5331 = vmatprep.mubr.f32.mxu0 0.0
      %5332 = vmatmul.mubr.f32.gmra.mrb[0].mxu0 %v5142
      %v5333 = vpop.f32.mrb[0].mxu0
      %v5334 = vadd.f32 0.0, %v5333
      %v5335 = vpop.f32.mrb[0].mxu0
      %5336 = vmatprep.mubr.f32.mxu0 0.0
      %5337 = vmatmul.mubr.f32.gmra.mrb[0].mxu0 %v5145
      %v5338 = vpop.f32.mrb[0].mxu0
      %v5339 = vadd.f32 0.0, %v5338
      %v5340 = vpop.f32.mrb[0].mxu0
      %5341 = vmatprep.mubr.f32.mxu0 0.0
      %5342 = vmatmul.mubr.f32.gmra.mrb[0].mxu0 %v5148
      %v5343 = vpop.f32.mrb[0].mxu0
      %v5344 = vadd.f32 0.0, %v5343
      %v5345 = vpop.f32.mrb[0].mxu0
      %5346 = vmatprep.mubr.f32.mxu0 0.0
      %5347 = vmatmul.mubr.f32.gmra.mrb[0].mxu0 %v5151
      %v5348 = vpop.f32.mrb[0].mxu0
      %v5349 = vadd.f32 0.0, %v5348
      %v5350 = vpop.f32.mrb[0].mxu0
      %5351 = vmatprep.mubr.f32.mxu0 0.0
      %5352 = vmatmul.mubr.f32.gmra.mrb[0].mxu0 %v5154
      %v5353 = vpop.f32.mrb[0].mxu0
      %v5354 = vadd.f32 0.0, %v5353
      %v5355 = vpop.f32.mrb[0].mxu0
      %5356 = vmatprep.mubr.f32.mxu0 0.0
      %5357 = vmatmul.mubr.f32.gmra.mrb[0].mxu0 %v5157
      %v5358 = vpop.f32.mrb[0].mxu0
      %v5359 = vadd.f32 0.0, %v5358
      %v5360 = vpop.f32.mrb[0].mxu0
      %5361 = vmatprep.mubr.f32.mxu0 0.0
      %5362 = vmatmul.mubr.f32.gmra.mrb[0].mxu0 %v5160
      %v5363 = vpop.f32.mrb[0].mxu0
      %v5364 = vadd.f32 0.0, %v5363
      %v5365 = vpop.f32.mrb[0].mxu0
      %5366 = vmatprep.mubr.f32.mxu0 0.0
      %5367 = vmatmul.mubr.f32.gmra.mrb[0].mxu0 %v5163
      %v5368 = vpop.f32.mrb[0].mxu0
      %v5369 = vadd.f32 0.0, %v5368
      %v5370 = vpop.f32.mrb[0].mxu0
      %5371 = vmatprep.mubr.f32.mxu0 0.0
      %5372 = vmatmul.mubr.f32.gmra.mrb[0].mxu0 %v5166
      %v5373 = vpop.f32.mrb[0].mxu0
      %v5374 = vadd.f32 0.0, %v5373
      %v5375 = vpop.f32.mrb[0].mxu0
      %5376 = vmatprep.mubr.f32.mxu0 0.0
      %5377 = vmatmul.mubr.f32.gmra.mrb[0].mxu0 %v5169
      %v5378 = vpop.f32.mrb[0].mxu0
      %v5379 = vadd.f32 0.0, %v5378
      %v5380 = vpop.f32.mrb[0].mxu0
      %5381 = vmatprep.mubr.f32.mxu0 0.0
      %5382 = vmatmul.mubr.f32.gmra.mrb[0].mxu0 %v5172
      %v5383 = vpop.f32.mrb[0].mxu0
      %v5384 = vadd.f32 0.0, %v5383
      %v5385 = vpop.f32.mrb[0].mxu0
      %5386 = vmatprep.mubr.f32.mxu0 0.0
      %5387 = vmatmul.mubr.f32.gmra.mrb[0].mxu0 %v5175
      %v5388 = vpop.f32.mrb[0].mxu0
      %v5389 = vadd.f32 0.0, %v5388
      %v5390 = vpop.f32.mrb[0].mxu0
      %5391 = vmatprep.mubr.f32.mxu0 0.0
      %5392 = vmatmul.mubr.f32.gmra.mrb[0].mxu0 %v5178
      %v5393 = vpop.f32.mrb[0].mxu0
      %v5394 = vadd.f32 0.0, %v5393
      %v5395 = vpop.f32.mrb[0].mxu0
      %5396 = vmatprep.mubr.f32.mxu0 0.0
      %5397 = vmatmul.mubr.f32.gmra.mrb[0].mxu0 %v5181
      %v5398 = vpop.f32.mrb[0].mxu0
      %v5399 = vadd.f32 0.0, %v5398
      %v5400 = vpop.f32.mrb[0].mxu0
      %5401 = vmatprep.mubr.f32.mxu0 0.0
      %5402 = vmatmul.mubr.f32.gmra.mrb[0].mxu0 %v5184
      %v5403 = vpop.f32.mrb[0].mxu0
      %v5404 = vadd.f32 0.0, %v5403
      %v5405 = vpop.f32.mrb[0].mxu0
      %5406 = vmatprep.mubr.f32.mxu0 0.0
      %5407 = vmatmul.mubr.f32.gmra.mrb[0].mxu0 %v5187
      %v5408 = vpop.f32.mrb[0].mxu0
      %v5409 = vadd.f32 0.0, %v5408
      %v5410 = vpop.f32.mrb[0].mxu0
      %5411 = vmatprep.mubr.f32.mxu0 0.0
      %5412 = vmatmul.mubr.f32.gmra.mrb[0].mxu0 %v5190
      %v5413 = vpop.f32.mrb[0].mxu0
      %v5414 = vadd.f32 0.0, %v5413
      %v5415 = vpop.f32.mrb[0].mxu0
      %5416 = vdwg.mxu0
      %v5417 = vadd.f32 %v5062, %v5259
      %v5418 = vadd.f32 %v5063, %v5264
      %v5419 = vadd.f32 %v5064, %v5269
      %v5420 = vadd.f32 %v5065, %v5274
      %v5421 = vadd.f32 %v5066, %v5279
      %v5422 = vadd.f32 %v5067, %v5284
      %v5423 = vadd.f32 %v5068, %v5289
      %v5424 = vadd.f32 %v5069, %v5294
      %v5425 = vadd.f32 %v5070, %v5299
      %v5426 = vadd.f32 %v5071, %v5304
      %v5427 = vadd.f32 %v5072, %v5309
      %v5428 = vadd.f32 %v5073, %v5314
      %v5429 = vadd.f32 %v5074, %v5319
      %v5430 = vadd.f32 %v5075, %v5324
      %v5431 = vadd.f32 %v5076, %v5329
      %v5432 = vadd.f32 %v5077, %v5334
      %v5433 = vadd.f32 %v5078, %v5339
      %v5434 = vadd.f32 %v5079, %v5344
      %v5435 = vadd.f32 %v5080, %v5349
      %v5436 = vadd.f32 %v5081, %v5354
      %v5437 = vadd.f32 %v5082, %v5359
      %v5438 = vadd.f32 %v5083, %v5364
      %v5439 = vadd.f32 %v5084, %v5369
      %v5440 = vadd.f32 %v5085, %v5374
      %v5441 = vadd.f32 %v5086, %v5379
      %v5442 = vadd.f32 %v5087, %v5384
      %v5443 = vadd.f32 %v5088, %v5389
      %v5444 = vadd.f32 %v5089, %v5394
      %v5445 = vadd.f32 %v5090, %v5399
      %v5446 = vadd.f32 %v5091, %v5404
      %v5447 = vadd.f32 %v5092, %v5409
      %v5448 = vadd.f32 %v5093, %v5414
      %5449 = vst.msk [vmem:[#allocation4] sm:$0xff] %vm305, %v5417
      %5450 = vst.msk [vmem:[#allocation4 + $0x8] sm:$0xff] %vm305, %v5418
      %5451 = vst.msk [vmem:[#allocation4 + $0x10] sm:$0xff] %vm305, %v5419
      %5452 = vst.msk [vmem:[#allocation4 + $0x18] sm:$0xff] %vm305, %v5420
      %5453 = vst.msk [vmem:[#allocation4 + $0x20] sm:$0xff] %vm305, %v5421
      %5454 = vst.msk [vmem:[#allocation4 + $0x28] sm:$0xff] %vm305, %v5422
      %5455 = vst.msk [vmem:[#allocation4 + $0x30] sm:$0xff] %vm305, %v5423
      %5456 = vst.msk [vmem:[#allocation4 + $0x38] sm:$0xff] %vm305, %v5424
      %5457 = vst.msk [vmem:[#allocation4 + $0x40] sm:$0xff] %vm305, %v5425
      %5458 = vst.msk [vmem:[#allocation4 + $0x48] sm:$0xff] %vm305, %v5426
      %5459 = vst.msk [vmem:[#allocation4 + $0x50] sm:$0xff] %vm305, %v5427
      %5460 = vst.msk [vmem:[#allocation4 + $0x58] sm:$0xff] %vm305, %v5428
      %5461 = vst.msk [vmem:[#allocation4 + $0x60] sm:$0xff] %vm305, %v5429
      %5462 = vst.msk [vmem:[#allocation4 + $0x68] sm:$0xff] %vm305, %v5430
      %5463 = vst.msk [vmem:[#allocation4 + $0x70] sm:$0xff] %vm305, %v5431
      %5464 = vst.msk [vmem:[#allocation4 + $0x78] sm:$0xff] %vm305, %v5432
      %5465 = vst.msk [vmem:[#allocation4 + $0x80] sm:$0xff] %vm305, %v5433
      %5466 = vst.msk [vmem:[#allocation4 + $0x88] sm:$0xff] %vm305, %v5434
      %5467 = vst.msk [vmem:[#allocation4 + $0x90] sm:$0xff] %vm305, %v5435
      %5468 = vst.msk [vmem:[#allocation4 + $0x98] sm:$0xff] %vm305, %v5436
      %5469 = vst.msk [vmem:[#allocation4 + $0xa0] sm:$0xff] %vm305, %v5437
      %5470 = vst.msk [vmem:[#allocation4 + $0xa8] sm:$0xff] %vm305, %v5438
      %5471 = vst.msk [vmem:[#allocation4 + $0xb0] sm:$0xff] %vm305, %v5439
      %5472 = vst.msk [vmem:[#allocation4 + $0xb8] sm:$0xff] %vm305, %v5440
      %5473 = vst.msk [vmem:[#allocation4 + $0xc0] sm:$0xff] %vm305, %v5441
      %5474 = vst.msk [vmem:[#allocation4 + $0xc8] sm:$0xff] %vm305, %v5442
      %5475 = vst.msk [vmem:[#allocation4 + $0xd0] sm:$0xff] %vm305, %v5443
      %5476 = vst.msk [vmem:[#allocation4 + $0xd8] sm:$0xff] %vm305, %v5444
      %5477 = vst.msk [vmem:[#allocation4 + $0xe0] sm:$0xff] %vm305, %v5445
      %5478 = vst.msk [vmem:[#allocation4 + $0xe8] sm:$0xff] %vm305, %v5446
      %5479 = vst.msk [vmem:[#allocation4 + $0xf0] sm:$0xff] %vm305, %v5447
      %5480 = vst.msk [vmem:[#allocation4 + $0xf8] sm:$0xff] %vm305, %v5448
      %v5481 = vld [vmem:[#allocation2 + $0x9] sm:$0xff]
      %v5482 = vld [vmem:[#allocation2 + $0x11] sm:$0xff]
      %v5483 = vld [vmem:[#allocation2 + $0x29] sm:$0xff]
      %v5484 = vld [vmem:[#allocation2 + $0x31] sm:$0xff]
      %v5485 = vld [vmem:[#allocation2 + $0x49] sm:$0xff]
      %v5486 = vld [vmem:[#allocation2 + $0x51] sm:$0xff]
      %v5487 = vld [vmem:[#allocation2 + $0x69] sm:$0xff]
      %v5488 = vld [vmem:[#allocation2 + $0x71] sm:$0xff]
      %v5489 = vld [vmem:[#allocation2 + $0x89] sm:$0xff]
      %v5490 = vld [vmem:[#allocation2 + $0x91] sm:$0xff]
      %v5491 = vld [vmem:[#allocation2 + $0xa9] sm:$0xff]
      %v5492 = vld [vmem:[#allocation2 + $0xb1] sm:$0xff]
      %v5493 = vld [vmem:[#allocation2 + $0xc9] sm:$0xff]
      %v5494 = vld [vmem:[#allocation2 + $0xd1] sm:$0xff]
      %v5495 = vld [vmem:[#allocation2 + $0xe9] sm:$0xff]
      %v5496 = vld [vmem:[#allocation2 + $0xf1] sm:$0xff]
      %v5497 = vld [vmem:[#allocation2 + $0x109] sm:$0xff]
      %v5498 = vld [vmem:[#allocation2 + $0x111] sm:$0xff]
      %v5499 = vld [vmem:[#allocation2 + $0x129] sm:$0xff]
      %v5500 = vld [vmem:[#allocation2 + $0x131] sm:$0xff]
      %v5501 = vld [vmem:[#allocation2 + $0x149] sm:$0xff]
      %v5502 = vld [vmem:[#allocation2 + $0x151] sm:$0xff]
      %v5503 = vld [vmem:[#allocation2 + $0x169] sm:$0xff]
      %v5504 = vld [vmem:[#allocation2 + $0x171] sm:$0xff]
      %v5505 = vld [vmem:[#allocation2 + $0x189] sm:$0xff]
      %v5506 = vld [vmem:[#allocation2 + $0x191] sm:$0xff]
      %v5507 = vld [vmem:[#allocation2 + $0x1a9] sm:$0xff]
      %v5508 = vld [vmem:[#allocation2 + $0x1b1] sm:$0xff]
      %v5509 = vld [vmem:[#allocation2 + $0x1c9] sm:$0xff]
      %v5510 = vld [vmem:[#allocation2 + $0x1d1] sm:$0xff]
      %v5511 = vld [vmem:[#allocation2 + $0x1e9] sm:$0xff]
      %v5512 = vld [vmem:[#allocation2 + $0x1f1] sm:$0xff]
      %v5513 = vld [vmem:[#allocation4] sm:$0xff]
      %v5514 = vld [vmem:[#allocation4 + $0x8] sm:$0xff]
      %v5515 = vld [vmem:[#allocation4 + $0x10] sm:$0xff]
      %v5516 = vld [vmem:[#allocation4 + $0x18] sm:$0xff]
      %v5517 = vld [vmem:[#allocation4 + $0x20] sm:$0xff]
      %v5518 = vld [vmem:[#allocation4 + $0x28] sm:$0xff]
      %v5519 = vld [vmem:[#allocation4 + $0x30] sm:$0xff]
      %v5520 = vld [vmem:[#allocation4 + $0x38] sm:$0xff]
      %v5521 = vld [vmem:[#allocation4 + $0x40] sm:$0xff]
      %v5522 = vld [vmem:[#allocation4 + $0x48] sm:$0xff]
      %v5523 = vld [vmem:[#allocation4 + $0x50] sm:$0xff]
      %v5524 = vld [vmem:[#allocation4 + $0x58] sm:$0xff]
      %v5525 = vld [vmem:[#allocation4 + $0x60] sm:$0xff]
      %v5526 = vld [vmem:[#allocation4 + $0x68] sm:$0xff]
      %v5527 = vld [vmem:[#allocation4 + $0x70] sm:$0xff]
      %v5528 = vld [vmem:[#allocation4 + $0x78] sm:$0xff]
      %v5529 = vld [vmem:[#allocation4 + $0x80] sm:$0xff]
      %v5530 = vld [vmem:[#allocation4 + $0x88] sm:$0xff]
      %v5531 = vld [vmem:[#allocation4 + $0x90] sm:$0xff]
      %v5532 = vld [vmem:[#allocation4 + $0x98] sm:$0xff]
      %v5533 = vld [vmem:[#allocation4 + $0xa0] sm:$0xff]
      %v5534 = vld [vmem:[#allocation4 + $0xa8] sm:$0xff]
      %v5535 = vld [vmem:[#allocation4 + $0xb0] sm:$0xff]
      %v5536 = vld [vmem:[#allocation4 + $0xb8] sm:$0xff]
      %v5537 = vld [vmem:[#allocation4 + $0xc0] sm:$0xff]
      %v5538 = vld [vmem:[#allocation4 + $0xc8] sm:$0xff]
      %v5539 = vld [vmem:[#allocation4 + $0xd0] sm:$0xff]
      %v5540 = vld [vmem:[#allocation4 + $0xd8] sm:$0xff]
      %v5541 = vld [vmem:[#allocation4 + $0xe0] sm:$0xff]
      %v5542 = vld [vmem:[#allocation4 + $0xe8] sm:$0xff]
      %v5543 = vld [vmem:[#allocation4 + $0xf0] sm:$0xff]
      %v5544 = vld [vmem:[#allocation4 + $0xf8] sm:$0xff]
      %s5545 = scalar_lea.vmem %s4, 16
      %v5546 = vld [vmem:[%s5545] sm:$0xff]
      %v5548 = vsel %vm305, %v5481, 0
      %v5551 = vsel %vm305, %v5482, 0
      %v5554 = vsel %vm305, %v5483, 0
      %v5557 = vsel %vm305, %v5484, 0
      %v5560 = vsel %vm305, %v5485, 0
      %v5563 = vsel %vm305, %v5486, 0
      %v5566 = vsel %vm305, %v5487, 0
      %v5569 = vsel %vm305, %v5488, 0
      %v5572 = vsel %vm305, %v5489, 0
      %v5575 = vsel %vm305, %v5490, 0
      %v5578 = vsel %vm305, %v5491, 0
      %v5581 = vsel %vm305, %v5492, 0
      %v5584 = vsel %vm305, %v5493, 0
      %v5587 = vsel %vm305, %v5494, 0
      %v5590 = vsel %vm305, %v5495, 0
      %v5593 = vsel %vm305, %v5496, 0
      %v5596 = vsel %vm305, %v5497, 0
      %v5599 = vsel %vm305, %v5498, 0
      %v5602 = vsel %vm305, %v5499, 0
      %v5605 = vsel %vm305, %v5500, 0
      %v5608 = vsel %vm305, %v5501, 0
      %v5611 = vsel %vm305, %v5502, 0
      %v5614 = vsel %vm305, %v5503, 0
      %v5617 = vsel %vm305, %v5504, 0
      %v5620 = vsel %vm305, %v5505, 0
      %v5623 = vsel %vm305, %v5506, 0
      %v5626 = vsel %vm305, %v5507, 0
      %v5629 = vsel %vm305, %v5508, 0
      %v5632 = vsel %vm305, %v5509, 0
      %v5635 = vsel %vm305, %v5510, 0
      %v5638 = vsel %vm305, %v5511, 0
      %v5641 = vsel %vm305, %v5512, 0
      %5643 = vmatprep.subr.mxu0 0.0
      %5644 = vmatpush1.msra.mxu0 %v5546
      %5645 = vmatprep.subr.mxu0 0.0
      %5646 = vmatpush1.msra.mxu0 0.0
      %5647 = vmatprep.subr.mxu0 0.0
      %5648 = vmatpush1.msra.mxu0 0.0
      %5649 = vmatprep.subr.mxu0 0.0
      %5650 = vmatpush1.msra.mxu0 0.0
      %5651 = vmatprep.subr.mxu0 0.0
      %5652 = vmatpush1.msra.mxu0 0.0
      %5653 = vmatprep.subr.mxu0 0.0
      %5654 = vmatpush1.msra.mxu0 0.0
      %5655 = vmatprep.subr.mxu0 0.0
      %5656 = vmatpush1.msra.mxu0 0.0
      %5657 = vmatprep.subr.mxu0 0.0
      %5658 = vmatpush1.msra.mxu0 0.0
      %5659 = vmatprep.subr.mxu0 0.0
      %5660 = vmatpush1.msra.mxu0 0.0
      %5661 = vmatprep.subr.mxu0 0.0
      %5662 = vmatpush1.msra.mxu0 0.0
      %5663 = vmatprep.subr.mxu0 0.0
      %5664 = vmatpush1.msra.mxu0 0.0
      %5665 = vmatprep.subr.mxu0 0.0
      %5666 = vmatpush1.msra.mxu0 0.0
      %5667 = vmatprep.subr.mxu0 0.0
      %5668 = vmatpush1.msra.mxu0 0.0
      %5669 = vmatprep.subr.mxu0 0.0
      %5670 = vmatpush1.msra.mxu0 0.0
      %5671 = vmatprep.subr.mxu0 0.0
      %5672 = vmatpush1.msra.mxu0 0.0
      %5673 = vmatprep.subr.mxu0 0.0
      %5674 = vmatpush1.msra.mxu0 0.0
      %5675 = vmatprep.subr.mxu0 0.0
      %5676 = vmatpush1.msra.mxu0 0.0
      %5677 = vmatprep.subr.mxu0 0.0
      %5678 = vmatpush1.msra.mxu0 0.0
      %5679 = vmatprep.subr.mxu0 0.0
      %5680 = vmatpush1.msra.mxu0 0.0
      %5681 = vmatprep.subr.mxu0 0.0
      %5682 = vmatpush1.msra.mxu0 0.0
      %5683 = vmatprep.subr.mxu0 0.0
      %5684 = vmatpush1.msra.mxu0 0.0
      %5685 = vmatprep.subr.mxu0 0.0
      %5686 = vmatpush1.msra.mxu0 0.0
      %5687 = vmatprep.subr.mxu0 0.0
      %5688 = vmatpush1.msra.mxu0 0.0
      %5689 = vmatprep.subr.mxu0 0.0
      %5690 = vmatpush1.msra.mxu0 0.0
      %5691 = vmatprep.subr.mxu0 0.0
      %5692 = vmatpush1.msra.mxu0 0.0
      %5693 = vmatprep.subr.mxu0 0.0
      %5694 = vmatpush1.msra.mxu0 0.0
      %5695 = vmatprep.subr.mxu0 0.0
      %5696 = vmatpush1.msra.mxu0 0.0
      %5697 = vmatprep.subr.mxu0 0.0
      %5698 = vmatpush1.msra.mxu0 0.0
      %5699 = vmatprep.subr.mxu0 0.0
      %5700 = vmatpush1.msra.mxu0 0.0
      %5701 = vmatprep.subr.mxu0 0.0
      %5702 = vmatpush1.msra.mxu0 0.0
      %5703 = vmatprep.subr.mxu0 0.0
      %5704 = vmatpush1.msra.mxu0 0.0
      %5705 = vmatprep.subr.mxu0 0.0
      %5706 = vmatpush1.msra.mxu0 0.0
      %5707 = vmatprep.mubr.f32.mxu0 0.0
      %5708 = vmatmul.mubr.f32.gmra.mrb[0].mxu0 %v5548
      %v5709 = vpop.f32.mrb[0].mxu0
      %v5710 = vadd.f32 0.0, %v5709
      %v5711 = vpop.f32.mrb[0].mxu0
      %5712 = vmatprep.mubr.f32.mxu0 0.0
      %5713 = vmatmul.mubr.f32.gmra.mrb[0].mxu0 %v5551
      %v5714 = vpop.f32.mrb[0].mxu0
      %v5715 = vadd.f32 0.0, %v5714
      %v5716 = vpop.f32.mrb[0].mxu0
      %5717 = vmatprep.mubr.f32.mxu0 0.0
      %5718 = vmatmul.mubr.f32.gmra.mrb[0].mxu0 %v5554
      %v5719 = vpop.f32.mrb[0].mxu0
      %v5720 = vadd.f32 0.0, %v5719
      %v5721 = vpop.f32.mrb[0].mxu0
      %5722 = vmatprep.mubr.f32.mxu0 0.0
      %5723 = vmatmul.mubr.f32.gmra.mrb[0].mxu0 %v5557
      %v5724 = vpop.f32.mrb[0].mxu0
      %v5725 = vadd.f32 0.0, %v5724
      %v5726 = vpop.f32.mrb[0].mxu0
      %5727 = vmatprep.mubr.f32.mxu0 0.0
      %5728 = vmatmul.mubr.f32.gmra.mrb[0].mxu0 %v5560
      %v5729 = vpop.f32.mrb[0].mxu0
      %v5730 = vadd.f32 0.0, %v5729
      %v5731 = vpop.f32.mrb[0].mxu0
      %5732 = vmatprep.mubr.f32.mxu0 0.0
      %5733 = vmatmul.mubr.f32.gmra.mrb[0].mxu0 %v5563
      %v5734 = vpop.f32.mrb[0].mxu0
      %v5735 = vadd.f32 0.0, %v5734
      %v5736 = vpop.f32.mrb[0].mxu0
      %5737 = vmatprep.mubr.f32.mxu0 0.0
      %5738 = vmatmul.mubr.f32.gmra.mrb[0].mxu0 %v5566
      %v5739 = vpop.f32.mrb[0].mxu0
      %v5740 = vadd.f32 0.0, %v5739
      %v5741 = vpop.f32.mrb[0].mxu0
      %5742 = vmatprep.mubr.f32.mxu0 0.0
      %5743 = vmatmul.mubr.f32.gmra.mrb[0].mxu0 %v5569
      %v5744 = vpop.f32.mrb[0].mxu0
      %v5745 = vadd.f32 0.0, %v5744
      %v5746 = vpop.f32.mrb[0].mxu0
      %5747 = vmatprep.mubr.f32.mxu0 0.0
      %5748 = vmatmul.mubr.f32.gmra.mrb[0].mxu0 %v5572
      %v5749 = vpop.f32.mrb[0].mxu0
      %v5750 = vadd.f32 0.0, %v5749
      %v5751 = vpop.f32.mrb[0].mxu0
      %5752 = vmatprep.mubr.f32.mxu0 0.0
      %5753 = vmatmul.mubr.f32.gmra.mrb[0].mxu0 %v5575
      %v5754 = vpop.f32.mrb[0].mxu0
      %v5755 = vadd.f32 0.0, %v5754
      %v5756 = vpop.f32.mrb[0].mxu0
      %5757 = vmatprep.mubr.f32.mxu0 0.0
      %5758 = vmatmul.mubr.f32.gmra.mrb[0].mxu0 %v5578
      %v5759 = vpop.f32.mrb[0].mxu0
      %v5760 = vadd.f32 0.0, %v5759
      %v5761 = vpop.f32.mrb[0].mxu0
      %5762 = vmatprep.mubr.f32.mxu0 0.0
      %5763 = vmatmul.mubr.f32.gmra.mrb[0].mxu0 %v5581
      %v5764 = vpop.f32.mrb[0].mxu0
      %v5765 = vadd.f32 0.0, %v5764
      %v5766 = vpop.f32.mrb[0].mxu0
      %5767 = vmatprep.mubr.f32.mxu0 0.0
      %5768 = vmatmul.mubr.f32.gmra.mrb[0].mxu0 %v5584
      %v5769 = vpop.f32.mrb[0].mxu0
      %v5770 = vadd.f32 0.0, %v5769
      %v5771 = vpop.f32.mrb[0].mxu0
      %5772 = vmatprep.mubr.f32.mxu0 0.0
      %5773 = vmatmul.mubr.f32.gmra.mrb[0].mxu0 %v5587
      %v5774 = vpop.f32.mrb[0].mxu0
      %v5775 = vadd.f32 0.0, %v5774
      %v5776 = vpop.f32.mrb[0].mxu0
      %5777 = vmatprep.mubr.f32.mxu0 0.0
      %5778 = vmatmul.mubr.f32.gmra.mrb[0].mxu0 %v5590
      %v5779 = vpop.f32.mrb[0].mxu0
      %v5780 = vadd.f32 0.0, %v5779
      %v5781 = vpop.f32.mrb[0].mxu0
      %5782 = vmatprep.mubr.f32.mxu0 0.0
      %5783 = vmatmul.mubr.f32.gmra.mrb[0].mxu0 %v5593
      %v5784 = vpop.f32.mrb[0].mxu0
      %v5785 = vadd.f32 0.0, %v5784
      %v5786 = vpop.f32.mrb[0].mxu0
      %5787 = vmatprep.mubr.f32.mxu0 0.0
      %5788 = vmatmul.mubr.f32.gmra.mrb[0].mxu0 %v5596
      %v5789 = vpop.f32.mrb[0].mxu0
      %v5790 = vadd.f32 0.0, %v5789
      %v5791 = vpop.f32.mrb[0].mxu0
      %5792 = vmatprep.mubr.f32.mxu0 0.0
      %5793 = vmatmul.mubr.f32.gmra.mrb[0].mxu0 %v5599
      %v5794 = vpop.f32.mrb[0].mxu0
      %v5795 = vadd.f32 0.0, %v5794
      %v5796 = vpop.f32.mrb[0].mxu0
      %5797 = vmatprep.mubr.f32.mxu0 0.0
      %5798 = vmatmul.mubr.f32.gmra.mrb[0].mxu0 %v5602
      %v5799 = vpop.f32.mrb[0].mxu0
      %v5800 = vadd.f32 0.0, %v5799
      %v5801 = vpop.f32.mrb[0].mxu0
      %5802 = vmatprep.mubr.f32.mxu0 0.0
      %5803 = vmatmul.mubr.f32.gmra.mrb[0].mxu0 %v5605
      %v5804 = vpop.f32.mrb[0].mxu0
      %v5805 = vadd.f32 0.0, %v5804
      %v5806 = vpop.f32.mrb[0].mxu0
      %5807 = vmatprep.mubr.f32.mxu0 0.0
      %5808 = vmatmul.mubr.f32.gmra.mrb[0].mxu0 %v5608
      %v5809 = vpop.f32.mrb[0].mxu0
      %v5810 = vadd.f32 0.0, %v5809
      %v5811 = vpop.f32.mrb[0].mxu0
      %5812 = vmatprep.mubr.f32.mxu0 0.0
      %5813 = vmatmul.mubr.f32.gmra.mrb[0].mxu0 %v5611
      %v5814 = vpop.f32.mrb[0].mxu0
      %v5815 = vadd.f32 0.0, %v5814
      %v5816 = vpop.f32.mrb[0].mxu0
      %5817 = vmatprep.mubr.f32.mxu0 0.0
      %5818 = vmatmul.mubr.f32.gmra.mrb[0].mxu0 %v5614
      %v5819 = vpop.f32.mrb[0].mxu0
      %v5820 = vadd.f32 0.0, %v5819
      %v5821 = vpop.f32.mrb[0].mxu0
      %5822 = vmatprep.mubr.f32.mxu0 0.0
      %5823 = vmatmul.mubr.f32.gmra.mrb[0].mxu0 %v5617
      %v5824 = vpop.f32.mrb[0].mxu0
      %v5825 = vadd.f32 0.0, %v5824
      %v5826 = vpop.f32.mrb[0].mxu0
      %5827 = vmatprep.mubr.f32.mxu0 0.0
      %5828 = vmatmul.mubr.f32.gmra.mrb[0].mxu0 %v5620
      %v5829 = vpop.f32.mrb[0].mxu0
      %v5830 = vadd.f32 0.0, %v5829
      %v5831 = vpop.f32.mrb[0].mxu0
      %5832 = vmatprep.mubr.f32.mxu0 0.0
      %5833 = vmatmul.mubr.f32.gmra.mrb[0].mxu0 %v5623
      %v5834 = vpop.f32.mrb[0].mxu0
      %v5835 = vadd.f32 0.0, %v5834
      %v5836 = vpop.f32.mrb[0].mxu0
      %5837 = vmatprep.mubr.f32.mxu0 0.0
      %5838 = vmatmul.mubr.f32.gmra.mrb[0].mxu0 %v5626
      %v5839 = vpop.f32.mrb[0].mxu0
      %v5840 = vadd.f32 0.0, %v5839
      %v5841 = vpop.f32.mrb[0].mxu0
      %5842 = vmatprep.mubr.f32.mxu0 0.0
      %5843 = vmatmul.mubr.f32.gmra.mrb[0].mxu0 %v5629
      %v5844 = vpop.f32.mrb[0].mxu0
      %v5845 = vadd.f32 0.0, %v5844
      %v5846 = vpop.f32.mrb[0].mxu0
      %5847 = vmatprep.mubr.f32.mxu0 0.0
      %5848 = vmatmul.mubr.f32.gmra.mrb[0].mxu0 %v5632
      %v5849 = vpop.f32.mrb[0].mxu0
      %v5850 = vadd.f32 0.0, %v5849
      %v5851 = vpop.f32.mrb[0].mxu0
      %5852 = vmatprep.mubr.f32.mxu0 0.0
      %5853 = vmatmul.mubr.f32.gmra.mrb[0].mxu0 %v5635
      %v5854 = vpop.f32.mrb[0].mxu0
      %v5855 = vadd.f32 0.0, %v5854
      %v5856 = vpop.f32.mrb[0].mxu0
      %5857 = vmatprep.mubr.f32.mxu0 0.0
      %5858 = vmatmul.mubr.f32.gmra.mrb[0].mxu0 %v5638
      %v5859 = vpop.f32.mrb[0].mxu0
      %v5860 = vadd.f32 0.0, %v5859
      %v5861 = vpop.f32.mrb[0].mxu0
      %5862 = vmatprep.mubr.f32.mxu0 0.0
      %5863 = vmatmul.mubr.f32.gmra.mrb[0].mxu0 %v5641
      %v5864 = vpop.f32.mrb[0].mxu0
      %v5865 = vadd.f32 0.0, %v5864
      %v5866 = vpop.f32.mrb[0].mxu0
      %5867 = vdwg.mxu0
      %v5868 = vadd.f32 %v5513, %v5710
      %v5869 = vadd.f32 %v5514, %v5715
      %v5870 = vadd.f32 %v5515, %v5720
      %v5871 = vadd.f32 %v5516, %v5725
      %v5872 = vadd.f32 %v5517, %v5730
      %v5873 = vadd.f32 %v5518, %v5735
      %v5874 = vadd.f32 %v5519, %v5740
      %v5875 = vadd.f32 %v5520, %v5745
      %v5876 = vadd.f32 %v5521, %v5750
      %v5877 = vadd.f32 %v5522, %v5755
      %v5878 = vadd.f32 %v5523, %v5760
      %v5879 = vadd.f32 %v5524, %v5765
      %v5880 = vadd.f32 %v5525, %v5770
      %v5881 = vadd.f32 %v5526, %v5775
      %v5882 = vadd.f32 %v5527, %v5780
      %v5883 = vadd.f32 %v5528, %v5785
      %v5884 = vadd.f32 %v5529, %v5790
      %v5885 = vadd.f32 %v5530, %v5795
      %v5886 = vadd.f32 %v5531, %v5800
      %v5887 = vadd.f32 %v5532, %v5805
      %v5888 = vadd.f32 %v5533, %v5810
      %v5889 = vadd.f32 %v5534, %v5815
      %v5890 = vadd.f32 %v5535, %v5820
      %v5891 = vadd.f32 %v5536, %v5825
      %v5892 = vadd.f32 %v5537, %v5830
      %v5893 = vadd.f32 %v5538, %v5835
      %v5894 = vadd.f32 %v5539, %v5840
      %v5895 = vadd.f32 %v5540, %v5845
      %v5896 = vadd.f32 %v5541, %v5850
      %v5897 = vadd.f32 %v5542, %v5855
      %v5898 = vadd.f32 %v5543, %v5860
      %v5899 = vadd.f32 %v5544, %v5865
      %5900 = vst.msk [vmem:[#allocation4] sm:$0xff] %vm305, %v5868
      %5901 = vst.msk [vmem:[#allocation4 + $0x8] sm:$0xff] %vm305, %v5869
      %5902 = vst.msk [vmem:[#allocation4 + $0x10] sm:$0xff] %vm305, %v5870
      %5903 = vst.msk [vmem:[#allocation4 + $0x18] sm:$0xff] %vm305, %v5871
      %5904 = vst.msk [vmem:[#allocation4 + $0x20] sm:$0xff] %vm305, %v5872
      %5905 = vst.msk [vmem:[#allocation4 + $0x28] sm:$0xff] %vm305, %v5873
      %5906 = vst.msk [vmem:[#allocation4 + $0x30] sm:$0xff] %vm305, %v5874
      %5907 = vst.msk [vmem:[#allocation4 + $0x38] sm:$0xff] %vm305, %v5875
      %5908 = vst.msk [vmem:[#allocation4 + $0x40] sm:$0xff] %vm305, %v5876
      %5909 = vst.msk [vmem:[#allocation4 + $0x48] sm:$0xff] %vm305, %v5877
      %5910 = vst.msk [vmem:[#allocation4 + $0x50] sm:$0xff] %vm305, %v5878
      %5911 = vst.msk [vmem:[#allocation4 + $0x58] sm:$0xff] %vm305, %v5879
      %5912 = vst.msk [vmem:[#allocation4 + $0x60] sm:$0xff] %vm305, %v5880
      %5913 = vst.msk [vmem:[#allocation4 + $0x68] sm:$0xff] %vm305, %v5881
      %5914 = vst.msk [vmem:[#allocation4 + $0x70] sm:$0xff] %vm305, %v5882
      %5915 = vst.msk [vmem:[#allocation4 + $0x78] sm:$0xff] %vm305, %v5883
      %5916 = vst.msk [vmem:[#allocation4 + $0x80] sm:$0xff] %vm305, %v5884
      %5917 = vst.msk [vmem:[#allocation4 + $0x88] sm:$0xff] %vm305, %v5885
      %5918 = vst.msk [vmem:[#allocation4 + $0x90] sm:$0xff] %vm305, %v5886
      %5919 = vst.msk [vmem:[#allocation4 + $0x98] sm:$0xff] %vm305, %v5887
      %5920 = vst.msk [vmem:[#allocation4 + $0xa0] sm:$0xff] %vm305, %v5888
      %5921 = vst.msk [vmem:[#allocation4 + $0xa8] sm:$0xff] %vm305, %v5889
      %5922 = vst.msk [vmem:[#allocation4 + $0xb0] sm:$0xff] %vm305, %v5890
      %5923 = vst.msk [vmem:[#allocation4 + $0xb8] sm:$0xff] %vm305, %v5891
      %5924 = vst.msk [vmem:[#allocation4 + $0xc0] sm:$0xff] %vm305, %v5892
      %5925 = vst.msk [vmem:[#allocation4 + $0xc8] sm:$0xff] %vm305, %v5893
      %5926 = vst.msk [vmem:[#allocation4 + $0xd0] sm:$0xff] %vm305, %v5894
      %5927 = vst.msk [vmem:[#allocation4 + $0xd8] sm:$0xff] %vm305, %v5895
      %5928 = vst.msk [vmem:[#allocation4 + $0xe0] sm:$0xff] %vm305, %v5896
      %5929 = vst.msk [vmem:[#allocation4 + $0xe8] sm:$0xff] %vm305, %v5897
      %5930 = vst.msk [vmem:[#allocation4 + $0xf0] sm:$0xff] %vm305, %v5898
      %5931 = vst.msk [vmem:[#allocation4 + $0xf8] sm:$0xff] %vm305, %v5899
      %v5932 = vld [vmem:[%s4444 + $0x7] sm:$0xff]
      %v5933 = vld [vmem:[%s4444 + $0xf] sm:$0xff]
      %v5934 = vld [vmem:[%s4444 + $0x27] sm:$0xff]
      %v5935 = vld [vmem:[%s4444 + $0x2f] sm:$0xff]
      %v5936 = vld [vmem:[%s4444 + $0x47] sm:$0xff]
      %v5937 = vld [vmem:[%s4444 + $0x4f] sm:$0xff]
      %v5938 = vld [vmem:[%s4444 + $0x67] sm:$0xff]
      %v5939 = vld [vmem:[%s4444 + $0x6f] sm:$0xff]
      %v5940 = vld [vmem:[%s4444 + $0x87] sm:$0xff]
      %v5941 = vld [vmem:[%s4444 + $0x8f] sm:$0xff]
      %v5942 = vld [vmem:[%s4444 + $0xa7] sm:$0xff]
      %v5943 = vld [vmem:[%s4444 + $0xaf] sm:$0xff]
      %v5944 = vld [vmem:[%s4444 + $0xc7] sm:$0xff]
      %v5945 = vld [vmem:[%s4444 + $0xcf] sm:$0xff]
      %v5946 = vld [vmem:[%s4444 + $0xe7] sm:$0xff]
      %v5947 = vld [vmem:[%s4444 + $0xef] sm:$0xff]
      %v5948 = vld [vmem:[%s4444 + $0x107] sm:$0xff]
      %v5949 = vld [vmem:[%s4444 + $0x10f] sm:$0xff]
      %v5950 = vld [vmem:[%s4444 + $0x127] sm:$0xff]
      %v5951 = vld [vmem:[%s4444 + $0x12f] sm:$0xff]
      %v5952 = vld [vmem:[%s4444 + $0x147] sm:$0xff]
      %v5953 = vld [vmem:[%s4444 + $0x14f] sm:$0xff]
      %v5954 = vld [vmem:[%s4444 + $0x167] sm:$0xff]
      %v5955 = vld [vmem:[%s4444 + $0x16f] sm:$0xff]
      %v5956 = vld [vmem:[%s4444 + $0x187] sm:$0xff]
      %v5957 = vld [vmem:[%s4444 + $0x18f] sm:$0xff]
      %v5958 = vld [vmem:[%s4444 + $0x1a7] sm:$0xff]
      %v5959 = vld [vmem:[%s4444 + $0x1af] sm:$0xff]
      %v5960 = vld [vmem:[%s4444 + $0x1c7] sm:$0xff]
      %v5961 = vld [vmem:[%s4444 + $0x1cf] sm:$0xff]
      %v5962 = vld [vmem:[%s4444 + $0x1e7] sm:$0xff]
      %v5963 = vld [vmem:[%s4444 + $0x1ef] sm:$0xff]
      %v5964 = vld [vmem:[#allocation4] sm:$0xff]
      %v5965 = vld [vmem:[#allocation4 + $0x8] sm:$0xff]
      %v5966 = vld [vmem:[#allocation4 + $0x10] sm:$0xff]
      %v5967 = vld [vmem:[#allocation4 + $0x18] sm:$0xff]
      %v5968 = vld [vmem:[#allocation4 + $0x20] sm:$0xff]
      %v5969 = vld [vmem:[#allocation4 + $0x28] sm:$0xff]
      %v5970 = vld [vmem:[#allocation4 + $0x30] sm:$0xff]
      %v5971 = vld [vmem:[#allocation4 + $0x38] sm:$0xff]
      %v5972 = vld [vmem:[#allocation4 + $0x40] sm:$0xff]
      %v5973 = vld [vmem:[#allocation4 + $0x48] sm:$0xff]
      %v5974 = vld [vmem:[#allocation4 + $0x50] sm:$0xff]
      %v5975 = vld [vmem:[#allocation4 + $0x58] sm:$0xff]
      %v5976 = vld [vmem:[#allocation4 + $0x60] sm:$0xff]
      %v5977 = vld [vmem:[#allocation4 + $0x68] sm:$0xff]
      %v5978 = vld [vmem:[#allocation4 + $0x70] sm:$0xff]
      %v5979 = vld [vmem:[#allocation4 + $0x78] sm:$0xff]
      %v5980 = vld [vmem:[#allocation4 + $0x80] sm:$0xff]
      %v5981 = vld [vmem:[#allocation4 + $0x88] sm:$0xff]
      %v5982 = vld [vmem:[#allocation4 + $0x90] sm:$0xff]
      %v5983 = vld [vmem:[#allocation4 + $0x98] sm:$0xff]
      %v5984 = vld [vmem:[#allocation4 + $0xa0] sm:$0xff]
      %v5985 = vld [vmem:[#allocation4 + $0xa8] sm:$0xff]
      %v5986 = vld [vmem:[#allocation4 + $0xb0] sm:$0xff]
      %v5987 = vld [vmem:[#allocation4 + $0xb8] sm:$0xff]
      %v5988 = vld [vmem:[#allocation4 + $0xc0] sm:$0xff]
      %v5989 = vld [vmem:[#allocation4 + $0xc8] sm:$0xff]
      %v5990 = vld [vmem:[#allocation4 + $0xd0] sm:$0xff]
      %v5991 = vld [vmem:[#allocation4 + $0xd8] sm:$0xff]
      %v5992 = vld [vmem:[#allocation4 + $0xe0] sm:$0xff]
      %v5993 = vld [vmem:[#allocation4 + $0xe8] sm:$0xff]
      %v5994 = vld [vmem:[#allocation4 + $0xf0] sm:$0xff]
      %v5995 = vld [vmem:[#allocation4 + $0xf8] sm:$0xff]
      %s5996 = scalar_lea.vmem %s4, 24
      %v5997 = vld [vmem:[%s5996] sm:$0xff]
      %v5999 = vsel %vm305, %v5932, 0
      %v6002 = vsel %vm305, %v5933, 0
      %v6005 = vsel %vm305, %v5934, 0
      %v6008 = vsel %vm305, %v5935, 0
      %v6011 = vsel %vm305, %v5936, 0
      %v6014 = vsel %vm305, %v5937, 0
      %v6017 = vsel %vm305, %v5938, 0
      %v6020 = vsel %vm305, %v5939, 0
      %v6023 = vsel %vm305, %v5940, 0
      %v6026 = vsel %vm305, %v5941, 0
      %v6029 = vsel %vm305, %v5942, 0
      %v6032 = vsel %vm305, %v5943, 0
      %v6035 = vsel %vm305, %v5944, 0
      %v6038 = vsel %vm305, %v5945, 0
      %v6041 = vsel %vm305, %v5946, 0
      %v6044 = vsel %vm305, %v5947, 0
      %v6047 = vsel %vm305, %v5948, 0
      %v6050 = vsel %vm305, %v5949, 0
      %v6053 = vsel %vm305, %v5950, 0
      %v6056 = vsel %vm305, %v5951, 0
      %v6059 = vsel %vm305, %v5952, 0
      %v6062 = vsel %vm305, %v5953, 0
      %v6065 = vsel %vm305, %v5954, 0
      %v6068 = vsel %vm305, %v5955, 0
      %v6071 = vsel %vm305, %v5956, 0
      %v6074 = vsel %vm305, %v5957, 0
      %v6077 = vsel %vm305, %v5958, 0
      %v6080 = vsel %vm305, %v5959, 0
      %v6083 = vsel %vm305, %v5960, 0
      %v6086 = vsel %vm305, %v5961, 0
      %v6089 = vsel %vm305, %v5962, 0
      %v6092 = vsel %vm305, %v5963, 0
      %6094 = vmatprep.subr.mxu0 0.0
      %6095 = vmatpush1.msra.mxu0 %v5997
      %6096 = vmatprep.subr.mxu0 0.0
      %6097 = vmatpush1.msra.mxu0 0.0
      %6098 = vmatprep.subr.mxu0 0.0
      %6099 = vmatpush1.msra.mxu0 0.0
      %6100 = vmatprep.subr.mxu0 0.0
      %6101 = vmatpush1.msra.mxu0 0.0
      %6102 = vmatprep.subr.mxu0 0.0
      %6103 = vmatpush1.msra.mxu0 0.0
      %6104 = vmatprep.subr.mxu0 0.0
      %6105 = vmatpush1.msra.mxu0 0.0
      %6106 = vmatprep.subr.mxu0 0.0
      %6107 = vmatpush1.msra.mxu0 0.0
      %6108 = vmatprep.subr.mxu0 0.0
      %6109 = vmatpush1.msra.mxu0 0.0
      %6110 = vmatprep.subr.mxu0 0.0
      %6111 = vmatpush1.msra.mxu0 0.0
      %6112 = vmatprep.subr.mxu0 0.0
      %6113 = vmatpush1.msra.mxu0 0.0
      %6114 = vmatprep.subr.mxu0 0.0
      %6115 = vmatpush1.msra.mxu0 0.0
      %6116 = vmatprep.subr.mxu0 0.0
      %6117 = vmatpush1.msra.mxu0 0.0
      %6118 = vmatprep.subr.mxu0 0.0
      %6119 = vmatpush1.msra.mxu0 0.0
      %6120 = vmatprep.subr.mxu0 0.0
      %6121 = vmatpush1.msra.mxu0 0.0
      %6122 = vmatprep.subr.mxu0 0.0
      %6123 = vmatpush1.msra.mxu0 0.0
      %6124 = vmatprep.subr.mxu0 0.0
      %6125 = vmatpush1.msra.mxu0 0.0
      %6126 = vmatprep.subr.mxu0 0.0
      %6127 = vmatpush1.msra.mxu0 0.0
      %6128 = vmatprep.subr.mxu0 0.0
      %6129 = vmatpush1.msra.mxu0 0.0
      %6130 = vmatprep.subr.mxu0 0.0
      %6131 = vmatpush1.msra.mxu0 0.0
      %6132 = vmatprep.subr.mxu0 0.0
      %6133 = vmatpush1.msra.mxu0 0.0
      %6134 = vmatprep.subr.mxu0 0.0
      %6135 = vmatpush1.msra.mxu0 0.0
      %6136 = vmatprep.subr.mxu0 0.0
      %6137 = vmatpush1.msra.mxu0 0.0
      %6138 = vmatprep.subr.mxu0 0.0
      %6139 = vmatpush1.msra.mxu0 0.0
      %6140 = vmatprep.subr.mxu0 0.0
      %6141 = vmatpush1.msra.mxu0 0.0
      %6142 = vmatprep.subr.mxu0 0.0
      %6143 = vmatpush1.msra.mxu0 0.0
      %6144 = vmatprep.subr.mxu0 0.0
      %6145 = vmatpush1.msra.mxu0 0.0
      %6146 = vmatprep.subr.mxu0 0.0
      %6147 = vmatpush1.msra.mxu0 0.0
      %6148 = vmatprep.subr.mxu0 0.0
      %6149 = vmatpush1.msra.mxu0 0.0
      %6150 = vmatprep.subr.mxu0 0.0
      %6151 = vmatpush1.msra.mxu0 0.0
      %6152 = vmatprep.subr.mxu0 0.0
      %6153 = vmatpush1.msra.mxu0 0.0
      %6154 = vmatprep.subr.mxu0 0.0
      %6155 = vmatpush1.msra.mxu0 0.0
      %6156 = vmatprep.subr.mxu0 0.0
      %6157 = vmatpush1.msra.mxu0 0.0
      %6158 = vmatprep.mubr.f32.mxu0 0.0
      %6159 = vmatmul.mubr.f32.gmra.mrb[0].mxu0 %v5999
      %v6160 = vpop.f32.mrb[0].mxu0
      %v6161 = vadd.f32 0.0, %v6160
      %v6162 = vpop.f32.mrb[0].mxu0
      %6163 = vmatprep.mubr.f32.mxu0 0.0
      %6164 = vmatmul.mubr.f32.gmra.mrb[0].mxu0 %v6002
      %v6165 = vpop.f32.mrb[0].mxu0
      %v6166 = vadd.f32 0.0, %v6165
      %v6167 = vpop.f32.mrb[0].mxu0
      %6168 = vmatprep.mubr.f32.mxu0 0.0
      %6169 = vmatmul.mubr.f32.gmra.mrb[0].mxu0 %v6005
      %v6170 = vpop.f32.mrb[0].mxu0
      %v6171 = vadd.f32 0.0, %v6170
      %v6172 = vpop.f32.mrb[0].mxu0
      %6173 = vmatprep.mubr.f32.mxu0 0.0
      %6174 = vmatmul.mubr.f32.gmra.mrb[0].mxu0 %v6008
      %v6175 = vpop.f32.mrb[0].mxu0
      %v6176 = vadd.f32 0.0, %v6175
      %v6177 = vpop.f32.mrb[0].mxu0
      %6178 = vmatprep.mubr.f32.mxu0 0.0
      %6179 = vmatmul.mubr.f32.gmra.mrb[0].mxu0 %v6011
      %v6180 = vpop.f32.mrb[0].mxu0
      %v6181 = vadd.f32 0.0, %v6180
      %v6182 = vpop.f32.mrb[0].mxu0
      %6183 = vmatprep.mubr.f32.mxu0 0.0
      %6184 = vmatmul.mubr.f32.gmra.mrb[0].mxu0 %v6014
      %v6185 = vpop.f32.mrb[0].mxu0
      %v6186 = vadd.f32 0.0, %v6185
      %v6187 = vpop.f32.mrb[0].mxu0
      %6188 = vmatprep.mubr.f32.mxu0 0.0
      %6189 = vmatmul.mubr.f32.gmra.mrb[0].mxu0 %v6017
      %v6190 = vpop.f32.mrb[0].mxu0
      %v6191 = vadd.f32 0.0, %v6190
      %v6192 = vpop.f32.mrb[0].mxu0
      %6193 = vmatprep.mubr.f32.mxu0 0.0
      %6194 = vmatmul.mubr.f32.gmra.mrb[0].mxu0 %v6020
      %v6195 = vpop.f32.mrb[0].mxu0
      %v6196 = vadd.f32 0.0, %v6195
      %v6197 = vpop.f32.mrb[0].mxu0
      %6198 = vmatprep.mubr.f32.mxu0 0.0
      %6199 = vmatmul.mubr.f32.gmra.mrb[0].mxu0 %v6023
      %v6200 = vpop.f32.mrb[0].mxu0
      %v6201 = vadd.f32 0.0, %v6200
      %v6202 = vpop.f32.mrb[0].mxu0
      %6203 = vmatprep.mubr.f32.mxu0 0.0
      %6204 = vmatmul.mubr.f32.gmra.mrb[0].mxu0 %v6026
      %v6205 = vpop.f32.mrb[0].mxu0
      %v6206 = vadd.f32 0.0, %v6205
      %v6207 = vpop.f32.mrb[0].mxu0
      %6208 = vmatprep.mubr.f32.mxu0 0.0
      %6209 = vmatmul.mubr.f32.gmra.mrb[0].mxu0 %v6029
      %v6210 = vpop.f32.mrb[0].mxu0
      %v6211 = vadd.f32 0.0, %v6210
      %v6212 = vpop.f32.mrb[0].mxu0
      %6213 = vmatprep.mubr.f32.mxu0 0.0
      %6214 = vmatmul.mubr.f32.gmra.mrb[0].mxu0 %v6032
      %v6215 = vpop.f32.mrb[0].mxu0
      %v6216 = vadd.f32 0.0, %v6215
      %v6217 = vpop.f32.mrb[0].mxu0
      %6218 = vmatprep.mubr.f32.mxu0 0.0
      %6219 = vmatmul.mubr.f32.gmra.mrb[0].mxu0 %v6035
      %v6220 = vpop.f32.mrb[0].mxu0
      %v6221 = vadd.f32 0.0, %v6220
      %v6222 = vpop.f32.mrb[0].mxu0
      %6223 = vmatprep.mubr.f32.mxu0 0.0
      %6224 = vmatmul.mubr.f32.gmra.mrb[0].mxu0 %v6038
      %v6225 = vpop.f32.mrb[0].mxu0
      %v6226 = vadd.f32 0.0, %v6225
      %v6227 = vpop.f32.mrb[0].mxu0
      %6228 = vmatprep.mubr.f32.mxu0 0.0
      %6229 = vmatmul.mubr.f32.gmra.mrb[0].mxu0 %v6041
      %v6230 = vpop.f32.mrb[0].mxu0
      %v6231 = vadd.f32 0.0, %v6230
      %v6232 = vpop.f32.mrb[0].mxu0
      %6233 = vmatprep.mubr.f32.mxu0 0.0
      %6234 = vmatmul.mubr.f32.gmra.mrb[0].mxu0 %v6044
      %v6235 = vpop.f32.mrb[0].mxu0
      %v6236 = vadd.f32 0.0, %v6235
      %v6237 = vpop.f32.mrb[0].mxu0
      %6238 = vmatprep.mubr.f32.mxu0 0.0
      %6239 = vmatmul.mubr.f32.gmra.mrb[0].mxu0 %v6047
      %v6240 = vpop.f32.mrb[0].mxu0
      %v6241 = vadd.f32 0.0, %v6240
      %v6242 = vpop.f32.mrb[0].mxu0
      %6243 = vmatprep.mubr.f32.mxu0 0.0
      %6244 = vmatmul.mubr.f32.gmra.mrb[0].mxu0 %v6050
      %v6245 = vpop.f32.mrb[0].mxu0
      %v6246 = vadd.f32 0.0, %v6245
      %v6247 = vpop.f32.mrb[0].mxu0
      %6248 = vmatprep.mubr.f32.mxu0 0.0
      %6249 = vmatmul.mubr.f32.gmra.mrb[0].mxu0 %v6053
      %v6250 = vpop.f32.mrb[0].mxu0
      %v6251 = vadd.f32 0.0, %v6250
      %v6252 = vpop.f32.mrb[0].mxu0
      %6253 = vmatprep.mubr.f32.mxu0 0.0
      %6254 = vmatmul.mubr.f32.gmra.mrb[0].mxu0 %v6056
      %v6255 = vpop.f32.mrb[0].mxu0
      %v6256 = vadd.f32 0.0, %v6255
      %v6257 = vpop.f32.mrb[0].mxu0
      %6258 = vmatprep.mubr.f32.mxu0 0.0
      %6259 = vmatmul.mubr.f32.gmra.mrb[0].mxu0 %v6059
      %v6260 = vpop.f32.mrb[0].mxu0
      %v6261 = vadd.f32 0.0, %v6260
      %v6262 = vpop.f32.mrb[0].mxu0
      %6263 = vmatprep.mubr.f32.mxu0 0.0
      %6264 = vmatmul.mubr.f32.gmra.mrb[0].mxu0 %v6062
      %v6265 = vpop.f32.mrb[0].mxu0
      %v6266 = vadd.f32 0.0, %v6265
      %v6267 = vpop.f32.mrb[0].mxu0
      %6268 = vmatprep.mubr.f32.mxu0 0.0
      %6269 = vmatmul.mubr.f32.gmra.mrb[0].mxu0 %v6065
      %v6270 = vpop.f32.mrb[0].mxu0
      %v6271 = vadd.f32 0.0, %v6270
      %v6272 = vpop.f32.mrb[0].mxu0
      %6273 = vmatprep.mubr.f32.mxu0 0.0
      %6274 = vmatmul.mubr.f32.gmra.mrb[0].mxu0 %v6068
      %v6275 = vpop.f32.mrb[0].mxu0
      %v6276 = vadd.f32 0.0, %v6275
      %v6277 = vpop.f32.mrb[0].mxu0
      %6278 = vmatprep.mubr.f32.mxu0 0.0
      %6279 = vmatmul.mubr.f32.gmra.mrb[0].mxu0 %v6071
      %v6280 = vpop.f32.mrb[0].mxu0
      %v6281 = vadd.f32 0.0, %v6280
      %v6282 = vpop.f32.mrb[0].mxu0
      %6283 = vmatprep.mubr.f32.mxu0 0.0
      %6284 = vmatmul.mubr.f32.gmra.mrb[0].mxu0 %v6074
      %v6285 = vpop.f32.mrb[0].mxu0
      %v6286 = vadd.f32 0.0, %v6285
      %v6287 = vpop.f32.mrb[0].mxu0
      %6288 = vmatprep.mubr.f32.mxu0 0.0
      %6289 = vmatmul.mubr.f32.gmra.mrb[0].mxu0 %v6077
      %v6290 = vpop.f32.mrb[0].mxu0
      %v6291 = vadd.f32 0.0, %v6290
      %v6292 = vpop.f32.mrb[0].mxu0
      %6293 = vmatprep.mubr.f32.mxu0 0.0
      %6294 = vmatmul.mubr.f32.gmra.mrb[0].mxu0 %v6080
      %v6295 = vpop.f32.mrb[0].mxu0
      %v6296 = vadd.f32 0.0, %v6295
      %v6297 = vpop.f32.mrb[0].mxu0
      %6298 = vmatprep.mubr.f32.mxu0 0.0
      %6299 = vmatmul.mubr.f32.gmra.mrb[0].mxu0 %v6083
      %v6300 = vpop.f32.mrb[0].mxu0
      %v6301 = vadd.f32 0.0, %v6300
      %v6302 = vpop.f32.mrb[0].mxu0
      %6303 = vmatprep.mubr.f32.mxu0 0.0
      %6304 = vmatmul.mubr.f32.gmra.mrb[0].mxu0 %v6086
      %v6305 = vpop.f32.mrb[0].mxu0
      %v6306 = vadd.f32 0.0, %v6305
      %v6307 = vpop.f32.mrb[0].mxu0
      %6308 = vmatprep.mubr.f32.mxu0 0.0
      %6309 = vmatmul.mubr.f32.gmra.mrb[0].mxu0 %v6089
      %v6310 = vpop.f32.mrb[0].mxu0
      %v6311 = vadd.f32 0.0, %v6310
      %v6312 = vpop.f32.mrb[0].mxu0
      %6313 = vmatprep.mubr.f32.mxu0 0.0
      %6314 = vmatmul.mubr.f32.gmra.mrb[0].mxu0 %v6092
      %v6315 = vpop.f32.mrb[0].mxu0
      %v6316 = vadd.f32 0.0, %v6315
      %v6317 = vpop.f32.mrb[0].mxu0
      %6318 = vdwg.mxu0
      %v6319 = vadd.f32 %v5964, %v6161
      %v6320 = vadd.f32 %v5965, %v6166
      %v6321 = vadd.f32 %v5966, %v6171
      %v6322 = vadd.f32 %v5967, %v6176
      %v6323 = vadd.f32 %v5968, %v6181
      %v6324 = vadd.f32 %v5969, %v6186
      %v6325 = vadd.f32 %v5970, %v6191
      %v6326 = vadd.f32 %v5971, %v6196
      %v6327 = vadd.f32 %v5972, %v6201
      %v6328 = vadd.f32 %v5973, %v6206
      %v6329 = vadd.f32 %v5974, %v6211
      %v6330 = vadd.f32 %v5975, %v6216
      %v6331 = vadd.f32 %v5976, %v6221
      %v6332 = vadd.f32 %v5977, %v6226
      %v6333 = vadd.f32 %v5978, %v6231
      %v6334 = vadd.f32 %v5979, %v6236
      %v6335 = vadd.f32 %v5980, %v6241
      %v6336 = vadd.f32 %v5981, %v6246
      %v6337 = vadd.f32 %v5982, %v6251
      %v6338 = vadd.f32 %v5983, %v6256
      %v6339 = vadd.f32 %v5984, %v6261
      %v6340 = vadd.f32 %v5985, %v6266
      %v6341 = vadd.f32 %v5986, %v6271
      %v6342 = vadd.f32 %v5987, %v6276
      %v6343 = vadd.f32 %v5988, %v6281
      %v6344 = vadd.f32 %v5989, %v6286
      %v6345 = vadd.f32 %v5990, %v6291
      %v6346 = vadd.f32 %v5991, %v6296
      %v6347 = vadd.f32 %v5992, %v6301
      %v6348 = vadd.f32 %v5993, %v6306
      %v6349 = vadd.f32 %v5994, %v6311
      %v6350 = vadd.f32 %v5995, %v6316
      %6351 = vst.msk [vmem:[#allocation4] sm:$0xff] %vm305, %v6319
      %6352 = vst.msk [vmem:[#allocation4 + $0x8] sm:$0xff] %vm305, %v6320
      %6353 = vst.msk [vmem:[#allocation4 + $0x10] sm:$0xff] %vm305, %v6321
      %6354 = vst.msk [vmem:[#allocation4 + $0x18] sm:$0xff] %vm305, %v6322
      %6355 = vst.msk [vmem:[#allocation4 + $0x20] sm:$0xff] %vm305, %v6323
      %6356 = vst.msk [vmem:[#allocation4 + $0x28] sm:$0xff] %vm305, %v6324
      %6357 = vst.msk [vmem:[#allocation4 + $0x30] sm:$0xff] %vm305, %v6325
      %6358 = vst.msk [vmem:[#allocation4 + $0x38] sm:$0xff] %vm305, %v6326
      %6359 = vst.msk [vmem:[#allocation4 + $0x40] sm:$0xff] %vm305, %v6327
      %6360 = vst.msk [vmem:[#allocation4 + $0x48] sm:$0xff] %vm305, %v6328
      %6361 = vst.msk [vmem:[#allocation4 + $0x50] sm:$0xff] %vm305, %v6329
      %6362 = vst.msk [vmem:[#allocation4 + $0x58] sm:$0xff] %vm305, %v6330
      %6363 = vst.msk [vmem:[#allocation4 + $0x60] sm:$0xff] %vm305, %v6331
      %6364 = vst.msk [vmem:[#allocation4 + $0x68] sm:$0xff] %vm305, %v6332
      %6365 = vst.msk [vmem:[#allocation4 + $0x70] sm:$0xff] %vm305, %v6333
      %6366 = vst.msk [vmem:[#allocation4 + $0x78] sm:$0xff] %vm305, %v6334
      %6367 = vst.msk [vmem:[#allocation4 + $0x80] sm:$0xff] %vm305, %v6335
      %6368 = vst.msk [vmem:[#allocation4 + $0x88] sm:$0xff] %vm305, %v6336
      %6369 = vst.msk [vmem:[#allocation4 + $0x90] sm:$0xff] %vm305, %v6337
      %6370 = vst.msk [vmem:[#allocation4 + $0x98] sm:$0xff] %vm305, %v6338
      %6371 = vst.msk [vmem:[#allocation4 + $0xa0] sm:$0xff] %vm305, %v6339
      %6372 = vst.msk [vmem:[#allocation4 + $0xa8] sm:$0xff] %vm305, %v6340
      %6373 = vst.msk [vmem:[#allocation4 + $0xb0] sm:$0xff] %vm305, %v6341
      %6374 = vst.msk [vmem:[#allocation4 + $0xb8] sm:$0xff] %vm305, %v6342
      %6375 = vst.msk [vmem:[#allocation4 + $0xc0] sm:$0xff] %vm305, %v6343
      %6376 = vst.msk [vmem:[#allocation4 + $0xc8] sm:$0xff] %vm305, %v6344
      %6377 = vst.msk [vmem:[#allocation4 + $0xd0] sm:$0xff] %vm305, %v6345
      %6378 = vst.msk [vmem:[#allocation4 + $0xd8] sm:$0xff] %vm305, %v6346
      %6379 = vst.msk [vmem:[#allocation4 + $0xe0] sm:$0xff] %vm305, %v6347
      %6380 = vst.msk [vmem:[#allocation4 + $0xe8] sm:$0xff] %vm305, %v6348
      %6381 = vst.msk [vmem:[#allocation4 + $0xf0] sm:$0xff] %vm305, %v6349
      %6382 = vst.msk [vmem:[#allocation4 + $0xf8] sm:$0xff] %vm305, %v6350
      %v6383 = vld [vmem:[%s4444 + $0x8] sm:$0xff]
      %v6384 = vld [vmem:[%s4444 + $0x10] sm:$0xff]
      %v6385 = vld [vmem:[%s4444 + $0x28] sm:$0xff]
      %v6386 = vld [vmem:[%s4444 + $0x30] sm:$0xff]
      %v6387 = vld [vmem:[%s4444 + $0x48] sm:$0xff]
      %v6388 = vld [vmem:[%s4444 + $0x50] sm:$0xff]
      %v6389 = vld [vmem:[%s4444 + $0x68] sm:$0xff]
      %v6390 = vld [vmem:[%s4444 + $0x70] sm:$0xff]
      %v6391 = vld [vmem:[%s4444 + $0x88] sm:$0xff]
      %v6392 = vld [vmem:[%s4444 + $0x90] sm:$0xff]
      %v6393 = vld [vmem:[%s4444 + $0xa8] sm:$0xff]
      %v6394 = vld [vmem:[%s4444 + $0xb0] sm:$0xff]
      %v6395 = vld [vmem:[%s4444 + $0xc8] sm:$0xff]
      %v6396 = vld [vmem:[%s4444 + $0xd0] sm:$0xff]
      %v6397 = vld [vmem:[%s4444 + $0xe8] sm:$0xff]
      %v6398 = vld [vmem:[%s4444 + $0xf0] sm:$0xff]
      %v6399 = vld [vmem:[%s4444 + $0x108] sm:$0xff]
      %v6400 = vld [vmem:[%s4444 + $0x110] sm:$0xff]
      %v6401 = vld [vmem:[%s4444 + $0x128] sm:$0xff]
      %v6402 = vld [vmem:[%s4444 + $0x130] sm:$0xff]
      %v6403 = vld [vmem:[%s4444 + $0x148] sm:$0xff]
      %v6404 = vld [vmem:[%s4444 + $0x150] sm:$0xff]
      %v6405 = vld [vmem:[%s4444 + $0x168] sm:$0xff]
      %v6406 = vld [vmem:[%s4444 + $0x170] sm:$0xff]
      %v6407 = vld [vmem:[%s4444 + $0x188] sm:$0xff]
      %v6408 = vld [vmem:[%s4444 + $0x190] sm:$0xff]
      %v6409 = vld [vmem:[%s4444 + $0x1a8] sm:$0xff]
      %v6410 = vld [vmem:[%s4444 + $0x1b0] sm:$0xff]
      %v6411 = vld [vmem:[%s4444 + $0x1c8] sm:$0xff]
      %v6412 = vld [vmem:[%s4444 + $0x1d0] sm:$0xff]
      %v6413 = vld [vmem:[%s4444 + $0x1e8] sm:$0xff]
      %v6414 = vld [vmem:[%s4444 + $0x1f0] sm:$0xff]
      %v6415 = vld [vmem:[#allocation4] sm:$0xff]
      %v6416 = vld [vmem:[#allocation4 + $0x8] sm:$0xff]
      %v6417 = vld [vmem:[#allocation4 + $0x10] sm:$0xff]
      %v6418 = vld [vmem:[#allocation4 + $0x18] sm:$0xff]
      %v6419 = vld [vmem:[#allocation4 + $0x20] sm:$0xff]
      %v6420 = vld [vmem:[#allocation4 + $0x28] sm:$0xff]
      %v6421 = vld [vmem:[#allocation4 + $0x30] sm:$0xff]
      %v6422 = vld [vmem:[#allocation4 + $0x38] sm:$0xff]
      %v6423 = vld [vmem:[#allocation4 + $0x40] sm:$0xff]
      %v6424 = vld [vmem:[#allocation4 + $0x48] sm:$0xff]
      %v6425 = vld [vmem:[#allocation4 + $0x50] sm:$0xff]
      %v6426 = vld [vmem:[#allocation4 + $0x58] sm:$0xff]
      %v6427 = vld [vmem:[#allocation4 + $0x60] sm:$0xff]
      %v6428 = vld [vmem:[#allocation4 + $0x68] sm:$0xff]
      %v6429 = vld [vmem:[#allocation4 + $0x70] sm:$0xff]
      %v6430 = vld [vmem:[#allocation4 + $0x78] sm:$0xff]
      %v6431 = vld [vmem:[#allocation4 + $0x80] sm:$0xff]
      %v6432 = vld [vmem:[#allocation4 + $0x88] sm:$0xff]
      %v6433 = vld [vmem:[#allocation4 + $0x90] sm:$0xff]
      %v6434 = vld [vmem:[#allocation4 + $0x98] sm:$0xff]
      %v6435 = vld [vmem:[#allocation4 + $0xa0] sm:$0xff]
      %v6436 = vld [vmem:[#allocation4 + $0xa8] sm:$0xff]
      %v6437 = vld [vmem:[#allocation4 + $0xb0] sm:$0xff]
      %v6438 = vld [vmem:[#allocation4 + $0xb8] sm:$0xff]
      %v6439 = vld [vmem:[#allocation4 + $0xc0] sm:$0xff]
      %v6440 = vld [vmem:[#allocation4 + $0xc8] sm:$0xff]
      %v6441 = vld [vmem:[#allocation4 + $0xd0] sm:$0xff]
      %v6442 = vld [vmem:[#allocation4 + $0xd8] sm:$0xff]
      %v6443 = vld [vmem:[#allocation4 + $0xe0] sm:$0xff]
      %v6444 = vld [vmem:[#allocation4 + $0xe8] sm:$0xff]
      %v6445 = vld [vmem:[#allocation4 + $0xf0] sm:$0xff]
      %v6446 = vld [vmem:[#allocation4 + $0xf8] sm:$0xff]
      %s6447 = scalar_lea.vmem %s4, 32
      %v6448 = vld [vmem:[%s6447] sm:$0xff]
      %v6450 = vsel %vm305, %v6383, 0
      %v6453 = vsel %vm305, %v6384, 0
      %v6456 = vsel %vm305, %v6385, 0
      %v6459 = vsel %vm305, %v6386, 0
      %v6462 = vsel %vm305, %v6387, 0
      %v6465 = vsel %vm305, %v6388, 0
      %v6468 = vsel %vm305, %v6389, 0
      %v6471 = vsel %vm305, %v6390, 0
      %v6474 = vsel %vm305, %v6391, 0
      %v6477 = vsel %vm305, %v6392, 0
      %v6480 = vsel %vm305, %v6393, 0
      %v6483 = vsel %vm305, %v6394, 0
      %v6486 = vsel %vm305, %v6395, 0
      %v6489 = vsel %vm305, %v6396, 0
      %v6492 = vsel %vm305, %v6397, 0
      %v6495 = vsel %vm305, %v6398, 0
      %v6498 = vsel %vm305, %v6399, 0
      %v6501 = vsel %vm305, %v6400, 0
      %v6504 = vsel %vm305, %v6401, 0
      %v6507 = vsel %vm305, %v6402, 0
      %v6510 = vsel %vm305, %v6403, 0
      %v6513 = vsel %vm305, %v6404, 0
      %v6516 = vsel %vm305, %v6405, 0
      %v6519 = vsel %vm305, %v6406, 0
      %v6522 = vsel %vm305, %v6407, 0
      %v6525 = vsel %vm305, %v6408, 0
      %v6528 = vsel %vm305, %v6409, 0
      %v6531 = vsel %vm305, %v6410, 0
      %v6534 = vsel %vm305, %v6411, 0
      %v6537 = vsel %vm305, %v6412, 0
      %v6540 = vsel %vm305, %v6413, 0
      %v6543 = vsel %vm305, %v6414, 0
      %6545 = vmatprep.subr.mxu0 0.0
      %6546 = vmatpush1.msra.mxu0 %v6448
      %6547 = vmatprep.subr.mxu0 0.0
      %6548 = vmatpush1.msra.mxu0 0.0
      %6549 = vmatprep.subr.mxu0 0.0
      %6550 = vmatpush1.msra.mxu0 0.0
      %6551 = vmatprep.subr.mxu0 0.0
      %6552 = vmatpush1.msra.mxu0 0.0
      %6553 = vmatprep.subr.mxu0 0.0
      %6554 = vmatpush1.msra.mxu0 0.0
      %6555 = vmatprep.subr.mxu0 0.0
      %6556 = vmatpush1.msra.mxu0 0.0
      %6557 = vmatprep.subr.mxu0 0.0
      %6558 = vmatpush1.msra.mxu0 0.0
      %6559 = vmatprep.subr.mxu0 0.0
      %6560 = vmatpush1.msra.mxu0 0.0
      %6561 = vmatprep.subr.mxu0 0.0
      %6562 = vmatpush1.msra.mxu0 0.0
      %6563 = vmatprep.subr.mxu0 0.0
      %6564 = vmatpush1.msra.mxu0 0.0
      %6565 = vmatprep.subr.mxu0 0.0
      %6566 = vmatpush1.msra.mxu0 0.0
      %6567 = vmatprep.subr.mxu0 0.0
      %6568 = vmatpush1.msra.mxu0 0.0
      %6569 = vmatprep.subr.mxu0 0.0
      %6570 = vmatpush1.msra.mxu0 0.0
      %6571 = vmatprep.subr.mxu0 0.0
      %6572 = vmatpush1.msra.mxu0 0.0
      %6573 = vmatprep.subr.mxu0 0.0
      %6574 = vmatpush1.msra.mxu0 0.0
      %6575 = vmatprep.subr.mxu0 0.0
      %6576 = vmatpush1.msra.mxu0 0.0
      %6577 = vmatprep.subr.mxu0 0.0
      %6578 = vmatpush1.msra.mxu0 0.0
      %6579 = vmatprep.subr.mxu0 0.0
      %6580 = vmatpush1.msra.mxu0 0.0
      %6581 = vmatprep.subr.mxu0 0.0
      %6582 = vmatpush1.msra.mxu0 0.0
      %6583 = vmatprep.subr.mxu0 0.0
      %6584 = vmatpush1.msra.mxu0 0.0
      %6585 = vmatprep.subr.mxu0 0.0
      %6586 = vmatpush1.msra.mxu0 0.0
      %6587 = vmatprep.subr.mxu0 0.0
      %6588 = vmatpush1.msra.mxu0 0.0
      %6589 = vmatprep.subr.mxu0 0.0
      %6590 = vmatpush1.msra.mxu0 0.0
      %6591 = vmatprep.subr.mxu0 0.0
      %6592 = vmatpush1.msra.mxu0 0.0
      %6593 = vmatprep.subr.mxu0 0.0
      %6594 = vmatpush1.msra.mxu0 0.0
      %6595 = vmatprep.subr.mxu0 0.0
      %6596 = vmatpush1.msra.mxu0 0.0
      %6597 = vmatprep.subr.mxu0 0.0
      %6598 = vmatpush1.msra.mxu0 0.0
      %6599 = vmatprep.subr.mxu0 0.0
      %6600 = vmatpush1.msra.mxu0 0.0
      %6601 = vmatprep.subr.mxu0 0.0
      %6602 = vmatpush1.msra.mxu0 0.0
      %6603 = vmatprep.subr.mxu0 0.0
      %6604 = vmatpush1.msra.mxu0 0.0
      %6605 = vmatprep.subr.mxu0 0.0
      %6606 = vmatpush1.msra.mxu0 0.0
      %6607 = vmatprep.subr.mxu0 0.0
      %6608 = vmatpush1.msra.mxu0 0.0
      %6609 = vmatprep.mubr.f32.mxu0 0.0
      %6610 = vmatmul.mubr.f32.gmra.mrb[0].mxu0 %v6450
      %v6611 = vpop.f32.mrb[0].mxu0
      %v6612 = vadd.f32 0.0, %v6611
      %v6613 = vpop.f32.mrb[0].mxu0
      %6614 = vmatprep.mubr.f32.mxu0 0.0
      %6615 = vmatmul.mubr.f32.gmra.mrb[0].mxu0 %v6453
      %v6616 = vpop.f32.mrb[0].mxu0
      %v6617 = vadd.f32 0.0, %v6616
      %v6618 = vpop.f32.mrb[0].mxu0
      %6619 = vmatprep.mubr.f32.mxu0 0.0
      %6620 = vmatmul.mubr.f32.gmra.mrb[0].mxu0 %v6456
      %v6621 = vpop.f32.mrb[0].mxu0
      %v6622 = vadd.f32 0.0, %v6621
      %v6623 = vpop.f32.mrb[0].mxu0
      %6624 = vmatprep.mubr.f32.mxu0 0.0
      %6625 = vmatmul.mubr.f32.gmra.mrb[0].mxu0 %v6459
      %v6626 = vpop.f32.mrb[0].mxu0
      %v6627 = vadd.f32 0.0, %v6626
      %v6628 = vpop.f32.mrb[0].mxu0
      %6629 = vmatprep.mubr.f32.mxu0 0.0
      %6630 = vmatmul.mubr.f32.gmra.mrb[0].mxu0 %v6462
      %v6631 = vpop.f32.mrb[0].mxu0
      %v6632 = vadd.f32 0.0, %v6631
      %v6633 = vpop.f32.mrb[0].mxu0
      %6634 = vmatprep.mubr.f32.mxu0 0.0
      %6635 = vmatmul.mubr.f32.gmra.mrb[0].mxu0 %v6465
      %v6636 = vpop.f32.mrb[0].mxu0
      %v6637 = vadd.f32 0.0, %v6636
      %v6638 = vpop.f32.mrb[0].mxu0
      %6639 = vmatprep.mubr.f32.mxu0 0.0
      %6640 = vmatmul.mubr.f32.gmra.mrb[0].mxu0 %v6468
      %v6641 = vpop.f32.mrb[0].mxu0
      %v6642 = vadd.f32 0.0, %v6641
      %v6643 = vpop.f32.mrb[0].mxu0
      %6644 = vmatprep.mubr.f32.mxu0 0.0
      %6645 = vmatmul.mubr.f32.gmra.mrb[0].mxu0 %v6471
      %v6646 = vpop.f32.mrb[0].mxu0
      %v6647 = vadd.f32 0.0, %v6646
      %v6648 = vpop.f32.mrb[0].mxu0
      %6649 = vmatprep.mubr.f32.mxu0 0.0
      %6650 = vmatmul.mubr.f32.gmra.mrb[0].mxu0 %v6474
      %v6651 = vpop.f32.mrb[0].mxu0
      %v6652 = vadd.f32 0.0, %v6651
      %v6653 = vpop.f32.mrb[0].mxu0
      %6654 = vmatprep.mubr.f32.mxu0 0.0
      %6655 = vmatmul.mubr.f32.gmra.mrb[0].mxu0 %v6477
      %v6656 = vpop.f32.mrb[0].mxu0
      %v6657 = vadd.f32 0.0, %v6656
      %v6658 = vpop.f32.mrb[0].mxu0
      %6659 = vmatprep.mubr.f32.mxu0 0.0
      %6660 = vmatmul.mubr.f32.gmra.mrb[0].mxu0 %v6480
      %v6661 = vpop.f32.mrb[0].mxu0
      %v6662 = vadd.f32 0.0, %v6661
      %v6663 = vpop.f32.mrb[0].mxu0
      %6664 = vmatprep.mubr.f32.mxu0 0.0
      %6665 = vmatmul.mubr.f32.gmra.mrb[0].mxu0 %v6483
      %v6666 = vpop.f32.mrb[0].mxu0
      %v6667 = vadd.f32 0.0, %v6666
      %v6668 = vpop.f32.mrb[0].mxu0
      %6669 = vmatprep.mubr.f32.mxu0 0.0
      %6670 = vmatmul.mubr.f32.gmra.mrb[0].mxu0 %v6486
      %v6671 = vpop.f32.mrb[0].mxu0
      %v6672 = vadd.f32 0.0, %v6671
      %v6673 = vpop.f32.mrb[0].mxu0
      %6674 = vmatprep.mubr.f32.mxu0 0.0
      %6675 = vmatmul.mubr.f32.gmra.mrb[0].mxu0 %v6489
      %v6676 = vpop.f32.mrb[0].mxu0
      %v6677 = vadd.f32 0.0, %v6676
      %v6678 = vpop.f32.mrb[0].mxu0
      %6679 = vmatprep.mubr.f32.mxu0 0.0
      %6680 = vmatmul.mubr.f32.gmra.mrb[0].mxu0 %v6492
      %v6681 = vpop.f32.mrb[0].mxu0
      %v6682 = vadd.f32 0.0, %v6681
      %v6683 = vpop.f32.mrb[0].mxu0
      %6684 = vmatprep.mubr.f32.mxu0 0.0
      %6685 = vmatmul.mubr.f32.gmra.mrb[0].mxu0 %v6495
      %v6686 = vpop.f32.mrb[0].mxu0
      %v6687 = vadd.f32 0.0, %v6686
      %v6688 = vpop.f32.mrb[0].mxu0
      %6689 = vmatprep.mubr.f32.mxu0 0.0
      %6690 = vmatmul.mubr.f32.gmra.mrb[0].mxu0 %v6498
      %v6691 = vpop.f32.mrb[0].mxu0
      %v6692 = vadd.f32 0.0, %v6691
      %v6693 = vpop.f32.mrb[0].mxu0
      %6694 = vmatprep.mubr.f32.mxu0 0.0
      %6695 = vmatmul.mubr.f32.gmra.mrb[0].mxu0 %v6501
      %v6696 = vpop.f32.mrb[0].mxu0
      %v6697 = vadd.f32 0.0, %v6696
      %v6698 = vpop.f32.mrb[0].mxu0
      %6699 = vmatprep.mubr.f32.mxu0 0.0
      %6700 = vmatmul.mubr.f32.gmra.mrb[0].mxu0 %v6504
      %v6701 = vpop.f32.mrb[0].mxu0
      %v6702 = vadd.f32 0.0, %v6701
      %v6703 = vpop.f32.mrb[0].mxu0
      %6704 = vmatprep.mubr.f32.mxu0 0.0
      %6705 = vmatmul.mubr.f32.gmra.mrb[0].mxu0 %v6507
      %v6706 = vpop.f32.mrb[0].mxu0
      %v6707 = vadd.f32 0.0, %v6706
      %v6708 = vpop.f32.mrb[0].mxu0
      %6709 = vmatprep.mubr.f32.mxu0 0.0
      %6710 = vmatmul.mubr.f32.gmra.mrb[0].mxu0 %v6510
      %v6711 = vpop.f32.mrb[0].mxu0
      %v6712 = vadd.f32 0.0, %v6711
      %v6713 = vpop.f32.mrb[0].mxu0
      %6714 = vmatprep.mubr.f32.mxu0 0.0
      %6715 = vmatmul.mubr.f32.gmra.mrb[0].mxu0 %v6513
      %v6716 = vpop.f32.mrb[0].mxu0
      %v6717 = vadd.f32 0.0, %v6716
      %v6718 = vpop.f32.mrb[0].mxu0
      %6719 = vmatprep.mubr.f32.mxu0 0.0
      %6720 = vmatmul.mubr.f32.gmra.mrb[0].mxu0 %v6516
      %v6721 = vpop.f32.mrb[0].mxu0
      %v6722 = vadd.f32 0.0, %v6721
      %v6723 = vpop.f32.mrb[0].mxu0
      %6724 = vmatprep.mubr.f32.mxu0 0.0
      %6725 = vmatmul.mubr.f32.gmra.mrb[0].mxu0 %v6519
      %v6726 = vpop.f32.mrb[0].mxu0
      %v6727 = vadd.f32 0.0, %v6726
      %v6728 = vpop.f32.mrb[0].mxu0
      %6729 = vmatprep.mubr.f32.mxu0 0.0
      %6730 = vmatmul.mubr.f32.gmra.mrb[0].mxu0 %v6522
      %v6731 = vpop.f32.mrb[0].mxu0
      %v6732 = vadd.f32 0.0, %v6731
      %v6733 = vpop.f32.mrb[0].mxu0
      %6734 = vmatprep.mubr.f32.mxu0 0.0
      %6735 = vmatmul.mubr.f32.gmra.mrb[0].mxu0 %v6525
      %v6736 = vpop.f32.mrb[0].mxu0
      %v6737 = vadd.f32 0.0, %v6736
      %v6738 = vpop.f32.mrb[0].mxu0
      %6739 = vmatprep.mubr.f32.mxu0 0.0
      %6740 = vmatmul.mubr.f32.gmra.mrb[0].mxu0 %v6528
      %v6741 = vpop.f32.mrb[0].mxu0
      %v6742 = vadd.f32 0.0, %v6741
      %v6743 = vpop.f32.mrb[0].mxu0
      %6744 = vmatprep.mubr.f32.mxu0 0.0
      %6745 = vmatmul.mubr.f32.gmra.mrb[0].mxu0 %v6531
      %v6746 = vpop.f32.mrb[0].mxu0
      %v6747 = vadd.f32 0.0, %v6746
      %v6748 = vpop.f32.mrb[0].mxu0
      %6749 = vmatprep.mubr.f32.mxu0 0.0
      %6750 = vmatmul.mubr.f32.gmra.mrb[0].mxu0 %v6534
      %v6751 = vpop.f32.mrb[0].mxu0
      %v6752 = vadd.f32 0.0, %v6751
      %v6753 = vpop.f32.mrb[0].mxu0
      %6754 = vmatprep.mubr.f32.mxu0 0.0
      %6755 = vmatmul.mubr.f32.gmra.mrb[0].mxu0 %v6537
      %v6756 = vpop.f32.mrb[0].mxu0
      %v6757 = vadd.f32 0.0, %v6756
      %v6758 = vpop.f32.mrb[0].mxu0
      %6759 = vmatprep.mubr.f32.mxu0 0.0
      %6760 = vmatmul.mubr.f32.gmra.mrb[0].mxu0 %v6540
      %v6761 = vpop.f32.mrb[0].mxu0
      %v6762 = vadd.f32 0.0, %v6761
      %v6763 = vpop.f32.mrb[0].mxu0
      %6764 = vmatprep.mubr.f32.mxu0 0.0
      %6765 = vmatmul.mubr.f32.gmra.mrb[0].mxu0 %v6543
      %v6766 = vpop.f32.mrb[0].mxu0
      %v6767 = vadd.f32 0.0, %v6766
      %v6768 = vpop.f32.mrb[0].mxu0
      %6769 = vdwg.mxu0
      %v6770 = vadd.f32 %v6415, %v6612
      %v6771 = vadd.f32 %v6416, %v6617
      %v6772 = vadd.f32 %v6417, %v6622
      %v6773 = vadd.f32 %v6418, %v6627
      %v6774 = vadd.f32 %v6419, %v6632
      %v6775 = vadd.f32 %v6420, %v6637
      %v6776 = vadd.f32 %v6421, %v6642
      %v6777 = vadd.f32 %v6422, %v6647
      %v6778 = vadd.f32 %v6423, %v6652
      %v6779 = vadd.f32 %v6424, %v6657
      %v6780 = vadd.f32 %v6425, %v6662
      %v6781 = vadd.f32 %v6426, %v6667
      %v6782 = vadd.f32 %v6427, %v6672
      %v6783 = vadd.f32 %v6428, %v6677
      %v6784 = vadd.f32 %v6429, %v6682
      %v6785 = vadd.f32 %v6430, %v6687
      %v6786 = vadd.f32 %v6431, %v6692
      %v6787 = vadd.f32 %v6432, %v6697
      %v6788 = vadd.f32 %v6433, %v6702
      %v6789 = vadd.f32 %v6434, %v6707
      %v6790 = vadd.f32 %v6435, %v6712
      %v6791 = vadd.f32 %v6436, %v6717
      %v6792 = vadd.f32 %v6437, %v6722
      %v6793 = vadd.f32 %v6438, %v6727
      %v6794 = vadd.f32 %v6439, %v6732
      %v6795 = vadd.f32 %v6440, %v6737
      %v6796 = vadd.f32 %v6441, %v6742
      %v6797 = vadd.f32 %v6442, %v6747
      %v6798 = vadd.f32 %v6443, %v6752
      %v6799 = vadd.f32 %v6444, %v6757
      %v6800 = vadd.f32 %v6445, %v6762
      %v6801 = vadd.f32 %v6446, %v6767
      %6802 = vst.msk [vmem:[#allocation4] sm:$0xff] %vm305, %v6770
      %6803 = vst.msk [vmem:[#allocation4 + $0x8] sm:$0xff] %vm305, %v6771
      %6804 = vst.msk [vmem:[#allocation4 + $0x10] sm:$0xff] %vm305, %v6772
      %6805 = vst.msk [vmem:[#allocation4 + $0x18] sm:$0xff] %vm305, %v6773
      %6806 = vst.msk [vmem:[#allocation4 + $0x20] sm:$0xff] %vm305, %v6774
      %6807 = vst.msk [vmem:[#allocation4 + $0x28] sm:$0xff] %vm305, %v6775
      %6808 = vst.msk [vmem:[#allocation4 + $0x30] sm:$0xff] %vm305, %v6776
      %6809 = vst.msk [vmem:[#allocation4 + $0x38] sm:$0xff] %vm305, %v6777
      %6810 = vst.msk [vmem:[#allocation4 + $0x40] sm:$0xff] %vm305, %v6778
      %6811 = vst.msk [vmem:[#allocation4 + $0x48] sm:$0xff] %vm305, %v6779
      %6812 = vst.msk [vmem:[#allocation4 + $0x50] sm:$0xff] %vm305, %v6780
      %6813 = vst.msk [vmem:[#allocation4 + $0x58] sm:$0xff] %vm305, %v6781
      %6814 = vst.msk [vmem:[#allocation4 + $0x60] sm:$0xff] %vm305, %v6782
      %6815 = vst.msk [vmem:[#allocation4 + $0x68] sm:$0xff] %vm305, %v6783
      %6816 = vst.msk [vmem:[#allocation4 + $0x70] sm:$0xff] %vm305, %v6784
      %6817 = vst.msk [vmem:[#allocation4 + $0x78] sm:$0xff] %vm305, %v6785
      %6818 = vst.msk [vmem:[#allocation4 + $0x80] sm:$0xff] %vm305, %v6786
      %6819 = vst.msk [vmem:[#allocation4 + $0x88] sm:$0xff] %vm305, %v6787
      %6820 = vst.msk [vmem:[#allocation4 + $0x90] sm:$0xff] %vm305, %v6788
      %6821 = vst.msk [vmem:[#allocation4 + $0x98] sm:$0xff] %vm305, %v6789
      %6822 = vst.msk [vmem:[#allocation4 + $0xa0] sm:$0xff] %vm305, %v6790
      %6823 = vst.msk [vmem:[#allocation4 + $0xa8] sm:$0xff] %vm305, %v6791
      %6824 = vst.msk [vmem:[#allocation4 + $0xb0] sm:$0xff] %vm305, %v6792
      %6825 = vst.msk [vmem:[#allocation4 + $0xb8] sm:$0xff] %vm305, %v6793
      %6826 = vst.msk [vmem:[#allocation4 + $0xc0] sm:$0xff] %vm305, %v6794
      %6827 = vst.msk [vmem:[#allocation4 + $0xc8] sm:$0xff] %vm305, %v6795
      %6828 = vst.msk [vmem:[#allocation4 + $0xd0] sm:$0xff] %vm305, %v6796
      %6829 = vst.msk [vmem:[#allocation4 + $0xd8] sm:$0xff] %vm305, %v6797
      %6830 = vst.msk [vmem:[#allocation4 + $0xe0] sm:$0xff] %vm305, %v6798
      %6831 = vst.msk [vmem:[#allocation4 + $0xe8] sm:$0xff] %vm305, %v6799
      %6832 = vst.msk [vmem:[#allocation4 + $0xf0] sm:$0xff] %vm305, %v6800
      %6833 = vst.msk [vmem:[#allocation4 + $0xf8] sm:$0xff] %vm305, %v6801
      %v6834 = vld [vmem:[%s4444 + $0x9] sm:$0xff]
      %v6835 = vld [vmem:[%s4444 + $0x11] sm:$0xff]
      %v6836 = vld [vmem:[%s4444 + $0x29] sm:$0xff]
      %v6837 = vld [vmem:[%s4444 + $0x31] sm:$0xff]
      %v6838 = vld [vmem:[%s4444 + $0x49] sm:$0xff]
      %v6839 = vld [vmem:[%s4444 + $0x51] sm:$0xff]
      %v6840 = vld [vmem:[%s4444 + $0x69] sm:$0xff]
      %v6841 = vld [vmem:[%s4444 + $0x71] sm:$0xff]
      %v6842 = vld [vmem:[%s4444 + $0x89] sm:$0xff]
      %v6843 = vld [vmem:[%s4444 + $0x91] sm:$0xff]
      %v6844 = vld [vmem:[%s4444 + $0xa9] sm:$0xff]
      %v6845 = vld [vmem:[%s4444 + $0xb1] sm:$0xff]
      %v6846 = vld [vmem:[%s4444 + $0xc9] sm:$0xff]
      %v6847 = vld [vmem:[%s4444 + $0xd1] sm:$0xff]
      %v6848 = vld [vmem:[%s4444 + $0xe9] sm:$0xff]
      %v6849 = vld [vmem:[%s4444 + $0xf1] sm:$0xff]
      %v6850 = vld [vmem:[%s4444 + $0x109] sm:$0xff]
      %v6851 = vld [vmem:[%s4444 + $0x111] sm:$0xff]
      %v6852 = vld [vmem:[%s4444 + $0x129] sm:$0xff]
      %v6853 = vld [vmem:[%s4444 + $0x131] sm:$0xff]
      %v6854 = vld [vmem:[%s4444 + $0x149] sm:$0xff]
      %v6855 = vld [vmem:[%s4444 + $0x151] sm:$0xff]
      %v6856 = vld [vmem:[%s4444 + $0x169] sm:$0xff]
      %v6857 = vld [vmem:[%s4444 + $0x171] sm:$0xff]
      %v6858 = vld [vmem:[%s4444 + $0x189] sm:$0xff]
      %v6859 = vld [vmem:[%s4444 + $0x191] sm:$0xff]
      %v6860 = vld [vmem:[%s4444 + $0x1a9] sm:$0xff]
      %v6861 = vld [vmem:[%s4444 + $0x1b1] sm:$0xff]
      %v6862 = vld [vmem:[%s4444 + $0x1c9] sm:$0xff]
      %v6863 = vld [vmem:[%s4444 + $0x1d1] sm:$0xff]
      %v6864 = vld [vmem:[%s4444 + $0x1e9] sm:$0xff]
      %v6865 = vld [vmem:[%s4444 + $0x1f1] sm:$0xff]
      %v6866 = vld [vmem:[#allocation4] sm:$0xff]
      %v6867 = vld [vmem:[#allocation4 + $0x8] sm:$0xff]
      %v6868 = vld [vmem:[#allocation4 + $0x10] sm:$0xff]
      %v6869 = vld [vmem:[#allocation4 + $0x18] sm:$0xff]
      %v6870 = vld [vmem:[#allocation4 + $0x20] sm:$0xff]
      %v6871 = vld [vmem:[#allocation4 + $0x28] sm:$0xff]
      %v6872 = vld [vmem:[#allocation4 + $0x30] sm:$0xff]
      %v6873 = vld [vmem:[#allocation4 + $0x38] sm:$0xff]
      %v6874 = vld [vmem:[#allocation4 + $0x40] sm:$0xff]
      %v6875 = vld [vmem:[#allocation4 + $0x48] sm:$0xff]
      %v6876 = vld [vmem:[#allocation4 + $0x50] sm:$0xff]
      %v6877 = vld [vmem:[#allocation4 + $0x58] sm:$0xff]
      %v6878 = vld [vmem:[#allocation4 + $0x60] sm:$0xff]
      %v6879 = vld [vmem:[#allocation4 + $0x68] sm:$0xff]
      %v6880 = vld [vmem:[#allocation4 + $0x70] sm:$0xff]
      %v6881 = vld [vmem:[#allocation4 + $0x78] sm:$0xff]
      %v6882 = vld [vmem:[#allocation4 + $0x80] sm:$0xff]
      %v6883 = vld [vmem:[#allocation4 + $0x88] sm:$0xff]
      %v6884 = vld [vmem:[#allocation4 + $0x90] sm:$0xff]
      %v6885 = vld [vmem:[#allocation4 + $0x98] sm:$0xff]
      %v6886 = vld [vmem:[#allocation4 + $0xa0] sm:$0xff]
      %v6887 = vld [vmem:[#allocation4 + $0xa8] sm:$0xff]
      %v6888 = vld [vmem:[#allocation4 + $0xb0] sm:$0xff]
      %v6889 = vld [vmem:[#allocation4 + $0xb8] sm:$0xff]
      %v6890 = vld [vmem:[#allocation4 + $0xc0] sm:$0xff]
      %v6891 = vld [vmem:[#allocation4 + $0xc8] sm:$0xff]
      %v6892 = vld [vmem:[#allocation4 + $0xd0] sm:$0xff]
      %v6893 = vld [vmem:[#allocation4 + $0xd8] sm:$0xff]
      %v6894 = vld [vmem:[#allocation4 + $0xe0] sm:$0xff]
      %v6895 = vld [vmem:[#allocation4 + $0xe8] sm:$0xff]
      %v6896 = vld [vmem:[#allocation4 + $0xf0] sm:$0xff]
      %v6897 = vld [vmem:[#allocation4 + $0xf8] sm:$0xff]
      %s6898 = scalar_lea.vmem %s4, 40
      %v6899 = vld [vmem:[%s6898] sm:$0xff]
      %v6901 = vsel %vm305, %v6834, 0
      %v6904 = vsel %vm305, %v6835, 0
      %v6907 = vsel %vm305, %v6836, 0
      %v6910 = vsel %vm305, %v6837, 0
      %v6913 = vsel %vm305, %v6838, 0
      %v6916 = vsel %vm305, %v6839, 0
      %v6919 = vsel %vm305, %v6840, 0
      %v6922 = vsel %vm305, %v6841, 0
      %v6925 = vsel %vm305, %v6842, 0
      %v6928 = vsel %vm305, %v6843, 0
      %v6931 = vsel %vm305, %v6844, 0
      %v6934 = vsel %vm305, %v6845, 0
      %v6937 = vsel %vm305, %v6846, 0
      %v6940 = vsel %vm305, %v6847, 0
      %v6943 = vsel %vm305, %v6848, 0
      %v6946 = vsel %vm305, %v6849, 0
      %v6949 = vsel %vm305, %v6850, 0
      %v6952 = vsel %vm305, %v6851, 0
      %v6955 = vsel %vm305, %v6852, 0
      %v6958 = vsel %vm305, %v6853, 0
      %v6961 = vsel %vm305, %v6854, 0
      %v6964 = vsel %vm305, %v6855, 0
      %v6967 = vsel %vm305, %v6856, 0
      %v6970 = vsel %vm305, %v6857, 0
      %v6973 = vsel %vm305, %v6858, 0
      %v6976 = vsel %vm305, %v6859, 0
      %v6979 = vsel %vm305, %v6860, 0
      %v6982 = vsel %vm305, %v6861, 0
      %v6985 = vsel %vm305, %v6862, 0
      %v6988 = vsel %vm305, %v6863, 0
      %v6991 = vsel %vm305, %v6864, 0
      %v6994 = vsel %vm305, %v6865, 0
      %6996 = vmatprep.subr.mxu0 0.0
      %6997 = vmatpush1.msra.mxu0 %v6899
      %6998 = vmatprep.subr.mxu0 0.0
      %6999 = vmatpush1.msra.mxu0 0.0
      %7000 = vmatprep.subr.mxu0 0.0
      %7001 = vmatpush1.msra.mxu0 0.0
      %7002 = vmatprep.subr.mxu0 0.0
      %7003 = vmatpush1.msra.mxu0 0.0
      %7004 = vmatprep.subr.mxu0 0.0
      %7005 = vmatpush1.msra.mxu0 0.0
      %7006 = vmatprep.subr.mxu0 0.0
      %7007 = vmatpush1.msra.mxu0 0.0
      %7008 = vmatprep.subr.mxu0 0.0
      %7009 = vmatpush1.msra.mxu0 0.0
      %7010 = vmatprep.subr.mxu0 0.0
      %7011 = vmatpush1.msra.mxu0 0.0
      %7012 = vmatprep.subr.mxu0 0.0
      %7013 = vmatpush1.msra.mxu0 0.0
      %7014 = vmatprep.subr.mxu0 0.0
      %7015 = vmatpush1.msra.mxu0 0.0
      %7016 = vmatprep.subr.mxu0 0.0
      %7017 = vmatpush1.msra.mxu0 0.0
      %7018 = vmatprep.subr.mxu0 0.0
      %7019 = vmatpush1.msra.mxu0 0.0
      %7020 = vmatprep.subr.mxu0 0.0
      %7021 = vmatpush1.msra.mxu0 0.0
      %7022 = vmatprep.subr.mxu0 0.0
      %7023 = vmatpush1.msra.mxu0 0.0
      %7024 = vmatprep.subr.mxu0 0.0
      %7025 = vmatpush1.msra.mxu0 0.0
      %7026 = vmatprep.subr.mxu0 0.0
      %7027 = vmatpush1.msra.mxu0 0.0
      %7028 = vmatprep.subr.mxu0 0.0
      %7029 = vmatpush1.msra.mxu0 0.0
      %7030 = vmatprep.subr.mxu0 0.0
      %7031 = vmatpush1.msra.mxu0 0.0
      %7032 = vmatprep.subr.mxu0 0.0
      %7033 = vmatpush1.msra.mxu0 0.0
      %7034 = vmatprep.subr.mxu0 0.0
      %7035 = vmatpush1.msra.mxu0 0.0
      %7036 = vmatprep.subr.mxu0 0.0
      %7037 = vmatpush1.msra.mxu0 0.0
      %7038 = vmatprep.subr.mxu0 0.0
      %7039 = vmatpush1.msra.mxu0 0.0
      %7040 = vmatprep.subr.mxu0 0.0
      %7041 = vmatpush1.msra.mxu0 0.0
      %7042 = vmatprep.subr.mxu0 0.0
      %7043 = vmatpush1.msra.mxu0 0.0
      %7044 = vmatprep.subr.mxu0 0.0
      %7045 = vmatpush1.msra.mxu0 0.0
      %7046 = vmatprep.subr.mxu0 0.0
      %7047 = vmatpush1.msra.mxu0 0.0
      %7048 = vmatprep.subr.mxu0 0.0
      %7049 = vmatpush1.msra.mxu0 0.0
      %7050 = vmatprep.subr.mxu0 0.0
      %7051 = vmatpush1.msra.mxu0 0.0
      %7052 = vmatprep.subr.mxu0 0.0
      %7053 = vmatpush1.msra.mxu0 0.0
      %7054 = vmatprep.subr.mxu0 0.0
      %7055 = vmatpush1.msra.mxu0 0.0
      %7056 = vmatprep.subr.mxu0 0.0
      %7057 = vmatpush1.msra.mxu0 0.0
      %7058 = vmatprep.subr.mxu0 0.0
      %7059 = vmatpush1.msra.mxu0 0.0
      %7060 = vmatprep.mubr.f32.mxu0 0.0
      %7061 = vmatmul.mubr.f32.gmra.mrb[0].mxu0 %v6901
      %v7062 = vpop.f32.mrb[0].mxu0
      %v7063 = vadd.f32 0.0, %v7062
      %v7064 = vpop.f32.mrb[0].mxu0
      %7065 = vmatprep.mubr.f32.mxu0 0.0
      %7066 = vmatmul.mubr.f32.gmra.mrb[0].mxu0 %v6904
      %v7067 = vpop.f32.mrb[0].mxu0
      %v7068 = vadd.f32 0.0, %v7067
      %v7069 = vpop.f32.mrb[0].mxu0
      %7070 = vmatprep.mubr.f32.mxu0 0.0
      %7071 = vmatmul.mubr.f32.gmra.mrb[0].mxu0 %v6907
      %v7072 = vpop.f32.mrb[0].mxu0
      %v7073 = vadd.f32 0.0, %v7072
      %v7074 = vpop.f32.mrb[0].mxu0
      %7075 = vmatprep.mubr.f32.mxu0 0.0
      %7076 = vmatmul.mubr.f32.gmra.mrb[0].mxu0 %v6910
      %v7077 = vpop.f32.mrb[0].mxu0
      %v7078 = vadd.f32 0.0, %v7077
      %v7079 = vpop.f32.mrb[0].mxu0
      %7080 = vmatprep.mubr.f32.mxu0 0.0
      %7081 = vmatmul.mubr.f32.gmra.mrb[0].mxu0 %v6913
      %v7082 = vpop.f32.mrb[0].mxu0
      %v7083 = vadd.f32 0.0, %v7082
      %v7084 = vpop.f32.mrb[0].mxu0
      %7085 = vmatprep.mubr.f32.mxu0 0.0
      %7086 = vmatmul.mubr.f32.gmra.mrb[0].mxu0 %v6916
      %v7087 = vpop.f32.mrb[0].mxu0
      %v7088 = vadd.f32 0.0, %v7087
      %v7089 = vpop.f32.mrb[0].mxu0
      %7090 = vmatprep.mubr.f32.mxu0 0.0
      %7091 = vmatmul.mubr.f32.gmra.mrb[0].mxu0 %v6919
      %v7092 = vpop.f32.mrb[0].mxu0
      %v7093 = vadd.f32 0.0, %v7092
      %v7094 = vpop.f32.mrb[0].mxu0
      %7095 = vmatprep.mubr.f32.mxu0 0.0
      %7096 = vmatmul.mubr.f32.gmra.mrb[0].mxu0 %v6922
      %v7097 = vpop.f32.mrb[0].mxu0
      %v7098 = vadd.f32 0.0, %v7097
      %v7099 = vpop.f32.mrb[0].mxu0
      %7100 = vmatprep.mubr.f32.mxu0 0.0
      %7101 = vmatmul.mubr.f32.gmra.mrb[0].mxu0 %v6925
      %v7102 = vpop.f32.mrb[0].mxu0
      %v7103 = vadd.f32 0.0, %v7102
      %v7104 = vpop.f32.mrb[0].mxu0
      %7105 = vmatprep.mubr.f32.mxu0 0.0
      %7106 = vmatmul.mubr.f32.gmra.mrb[0].mxu0 %v6928
      %v7107 = vpop.f32.mrb[0].mxu0
      %v7108 = vadd.f32 0.0, %v7107
      %v7109 = vpop.f32.mrb[0].mxu0
      %7110 = vmatprep.mubr.f32.mxu0 0.0
      %7111 = vmatmul.mubr.f32.gmra.mrb[0].mxu0 %v6931
      %v7112 = vpop.f32.mrb[0].mxu0
      %v7113 = vadd.f32 0.0, %v7112
      %v7114 = vpop.f32.mrb[0].mxu0
      %7115 = vmatprep.mubr.f32.mxu0 0.0
      %7116 = vmatmul.mubr.f32.gmra.mrb[0].mxu0 %v6934
      %v7117 = vpop.f32.mrb[0].mxu0
      %v7118 = vadd.f32 0.0, %v7117
      %v7119 = vpop.f32.mrb[0].mxu0
      %7120 = vmatprep.mubr.f32.mxu0 0.0
      %7121 = vmatmul.mubr.f32.gmra.mrb[0].mxu0 %v6937
      %v7122 = vpop.f32.mrb[0].mxu0
      %v7123 = vadd.f32 0.0, %v7122
      %v7124 = vpop.f32.mrb[0].mxu0
      %7125 = vmatprep.mubr.f32.mxu0 0.0
      %7126 = vmatmul.mubr.f32.gmra.mrb[0].mxu0 %v6940
      %v7127 = vpop.f32.mrb[0].mxu0
      %v7128 = vadd.f32 0.0, %v7127
      %v7129 = vpop.f32.mrb[0].mxu0
      %7130 = vmatprep.mubr.f32.mxu0 0.0
      %7131 = vmatmul.mubr.f32.gmra.mrb[0].mxu0 %v6943
      %v7132 = vpop.f32.mrb[0].mxu0
      %v7133 = vadd.f32 0.0, %v7132
      %v7134 = vpop.f32.mrb[0].mxu0
      %7135 = vmatprep.mubr.f32.mxu0 0.0
      %7136 = vmatmul.mubr.f32.gmra.mrb[0].mxu0 %v6946
      %v7137 = vpop.f32.mrb[0].mxu0
      %v7138 = vadd.f32 0.0, %v7137
      %v7139 = vpop.f32.mrb[0].mxu0
      %7140 = vmatprep.mubr.f32.mxu0 0.0
      %7141 = vmatmul.mubr.f32.gmra.mrb[0].mxu0 %v6949
      %v7142 = vpop.f32.mrb[0].mxu0
      %v7143 = vadd.f32 0.0, %v7142
      %v7144 = vpop.f32.mrb[0].mxu0
      %7145 = vmatprep.mubr.f32.mxu0 0.0
      %7146 = vmatmul.mubr.f32.gmra.mrb[0].mxu0 %v6952
      %v7147 = vpop.f32.mrb[0].mxu0
      %v7148 = vadd.f32 0.0, %v7147
      %v7149 = vpop.f32.mrb[0].mxu0
      %7150 = vmatprep.mubr.f32.mxu0 0.0
      %7151 = vmatmul.mubr.f32.gmra.mrb[0].mxu0 %v6955
      %v7152 = vpop.f32.mrb[0].mxu0
      %v7153 = vadd.f32 0.0, %v7152
      %v7154 = vpop.f32.mrb[0].mxu0
      %7155 = vmatprep.mubr.f32.mxu0 0.0
      %7156 = vmatmul.mubr.f32.gmra.mrb[0].mxu0 %v6958
      %v7157 = vpop.f32.mrb[0].mxu0
      %v7158 = vadd.f32 0.0, %v7157
      %v7159 = vpop.f32.mrb[0].mxu0
      %7160 = vmatprep.mubr.f32.mxu0 0.0
      %7161 = vmatmul.mubr.f32.gmra.mrb[0].mxu0 %v6961
      %v7162 = vpop.f32.mrb[0].mxu0
      %v7163 = vadd.f32 0.0, %v7162
      %v7164 = vpop.f32.mrb[0].mxu0
      %7165 = vmatprep.mubr.f32.mxu0 0.0
      %7166 = vmatmul.mubr.f32.gmra.mrb[0].mxu0 %v6964
      %v7167 = vpop.f32.mrb[0].mxu0
      %v7168 = vadd.f32 0.0, %v7167
      %v7169 = vpop.f32.mrb[0].mxu0
      %7170 = vmatprep.mubr.f32.mxu0 0.0
      %7171 = vmatmul.mubr.f32.gmra.mrb[0].mxu0 %v6967
      %v7172 = vpop.f32.mrb[0].mxu0
      %v7173 = vadd.f32 0.0, %v7172
      %v7174 = vpop.f32.mrb[0].mxu0
      %7175 = vmatprep.mubr.f32.mxu0 0.0
      %7176 = vmatmul.mubr.f32.gmra.mrb[0].mxu0 %v6970
      %v7177 = vpop.f32.mrb[0].mxu0
      %v7178 = vadd.f32 0.0, %v7177
      %v7179 = vpop.f32.mrb[0].mxu0
      %7180 = vmatprep.mubr.f32.mxu0 0.0
      %7181 = vmatmul.mubr.f32.gmra.mrb[0].mxu0 %v6973
      %v7182 = vpop.f32.mrb[0].mxu0
      %v7183 = vadd.f32 0.0, %v7182
      %v7184 = vpop.f32.mrb[0].mxu0
      %7185 = vmatprep.mubr.f32.mxu0 0.0
      %7186 = vmatmul.mubr.f32.gmra.mrb[0].mxu0 %v6976
      %v7187 = vpop.f32.mrb[0].mxu0
      %v7188 = vadd.f32 0.0, %v7187
      %v7189 = vpop.f32.mrb[0].mxu0
      %7190 = vmatprep.mubr.f32.mxu0 0.0
      %7191 = vmatmul.mubr.f32.gmra.mrb[0].mxu0 %v6979
      %v7192 = vpop.f32.mrb[0].mxu0
      %v7193 = vadd.f32 0.0, %v7192
      %v7194 = vpop.f32.mrb[0].mxu0
      %7195 = vmatprep.mubr.f32.mxu0 0.0
      %7196 = vmatmul.mubr.f32.gmra.mrb[0].mxu0 %v6982
      %v7197 = vpop.f32.mrb[0].mxu0
      %v7198 = vadd.f32 0.0, %v7197
      %v7199 = vpop.f32.mrb[0].mxu0
      %7200 = vmatprep.mubr.f32.mxu0 0.0
      %7201 = vmatmul.mubr.f32.gmra.mrb[0].mxu0 %v6985
      %v7202 = vpop.f32.mrb[0].mxu0
      %v7203 = vadd.f32 0.0, %v7202
      %v7204 = vpop.f32.mrb[0].mxu0
      %7205 = vmatprep.mubr.f32.mxu0 0.0
      %7206 = vmatmul.mubr.f32.gmra.mrb[0].mxu0 %v6988
      %v7207 = vpop.f32.mrb[0].mxu0
      %v7208 = vadd.f32 0.0, %v7207
      %v7209 = vpop.f32.mrb[0].mxu0
      %7210 = vmatprep.mubr.f32.mxu0 0.0
      %7211 = vmatmul.mubr.f32.gmra.mrb[0].mxu0 %v6991
      %v7212 = vpop.f32.mrb[0].mxu0
      %v7213 = vadd.f32 0.0, %v7212
      %v7214 = vpop.f32.mrb[0].mxu0
      %7215 = vmatprep.mubr.f32.mxu0 0.0
      %7216 = vmatmul.mubr.f32.gmra.mrb[0].mxu0 %v6994
      %v7217 = vpop.f32.mrb[0].mxu0
      %v7218 = vadd.f32 0.0, %v7217
      %v7219 = vpop.f32.mrb[0].mxu0
      %7220 = vdwg.mxu0
      %v7221 = vadd.f32 %v6866, %v7063
      %v7222 = vadd.f32 %v6867, %v7068
      %v7223 = vadd.f32 %v6868, %v7073
      %v7224 = vadd.f32 %v6869, %v7078
      %v7225 = vadd.f32 %v6870, %v7083
      %v7226 = vadd.f32 %v6871, %v7088
      %v7227 = vadd.f32 %v6872, %v7093
      %v7228 = vadd.f32 %v6873, %v7098
      %v7229 = vadd.f32 %v6874, %v7103
      %v7230 = vadd.f32 %v6875, %v7108
      %v7231 = vadd.f32 %v6876, %v7113
      %v7232 = vadd.f32 %v6877, %v7118
      %v7233 = vadd.f32 %v6878, %v7123
      %v7234 = vadd.f32 %v6879, %v7128
      %v7235 = vadd.f32 %v6880, %v7133
      %v7236 = vadd.f32 %v6881, %v7138
      %v7237 = vadd.f32 %v6882, %v7143
      %v7238 = vadd.f32 %v6883, %v7148
      %v7239 = vadd.f32 %v6884, %v7153
      %v7240 = vadd.f32 %v6885, %v7158
      %v7241 = vadd.f32 %v6886, %v7163
      %v7242 = vadd.f32 %v6887, %v7168
      %v7243 = vadd.f32 %v6888, %v7173
      %v7244 = vadd.f32 %v6889, %v7178
      %v7245 = vadd.f32 %v6890, %v7183
      %v7246 = vadd.f32 %v6891, %v7188
      %v7247 = vadd.f32 %v6892, %v7193
      %v7248 = vadd.f32 %v6893, %v7198
      %v7249 = vadd.f32 %v6894, %v7203
      %v7250 = vadd.f32 %v6895, %v7208
      %v7251 = vadd.f32 %v6896, %v7213
      %v7252 = vadd.f32 %v6897, %v7218
      %7253 = vst.msk [vmem:[#allocation4] sm:$0xff] %vm305, %v7221
      %7254 = vst.msk [vmem:[#allocation4 + $0x8] sm:$0xff] %vm305, %v7222
      %7255 = vst.msk [vmem:[#allocation4 + $0x10] sm:$0xff] %vm305, %v7223
      %7256 = vst.msk [vmem:[#allocation4 + $0x18] sm:$0xff] %vm305, %v7224
      %7257 = vst.msk [vmem:[#allocation4 + $0x20] sm:$0xff] %vm305, %v7225
      %7258 = vst.msk [vmem:[#allocation4 + $0x28] sm:$0xff] %vm305, %v7226
      %7259 = vst.msk [vmem:[#allocation4 + $0x30] sm:$0xff] %vm305, %v7227
      %7260 = vst.msk [vmem:[#allocation4 + $0x38] sm:$0xff] %vm305, %v7228
      %7261 = vst.msk [vmem:[#allocation4 + $0x40] sm:$0xff] %vm305, %v7229
      %7262 = vst.msk [vmem:[#allocation4 + $0x48] sm:$0xff] %vm305, %v7230
      %7263 = vst.msk [vmem:[#allocation4 + $0x50] sm:$0xff] %vm305, %v7231
      %7264 = vst.msk [vmem:[#allocation4 + $0x58] sm:$0xff] %vm305, %v7232
      %7265 = vst.msk [vmem:[#allocation4 + $0x60] sm:$0xff] %vm305, %v7233
      %7266 = vst.msk [vmem:[#allocation4 + $0x68] sm:$0xff] %vm305, %v7234
      %7267 = vst.msk [vmem:[#allocation4 + $0x70] sm:$0xff] %vm305, %v7235
      %7268 = vst.msk [vmem:[#allocation4 + $0x78] sm:$0xff] %vm305, %v7236
      %7269 = vst.msk [vmem:[#allocation4 + $0x80] sm:$0xff] %vm305, %v7237
      %7270 = vst.msk [vmem:[#allocation4 + $0x88] sm:$0xff] %vm305, %v7238
      %7271 = vst.msk [vmem:[#allocation4 + $0x90] sm:$0xff] %vm305, %v7239
      %7272 = vst.msk [vmem:[#allocation4 + $0x98] sm:$0xff] %vm305, %v7240
      %7273 = vst.msk [vmem:[#allocation4 + $0xa0] sm:$0xff] %vm305, %v7241
      %7274 = vst.msk [vmem:[#allocation4 + $0xa8] sm:$0xff] %vm305, %v7242
      %7275 = vst.msk [vmem:[#allocation4 + $0xb0] sm:$0xff] %vm305, %v7243
      %7276 = vst.msk [vmem:[#allocation4 + $0xb8] sm:$0xff] %vm305, %v7244
      %7277 = vst.msk [vmem:[#allocation4 + $0xc0] sm:$0xff] %vm305, %v7245
      %7278 = vst.msk [vmem:[#allocation4 + $0xc8] sm:$0xff] %vm305, %v7246
      %7279 = vst.msk [vmem:[#allocation4 + $0xd0] sm:$0xff] %vm305, %v7247
      %7280 = vst.msk [vmem:[#allocation4 + $0xd8] sm:$0xff] %vm305, %v7248
      %7281 = vst.msk [vmem:[#allocation4 + $0xe0] sm:$0xff] %vm305, %v7249
      %7282 = vst.msk [vmem:[#allocation4 + $0xe8] sm:$0xff] %vm305, %v7250
      %7283 = vst.msk [vmem:[#allocation4 + $0xf0] sm:$0xff] %vm305, %v7251
      %7284 = vst.msk [vmem:[#allocation4 + $0xf8] sm:$0xff] %vm305, %v7252
      %s7285 = scalar_lea.vmem [#allocation2], 64
      %v7286 = vld [vmem:[%s7285 + $0x7] sm:$0xff]
      %v7287 = vld [vmem:[%s7285 + $0xf] sm:$0xff]
      %v7288 = vld [vmem:[%s7285 + $0x27] sm:$0xff]
      %v7289 = vld [vmem:[%s7285 + $0x2f] sm:$0xff]
      %v7290 = vld [vmem:[%s7285 + $0x47] sm:$0xff]
      %v7291 = vld [vmem:[%s7285 + $0x4f] sm:$0xff]
      %v7292 = vld [vmem:[%s7285 + $0x67] sm:$0xff]
      %v7293 = vld [vmem:[%s7285 + $0x6f] sm:$0xff]
      %v7294 = vld [vmem:[%s7285 + $0x87] sm:$0xff]
      %v7295 = vld [vmem:[%s7285 + $0x8f] sm:$0xff]
      %v7296 = vld [vmem:[%s7285 + $0xa7] sm:$0xff]
      %v7297 = vld [vmem:[%s7285 + $0xaf] sm:$0xff]
      %v7298 = vld [vmem:[%s7285 + $0xc7] sm:$0xff]
      %v7299 = vld [vmem:[%s7285 + $0xcf] sm:$0xff]
      %v7300 = vld [vmem:[%s7285 + $0xe7] sm:$0xff]
      %v7301 = vld [vmem:[%s7285 + $0xef] sm:$0xff]
      %v7302 = vld [vmem:[%s7285 + $0x107] sm:$0xff]
      %v7303 = vld [vmem:[%s7285 + $0x10f] sm:$0xff]
      %v7304 = vld [vmem:[%s7285 + $0x127] sm:$0xff]
      %v7305 = vld [vmem:[%s7285 + $0x12f] sm:$0xff]
      %v7306 = vld [vmem:[%s7285 + $0x147] sm:$0xff]
      %v7307 = vld [vmem:[%s7285 + $0x14f] sm:$0xff]
      %v7308 = vld [vmem:[%s7285 + $0x167] sm:$0xff]
      %v7309 = vld [vmem:[%s7285 + $0x16f] sm:$0xff]
      %v7310 = vld [vmem:[%s7285 + $0x187] sm:$0xff]
      %v7311 = vld [vmem:[%s7285 + $0x18f] sm:$0xff]
      %v7312 = vld [vmem:[%s7285 + $0x1a7] sm:$0xff]
      %v7313 = vld [vmem:[%s7285 + $0x1af] sm:$0xff]
      %v7314 = vld [vmem:[%s7285 + $0x1c7] sm:$0xff]
      %v7315 = vld [vmem:[%s7285 + $0x1cf] sm:$0xff]
      %v7316 = vld [vmem:[%s7285 + $0x1e7] sm:$0xff]
      %v7317 = vld [vmem:[%s7285 + $0x1ef] sm:$0xff]
      %v7318 = vld [vmem:[#allocation4] sm:$0xff]
      %v7319 = vld [vmem:[#allocation4 + $0x8] sm:$0xff]
      %v7320 = vld [vmem:[#allocation4 + $0x10] sm:$0xff]
      %v7321 = vld [vmem:[#allocation4 + $0x18] sm:$0xff]
      %v7322 = vld [vmem:[#allocation4 + $0x20] sm:$0xff]
      %v7323 = vld [vmem:[#allocation4 + $0x28] sm:$0xff]
      %v7324 = vld [vmem:[#allocation4 + $0x30] sm:$0xff]
      %v7325 = vld [vmem:[#allocation4 + $0x38] sm:$0xff]
      %v7326 = vld [vmem:[#allocation4 + $0x40] sm:$0xff]
      %v7327 = vld [vmem:[#allocation4 + $0x48] sm:$0xff]
      %v7328 = vld [vmem:[#allocation4 + $0x50] sm:$0xff]
      %v7329 = vld [vmem:[#allocation4 + $0x58] sm:$0xff]
      %v7330 = vld [vmem:[#allocation4 + $0x60] sm:$0xff]
      %v7331 = vld [vmem:[#allocation4 + $0x68] sm:$0xff]
      %v7332 = vld [vmem:[#allocation4 + $0x70] sm:$0xff]
      %v7333 = vld [vmem:[#allocation4 + $0x78] sm:$0xff]
      %v7334 = vld [vmem:[#allocation4 + $0x80] sm:$0xff]
      %v7335 = vld [vmem:[#allocation4 + $0x88] sm:$0xff]
      %v7336 = vld [vmem:[#allocation4 + $0x90] sm:$0xff]
      %v7337 = vld [vmem:[#allocation4 + $0x98] sm:$0xff]
      %v7338 = vld [vmem:[#allocation4 + $0xa0] sm:$0xff]
      %v7339 = vld [vmem:[#allocation4 + $0xa8] sm:$0xff]
      %v7340 = vld [vmem:[#allocation4 + $0xb0] sm:$0xff]
      %v7341 = vld [vmem:[#allocation4 + $0xb8] sm:$0xff]
      %v7342 = vld [vmem:[#allocation4 + $0xc0] sm:$0xff]
      %v7343 = vld [vmem:[#allocation4 + $0xc8] sm:$0xff]
      %v7344 = vld [vmem:[#allocation4 + $0xd0] sm:$0xff]
      %v7345 = vld [vmem:[#allocation4 + $0xd8] sm:$0xff]
      %v7346 = vld [vmem:[#allocation4 + $0xe0] sm:$0xff]
      %v7347 = vld [vmem:[#allocation4 + $0xe8] sm:$0xff]
      %v7348 = vld [vmem:[#allocation4 + $0xf0] sm:$0xff]
      %v7349 = vld [vmem:[#allocation4 + $0xf8] sm:$0xff]
      %s7350 = scalar_lea.vmem %s4, 48
      %v7351 = vld [vmem:[%s7350] sm:$0xff]
      %v7353 = vsel %vm305, %v7286, 0
      %v7356 = vsel %vm305, %v7287, 0
      %v7359 = vsel %vm305, %v7288, 0
      %v7362 = vsel %vm305, %v7289, 0
      %v7365 = vsel %vm305, %v7290, 0
      %v7368 = vsel %vm305, %v7291, 0
      %v7371 = vsel %vm305, %v7292, 0
      %v7374 = vsel %vm305, %v7293, 0
      %v7377 = vsel %vm305, %v7294, 0
      %v7380 = vsel %vm305, %v7295, 0
      %v7383 = vsel %vm305, %v7296, 0
      %v7386 = vsel %vm305, %v7297, 0
      %v7389 = vsel %vm305, %v7298, 0
      %v7392 = vsel %vm305, %v7299, 0
      %v7395 = vsel %vm305, %v7300, 0
      %v7398 = vsel %vm305, %v7301, 0
      %v7401 = vsel %vm305, %v7302, 0
      %v7404 = vsel %vm305, %v7303, 0
      %v7407 = vsel %vm305, %v7304, 0
      %v7410 = vsel %vm305, %v7305, 0
      %v7413 = vsel %vm305, %v7306, 0
      %v7416 = vsel %vm305, %v7307, 0
      %v7419 = vsel %vm305, %v7308, 0
      %v7422 = vsel %vm305, %v7309, 0
      %v7425 = vsel %vm305, %v7310, 0
      %v7428 = vsel %vm305, %v7311, 0
      %v7431 = vsel %vm305, %v7312, 0
      %v7434 = vsel %vm305, %v7313, 0
      %v7437 = vsel %vm305, %v7314, 0
      %v7440 = vsel %vm305, %v7315, 0
      %v7443 = vsel %vm305, %v7316, 0
      %v7446 = vsel %vm305, %v7317, 0
      %7448 = vmatprep.subr.mxu0 0.0
      %7449 = vmatpush1.msra.mxu0 %v7351
      %7450 = vmatprep.subr.mxu0 0.0
      %7451 = vmatpush1.msra.mxu0 0.0
      %7452 = vmatprep.subr.mxu0 0.0
      %7453 = vmatpush1.msra.mxu0 0.0
      %7454 = vmatprep.subr.mxu0 0.0
      %7455 = vmatpush1.msra.mxu0 0.0
      %7456 = vmatprep.subr.mxu0 0.0
      %7457 = vmatpush1.msra.mxu0 0.0
      %7458 = vmatprep.subr.mxu0 0.0
      %7459 = vmatpush1.msra.mxu0 0.0
      %7460 = vmatprep.subr.mxu0 0.0
      %7461 = vmatpush1.msra.mxu0 0.0
      %7462 = vmatprep.subr.mxu0 0.0
      %7463 = vmatpush1.msra.mxu0 0.0
      %7464 = vmatprep.subr.mxu0 0.0
      %7465 = vmatpush1.msra.mxu0 0.0
      %7466 = vmatprep.subr.mxu0 0.0
      %7467 = vmatpush1.msra.mxu0 0.0
      %7468 = vmatprep.subr.mxu0 0.0
      %7469 = vmatpush1.msra.mxu0 0.0
      %7470 = vmatprep.subr.mxu0 0.0
      %7471 = vmatpush1.msra.mxu0 0.0
      %7472 = vmatprep.subr.mxu0 0.0
      %7473 = vmatpush1.msra.mxu0 0.0
      %7474 = vmatprep.subr.mxu0 0.0
      %7475 = vmatpush1.msra.mxu0 0.0
      %7476 = vmatprep.subr.mxu0 0.0
      %7477 = vmatpush1.msra.mxu0 0.0
      %7478 = vmatprep.subr.mxu0 0.0
      %7479 = vmatpush1.msra.mxu0 0.0
      %7480 = vmatprep.subr.mxu0 0.0
      %7481 = vmatpush1.msra.mxu0 0.0
      %7482 = vmatprep.subr.mxu0 0.0
      %7483 = vmatpush1.msra.mxu0 0.0
      %7484 = vmatprep.subr.mxu0 0.0
      %7485 = vmatpush1.msra.mxu0 0.0
      %7486 = vmatprep.subr.mxu0 0.0
      %7487 = vmatpush1.msra.mxu0 0.0
      %7488 = vmatprep.subr.mxu0 0.0
      %7489 = vmatpush1.msra.mxu0 0.0
      %7490 = vmatprep.subr.mxu0 0.0
      %7491 = vmatpush1.msra.mxu0 0.0
      %7492 = vmatprep.subr.mxu0 0.0
      %7493 = vmatpush1.msra.mxu0 0.0
      %7494 = vmatprep.subr.mxu0 0.0
      %7495 = vmatpush1.msra.mxu0 0.0
      %7496 = vmatprep.subr.mxu0 0.0
      %7497 = vmatpush1.msra.mxu0 0.0
      %7498 = vmatprep.subr.mxu0 0.0
      %7499 = vmatpush1.msra.mxu0 0.0
      %7500 = vmatprep.subr.mxu0 0.0
      %7501 = vmatpush1.msra.mxu0 0.0
      %7502 = vmatprep.subr.mxu0 0.0
      %7503 = vmatpush1.msra.mxu0 0.0
      %7504 = vmatprep.subr.mxu0 0.0
      %7505 = vmatpush1.msra.mxu0 0.0
      %7506 = vmatprep.subr.mxu0 0.0
      %7507 = vmatpush1.msra.mxu0 0.0
      %7508 = vmatprep.subr.mxu0 0.0
      %7509 = vmatpush1.msra.mxu0 0.0
      %7510 = vmatprep.subr.mxu0 0.0
      %7511 = vmatpush1.msra.mxu0 0.0
      %7512 = vmatprep.mubr.f32.mxu0 0.0
      %7513 = vmatmul.mubr.f32.gmra.mrb[0].mxu0 %v7353
      %v7514 = vpop.f32.mrb[0].mxu0
      %v7515 = vadd.f32 0.0, %v7514
      %v7516 = vpop.f32.mrb[0].mxu0
      %7517 = vmatprep.mubr.f32.mxu0 0.0
      %7518 = vmatmul.mubr.f32.gmra.mrb[0].mxu0 %v7356
      %v7519 = vpop.f32.mrb[0].mxu0
      %v7520 = vadd.f32 0.0, %v7519
      %v7521 = vpop.f32.mrb[0].mxu0
      %7522 = vmatprep.mubr.f32.mxu0 0.0
      %7523 = vmatmul.mubr.f32.gmra.mrb[0].mxu0 %v7359
      %v7524 = vpop.f32.mrb[0].mxu0
      %v7525 = vadd.f32 0.0, %v7524
      %v7526 = vpop.f32.mrb[0].mxu0
      %7527 = vmatprep.mubr.f32.mxu0 0.0
      %7528 = vmatmul.mubr.f32.gmra.mrb[0].mxu0 %v7362
      %v7529 = vpop.f32.mrb[0].mxu0
      %v7530 = vadd.f32 0.0, %v7529
      %v7531 = vpop.f32.mrb[0].mxu0
      %7532 = vmatprep.mubr.f32.mxu0 0.0
      %7533 = vmatmul.mubr.f32.gmra.mrb[0].mxu0 %v7365
      %v7534 = vpop.f32.mrb[0].mxu0
      %v7535 = vadd.f32 0.0, %v7534
      %v7536 = vpop.f32.mrb[0].mxu0
      %7537 = vmatprep.mubr.f32.mxu0 0.0
      %7538 = vmatmul.mubr.f32.gmra.mrb[0].mxu0 %v7368
      %v7539 = vpop.f32.mrb[0].mxu0
      %v7540 = vadd.f32 0.0, %v7539
      %v7541 = vpop.f32.mrb[0].mxu0
      %7542 = vmatprep.mubr.f32.mxu0 0.0
      %7543 = vmatmul.mubr.f32.gmra.mrb[0].mxu0 %v7371
      %v7544 = vpop.f32.mrb[0].mxu0
      %v7545 = vadd.f32 0.0, %v7544
      %v7546 = vpop.f32.mrb[0].mxu0
      %7547 = vmatprep.mubr.f32.mxu0 0.0
      %7548 = vmatmul.mubr.f32.gmra.mrb[0].mxu0 %v7374
      %v7549 = vpop.f32.mrb[0].mxu0
      %v7550 = vadd.f32 0.0, %v7549
      %v7551 = vpop.f32.mrb[0].mxu0
      %7552 = vmatprep.mubr.f32.mxu0 0.0
      %7553 = vmatmul.mubr.f32.gmra.mrb[0].mxu0 %v7377
      %v7554 = vpop.f32.mrb[0].mxu0
      %v7555 = vadd.f32 0.0, %v7554
      %v7556 = vpop.f32.mrb[0].mxu0
      %7557 = vmatprep.mubr.f32.mxu0 0.0
      %7558 = vmatmul.mubr.f32.gmra.mrb[0].mxu0 %v7380
      %v7559 = vpop.f32.mrb[0].mxu0
      %v7560 = vadd.f32 0.0, %v7559
      %v7561 = vpop.f32.mrb[0].mxu0
      %7562 = vmatprep.mubr.f32.mxu0 0.0
      %7563 = vmatmul.mubr.f32.gmra.mrb[0].mxu0 %v7383
      %v7564 = vpop.f32.mrb[0].mxu0
      %v7565 = vadd.f32 0.0, %v7564
      %v7566 = vpop.f32.mrb[0].mxu0
      %7567 = vmatprep.mubr.f32.mxu0 0.0
      %7568 = vmatmul.mubr.f32.gmra.mrb[0].mxu0 %v7386
      %v7569 = vpop.f32.mrb[0].mxu0
      %v7570 = vadd.f32 0.0, %v7569
      %v7571 = vpop.f32.mrb[0].mxu0
      %7572 = vmatprep.mubr.f32.mxu0 0.0
      %7573 = vmatmul.mubr.f32.gmra.mrb[0].mxu0 %v7389
      %v7574 = vpop.f32.mrb[0].mxu0
      %v7575 = vadd.f32 0.0, %v7574
      %v7576 = vpop.f32.mrb[0].mxu0
      %7577 = vmatprep.mubr.f32.mxu0 0.0
      %7578 = vmatmul.mubr.f32.gmra.mrb[0].mxu0 %v7392
      %v7579 = vpop.f32.mrb[0].mxu0
      %v7580 = vadd.f32 0.0, %v7579
      %v7581 = vpop.f32.mrb[0].mxu0
      %7582 = vmatprep.mubr.f32.mxu0 0.0
      %7583 = vmatmul.mubr.f32.gmra.mrb[0].mxu0 %v7395
      %v7584 = vpop.f32.mrb[0].mxu0
      %v7585 = vadd.f32 0.0, %v7584
      %v7586 = vpop.f32.mrb[0].mxu0
      %7587 = vmatprep.mubr.f32.mxu0 0.0
      %7588 = vmatmul.mubr.f32.gmra.mrb[0].mxu0 %v7398
      %v7589 = vpop.f32.mrb[0].mxu0
      %v7590 = vadd.f32 0.0, %v7589
      %v7591 = vpop.f32.mrb[0].mxu0
      %7592 = vmatprep.mubr.f32.mxu0 0.0
      %7593 = vmatmul.mubr.f32.gmra.mrb[0].mxu0 %v7401
      %v7594 = vpop.f32.mrb[0].mxu0
      %v7595 = vadd.f32 0.0, %v7594
      %v7596 = vpop.f32.mrb[0].mxu0
      %7597 = vmatprep.mubr.f32.mxu0 0.0
      %7598 = vmatmul.mubr.f32.gmra.mrb[0].mxu0 %v7404
      %v7599 = vpop.f32.mrb[0].mxu0
      %v7600 = vadd.f32 0.0, %v7599
      %v7601 = vpop.f32.mrb[0].mxu0
      %7602 = vmatprep.mubr.f32.mxu0 0.0
      %7603 = vmatmul.mubr.f32.gmra.mrb[0].mxu0 %v7407
      %v7604 = vpop.f32.mrb[0].mxu0
      %v7605 = vadd.f32 0.0, %v7604
      %v7606 = vpop.f32.mrb[0].mxu0
      %7607 = vmatprep.mubr.f32.mxu0 0.0
      %7608 = vmatmul.mubr.f32.gmra.mrb[0].mxu0 %v7410
      %v7609 = vpop.f32.mrb[0].mxu0
      %v7610 = vadd.f32 0.0, %v7609
      %v7611 = vpop.f32.mrb[0].mxu0
      %7612 = vmatprep.mubr.f32.mxu0 0.0
      %7613 = vmatmul.mubr.f32.gmra.mrb[0].mxu0 %v7413
      %v7614 = vpop.f32.mrb[0].mxu0
      %v7615 = vadd.f32 0.0, %v7614
      %v7616 = vpop.f32.mrb[0].mxu0
      %7617 = vmatprep.mubr.f32.mxu0 0.0
      %7618 = vmatmul.mubr.f32.gmra.mrb[0].mxu0 %v7416
      %v7619 = vpop.f32.mrb[0].mxu0
      %v7620 = vadd.f32 0.0, %v7619
      %v7621 = vpop.f32.mrb[0].mxu0
      %7622 = vmatprep.mubr.f32.mxu0 0.0
      %7623 = vmatmul.mubr.f32.gmra.mrb[0].mxu0 %v7419
      %v7624 = vpop.f32.mrb[0].mxu0
      %v7625 = vadd.f32 0.0, %v7624
      %v7626 = vpop.f32.mrb[0].mxu0
      %7627 = vmatprep.mubr.f32.mxu0 0.0
      %7628 = vmatmul.mubr.f32.gmra.mrb[0].mxu0 %v7422
      %v7629 = vpop.f32.mrb[0].mxu0
      %v7630 = vadd.f32 0.0, %v7629
      %v7631 = vpop.f32.mrb[0].mxu0
      %7632 = vmatprep.mubr.f32.mxu0 0.0
      %7633 = vmatmul.mubr.f32.gmra.mrb[0].mxu0 %v7425
      %v7634 = vpop.f32.mrb[0].mxu0
      %v7635 = vadd.f32 0.0, %v7634
      %v7636 = vpop.f32.mrb[0].mxu0
      %7637 = vmatprep.mubr.f32.mxu0 0.0
      %7638 = vmatmul.mubr.f32.gmra.mrb[0].mxu0 %v7428
      %v7639 = vpop.f32.mrb[0].mxu0
      %v7640 = vadd.f32 0.0, %v7639
      %v7641 = vpop.f32.mrb[0].mxu0
      %7642 = vmatprep.mubr.f32.mxu0 0.0
      %7643 = vmatmul.mubr.f32.gmra.mrb[0].mxu0 %v7431
      %v7644 = vpop.f32.mrb[0].mxu0
      %v7645 = vadd.f32 0.0, %v7644
      %v7646 = vpop.f32.mrb[0].mxu0
      %7647 = vmatprep.mubr.f32.mxu0 0.0
      %7648 = vmatmul.mubr.f32.gmra.mrb[0].mxu0 %v7434
      %v7649 = vpop.f32.mrb[0].mxu0
      %v7650 = vadd.f32 0.0, %v7649
      %v7651 = vpop.f32.mrb[0].mxu0
      %7652 = vmatprep.mubr.f32.mxu0 0.0
      %7653 = vmatmul.mubr.f32.gmra.mrb[0].mxu0 %v7437
      %v7654 = vpop.f32.mrb[0].mxu0
      %v7655 = vadd.f32 0.0, %v7654
      %v7656 = vpop.f32.mrb[0].mxu0
      %7657 = vmatprep.mubr.f32.mxu0 0.0
      %7658 = vmatmul.mubr.f32.gmra.mrb[0].mxu0 %v7440
      %v7659 = vpop.f32.mrb[0].mxu0
      %v7660 = vadd.f32 0.0, %v7659
      %v7661 = vpop.f32.mrb[0].mxu0
      %7662 = vmatprep.mubr.f32.mxu0 0.0
      %7663 = vmatmul.mubr.f32.gmra.mrb[0].mxu0 %v7443
      %v7664 = vpop.f32.mrb[0].mxu0
      %v7665 = vadd.f32 0.0, %v7664
      %v7666 = vpop.f32.mrb[0].mxu0
      %7667 = vmatprep.mubr.f32.mxu0 0.0
      %7668 = vmatmul.mubr.f32.gmra.mrb[0].mxu0 %v7446
      %v7669 = vpop.f32.mrb[0].mxu0
      %v7670 = vadd.f32 0.0, %v7669
      %v7671 = vpop.f32.mrb[0].mxu0
      %7672 = vdwg.mxu0
      %v7673 = vadd.f32 %v7318, %v7515
      %v7674 = vadd.f32 %v7319, %v7520
      %v7675 = vadd.f32 %v7320, %v7525
      %v7676 = vadd.f32 %v7321, %v7530
      %v7677 = vadd.f32 %v7322, %v7535
      %v7678 = vadd.f32 %v7323, %v7540
      %v7679 = vadd.f32 %v7324, %v7545
      %v7680 = vadd.f32 %v7325, %v7550
      %v7681 = vadd.f32 %v7326, %v7555
      %v7682 = vadd.f32 %v7327, %v7560
      %v7683 = vadd.f32 %v7328, %v7565
      %v7684 = vadd.f32 %v7329, %v7570
      %v7685 = vadd.f32 %v7330, %v7575
      %v7686 = vadd.f32 %v7331, %v7580
      %v7687 = vadd.f32 %v7332, %v7585
      %v7688 = vadd.f32 %v7333, %v7590
      %v7689 = vadd.f32 %v7334, %v7595
      %v7690 = vadd.f32 %v7335, %v7600
      %v7691 = vadd.f32 %v7336, %v7605
      %v7692 = vadd.f32 %v7337, %v7610
      %v7693 = vadd.f32 %v7338, %v7615
      %v7694 = vadd.f32 %v7339, %v7620
      %v7695 = vadd.f32 %v7340, %v7625
      %v7696 = vadd.f32 %v7341, %v7630
      %v7697 = vadd.f32 %v7342, %v7635
      %v7698 = vadd.f32 %v7343, %v7640
      %v7699 = vadd.f32 %v7344, %v7645
      %v7700 = vadd.f32 %v7345, %v7650
      %v7701 = vadd.f32 %v7346, %v7655
      %v7702 = vadd.f32 %v7347, %v7660
      %v7703 = vadd.f32 %v7348, %v7665
      %v7704 = vadd.f32 %v7349, %v7670
      %7705 = vst.msk [vmem:[#allocation4] sm:$0xff] %vm305, %v7673
      %7706 = vst.msk [vmem:[#allocation4 + $0x8] sm:$0xff] %vm305, %v7674
      %7707 = vst.msk [vmem:[#allocation4 + $0x10] sm:$0xff] %vm305, %v7675
      %7708 = vst.msk [vmem:[#allocation4 + $0x18] sm:$0xff] %vm305, %v7676
      %7709 = vst.msk [vmem:[#allocation4 + $0x20] sm:$0xff] %vm305, %v7677
      %7710 = vst.msk [vmem:[#allocation4 + $0x28] sm:$0xff] %vm305, %v7678
      %7711 = vst.msk [vmem:[#allocation4 + $0x30] sm:$0xff] %vm305, %v7679
      %7712 = vst.msk [vmem:[#allocation4 + $0x38] sm:$0xff] %vm305, %v7680
      %7713 = vst.msk [vmem:[#allocation4 + $0x40] sm:$0xff] %vm305, %v7681
      %7714 = vst.msk [vmem:[#allocation4 + $0x48] sm:$0xff] %vm305, %v7682
      %7715 = vst.msk [vmem:[#allocation4 + $0x50] sm:$0xff] %vm305, %v7683
      %7716 = vst.msk [vmem:[#allocation4 + $0x58] sm:$0xff] %vm305, %v7684
      %7717 = vst.msk [vmem:[#allocation4 + $0x60] sm:$0xff] %vm305, %v7685
      %7718 = vst.msk [vmem:[#allocation4 + $0x68] sm:$0xff] %vm305, %v7686
      %7719 = vst.msk [vmem:[#allocation4 + $0x70] sm:$0xff] %vm305, %v7687
      %7720 = vst.msk [vmem:[#allocation4 + $0x78] sm:$0xff] %vm305, %v7688
      %7721 = vst.msk [vmem:[#allocation4 + $0x80] sm:$0xff] %vm305, %v7689
      %7722 = vst.msk [vmem:[#allocation4 + $0x88] sm:$0xff] %vm305, %v7690
      %7723 = vst.msk [vmem:[#allocation4 + $0x90] sm:$0xff] %vm305, %v7691
      %7724 = vst.msk [vmem:[#allocation4 + $0x98] sm:$0xff] %vm305, %v7692
      %7725 = vst.msk [vmem:[#allocation4 + $0xa0] sm:$0xff] %vm305, %v7693
      %7726 = vst.msk [vmem:[#allocation4 + $0xa8] sm:$0xff] %vm305, %v7694
      %7727 = vst.msk [vmem:[#allocation4 + $0xb0] sm:$0xff] %vm305, %v7695
      %7728 = vst.msk [vmem:[#allocation4 + $0xb8] sm:$0xff] %vm305, %v7696
      %7729 = vst.msk [vmem:[#allocation4 + $0xc0] sm:$0xff] %vm305, %v7697
      %7730 = vst.msk [vmem:[#allocation4 + $0xc8] sm:$0xff] %vm305, %v7698
      %7731 = vst.msk [vmem:[#allocation4 + $0xd0] sm:$0xff] %vm305, %v7699
      %7732 = vst.msk [vmem:[#allocation4 + $0xd8] sm:$0xff] %vm305, %v7700
      %7733 = vst.msk [vmem:[#allocation4 + $0xe0] sm:$0xff] %vm305, %v7701
      %7734 = vst.msk [vmem:[#allocation4 + $0xe8] sm:$0xff] %vm305, %v7702
      %7735 = vst.msk [vmem:[#allocation4 + $0xf0] sm:$0xff] %vm305, %v7703
      %7736 = vst.msk [vmem:[#allocation4 + $0xf8] sm:$0xff] %vm305, %v7704
      %v7737 = vld [vmem:[%s7285 + $0x8] sm:$0xff]
      %v7738 = vld [vmem:[%s7285 + $0x10] sm:$0xff]
      %v7739 = vld [vmem:[%s7285 + $0x28] sm:$0xff]
      %v7740 = vld [vmem:[%s7285 + $0x30] sm:$0xff]
      %v7741 = vld [vmem:[%s7285 + $0x48] sm:$0xff]
      %v7742 = vld [vmem:[%s7285 + $0x50] sm:$0xff]
      %v7743 = vld [vmem:[%s7285 + $0x68] sm:$0xff]
      %v7744 = vld [vmem:[%s7285 + $0x70] sm:$0xff]
      %v7745 = vld [vmem:[%s7285 + $0x88] sm:$0xff]
      %v7746 = vld [vmem:[%s7285 + $0x90] sm:$0xff]
      %v7747 = vld [vmem:[%s7285 + $0xa8] sm:$0xff]
      %v7748 = vld [vmem:[%s7285 + $0xb0] sm:$0xff]
      %v7749 = vld [vmem:[%s7285 + $0xc8] sm:$0xff]
      %v7750 = vld [vmem:[%s7285 + $0xd0] sm:$0xff]
      %v7751 = vld [vmem:[%s7285 + $0xe8] sm:$0xff]
      %v7752 = vld [vmem:[%s7285 + $0xf0] sm:$0xff]
      %v7753 = vld [vmem:[%s7285 + $0x108] sm:$0xff]
      %v7754 = vld [vmem:[%s7285 + $0x110] sm:$0xff]
      %v7755 = vld [vmem:[%s7285 + $0x128] sm:$0xff]
      %v7756 = vld [vmem:[%s7285 + $0x130] sm:$0xff]
      %v7757 = vld [vmem:[%s7285 + $0x148] sm:$0xff]
      %v7758 = vld [vmem:[%s7285 + $0x150] sm:$0xff]
      %v7759 = vld [vmem:[%s7285 + $0x168] sm:$0xff]
      %v7760 = vld [vmem:[%s7285 + $0x170] sm:$0xff]
      %v7761 = vld [vmem:[%s7285 + $0x188] sm:$0xff]
      %v7762 = vld [vmem:[%s7285 + $0x190] sm:$0xff]
      %v7763 = vld [vmem:[%s7285 + $0x1a8] sm:$0xff]
      %v7764 = vld [vmem:[%s7285 + $0x1b0] sm:$0xff]
      %v7765 = vld [vmem:[%s7285 + $0x1c8] sm:$0xff]
      %v7766 = vld [vmem:[%s7285 + $0x1d0] sm:$0xff]
      %v7767 = vld [vmem:[%s7285 + $0x1e8] sm:$0xff]
      %v7768 = vld [vmem:[%s7285 + $0x1f0] sm:$0xff]
      %v7769 = vld [vmem:[#allocation4] sm:$0xff]
      %v7770 = vld [vmem:[#allocation4 + $0x8] sm:$0xff]
      %v7771 = vld [vmem:[#allocation4 + $0x10] sm:$0xff]
      %v7772 = vld [vmem:[#allocation4 + $0x18] sm:$0xff]
      %v7773 = vld [vmem:[#allocation4 + $0x20] sm:$0xff]
      %v7774 = vld [vmem:[#allocation4 + $0x28] sm:$0xff]
      %v7775 = vld [vmem:[#allocation4 + $0x30] sm:$0xff]
      %v7776 = vld [vmem:[#allocation4 + $0x38] sm:$0xff]
      %v7777 = vld [vmem:[#allocation4 + $0x40] sm:$0xff]
      %v7778 = vld [vmem:[#allocation4 + $0x48] sm:$0xff]
      %v7779 = vld [vmem:[#allocation4 + $0x50] sm:$0xff]
      %v7780 = vld [vmem:[#allocation4 + $0x58] sm:$0xff]
      %v7781 = vld [vmem:[#allocation4 + $0x60] sm:$0xff]
      %v7782 = vld [vmem:[#allocation4 + $0x68] sm:$0xff]
      %v7783 = vld [vmem:[#allocation4 + $0x70] sm:$0xff]
      %v7784 = vld [vmem:[#allocation4 + $0x78] sm:$0xff]
      %v7785 = vld [vmem:[#allocation4 + $0x80] sm:$0xff]
      %v7786 = vld [vmem:[#allocation4 + $0x88] sm:$0xff]
      %v7787 = vld [vmem:[#allocation4 + $0x90] sm:$0xff]
      %v7788 = vld [vmem:[#allocation4 + $0x98] sm:$0xff]
      %v7789 = vld [vmem:[#allocation4 + $0xa0] sm:$0xff]
      %v7790 = vld [vmem:[#allocation4 + $0xa8] sm:$0xff]
      %v7791 = vld [vmem:[#allocation4 + $0xb0] sm:$0xff]
      %v7792 = vld [vmem:[#allocation4 + $0xb8] sm:$0xff]
      %v7793 = vld [vmem:[#allocation4 + $0xc0] sm:$0xff]
      %v7794 = vld [vmem:[#allocation4 + $0xc8] sm:$0xff]
      %v7795 = vld [vmem:[#allocation4 + $0xd0] sm:$0xff]
      %v7796 = vld [vmem:[#allocation4 + $0xd8] sm:$0xff]
      %v7797 = vld [vmem:[#allocation4 + $0xe0] sm:$0xff]
      %v7798 = vld [vmem:[#allocation4 + $0xe8] sm:$0xff]
      %v7799 = vld [vmem:[#allocation4 + $0xf0] sm:$0xff]
      %v7800 = vld [vmem:[#allocation4 + $0xf8] sm:$0xff]
      %s7801 = scalar_lea.vmem %s4, 56
      %v7802 = vld [vmem:[%s7801] sm:$0xff]
      %v7804 = vsel %vm305, %v7737, 0
      %v7807 = vsel %vm305, %v7738, 0
      %v7810 = vsel %vm305, %v7739, 0
      %v7813 = vsel %vm305, %v7740, 0
      %v7816 = vsel %vm305, %v7741, 0
      %v7819 = vsel %vm305, %v7742, 0
      %v7822 = vsel %vm305, %v7743, 0
      %v7825 = vsel %vm305, %v7744, 0
      %v7828 = vsel %vm305, %v7745, 0
      %v7831 = vsel %vm305, %v7746, 0
      %v7834 = vsel %vm305, %v7747, 0
      %v7837 = vsel %vm305, %v7748, 0
      %v7840 = vsel %vm305, %v7749, 0
      %v7843 = vsel %vm305, %v7750, 0
      %v7846 = vsel %vm305, %v7751, 0
      %v7849 = vsel %vm305, %v7752, 0
      %v7852 = vsel %vm305, %v7753, 0
      %v7855 = vsel %vm305, %v7754, 0
      %v7858 = vsel %vm305, %v7755, 0
      %v7861 = vsel %vm305, %v7756, 0
      %v7864 = vsel %vm305, %v7757, 0
      %v7867 = vsel %vm305, %v7758, 0
      %v7870 = vsel %vm305, %v7759, 0
      %v7873 = vsel %vm305, %v7760, 0
      %v7876 = vsel %vm305, %v7761, 0
      %v7879 = vsel %vm305, %v7762, 0
      %v7882 = vsel %vm305, %v7763, 0
      %v7885 = vsel %vm305, %v7764, 0
      %v7888 = vsel %vm305, %v7765, 0
      %v7891 = vsel %vm305, %v7766, 0
      %v7894 = vsel %vm305, %v7767, 0
      %v7897 = vsel %vm305, %v7768, 0
      %7899 = vmatprep.subr.mxu0 0.0
      %7900 = vmatpush1.msra.mxu0 %v7802
      %7901 = vmatprep.subr.mxu0 0.0
      %7902 = vmatpush1.msra.mxu0 0.0
      %7903 = vmatprep.subr.mxu0 0.0
      %7904 = vmatpush1.msra.mxu0 0.0
      %7905 = vmatprep.subr.mxu0 0.0
      %7906 = vmatpush1.msra.mxu0 0.0
      %7907 = vmatprep.subr.mxu0 0.0
      %7908 = vmatpush1.msra.mxu0 0.0
      %7909 = vmatprep.subr.mxu0 0.0
      %7910 = vmatpush1.msra.mxu0 0.0
      %7911 = vmatprep.subr.mxu0 0.0
      %7912 = vmatpush1.msra.mxu0 0.0
      %7913 = vmatprep.subr.mxu0 0.0
      %7914 = vmatpush1.msra.mxu0 0.0
      %7915 = vmatprep.subr.mxu0 0.0
      %7916 = vmatpush1.msra.mxu0 0.0
      %7917 = vmatprep.subr.mxu0 0.0
      %7918 = vmatpush1.msra.mxu0 0.0
      %7919 = vmatprep.subr.mxu0 0.0
      %7920 = vmatpush1.msra.mxu0 0.0
      %7921 = vmatprep.subr.mxu0 0.0
      %7922 = vmatpush1.msra.mxu0 0.0
      %7923 = vmatprep.subr.mxu0 0.0
      %7924 = vmatpush1.msra.mxu0 0.0
      %7925 = vmatprep.subr.mxu0 0.0
      %7926 = vmatpush1.msra.mxu0 0.0
      %7927 = vmatprep.subr.mxu0 0.0
      %7928 = vmatpush1.msra.mxu0 0.0
      %7929 = vmatprep.subr.mxu0 0.0
      %7930 = vmatpush1.msra.mxu0 0.0
      %7931 = vmatprep.subr.mxu0 0.0
      %7932 = vmatpush1.msra.mxu0 0.0
      %7933 = vmatprep.subr.mxu0 0.0
      %7934 = vmatpush1.msra.mxu0 0.0
      %7935 = vmatprep.subr.mxu0 0.0
      %7936 = vmatpush1.msra.mxu0 0.0
      %7937 = vmatprep.subr.mxu0 0.0
      %7938 = vmatpush1.msra.mxu0 0.0
      %7939 = vmatprep.subr.mxu0 0.0
      %7940 = vmatpush1.msra.mxu0 0.0
      %7941 = vmatprep.subr.mxu0 0.0
      %7942 = vmatpush1.msra.mxu0 0.0
      %7943 = vmatprep.subr.mxu0 0.0
      %7944 = vmatpush1.msra.mxu0 0.0
      %7945 = vmatprep.subr.mxu0 0.0
      %7946 = vmatpush1.msra.mxu0 0.0
      %7947 = vmatprep.subr.mxu0 0.0
      %7948 = vmatpush1.msra.mxu0 0.0
      %7949 = vmatprep.subr.mxu0 0.0
      %7950 = vmatpush1.msra.mxu0 0.0
      %7951 = vmatprep.subr.mxu0 0.0
      %7952 = vmatpush1.msra.mxu0 0.0
      %7953 = vmatprep.subr.mxu0 0.0
      %7954 = vmatpush1.msra.mxu0 0.0
      %7955 = vmatprep.subr.mxu0 0.0
      %7956 = vmatpush1.msra.mxu0 0.0
      %7957 = vmatprep.subr.mxu0 0.0
      %7958 = vmatpush1.msra.mxu0 0.0
      %7959 = vmatprep.subr.mxu0 0.0
      %7960 = vmatpush1.msra.mxu0 0.0
      %7961 = vmatprep.subr.mxu0 0.0
      %7962 = vmatpush1.msra.mxu0 0.0
      %7963 = vmatprep.mubr.f32.mxu0 0.0
      %7964 = vmatmul.mubr.f32.gmra.mrb[0].mxu0 %v7804
      %v7965 = vpop.f32.mrb[0].mxu0
      %v7966 = vadd.f32 0.0, %v7965
      %v7967 = vpop.f32.mrb[0].mxu0
      %7968 = vmatprep.mubr.f32.mxu0 0.0
      %7969 = vmatmul.mubr.f32.gmra.mrb[0].mxu0 %v7807
      %v7970 = vpop.f32.mrb[0].mxu0
      %v7971 = vadd.f32 0.0, %v7970
      %v7972 = vpop.f32.mrb[0].mxu0
      %7973 = vmatprep.mubr.f32.mxu0 0.0
      %7974 = vmatmul.mubr.f32.gmra.mrb[0].mxu0 %v7810
      %v7975 = vpop.f32.mrb[0].mxu0
      %v7976 = vadd.f32 0.0, %v7975
      %v7977 = vpop.f32.mrb[0].mxu0
      %7978 = vmatprep.mubr.f32.mxu0 0.0
      %7979 = vmatmul.mubr.f32.gmra.mrb[0].mxu0 %v7813
      %v7980 = vpop.f32.mrb[0].mxu0
      %v7981 = vadd.f32 0.0, %v7980
      %v7982 = vpop.f32.mrb[0].mxu0
      %7983 = vmatprep.mubr.f32.mxu0 0.0
      %7984 = vmatmul.mubr.f32.gmra.mrb[0].mxu0 %v7816
      %v7985 = vpop.f32.mrb[0].mxu0
      %v7986 = vadd.f32 0.0, %v7985
      %v7987 = vpop.f32.mrb[0].mxu0
      %7988 = vmatprep.mubr.f32.mxu0 0.0
      %7989 = vmatmul.mubr.f32.gmra.mrb[0].mxu0 %v7819
      %v7990 = vpop.f32.mrb[0].mxu0
      %v7991 = vadd.f32 0.0, %v7990
      %v7992 = vpop.f32.mrb[0].mxu0
      %7993 = vmatprep.mubr.f32.mxu0 0.0
      %7994 = vmatmul.mubr.f32.gmra.mrb[0].mxu0 %v7822
      %v7995 = vpop.f32.mrb[0].mxu0
      %v7996 = vadd.f32 0.0, %v7995
      %v7997 = vpop.f32.mrb[0].mxu0
      %7998 = vmatprep.mubr.f32.mxu0 0.0
      %7999 = vmatmul.mubr.f32.gmra.mrb[0].mxu0 %v7825
      %v8000 = vpop.f32.mrb[0].mxu0
      %v8001 = vadd.f32 0.0, %v8000
      %v8002 = vpop.f32.mrb[0].mxu0
      %8003 = vmatprep.mubr.f32.mxu0 0.0
      %8004 = vmatmul.mubr.f32.gmra.mrb[0].mxu0 %v7828
      %v8005 = vpop.f32.mrb[0].mxu0
      %v8006 = vadd.f32 0.0, %v8005
      %v8007 = vpop.f32.mrb[0].mxu0
      %8008 = vmatprep.mubr.f32.mxu0 0.0
      %8009 = vmatmul.mubr.f32.gmra.mrb[0].mxu0 %v7831
      %v8010 = vpop.f32.mrb[0].mxu0
      %v8011 = vadd.f32 0.0, %v8010
      %v8012 = vpop.f32.mrb[0].mxu0
      %8013 = vmatprep.mubr.f32.mxu0 0.0
      %8014 = vmatmul.mubr.f32.gmra.mrb[0].mxu0 %v7834
      %v8015 = vpop.f32.mrb[0].mxu0
      %v8016 = vadd.f32 0.0, %v8015
      %v8017 = vpop.f32.mrb[0].mxu0
      %8018 = vmatprep.mubr.f32.mxu0 0.0
      %8019 = vmatmul.mubr.f32.gmra.mrb[0].mxu0 %v7837
      %v8020 = vpop.f32.mrb[0].mxu0
      %v8021 = vadd.f32 0.0, %v8020
      %v8022 = vpop.f32.mrb[0].mxu0
      %8023 = vmatprep.mubr.f32.mxu0 0.0
      %8024 = vmatmul.mubr.f32.gmra.mrb[0].mxu0 %v7840
      %v8025 = vpop.f32.mrb[0].mxu0
      %v8026 = vadd.f32 0.0, %v8025
      %v8027 = vpop.f32.mrb[0].mxu0
      %8028 = vmatprep.mubr.f32.mxu0 0.0
      %8029 = vmatmul.mubr.f32.gmra.mrb[0].mxu0 %v7843
      %v8030 = vpop.f32.mrb[0].mxu0
      %v8031 = vadd.f32 0.0, %v8030
      %v8032 = vpop.f32.mrb[0].mxu0
      %8033 = vmatprep.mubr.f32.mxu0 0.0
      %8034 = vmatmul.mubr.f32.gmra.mrb[0].mxu0 %v7846
      %v8035 = vpop.f32.mrb[0].mxu0
      %v8036 = vadd.f32 0.0, %v8035
      %v8037 = vpop.f32.mrb[0].mxu0
      %8038 = vmatprep.mubr.f32.mxu0 0.0
      %8039 = vmatmul.mubr.f32.gmra.mrb[0].mxu0 %v7849
      %v8040 = vpop.f32.mrb[0].mxu0
      %v8041 = vadd.f32 0.0, %v8040
      %v8042 = vpop.f32.mrb[0].mxu0
      %8043 = vmatprep.mubr.f32.mxu0 0.0
      %8044 = vmatmul.mubr.f32.gmra.mrb[0].mxu0 %v7852
      %v8045 = vpop.f32.mrb[0].mxu0
      %v8046 = vadd.f32 0.0, %v8045
      %v8047 = vpop.f32.mrb[0].mxu0
      %8048 = vmatprep.mubr.f32.mxu0 0.0
      %8049 = vmatmul.mubr.f32.gmra.mrb[0].mxu0 %v7855
      %v8050 = vpop.f32.mrb[0].mxu0
      %v8051 = vadd.f32 0.0, %v8050
      %v8052 = vpop.f32.mrb[0].mxu0
      %8053 = vmatprep.mubr.f32.mxu0 0.0
      %8054 = vmatmul.mubr.f32.gmra.mrb[0].mxu0 %v7858
      %v8055 = vpop.f32.mrb[0].mxu0
      %v8056 = vadd.f32 0.0, %v8055
      %v8057 = vpop.f32.mrb[0].mxu0
      %8058 = vmatprep.mubr.f32.mxu0 0.0
      %8059 = vmatmul.mubr.f32.gmra.mrb[0].mxu0 %v7861
      %v8060 = vpop.f32.mrb[0].mxu0
      %v8061 = vadd.f32 0.0, %v8060
      %v8062 = vpop.f32.mrb[0].mxu0
      %8063 = vmatprep.mubr.f32.mxu0 0.0
      %8064 = vmatmul.mubr.f32.gmra.mrb[0].mxu0 %v7864
      %v8065 = vpop.f32.mrb[0].mxu0
      %v8066 = vadd.f32 0.0, %v8065
      %v8067 = vpop.f32.mrb[0].mxu0
      %8068 = vmatprep.mubr.f32.mxu0 0.0
      %8069 = vmatmul.mubr.f32.gmra.mrb[0].mxu0 %v7867
      %v8070 = vpop.f32.mrb[0].mxu0
      %v8071 = vadd.f32 0.0, %v8070
      %v8072 = vpop.f32.mrb[0].mxu0
      %8073 = vmatprep.mubr.f32.mxu0 0.0
      %8074 = vmatmul.mubr.f32.gmra.mrb[0].mxu0 %v7870
      %v8075 = vpop.f32.mrb[0].mxu0
      %v8076 = vadd.f32 0.0, %v8075
      %v8077 = vpop.f32.mrb[0].mxu0
      %8078 = vmatprep.mubr.f32.mxu0 0.0
      %8079 = vmatmul.mubr.f32.gmra.mrb[0].mxu0 %v7873
      %v8080 = vpop.f32.mrb[0].mxu0
      %v8081 = vadd.f32 0.0, %v8080
      %v8082 = vpop.f32.mrb[0].mxu0
      %8083 = vmatprep.mubr.f32.mxu0 0.0
      %8084 = vmatmul.mubr.f32.gmra.mrb[0].mxu0 %v7876
      %v8085 = vpop.f32.mrb[0].mxu0
      %v8086 = vadd.f32 0.0, %v8085
      %v8087 = vpop.f32.mrb[0].mxu0
      %8088 = vmatprep.mubr.f32.mxu0 0.0
      %8089 = vmatmul.mubr.f32.gmra.mrb[0].mxu0 %v7879
      %v8090 = vpop.f32.mrb[0].mxu0
      %v8091 = vadd.f32 0.0, %v8090
      %v8092 = vpop.f32.mrb[0].mxu0
      %8093 = vmatprep.mubr.f32.mxu0 0.0
      %8094 = vmatmul.mubr.f32.gmra.mrb[0].mxu0 %v7882
      %v8095 = vpop.f32.mrb[0].mxu0
      %v8096 = vadd.f32 0.0, %v8095
      %v8097 = vpop.f32.mrb[0].mxu0
      %8098 = vmatprep.mubr.f32.mxu0 0.0
      %8099 = vmatmul.mubr.f32.gmra.mrb[0].mxu0 %v7885
      %v8100 = vpop.f32.mrb[0].mxu0
      %v8101 = vadd.f32 0.0, %v8100
      %v8102 = vpop.f32.mrb[0].mxu0
      %8103 = vmatprep.mubr.f32.mxu0 0.0
      %8104 = vmatmul.mubr.f32.gmra.mrb[0].mxu0 %v7888
      %v8105 = vpop.f32.mrb[0].mxu0
      %v8106 = vadd.f32 0.0, %v8105
      %v8107 = vpop.f32.mrb[0].mxu0
      %8108 = vmatprep.mubr.f32.mxu0 0.0
      %8109 = vmatmul.mubr.f32.gmra.mrb[0].mxu0 %v7891
      %v8110 = vpop.f32.mrb[0].mxu0
      %v8111 = vadd.f32 0.0, %v8110
      %v8112 = vpop.f32.mrb[0].mxu0
      %8113 = vmatprep.mubr.f32.mxu0 0.0
      %8114 = vmatmul.mubr.f32.gmra.mrb[0].mxu0 %v7894
      %v8115 = vpop.f32.mrb[0].mxu0
      %v8116 = vadd.f32 0.0, %v8115
      %v8117 = vpop.f32.mrb[0].mxu0
      %8118 = vmatprep.mubr.f32.mxu0 0.0
      %8119 = vmatmul.mubr.f32.gmra.mrb[0].mxu0 %v7897
      %v8120 = vpop.f32.mrb[0].mxu0
      %v8121 = vadd.f32 0.0, %v8120
      %v8122 = vpop.f32.mrb[0].mxu0
      %8123 = vdwg.mxu0
      %v8124 = vadd.f32 %v7769, %v7966
      %v8125 = vadd.f32 %v7770, %v7971
      %v8126 = vadd.f32 %v7771, %v7976
      %v8127 = vadd.f32 %v7772, %v7981
      %v8128 = vadd.f32 %v7773, %v7986
      %v8129 = vadd.f32 %v7774, %v7991
      %v8130 = vadd.f32 %v7775, %v7996
      %v8131 = vadd.f32 %v7776, %v8001
      %v8132 = vadd.f32 %v7777, %v8006
      %v8133 = vadd.f32 %v7778, %v8011
      %v8134 = vadd.f32 %v7779, %v8016
      %v8135 = vadd.f32 %v7780, %v8021
      %v8136 = vadd.f32 %v7781, %v8026
      %v8137 = vadd.f32 %v7782, %v8031
      %v8138 = vadd.f32 %v7783, %v8036
      %v8139 = vadd.f32 %v7784, %v8041
      %v8140 = vadd.f32 %v7785, %v8046
      %v8141 = vadd.f32 %v7786, %v8051
      %v8142 = vadd.f32 %v7787, %v8056
      %v8143 = vadd.f32 %v7788, %v8061
      %v8144 = vadd.f32 %v7789, %v8066
      %v8145 = vadd.f32 %v7790, %v8071
      %v8146 = vadd.f32 %v7791, %v8076
      %v8147 = vadd.f32 %v7792, %v8081
      %v8148 = vadd.f32 %v7793, %v8086
      %v8149 = vadd.f32 %v7794, %v8091
      %v8150 = vadd.f32 %v7795, %v8096
      %v8151 = vadd.f32 %v7796, %v8101
      %v8152 = vadd.f32 %v7797, %v8106
      %v8153 = vadd.f32 %v7798, %v8111
      %v8154 = vadd.f32 %v7799, %v8116
      %v8155 = vadd.f32 %v7800, %v8121
      %8156 = vst.msk [vmem:[#allocation4] sm:$0xff] %vm305, %v8124
      %8157 = vst.msk [vmem:[#allocation4 + $0x8] sm:$0xff] %vm305, %v8125
      %8158 = vst.msk [vmem:[#allocation4 + $0x10] sm:$0xff] %vm305, %v8126
      %8159 = vst.msk [vmem:[#allocation4 + $0x18] sm:$0xff] %vm305, %v8127
      %8160 = vst.msk [vmem:[#allocation4 + $0x20] sm:$0xff] %vm305, %v8128
      %8161 = vst.msk [vmem:[#allocation4 + $0x28] sm:$0xff] %vm305, %v8129
      %8162 = vst.msk [vmem:[#allocation4 + $0x30] sm:$0xff] %vm305, %v8130
      %8163 = vst.msk [vmem:[#allocation4 + $0x38] sm:$0xff] %vm305, %v8131
      %8164 = vst.msk [vmem:[#allocation4 + $0x40] sm:$0xff] %vm305, %v8132
      %8165 = vst.msk [vmem:[#allocation4 + $0x48] sm:$0xff] %vm305, %v8133
      %8166 = vst.msk [vmem:[#allocation4 + $0x50] sm:$0xff] %vm305, %v8134
      %8167 = vst.msk [vmem:[#allocation4 + $0x58] sm:$0xff] %vm305, %v8135
      %8168 = vst.msk [vmem:[#allocation4 + $0x60] sm:$0xff] %vm305, %v8136
      %8169 = vst.msk [vmem:[#allocation4 + $0x68] sm:$0xff] %vm305, %v8137
      %8170 = vst.msk [vmem:[#allocation4 + $0x70] sm:$0xff] %vm305, %v8138
      %8171 = vst.msk [vmem:[#allocation4 + $0x78] sm:$0xff] %vm305, %v8139
      %8172 = vst.msk [vmem:[#allocation4 + $0x80] sm:$0xff] %vm305, %v8140
      %8173 = vst.msk [vmem:[#allocation4 + $0x88] sm:$0xff] %vm305, %v8141
      %8174 = vst.msk [vmem:[#allocation4 + $0x90] sm:$0xff] %vm305, %v8142
      %8175 = vst.msk [vmem:[#allocation4 + $0x98] sm:$0xff] %vm305, %v8143
      %8176 = vst.msk [vmem:[#allocation4 + $0xa0] sm:$0xff] %vm305, %v8144
      %8177 = vst.msk [vmem:[#allocation4 + $0xa8] sm:$0xff] %vm305, %v8145
      %8178 = vst.msk [vmem:[#allocation4 + $0xb0] sm:$0xff] %vm305, %v8146
      %8179 = vst.msk [vmem:[#allocation4 + $0xb8] sm:$0xff] %vm305, %v8147
      %8180 = vst.msk [vmem:[#allocation4 + $0xc0] sm:$0xff] %vm305, %v8148
      %8181 = vst.msk [vmem:[#allocation4 + $0xc8] sm:$0xff] %vm305, %v8149
      %8182 = vst.msk [vmem:[#allocation4 + $0xd0] sm:$0xff] %vm305, %v8150
      %8183 = vst.msk [vmem:[#allocation4 + $0xd8] sm:$0xff] %vm305, %v8151
      %8184 = vst.msk [vmem:[#allocation4 + $0xe0] sm:$0xff] %vm305, %v8152
      %8185 = vst.msk [vmem:[#allocation4 + $0xe8] sm:$0xff] %vm305, %v8153
      %8186 = vst.msk [vmem:[#allocation4 + $0xf0] sm:$0xff] %vm305, %v8154
      %8187 = vst.msk [vmem:[#allocation4 + $0xf8] sm:$0xff] %vm305, %v8155
      %v8188 = vld [vmem:[%s7285 + $0x9] sm:$0xff]
      %v8189 = vld [vmem:[%s7285 + $0x11] sm:$0xff]
      %v8190 = vld [vmem:[%s7285 + $0x29] sm:$0xff]
      %v8191 = vld [vmem:[%s7285 + $0x31] sm:$0xff]
      %v8192 = vld [vmem:[%s7285 + $0x49] sm:$0xff]
      %v8193 = vld [vmem:[%s7285 + $0x51] sm:$0xff]
      %v8194 = vld [vmem:[%s7285 + $0x69] sm:$0xff]
      %v8195 = vld [vmem:[%s7285 + $0x71] sm:$0xff]
      %v8196 = vld [vmem:[%s7285 + $0x89] sm:$0xff]
      %v8197 = vld [vmem:[%s7285 + $0x91] sm:$0xff]
      %v8198 = vld [vmem:[%s7285 + $0xa9] sm:$0xff]
      %v8199 = vld [vmem:[%s7285 + $0xb1] sm:$0xff]
      %v8200 = vld [vmem:[%s7285 + $0xc9] sm:$0xff]
      %v8201 = vld [vmem:[%s7285 + $0xd1] sm:$0xff]
      %v8202 = vld [vmem:[%s7285 + $0xe9] sm:$0xff]
      %v8203 = vld [vmem:[%s7285 + $0xf1] sm:$0xff]
      %v8204 = vld [vmem:[%s7285 + $0x109] sm:$0xff]
      %v8205 = vld [vmem:[%s7285 + $0x111] sm:$0xff]
      %v8206 = vld [vmem:[%s7285 + $0x129] sm:$0xff]
      %v8207 = vld [vmem:[%s7285 + $0x131] sm:$0xff]
      %v8208 = vld [vmem:[%s7285 + $0x149] sm:$0xff]
      %v8209 = vld [vmem:[%s7285 + $0x151] sm:$0xff]
      %v8210 = vld [vmem:[%s7285 + $0x169] sm:$0xff]
      %v8211 = vld [vmem:[%s7285 + $0x171] sm:$0xff]
      %v8212 = vld [vmem:[%s7285 + $0x189] sm:$0xff]
      %v8213 = vld [vmem:[%s7285 + $0x191] sm:$0xff]
      %v8214 = vld [vmem:[%s7285 + $0x1a9] sm:$0xff]
      %v8215 = vld [vmem:[%s7285 + $0x1b1] sm:$0xff]
      %v8216 = vld [vmem:[%s7285 + $0x1c9] sm:$0xff]
      %v8217 = vld [vmem:[%s7285 + $0x1d1] sm:$0xff]
      %v8218 = vld [vmem:[%s7285 + $0x1e9] sm:$0xff]
      %v8219 = vld [vmem:[%s7285 + $0x1f1] sm:$0xff]
      %v8220 = vld [vmem:[#allocation4] sm:$0xff]
      %v8221 = vld [vmem:[#allocation4 + $0x8] sm:$0xff]
      %v8222 = vld [vmem:[#allocation4 + $0x10] sm:$0xff]
      %v8223 = vld [vmem:[#allocation4 + $0x18] sm:$0xff]
      %v8224 = vld [vmem:[#allocation4 + $0x20] sm:$0xff]
      %v8225 = vld [vmem:[#allocation4 + $0x28] sm:$0xff]
      %v8226 = vld [vmem:[#allocation4 + $0x30] sm:$0xff]
      %v8227 = vld [vmem:[#allocation4 + $0x38] sm:$0xff]
      %v8228 = vld [vmem:[#allocation4 + $0x40] sm:$0xff]
      %v8229 = vld [vmem:[#allocation4 + $0x48] sm:$0xff]
      %v8230 = vld [vmem:[#allocation4 + $0x50] sm:$0xff]
      %v8231 = vld [vmem:[#allocation4 + $0x58] sm:$0xff]
      %v8232 = vld [vmem:[#allocation4 + $0x60] sm:$0xff]
      %v8233 = vld [vmem:[#allocation4 + $0x68] sm:$0xff]
      %v8234 = vld [vmem:[#allocation4 + $0x70] sm:$0xff]
      %v8235 = vld [vmem:[#allocation4 + $0x78] sm:$0xff]
      %v8236 = vld [vmem:[#allocation4 + $0x80] sm:$0xff]
      %v8237 = vld [vmem:[#allocation4 + $0x88] sm:$0xff]
      %v8238 = vld [vmem:[#allocation4 + $0x90] sm:$0xff]
      %v8239 = vld [vmem:[#allocation4 + $0x98] sm:$0xff]
      %v8240 = vld [vmem:[#allocation4 + $0xa0] sm:$0xff]
      %v8241 = vld [vmem:[#allocation4 + $0xa8] sm:$0xff]
      %v8242 = vld [vmem:[#allocation4 + $0xb0] sm:$0xff]
      %v8243 = vld [vmem:[#allocation4 + $0xb8] sm:$0xff]
      %v8244 = vld [vmem:[#allocation4 + $0xc0] sm:$0xff]
      %v8245 = vld [vmem:[#allocation4 + $0xc8] sm:$0xff]
      %v8246 = vld [vmem:[#allocation4 + $0xd0] sm:$0xff]
      %v8247 = vld [vmem:[#allocation4 + $0xd8] sm:$0xff]
      %v8248 = vld [vmem:[#allocation4 + $0xe0] sm:$0xff]
      %v8249 = vld [vmem:[#allocation4 + $0xe8] sm:$0xff]
      %v8250 = vld [vmem:[#allocation4 + $0xf0] sm:$0xff]
      %v8251 = vld [vmem:[#allocation4 + $0xf8] sm:$0xff]
      %s8252 = scalar_lea.vmem %s4, 64
      %v8253 = vld [vmem:[%s8252] sm:$0xff]
      %v8255 = vsel %vm305, %v8188, 0
      %v8258 = vsel %vm305, %v8189, 0
      %v8261 = vsel %vm305, %v8190, 0
      %v8264 = vsel %vm305, %v8191, 0
      %v8267 = vsel %vm305, %v8192, 0
      %v8270 = vsel %vm305, %v8193, 0
      %v8273 = vsel %vm305, %v8194, 0
      %v8276 = vsel %vm305, %v8195, 0
      %v8279 = vsel %vm305, %v8196, 0
      %v8282 = vsel %vm305, %v8197, 0
      %v8285 = vsel %vm305, %v8198, 0
      %v8288 = vsel %vm305, %v8199, 0
      %v8291 = vsel %vm305, %v8200, 0
      %v8294 = vsel %vm305, %v8201, 0
      %v8297 = vsel %vm305, %v8202, 0
      %v8300 = vsel %vm305, %v8203, 0
      %v8303 = vsel %vm305, %v8204, 0
      %v8306 = vsel %vm305, %v8205, 0
      %v8309 = vsel %vm305, %v8206, 0
      %v8312 = vsel %vm305, %v8207, 0
      %v8315 = vsel %vm305, %v8208, 0
      %v8318 = vsel %vm305, %v8209, 0
      %v8321 = vsel %vm305, %v8210, 0
      %v8324 = vsel %vm305, %v8211, 0
      %v8327 = vsel %vm305, %v8212, 0
      %v8330 = vsel %vm305, %v8213, 0
      %v8333 = vsel %vm305, %v8214, 0
      %v8336 = vsel %vm305, %v8215, 0
      %v8339 = vsel %vm305, %v8216, 0
      %v8342 = vsel %vm305, %v8217, 0
      %v8345 = vsel %vm305, %v8218, 0
      %v8348 = vsel %vm305, %v8219, 0
      %8350 = vmatprep.subr.mxu0 0.0
      %8351 = vmatpush1.msra.mxu0 %v8253
      %8352 = vmatprep.subr.mxu0 0.0
      %8353 = vmatpush1.msra.mxu0 0.0
      %8354 = vmatprep.subr.mxu0 0.0
      %8355 = vmatpush1.msra.mxu0 0.0
      %8356 = vmatprep.subr.mxu0 0.0
      %8357 = vmatpush1.msra.mxu0 0.0
      %8358 = vmatprep.subr.mxu0 0.0
      %8359 = vmatpush1.msra.mxu0 0.0
      %8360 = vmatprep.subr.mxu0 0.0
      %8361 = vmatpush1.msra.mxu0 0.0
      %8362 = vmatprep.subr.mxu0 0.0
      %8363 = vmatpush1.msra.mxu0 0.0
      %8364 = vmatprep.subr.mxu0 0.0
      %8365 = vmatpush1.msra.mxu0 0.0
      %8366 = vmatprep.subr.mxu0 0.0
      %8367 = vmatpush1.msra.mxu0 0.0
      %8368 = vmatprep.subr.mxu0 0.0
      %8369 = vmatpush1.msra.mxu0 0.0
      %8370 = vmatprep.subr.mxu0 0.0
      %8371 = vmatpush1.msra.mxu0 0.0
      %8372 = vmatprep.subr.mxu0 0.0
      %8373 = vmatpush1.msra.mxu0 0.0
      %8374 = vmatprep.subr.mxu0 0.0
      %8375 = vmatpush1.msra.mxu0 0.0
      %8376 = vmatprep.subr.mxu0 0.0
      %8377 = vmatpush1.msra.mxu0 0.0
      %8378 = vmatprep.subr.mxu0 0.0
      %8379 = vmatpush1.msra.mxu0 0.0
      %8380 = vmatprep.subr.mxu0 0.0
      %8381 = vmatpush1.msra.mxu0 0.0
      %8382 = vmatprep.subr.mxu0 0.0
      %8383 = vmatpush1.msra.mxu0 0.0
      %8384 = vmatprep.subr.mxu0 0.0
      %8385 = vmatpush1.msra.mxu0 0.0
      %8386 = vmatprep.subr.mxu0 0.0
      %8387 = vmatpush1.msra.mxu0 0.0
      %8388 = vmatprep.subr.mxu0 0.0
      %8389 = vmatpush1.msra.mxu0 0.0
      %8390 = vmatprep.subr.mxu0 0.0
      %8391 = vmatpush1.msra.mxu0 0.0
      %8392 = vmatprep.subr.mxu0 0.0
      %8393 = vmatpush1.msra.mxu0 0.0
      %8394 = vmatprep.subr.mxu0 0.0
      %8395 = vmatpush1.msra.mxu0 0.0
      %8396 = vmatprep.subr.mxu0 0.0
      %8397 = vmatpush1.msra.mxu0 0.0
      %8398 = vmatprep.subr.mxu0 0.0
      %8399 = vmatpush1.msra.mxu0 0.0
      %8400 = vmatprep.subr.mxu0 0.0
      %8401 = vmatpush1.msra.mxu0 0.0
      %8402 = vmatprep.subr.mxu0 0.0
      %8403 = vmatpush1.msra.mxu0 0.0
      %8404 = vmatprep.subr.mxu0 0.0
      %8405 = vmatpush1.msra.mxu0 0.0
      %8406 = vmatprep.subr.mxu0 0.0
      %8407 = vmatpush1.msra.mxu0 0.0
      %8408 = vmatprep.subr.mxu0 0.0
      %8409 = vmatpush1.msra.mxu0 0.0
      %8410 = vmatprep.subr.mxu0 0.0
      %8411 = vmatpush1.msra.mxu0 0.0
      %8412 = vmatprep.subr.mxu0 0.0
      %8413 = vmatpush1.msra.mxu0 0.0
      %8414 = vmatprep.mubr.f32.mxu0 0.0
      %8415 = vmatmul.mubr.f32.gmra.mrb[0].mxu0 %v8255
      %v8416 = vpop.f32.mrb[0].mxu0
      %v8417 = vadd.f32 0.0, %v8416
      %v8418 = vpop.f32.mrb[0].mxu0
      %8419 = vmatprep.mubr.f32.mxu0 0.0
      %8420 = vmatmul.mubr.f32.gmra.mrb[0].mxu0 %v8258
      %v8421 = vpop.f32.mrb[0].mxu0
      %v8422 = vadd.f32 0.0, %v8421
      %v8423 = vpop.f32.mrb[0].mxu0
      %8424 = vmatprep.mubr.f32.mxu0 0.0
      %8425 = vmatmul.mubr.f32.gmra.mrb[0].mxu0 %v8261
      %v8426 = vpop.f32.mrb[0].mxu0
      %v8427 = vadd.f32 0.0, %v8426
      %v8428 = vpop.f32.mrb[0].mxu0
      %8429 = vmatprep.mubr.f32.mxu0 0.0
      %8430 = vmatmul.mubr.f32.gmra.mrb[0].mxu0 %v8264
      %v8431 = vpop.f32.mrb[0].mxu0
      %v8432 = vadd.f32 0.0, %v8431
      %v8433 = vpop.f32.mrb[0].mxu0
      %8434 = vmatprep.mubr.f32.mxu0 0.0
      %8435 = vmatmul.mubr.f32.gmra.mrb[0].mxu0 %v8267
      %v8436 = vpop.f32.mrb[0].mxu0
      %v8437 = vadd.f32 0.0, %v8436
      %v8438 = vpop.f32.mrb[0].mxu0
      %8439 = vmatprep.mubr.f32.mxu0 0.0
      %8440 = vmatmul.mubr.f32.gmra.mrb[0].mxu0 %v8270
      %v8441 = vpop.f32.mrb[0].mxu0
      %v8442 = vadd.f32 0.0, %v8441
      %v8443 = vpop.f32.mrb[0].mxu0
      %8444 = vmatprep.mubr.f32.mxu0 0.0
      %8445 = vmatmul.mubr.f32.gmra.mrb[0].mxu0 %v8273
      %v8446 = vpop.f32.mrb[0].mxu0
      %v8447 = vadd.f32 0.0, %v8446
      %v8448 = vpop.f32.mrb[0].mxu0
      %8449 = vmatprep.mubr.f32.mxu0 0.0
      %8450 = vmatmul.mubr.f32.gmra.mrb[0].mxu0 %v8276
      %v8451 = vpop.f32.mrb[0].mxu0
      %v8452 = vadd.f32 0.0, %v8451
      %v8453 = vpop.f32.mrb[0].mxu0
      %8454 = vmatprep.mubr.f32.mxu0 0.0
      %8455 = vmatmul.mubr.f32.gmra.mrb[0].mxu0 %v8279
      %v8456 = vpop.f32.mrb[0].mxu0
      %v8457 = vadd.f32 0.0, %v8456
      %v8458 = vpop.f32.mrb[0].mxu0
      %8459 = vmatprep.mubr.f32.mxu0 0.0
      %8460 = vmatmul.mubr.f32.gmra.mrb[0].mxu0 %v8282
      %v8461 = vpop.f32.mrb[0].mxu0
      %v8462 = vadd.f32 0.0, %v8461
      %v8463 = vpop.f32.mrb[0].mxu0
      %8464 = vmatprep.mubr.f32.mxu0 0.0
      %8465 = vmatmul.mubr.f32.gmra.mrb[0].mxu0 %v8285
      %v8466 = vpop.f32.mrb[0].mxu0
      %v8467 = vadd.f32 0.0, %v8466
      %v8468 = vpop.f32.mrb[0].mxu0
      %8469 = vmatprep.mubr.f32.mxu0 0.0
      %8470 = vmatmul.mubr.f32.gmra.mrb[0].mxu0 %v8288
      %v8471 = vpop.f32.mrb[0].mxu0
      %v8472 = vadd.f32 0.0, %v8471
      %v8473 = vpop.f32.mrb[0].mxu0
      %8474 = vmatprep.mubr.f32.mxu0 0.0
      %8475 = vmatmul.mubr.f32.gmra.mrb[0].mxu0 %v8291
      %v8476 = vpop.f32.mrb[0].mxu0
      %v8477 = vadd.f32 0.0, %v8476
      %v8478 = vpop.f32.mrb[0].mxu0
      %8479 = vmatprep.mubr.f32.mxu0 0.0
      %8480 = vmatmul.mubr.f32.gmra.mrb[0].mxu0 %v8294
      %v8481 = vpop.f32.mrb[0].mxu0
      %v8482 = vadd.f32 0.0, %v8481
      %v8483 = vpop.f32.mrb[0].mxu0
      %8484 = vmatprep.mubr.f32.mxu0 0.0
      %8485 = vmatmul.mubr.f32.gmra.mrb[0].mxu0 %v8297
      %v8486 = vpop.f32.mrb[0].mxu0
      %v8487 = vadd.f32 0.0, %v8486
      %v8488 = vpop.f32.mrb[0].mxu0
      %8489 = vmatprep.mubr.f32.mxu0 0.0
      %8490 = vmatmul.mubr.f32.gmra.mrb[0].mxu0 %v8300
      %v8491 = vpop.f32.mrb[0].mxu0
      %v8492 = vadd.f32 0.0, %v8491
      %v8493 = vpop.f32.mrb[0].mxu0
      %8494 = vmatprep.mubr.f32.mxu0 0.0
      %8495 = vmatmul.mubr.f32.gmra.mrb[0].mxu0 %v8303
      %v8496 = vpop.f32.mrb[0].mxu0
      %v8497 = vadd.f32 0.0, %v8496
      %v8498 = vpop.f32.mrb[0].mxu0
      %8499 = vmatprep.mubr.f32.mxu0 0.0
      %8500 = vmatmul.mubr.f32.gmra.mrb[0].mxu0 %v8306
      %v8501 = vpop.f32.mrb[0].mxu0
      %v8502 = vadd.f32 0.0, %v8501
      %v8503 = vpop.f32.mrb[0].mxu0
      %8504 = vmatprep.mubr.f32.mxu0 0.0
      %8505 = vmatmul.mubr.f32.gmra.mrb[0].mxu0 %v8309
      %v8506 = vpop.f32.mrb[0].mxu0
      %v8507 = vadd.f32 0.0, %v8506
      %v8508 = vpop.f32.mrb[0].mxu0
      %8509 = vmatprep.mubr.f32.mxu0 0.0
      %8510 = vmatmul.mubr.f32.gmra.mrb[0].mxu0 %v8312
      %v8511 = vpop.f32.mrb[0].mxu0
      %v8512 = vadd.f32 0.0, %v8511
      %v8513 = vpop.f32.mrb[0].mxu0
      %8514 = vmatprep.mubr.f32.mxu0 0.0
      %8515 = vmatmul.mubr.f32.gmra.mrb[0].mxu0 %v8315
      %v8516 = vpop.f32.mrb[0].mxu0
      %v8517 = vadd.f32 0.0, %v8516
      %v8518 = vpop.f32.mrb[0].mxu0
      %8519 = vmatprep.mubr.f32.mxu0 0.0
      %8520 = vmatmul.mubr.f32.gmra.mrb[0].mxu0 %v8318
      %v8521 = vpop.f32.mrb[0].mxu0
      %v8522 = vadd.f32 0.0, %v8521
      %v8523 = vpop.f32.mrb[0].mxu0
      %8524 = vmatprep.mubr.f32.mxu0 0.0
      %8525 = vmatmul.mubr.f32.gmra.mrb[0].mxu0 %v8321
      %v8526 = vpop.f32.mrb[0].mxu0
      %v8527 = vadd.f32 0.0, %v8526
      %v8528 = vpop.f32.mrb[0].mxu0
      %8529 = vmatprep.mubr.f32.mxu0 0.0
      %8530 = vmatmul.mubr.f32.gmra.mrb[0].mxu0 %v8324
      %v8531 = vpop.f32.mrb[0].mxu0
      %v8532 = vadd.f32 0.0, %v8531
      %v8533 = vpop.f32.mrb[0].mxu0
      %8534 = vmatprep.mubr.f32.mxu0 0.0
      %8535 = vmatmul.mubr.f32.gmra.mrb[0].mxu0 %v8327
      %v8536 = vpop.f32.mrb[0].mxu0
      %v8537 = vadd.f32 0.0, %v8536
      %v8538 = vpop.f32.mrb[0].mxu0
      %8539 = vmatprep.mubr.f32.mxu0 0.0
      %8540 = vmatmul.mubr.f32.gmra.mrb[0].mxu0 %v8330
      %v8541 = vpop.f32.mrb[0].mxu0
      %v8542 = vadd.f32 0.0, %v8541
      %v8543 = vpop.f32.mrb[0].mxu0
      %8544 = vmatprep.mubr.f32.mxu0 0.0
      %8545 = vmatmul.mubr.f32.gmra.mrb[0].mxu0 %v8333
      %v8546 = vpop.f32.mrb[0].mxu0
      %v8547 = vadd.f32 0.0, %v8546
      %v8548 = vpop.f32.mrb[0].mxu0
      %8549 = vmatprep.mubr.f32.mxu0 0.0
      %8550 = vmatmul.mubr.f32.gmra.mrb[0].mxu0 %v8336
      %v8551 = vpop.f32.mrb[0].mxu0
      %v8552 = vadd.f32 0.0, %v8551
      %v8553 = vpop.f32.mrb[0].mxu0
      %8554 = vmatprep.mubr.f32.mxu0 0.0
      %8555 = vmatmul.mubr.f32.gmra.mrb[0].mxu0 %v8339
      %v8556 = vpop.f32.mrb[0].mxu0
      %v8557 = vadd.f32 0.0, %v8556
      %v8558 = vpop.f32.mrb[0].mxu0
      %8559 = vmatprep.mubr.f32.mxu0 0.0
      %8560 = vmatmul.mubr.f32.gmra.mrb[0].mxu0 %v8342
      %v8561 = vpop.f32.mrb[0].mxu0
      %v8562 = vadd.f32 0.0, %v8561
      %v8563 = vpop.f32.mrb[0].mxu0
      %8564 = vmatprep.mubr.f32.mxu0 0.0
      %8565 = vmatmul.mubr.f32.gmra.mrb[0].mxu0 %v8345
      %v8566 = vpop.f32.mrb[0].mxu0
      %v8567 = vadd.f32 0.0, %v8566
      %v8568 = vpop.f32.mrb[0].mxu0
      %8569 = vmatprep.mubr.f32.mxu0 0.0
      %8570 = vmatmul.mubr.f32.gmra.mrb[0].mxu0 %v8348
      %v8571 = vpop.f32.mrb[0].mxu0
      %v8572 = vadd.f32 0.0, %v8571
      %v8573 = vpop.f32.mrb[0].mxu0
      %8574 = vdwg.mxu0
      %v8575 = vadd.f32 %v8220, %v8417
      %v8576 = vadd.f32 %v8221, %v8422
      %v8577 = vadd.f32 %v8222, %v8427
      %v8578 = vadd.f32 %v8223, %v8432
      %v8579 = vadd.f32 %v8224, %v8437
      %v8580 = vadd.f32 %v8225, %v8442
      %v8581 = vadd.f32 %v8226, %v8447
      %v8582 = vadd.f32 %v8227, %v8452
      %v8583 = vadd.f32 %v8228, %v8457
      %v8584 = vadd.f32 %v8229, %v8462
      %v8585 = vadd.f32 %v8230, %v8467
      %v8586 = vadd.f32 %v8231, %v8472
      %v8587 = vadd.f32 %v8232, %v8477
      %v8588 = vadd.f32 %v8233, %v8482
      %v8589 = vadd.f32 %v8234, %v8487
      %v8590 = vadd.f32 %v8235, %v8492
      %v8591 = vadd.f32 %v8236, %v8497
      %v8592 = vadd.f32 %v8237, %v8502
      %v8593 = vadd.f32 %v8238, %v8507
      %v8594 = vadd.f32 %v8239, %v8512
      %v8595 = vadd.f32 %v8240, %v8517
      %v8596 = vadd.f32 %v8241, %v8522
      %v8597 = vadd.f32 %v8242, %v8527
      %v8598 = vadd.f32 %v8243, %v8532
      %v8599 = vadd.f32 %v8244, %v8537
      %v8600 = vadd.f32 %v8245, %v8542
      %v8601 = vadd.f32 %v8246, %v8547
      %v8602 = vadd.f32 %v8247, %v8552
      %v8603 = vadd.f32 %v8248, %v8557
      %v8604 = vadd.f32 %v8249, %v8562
      %v8605 = vadd.f32 %v8250, %v8567
      %v8606 = vadd.f32 %v8251, %v8572
      %8607 = vst.msk [vmem:[#allocation4] sm:$0xff] %vm305, %v8575
      %8608 = vst.msk [vmem:[#allocation4 + $0x8] sm:$0xff] %vm305, %v8576
      %8609 = vst.msk [vmem:[#allocation4 + $0x10] sm:$0xff] %vm305, %v8577
      %8610 = vst.msk [vmem:[#allocation4 + $0x18] sm:$0xff] %vm305, %v8578
      %8611 = vst.msk [vmem:[#allocation4 + $0x20] sm:$0xff] %vm305, %v8579
      %8612 = vst.msk [vmem:[#allocation4 + $0x28] sm:$0xff] %vm305, %v8580
      %8613 = vst.msk [vmem:[#allocation4 + $0x30] sm:$0xff] %vm305, %v8581
      %8614 = vst.msk [vmem:[#allocation4 + $0x38] sm:$0xff] %vm305, %v8582
      %8615 = vst.msk [vmem:[#allocation4 + $0x40] sm:$0xff] %vm305, %v8583
      %8616 = vst.msk [vmem:[#allocation4 + $0x48] sm:$0xff] %vm305, %v8584
      %8617 = vst.msk [vmem:[#allocation4 + $0x50] sm:$0xff] %vm305, %v8585
      %8618 = vst.msk [vmem:[#allocation4 + $0x58] sm:$0xff] %vm305, %v8586
      %8619 = vst.msk [vmem:[#allocation4 + $0x60] sm:$0xff] %vm305, %v8587
      %8620 = vst.msk [vmem:[#allocation4 + $0x68] sm:$0xff] %vm305, %v8588
      %8621 = vst.msk [vmem:[#allocation4 + $0x70] sm:$0xff] %vm305, %v8589
      %8622 = vst.msk [vmem:[#allocation4 + $0x78] sm:$0xff] %vm305, %v8590
      %8623 = vst.msk [vmem:[#allocation4 + $0x80] sm:$0xff] %vm305, %v8591
      %8624 = vst.msk [vmem:[#allocation4 + $0x88] sm:$0xff] %vm305, %v8592
      %8625 = vst.msk [vmem:[#allocation4 + $0x90] sm:$0xff] %vm305, %v8593
      %8626 = vst.msk [vmem:[#allocation4 + $0x98] sm:$0xff] %vm305, %v8594
      %8627 = vst.msk [vmem:[#allocation4 + $0xa0] sm:$0xff] %vm305, %v8595
      %8628 = vst.msk [vmem:[#allocation4 + $0xa8] sm:$0xff] %vm305, %v8596
      %8629 = vst.msk [vmem:[#allocation4 + $0xb0] sm:$0xff] %vm305, %v8597
      %8630 = vst.msk [vmem:[#allocation4 + $0xb8] sm:$0xff] %vm305, %v8598
      %8631 = vst.msk [vmem:[#allocation4 + $0xc0] sm:$0xff] %vm305, %v8599
      %8632 = vst.msk [vmem:[#allocation4 + $0xc8] sm:$0xff] %vm305, %v8600
      %8633 = vst.msk [vmem:[#allocation4 + $0xd0] sm:$0xff] %vm305, %v8601
      %8634 = vst.msk [vmem:[#allocation4 + $0xd8] sm:$0xff] %vm305, %v8602
      %8635 = vst.msk [vmem:[#allocation4 + $0xe0] sm:$0xff] %vm305, %v8603
      %8636 = vst.msk [vmem:[#allocation4 + $0xe8] sm:$0xff] %vm305, %v8604
      %8637 = vst.msk [vmem:[#allocation4 + $0xf0] sm:$0xff] %vm305, %v8605
      %8638 = vst.msk [vmem:[#allocation4 + $0xf8] sm:$0xff] %vm305, %v8606
      %v8639 = vld [vmem:[#allocation4] sm:$0xff]
      %v8640 = vld [vmem:[#allocation4 + $0x8] sm:$0xff]
      %v8641 = vld [vmem:[#allocation4 + $0x10] sm:$0xff]
      %v8642 = vld [vmem:[#allocation4 + $0x18] sm:$0xff]
      %v8643 = vld [vmem:[#allocation4 + $0x20] sm:$0xff]
      %v8644 = vld [vmem:[#allocation4 + $0x28] sm:$0xff]
      %v8645 = vld [vmem:[#allocation4 + $0x30] sm:$0xff]
      %v8646 = vld [vmem:[#allocation4 + $0x38] sm:$0xff]
      %v8647 = vld [vmem:[#allocation4 + $0x40] sm:$0xff]
      %v8648 = vld [vmem:[#allocation4 + $0x48] sm:$0xff]
      %v8649 = vld [vmem:[#allocation4 + $0x50] sm:$0xff]
      %v8650 = vld [vmem:[#allocation4 + $0x58] sm:$0xff]
      %v8651 = vld [vmem:[#allocation4 + $0x60] sm:$0xff]
      %v8652 = vld [vmem:[#allocation4 + $0x68] sm:$0xff]
      %v8653 = vld [vmem:[#allocation4 + $0x70] sm:$0xff]
      %v8654 = vld [vmem:[#allocation4 + $0x78] sm:$0xff]
      %v8655 = vld [vmem:[#allocation4 + $0x80] sm:$0xff]
      %v8656 = vld [vmem:[#allocation4 + $0x88] sm:$0xff]
      %v8657 = vld [vmem:[#allocation4 + $0x90] sm:$0xff]
      %v8658 = vld [vmem:[#allocation4 + $0x98] sm:$0xff]
      %v8659 = vld [vmem:[#allocation4 + $0xa0] sm:$0xff]
      %v8660 = vld [vmem:[#allocation4 + $0xa8] sm:$0xff]
      %v8661 = vld [vmem:[#allocation4 + $0xb0] sm:$0xff]
      %v8662 = vld [vmem:[#allocation4 + $0xb8] sm:$0xff]
      %v8663 = vld [vmem:[#allocation4 + $0xc0] sm:$0xff]
      %v8664 = vld [vmem:[#allocation4 + $0xc8] sm:$0xff]
      %v8665 = vld [vmem:[#allocation4 + $0xd0] sm:$0xff]
      %v8666 = vld [vmem:[#allocation4 + $0xd8] sm:$0xff]
      %v8667 = vld [vmem:[#allocation4 + $0xe0] sm:$0xff]
      %v8668 = vld [vmem:[#allocation4 + $0xe8] sm:$0xff]
      %v8669 = vld [vmem:[#allocation4 + $0xf0] sm:$0xff]
      %v8670 = vld [vmem:[#allocation4 + $0xf8] sm:$0xff]
      %8671 = vst.msk [vmem:[%s271] sm:$0xff] %vm305, %v8639
      %8672 = vst.msk [vmem:[%s271 + $0x8] sm:$0xff] %vm305, %v8640
      %8673 = vst.msk [vmem:[%s271 + $0x10] sm:$0xff] %vm305, %v8641
      %8674 = vst.msk [vmem:[%s271 + $0x18] sm:$0xff] %vm305, %v8642
      %8675 = vst.msk [vmem:[%s271 + $0x20] sm:$0xff] %vm305, %v8643
      %8676 = vst.msk [vmem:[%s271 + $0x28] sm:$0xff] %vm305, %v8644
      %8677 = vst.msk [vmem:[%s271 + $0x30] sm:$0xff] %vm305, %v8645
      %8678 = vst.msk [vmem:[%s271 + $0x38] sm:$0xff] %vm305, %v8646
      %8679 = vst.msk [vmem:[%s271 + $0x40] sm:$0xff] %vm305, %v8647
      %8680 = vst.msk [vmem:[%s271 + $0x48] sm:$0xff] %vm305, %v8648
      %8681 = vst.msk [vmem:[%s271 + $0x50] sm:$0xff] %vm305, %v8649
      %8682 = vst.msk [vmem:[%s271 + $0x58] sm:$0xff] %vm305, %v8650
      %8683 = vst.msk [vmem:[%s271 + $0x60] sm:$0xff] %vm305, %v8651
      %8684 = vst.msk [vmem:[%s271 + $0x68] sm:$0xff] %vm305, %v8652
      %8685 = vst.msk [vmem:[%s271 + $0x70] sm:$0xff] %vm305, %v8653
      %8686 = vst.msk [vmem:[%s271 + $0x78] sm:$0xff] %vm305, %v8654
      %8687 = vst.msk [vmem:[%s271 + $0x80] sm:$0xff] %vm305, %v8655
      %8688 = vst.msk [vmem:[%s271 + $0x88] sm:$0xff] %vm305, %v8656
      %8689 = vst.msk [vmem:[%s271 + $0x90] sm:$0xff] %vm305, %v8657
      %8690 = vst.msk [vmem:[%s271 + $0x98] sm:$0xff] %vm305, %v8658
      %8691 = vst.msk [vmem:[%s271 + $0xa0] sm:$0xff] %vm305, %v8659
      %8692 = vst.msk [vmem:[%s271 + $0xa8] sm:$0xff] %vm305, %v8660
      %8693 = vst.msk [vmem:[%s271 + $0xb0] sm:$0xff] %vm305, %v8661
      %8694 = vst.msk [vmem:[%s271 + $0xb8] sm:$0xff] %vm305, %v8662
      %8695 = vst.msk [vmem:[%s271 + $0xc0] sm:$0xff] %vm305, %v8663
      %8696 = vst.msk [vmem:[%s271 + $0xc8] sm:$0xff] %vm305, %v8664
      %8697 = vst.msk [vmem:[%s271 + $0xd0] sm:$0xff] %vm305, %v8665
      %8698 = vst.msk [vmem:[%s271 + $0xd8] sm:$0xff] %vm305, %v8666
      %8699 = vst.msk [vmem:[%s271 + $0xe0] sm:$0xff] %vm305, %v8667
      %8700 = vst.msk [vmem:[%s271 + $0xe8] sm:$0xff] %vm305, %v8668
      %8701 = vst.msk [vmem:[%s271 + $0xf0] sm:$0xff] %vm305, %v8669
      %8702 = vst.msk [vmem:[%s271 + $0xf8] sm:$0xff] %vm305, %v8670
      %p8703 = scmp.lt.s32.totalorder %s17, 1
      %s8704 = scalar_select %p8703, %s17, 1
      %s8705 = smul.addr %s8704, 32
      %s8706 = smul.addr %s8705, 8
      %s8707 = scalar_lea.vmem %s6, %s8706
      // Predicated region
      $region45: #{basic_block_forward.1} parent=43 // pred_check
        %p8708 = pneg %p171
      $region46: #{basic_block_forward.1} parent=43 // pred_check_branch
        %8710 = sbr.rel (%p8708) target = $region48
      $region47: #{basic_block_forward.1} parent=43 // pred_region
        _
      $region48: #{basic_block_forward.1} parent=43 // pred_fallthru
        _
    $region44: #{basic_block_forward.1} parent=5 // pred_fallthru
      _
    %p8711 = scmp.le.s32.totalorder 2, %s12
    // Predicated region
    $region49: #{basic_block_forward.1} parent=5 // pred_check
      %p8712 = pneg %p8711
    $region50: #{basic_block_forward.1} parent=5 // pred_check_branch
      %8714 = sbr.rel (%p8712) target = $region52
    $region51: #{basic_block_forward.1} parent=5 // pred_region
      %s8715 = ssub.s32 %s12, 2
      // Predicated region
      $region53: #{basic_block_forward.1} parent=51 // pred_check
        %p8716 = pneg %p177
      $region54: #{basic_block_forward.1} parent=51 // pred_check_branch
        %8718 = sbr.rel (%p8716) target = $region56
      $region55: #{basic_block_forward.1} parent=51 // pred_region
        %p8719 = scmp.lt.s32.totalorder %s18, 1
        %s8720 = scalar_select %p8719, %s18, 1
        %s8721 = smul.addr %s8720, 32
        %s8722 = smul.addr %s8721, 8
        %s8723 = scalar_lea.vmem %s6, %s8722
      $region56: #{basic_block_forward.1} parent=51 // pred_fallthru
        _
    $region52: #{basic_block_forward.1} parent=5 // pred_fallthru
      _
  $region6: #{basic_block_forward.1} parent=0 // loop_footer
    %s16 = sadd.s32 1, %s12
  $region7: #{basic_block_forward.1} parent=0 // loop_footer_branch
    %11 = sbr.rel target = $region3
  $region8: #{basic_block_forward.1} parent=0 // loop_exit
    _

</llo_original>
